<compile_context>
chip_gen: v7x
topology: tpu7x:2x2x1
jax: 0.10.0
libtpu: 0.0.40
codegen_flags: <defaults>
</compile_context>

<pallas_src>
from itertools import cycle, islice

import jax
import jax.numpy as jnp
import numpy as np
from jax import lax
from jax.experimental import pallas as pl
from jax.experimental.pallas import tpu as pltpu


def _round_up(x, m):
    return ((x + m - 1) // m) * m


def _make_msd_kernel(dilations, in_channels, width, width_pad, Hp, Wp, dmax,
                     p_tile):
    depth = len(dilations)
    P = Hp * Wp                      # flattened padded-image size
    Mg = dmax * Wp + dmax            # max |tap shift| in flattened coords
    C_total = in_channels + depth * width
    L = P + 2 * Mg

    def kernel(x_ref, mask_ref, *refs):
        w_refs = refs[:depth]            # each: (9, width_pad, c_prev_i) bf16
        b_ref = refs[depth]              # (depth, width_pad, 1) f32
        wfc_ref = refs[depth + 1]        # (C_total, out_pad) f32
        bfc_ref = refs[depth + 2]        # (1, out_pad) f32
        out_ref = refs[depth + 3]        # (1, 1, out_pad) f32
        feat_ref = refs[depth + 4]       # VMEM scratch (C_total, L) bf16

        # ---- init --------------------------------------------------------
        # Only the 2*Mg margin columns of the *layer* rows need zeroing:
        # input rows are fully overwritten below (x is pre-padded with zero
        # margins) and every layer interior (incl. halo) is rewritten as
        # y*mask each step.  Runs every grid step; NOT gated on program_id==0
        # (on v7x megacore the second core never sees program 0).
        zmargin = jnp.zeros((C_total - in_channels, Mg), feat_ref.dtype)
        feat_ref[in_channels:C_total, 0:Mg] = zmargin
        feat_ref[in_channels:C_total, Mg + P:L] = zmargin
        feat_ref[0:in_channels, :] = x_ref[0]

        mask = mask_ref[...]             # (1, P) f32: 1.0 interior, 0.0 halo

        # ---- MSD layers ----------------------------------------------------
        # TODO(synk): for large depth (50-100), switch this static unroll to a
        # lax.fori_loop over uniformly padded (9, width_pad, C_total) weights
        # to bound live ranges / instruction-memory.
        for i, d in enumerate(dilations):
            c_prev = in_channels + i * width
            w_l = w_refs[i]
            b_i = b_ref[i]                               # (width_pad, 1) f32

            for c0 in range(0, P, p_tile):               # lane tiling
                T = min(p_tile, P - c0)
                maskc = mask[:, c0:c0 + T]               # (1, T) f32
                acc = None
                # 3x3 dilated conv: ONE VMEM window load per kernel row; the
                # -d/0/+d column taps are in-register shifted slices of it.
                for ky in range(3):
                    row0 = Mg + (ky - 1) * d * Wp + c0 - d
                    win = feat_ref[0:c_prev, row0:row0 + T + 2 * d]
                    acc_ky = None
                    for kx in range(3):
                        tap = win[:, kx * d:kx * d + T]  # (c_prev, T) bf16
                        part = jnp.dot(w_l[ky * 3 + kx], tap,
                                       preferred_element_type=jnp.float32)
                        acc_ky = part if acc_ky is None else acc_ky + part
                    acc = acc_ky if acc is None else acc + acc_ky

                y = jnp.maximum(acc + b_i, 0.0)          # bias + ReLU in f32
                # keep halo positions exactly zero; narrow to bf16 at store
                y = (y[0:width] * maskc).astype(feat_ref.dtype)
                feat_ref[c_prev:c_prev + width, Mg + c0:Mg + c0 + T] = y

        # ---- AdaptiveMaxPool2d((1,1)) + Linear ----------------------------
        # Input rows can be negative -> mask-guard them; layer rows are ReLU
        # outputs (>= 0) with exact-zero halos, so a plain max is correct.
        neg = jnp.finfo(jnp.float32).min
        v_in = feat_ref[0:in_channels, Mg:Mg + P].astype(jnp.float32)
        p_in = jnp.max(jnp.where(mask > 0.5, v_in, neg), axis=1, keepdims=True)
        v_ly = feat_ref[in_channels:C_total, Mg:Mg + P].astype(jnp.float32)
        p_ly = jnp.max(v_ly, axis=1, keepdims=True)

        logits = (jnp.sum(wfc_ref[0:in_channels, :] * p_in,
                          axis=0, keepdims=True)
                  + jnp.sum(wfc_ref[in_channels:C_total, :] * p_ly,
                            axis=0, keepdims=True)
                  + bfc_ref[...])
        out_ref[0] = logits

    return kernel


def msd_classifier_forward(x, conv_weights, conv_bias, fc_weight, fc_bias,
                           dilations, width, *, p_tile=512):
    N, C_in, H, W = x.shape
    depth = len(dilations)
    out_channels = fc_weight.shape[0]
    C_total = C_in + depth * width
    dmax = max(dilations)

    Hp = H + 2 * dmax
    Wp = W + 2 * dmax
    # Lane-align rows of the flattened image when W is large enough that the
    # extra zero columns are cheap (makes the +/-d*Wp row-shift taps aligned).
    if W >= 112:
        Wp = _round_up(Wp, 128)
    P = Hp * Wp
    Mg = dmax * Wp + dmax
    L = P + 2 * Mg

    width_pad = _round_up(width, 8)
    out_pad = _round_up(out_channels, 128)

    # Pre-pad + flatten the input (layout plumbing only); bf16 storage.
    xf = jnp.zeros((N, C_in, Hp, Wp), jnp.float32)
    xf = xf.at[:, :, dmax:dmax + H, dmax:dmax + W].set(x.astype(jnp.float32))
    xf = xf.reshape(N, C_in, P)
    xf = jnp.pad(xf, ((0, 0), (0, 0), (Mg, Mg))).astype(jnp.bfloat16)  # (N,C_in,L)

    # Interior mask over flattened padded coordinates (f32 VPU math).
    mask = jnp.zeros((Hp, Wp), jnp.float32)
    mask = mask.at[dmax:dmax + H, dmax:dmax + W].set(1.0)
    mask = mask.reshape(1, P)

    # Conv weights: (width, c_prev, 3, 3) -> (9, width_pad, c_prev) bf16 tiles.
    w_taps = []
    for i, w in enumerate(conv_weights):
        c_prev = C_in + i * width
        wt = jnp.transpose(w.astype(jnp.float32), (2, 3, 0, 1))
        wt = wt.reshape(9, width, c_prev)
        wt = jnp.pad(wt, ((0, 0), (0, width_pad - width), (0, 0)))
        w_taps.append(wt.astype(jnp.bfloat16))

    b_conv = jnp.pad(conv_bias.astype(jnp.float32),
                     ((0, 0), (0, width_pad - width)))
    b_conv = b_conv.reshape(depth, width_pad, 1)

    wfc_t = jnp.zeros((C_total, out_pad), jnp.float32)
    wfc_t = wfc_t.at[:, :out_channels].set(fc_weight.T.astype(jnp.float32))
    bfc = jnp.zeros((1, out_pad), jnp.float32)
    bfc = bfc.at[:, :out_channels].set(fc_bias.astype(jnp.float32))

    kernel = _make_msd_kernel(dilations, C_in, width, width_pad, Hp, Wp, dmax,
                              min(p_tile, P))

    in_specs = [
        pl.BlockSpec((1, C_in, L), lambda n: (n, 0, 0)),
        pl.BlockSpec((1, P), lambda n: (0, 0)),
    ]
    for wt in w_taps:
        in_specs.append(pl.BlockSpec(wt.shape, lambda n: (0, 0, 0)))
    in_specs.append(pl.BlockSpec(b_conv.shape, lambda n: (0, 0, 0)))
    in_specs.append(pl.BlockSpec(wfc_t.shape, lambda n: (0, 0)))
    in_specs.append(pl.BlockSpec(bfc.shape, lambda n: (0, 0)))
    # TODO(synk): single-buffer the constant weight/mask blocks
    # (pipeline_mode=pl.Buffered(1)) to reclaim VMEM headroom on v7x once that
    # path is universally supported.

    # VMEM budget computed from the actual footprint (not a hardcoded 32 MiB):
    # bf16 slab + double-buffered input/output blocks + slack.
    block_bytes = (C_in * L * 2 + P * 4
                   + sum(int(np.prod(wt.shape)) * 2 for wt in w_taps)
                   + depth * width_pad * 4
                   + C_total * out_pad * 4 + out_pad * 4   # wfc, bfc
                   + out_pad * 4)                          # output block
    slab_bytes = C_total * L * 2
    needed = slab_bytes + 2 * block_bytes + (2 << 20)
    vmem_limit = int(min(max(needed * 5 // 4, 16 << 20), 100 << 20))

    out = pl.pallas_call(
        kernel,
        out_shape=jax.ShapeDtypeStruct((N, 1, out_pad), jnp.float32),
        grid=(N,),
        in_specs=in_specs,
        out_specs=pl.BlockSpec((1, 1, out_pad), lambda n: (n, 0, 0)),
        scratch_shapes=[pltpu.VMEM((C_total, L), jnp.bfloat16)],
        compiler_params=pltpu.CompilerParams(
            dimension_semantics=("parallel",),
            vmem_limit_bytes=vmem_limit),
    )(xf, mask, *w_taps, b_conv, wfc_t, bfc)

    return out.reshape(N, out_pad)[:, :out_channels]


def reference_forward(x, conv_weights, conv_bias, fc_weight, fc_bias,
                      dilations, width):
    """Pure-JAX f32 reference (lax conv) for verification."""
    feat = x.astype(jnp.float32)
    for i, (w, d) in enumerate(zip(conv_weights, dilations)):
        y = lax.conv_general_dilated(
            feat, w.astype(jnp.float32),
            window_strides=(1, 1),
            padding=[(d, d), (d, d)],
            rhs_dilation=(d, d),
            dimension_numbers=("NCHW", "OIHW", "NCHW"))
        y = jax.nn.relu(y + conv_bias[i][None, :, None, None])
        feat = jnp.concatenate([feat, y], axis=1)
    pooled = jnp.max(feat, axis=(2, 3))                       # (N, num_features)
    return pooled @ fc_weight.T + fc_bias[None, :]


if __name__ == "__main__":
    # Small, MSDClassifier2d-consistent configuration.
    in_channels, out_channels = 4, 3
    width, maxdil, depth = 1, 3, 6
    N, H, W = 2, 16, 16
    dilations = list(islice(cycle(range(1, 1 + maxdil)), depth))
    num_features = width * depth + in_channels

    key = jax.random.PRNGKey(0)
    k_x, k_b, k_fcw, k_fcb, *k_w = jax.random.split(key, 4 + depth)

    x = jax.random.normal(k_x, (N, in_channels, H, W), jnp.float32)
    conv_weights = [
        0.2 * jax.random.normal(k_w[i], (width, in_channels + i * width, 3, 3),
                                jnp.float32)
        for i in range(depth)
    ]
    conv_bias = 0.1 * jax.random.normal(k_b, (depth, width), jnp.float32)
    fc_weight = 0.1 * jax.random.normal(k_fcw, (out_channels, num_features),
                                        jnp.float32)
    fc_bias = 0.1 * jax.random.normal(k_fcb, (out_channels,), jnp.float32)

    out = msd_classifier_forward(x, conv_weights, conv_bias, fc_weight, fc_bias,
                                 dilations, width)
    out = jax.block_until_ready(out)

    ref = reference_forward(x, conv_weights, conv_bias, fc_weight, fc_bias,
                            dilations, width)
    # bf16 feature storage (f32 accumulation) vs f32 reference: relaxed tol.
    np.testing.assert_allclose(np.asarray(out), np.asarray(ref),
                               rtol=3e-2, atol=3e-2)
    print("KERNEL_OK")
</pallas_src>

<mosaic_0001>
module attributes {stable_mosaic.version = 11 : i64} {
  func.func @kernel(%arg0: i32, %arg1: memref<1x4x622xbf16, #tpu.memory_space<vmem>>, %arg2: memref<1x484xf32, #tpu.memory_space<vmem>>, %arg3: memref<9x8x4xbf16, #tpu.memory_space<vmem>>, %arg4: memref<9x8x5xbf16, #tpu.memory_space<vmem>>, %arg5: memref<9x8x6xbf16, #tpu.memory_space<vmem>>, %arg6: memref<9x8x7xbf16, #tpu.memory_space<vmem>>, %arg7: memref<9x8x8xbf16, #tpu.memory_space<vmem>>, %arg8: memref<9x8x9xbf16, #tpu.memory_space<vmem>>, %arg9: memref<6x8x1xf32, #tpu.memory_space<vmem>>, %arg10: memref<10x128xf32, #tpu.memory_space<vmem>>, %arg11: memref<1x128xf32, #tpu.memory_space<vmem>>, %arg12: memref<1x1x128xf32, #tpu.memory_space<vmem>>, %arg13: memref<10x622xbf16, #tpu.memory_space<vmem>>) attributes {dimension_semantics = [#tpu.dimension_semantics<parallel>], iteration_bounds = array<i64: 2>, scalar_prefetch = 0 : i64, scratch_operands = 1 : i64, tpu.core_type = #tpu.core_type<tc>, window_params = [{transform_indices = @transform_0, window_bounds = array<i64: 1, 4, 622>}, {pipeline_mode = #tpu.pipeline_mode<synchronous>, transform_indices = @transform_1, window_bounds = array<i64: 1, 484>}, {pipeline_mode = #tpu.pipeline_mode<synchronous>, transform_indices = @transform_2, window_bounds = array<i64: 9, 8, 4>}, {pipeline_mode = #tpu.pipeline_mode<synchronous>, transform_indices = @transform_3, window_bounds = array<i64: 9, 8, 5>}, {pipeline_mode = #tpu.pipeline_mode<synchronous>, transform_indices = @transform_4, window_bounds = array<i64: 9, 8, 6>}, {pipeline_mode = #tpu.pipeline_mode<synchronous>, transform_indices = @transform_5, window_bounds = array<i64: 9, 8, 7>}, {pipeline_mode = #tpu.pipeline_mode<synchronous>, transform_indices = @transform_6, window_bounds = array<i64: 9, 8, 8>}, {pipeline_mode = #tpu.pipeline_mode<synchronous>, transform_indices = @transform_7, window_bounds = array<i64: 9, 8, 9>}, {pipeline_mode = #tpu.pipeline_mode<synchronous>, transform_indices = @transform_8, window_bounds = array<i64: 6, 8, 1>}, {pipeline_mode = #tpu.pipeline_mode<synchronous>, transform_indices = @transform_9, window_bounds = array<i64: 10, 128>}, {pipeline_mode = #tpu.pipeline_mode<synchronous>, transform_indices = @transform_10, window_bounds = array<i64: 1, 128>}, {transform_indices = @transform_11, window_bounds = array<i64: 1, 1, 128>}]} {
    %cst = arith.constant 0.000000e+00 : bf16
    %0 = vector.broadcast %cst : bf16 to vector<6x69xbf16>
    %c4 = arith.constant 4 : index
    %c0 = arith.constant 0 : index
    %1 = vector.load %arg13[%c4, %c0] : memref<10x622xbf16, #tpu.memory_space<vmem>>, vector<6x69xbf16>
    tpu.vector_store %arg13[%c4, %c0], %0 {strides = array<i32>} : memref<10x622xbf16, #tpu.memory_space<vmem>>, vector<6x69xbf16>,
    %c4_0 = arith.constant 4 : index
    %c553 = arith.constant 553 : index
    %2 = vector.load %arg13[%c4_0, %c553] : memref<10x622xbf16, #tpu.memory_space<vmem>>, vector<6x69xbf16>
    tpu.vector_store %arg13[%c4_0, %c553], %0 {strides = array<i32>} : memref<10x622xbf16, #tpu.memory_space<vmem>>, vector<6x69xbf16>,
    %c0_1 = arith.constant 0 : index
    %c0_2 = arith.constant 0 : index
    %c0_3 = arith.constant 0 : index
    %3 = vector.load %arg1[%c0_1, %c0_2, %c0_3] : memref<1x4x622xbf16, #tpu.memory_space<vmem>>, vector<1x4x622xbf16>
    %4 = vector.shape_cast %3 : vector<1x4x622xbf16> to vector<4x622xbf16>
    %c0_4 = arith.constant 0 : index
    %c0_5 = arith.constant 0 : index
    %5 = vector.load %arg13[%c0_4, %c0_5] : memref<10x622xbf16, #tpu.memory_space<vmem>>, vector<4x622xbf16>
    tpu.vector_store %arg13[%c0_4, %c0_5], %4 {strides = array<i32>} : memref<10x622xbf16, #tpu.memory_space<vmem>>, vector<4x622xbf16>,
    %c0_6 = arith.constant 0 : index
    %c0_7 = arith.constant 0 : index
    %6 = vector.load %arg2[%c0_6, %c0_7] : memref<1x484xf32, #tpu.memory_space<vmem>>, vector<1x484xf32>
    %c0_8 = arith.constant 0 : index
    %c0_9 = arith.constant 0 : index
    %c0_10 = arith.constant 0 : index
    %7 = vector.load %arg9[%c0_8, %c0_9, %c0_10] : memref<6x8x1xf32, #tpu.memory_space<vmem>>, vector<1x8x1xf32>
    %8 = vector.shape_cast %7 : vector<1x8x1xf32> to vector<8x1xf32>
    %c0_11 = arith.constant 0 : index
    %c46 = arith.constant 46 : index
    %9 = vector.load %arg13[%c0_11, %c46] : memref<10x622xbf16, #tpu.memory_space<vmem>>, vector<4x486xbf16>
    %10 = vector.extract_strided_slice %9 {offsets = [0, 0], sizes = [4, 484], strides = [1, 1]} : vector<4x486xbf16> to vector<4x484xbf16>
    %c0_12 = arith.constant 0 : index
    %c0_13 = arith.constant 0 : index
    %c0_14 = arith.constant 0 : index
    %11 = vector.load %arg3[%c0_12, %c0_13, %c0_14] : memref<9x8x4xbf16, #tpu.memory_space<vmem>>, vector<1x8x4xbf16>
    %12 = vector.shape_cast %11 : vector<1x8x4xbf16> to vector<8x4xbf16>
    %cst_15 = arith.constant dense<0.000000e+00> : vector<8x484xf32>
    %13 = tpu.matmul %12, %10, %cst_15 {dimension_numbers = #tpu.dot_dimension_numbers<[1], [0], [0], [1], [0, 0, 1, 1], [], []>} : vector<8x4xbf16>, vector<4x484xbf16>, vector<8x484xf32> -> vector<8x484xf32>
    %14 = vector.extract_strided_slice %9 {offsets = [0, 1], sizes = [4, 484], strides = [1, 1]} : vector<4x486xbf16> to vector<4x484xbf16>
    %c1 = arith.constant 1 : index
    %c0_16 = arith.constant 0 : index
    %c0_17 = arith.constant 0 : index
    %15 = vector.load %arg3[%c1, %c0_16, %c0_17] : memref<9x8x4xbf16, #tpu.memory_space<vmem>>, vector<1x8x4xbf16>
    %16 = vector.shape_cast %15 : vector<1x8x4xbf16> to vector<8x4xbf16>
    %cst_18 = arith.constant dense<0.000000e+00> : vector<8x484xf32>
    %17 = tpu.matmul %16, %14, %cst_18 {dimension_numbers = #tpu.dot_dimension_numbers<[1], [0], [0], [1], [0, 0, 1, 1], [], []>} : vector<8x4xbf16>, vector<4x484xbf16>, vector<8x484xf32> -> vector<8x484xf32>
    %18 = arith.addf %13, %17 : vector<8x484xf32>
    %19 = vector.extract_strided_slice %9 {offsets = [0, 2], sizes = [4, 484], strides = [1, 1]} : vector<4x486xbf16> to vector<4x484xbf16>
    %c2 = arith.constant 2 : index
    %c0_19 = arith.constant 0 : index
    %c0_20 = arith.constant 0 : index
    %20 = vector.load %arg3[%c2, %c0_19, %c0_20] : memref<9x8x4xbf16, #tpu.memory_space<vmem>>, vector<1x8x4xbf16>
    %21 = vector.shape_cast %20 : vector<1x8x4xbf16> to vector<8x4xbf16>
    %cst_21 = arith.constant dense<0.000000e+00> : vector<8x484xf32>
    %22 = tpu.matmul %21, %19, %cst_21 {dimension_numbers = #tpu.dot_dimension_numbers<[1], [0], [0], [1], [0, 0, 1, 1], [], []>} : vector<8x4xbf16>, vector<4x484xbf16>, vector<8x484xf32> -> vector<8x484xf32>
    %23 = arith.addf %18, %22 : vector<8x484xf32>
    %c0_22 = arith.constant 0 : index
    %c68 = arith.constant 68 : index
    %24 = vector.load %arg13[%c0_22, %c68] : memref<10x622xbf16, #tpu.memory_space<vmem>>, vector<4x486xbf16>
    %25 = vector.extract_strided_slice %24 {offsets = [0, 0], sizes = [4, 484], strides = [1, 1]} : vector<4x486xbf16> to vector<4x484xbf16>
    %c3 = arith.constant 3 : index
    %c0_23 = arith.constant 0 : index
    %c0_24 = arith.constant 0 : index
    %26 = vector.load %arg3[%c3, %c0_23, %c0_24] : memref<9x8x4xbf16, #tpu.memory_space<vmem>>, vector<1x8x4xbf16>
    %27 = vector.shape_cast %26 : vector<1x8x4xbf16> to vector<8x4xbf16>
    %cst_25 = arith.constant dense<0.000000e+00> : vector<8x484xf32>
    %28 = tpu.matmul %27, %25, %cst_25 {dimension_numbers = #tpu.dot_dimension_numbers<[1], [0], [0], [1], [0, 0, 1, 1], [], []>} : vector<8x4xbf16>, vector<4x484xbf16>, vector<8x484xf32> -> vector<8x484xf32>
    %29 = vector.extract_strided_slice %24 {offsets = [0, 1], sizes = [4, 484], strides = [1, 1]} : vector<4x486xbf16> to vector<4x484xbf16>
    %c4_26 = arith.constant 4 : index
    %c0_27 = arith.constant 0 : index
    %c0_28 = arith.constant 0 : index
    %30 = vector.load %arg3[%c4_26, %c0_27, %c0_28] : memref<9x8x4xbf16, #tpu.memory_space<vmem>>, vector<1x8x4xbf16>
    %31 = vector.shape_cast %30 : vector<1x8x4xbf16> to vector<8x4xbf16>
    %cst_29 = arith.constant dense<0.000000e+00> : vector<8x484xf32>
    %32 = tpu.matmul %31, %29, %cst_29 {dimension_numbers = #tpu.dot_dimension_numbers<[1], [0], [0], [1], [0, 0, 1, 1], [], []>} : vector<8x4xbf16>, vector<4x484xbf16>, vector<8x484xf32> -> vector<8x484xf32>
    %33 = arith.addf %28, %32 : vector<8x484xf32>
    %34 = vector.extract_strided_slice %24 {offsets = [0, 2], sizes = [4, 484], strides = [1, 1]} : vector<4x486xbf16> to vector<4x484xbf16>
    %c5 = arith.constant 5 : index
    %c0_30 = arith.constant 0 : index
    %c0_31 = arith.constant 0 : index
    %35 = vector.load %arg3[%c5, %c0_30, %c0_31] : memref<9x8x4xbf16, #tpu.memory_space<vmem>>, vector<1x8x4xbf16>
    %36 = vector.shape_cast %35 : vector<1x8x4xbf16> to vector<8x4xbf16>
    %cst_32 = arith.constant dense<0.000000e+00> : vector<8x484xf32>
    %37 = tpu.matmul %36, %34, %cst_32 {dimension_numbers = #tpu.dot_dimension_numbers<[1], [0], [0], [1], [0, 0, 1, 1], [], []>} : vector<8x4xbf16>, vector<4x484xbf16>, vector<8x484xf32> -> vector<8x484xf32>
    %38 = arith.addf %33, %37 : vector<8x484xf32>
    %39 = arith.addf %23, %38 : vector<8x484xf32>
    %c0_33 = arith.constant 0 : index
    %c90 = arith.constant 90 : index
    %40 = vector.load %arg13[%c0_33, %c90] : memref<10x622xbf16, #tpu.memory_space<vmem>>, vector<4x486xbf16>
    %41 = vector.extract_strided_slice %40 {offsets = [0, 0], sizes = [4, 484], strides = [1, 1]} : vector<4x486xbf16> to vector<4x484xbf16>
    %c6 = arith.constant 6 : index
    %c0_34 = arith.constant 0 : index
    %c0_35 = arith.constant 0 : index
    %42 = vector.load %arg3[%c6, %c0_34, %c0_35] : memref<9x8x4xbf16, #tpu.memory_space<vmem>>, vector<1x8x4xbf16>
    %43 = vector.shape_cast %42 : vector<1x8x4xbf16> to vector<8x4xbf16>
    %cst_36 = arith.constant dense<0.000000e+00> : vector<8x484xf32>
    %44 = tpu.matmul %43, %41, %cst_36 {dimension_numbers = #tpu.dot_dimension_numbers<[1], [0], [0], [1], [0, 0, 1, 1], [], []>} : vector<8x4xbf16>, vector<4x484xbf16>, vector<8x484xf32> -> vector<8x484xf32>
    %45 = vector.extract_strided_slice %40 {offsets = [0, 1], sizes = [4, 484], strides = [1, 1]} : vector<4x486xbf16> to vector<4x484xbf16>
    %c7 = arith.constant 7 : index
    %c0_37 = arith.constant 0 : index
    %c0_38 = arith.constant 0 : index
    %46 = vector.load %arg3[%c7, %c0_37, %c0_38] : memref<9x8x4xbf16, #tpu.memory_space<vmem>>, vector<1x8x4xbf16>
    %47 = vector.shape_cast %46 : vector<1x8x4xbf16> to vector<8x4xbf16>
    %cst_39 = arith.constant dense<0.000000e+00> : vector<8x484xf32>
    %48 = tpu.matmul %47, %45, %cst_39 {dimension_numbers = #tpu.dot_dimension_numbers<[1], [0], [0], [1], [0, 0, 1, 1], [], []>} : vector<8x4xbf16>, vector<4x484xbf16>, vector<8x484xf32> -> vector<8x484xf32>
    %49 = arith.addf %44, %48 : vector<8x484xf32>
    %50 = vector.extract_strided_slice %40 {offsets = [0, 2], sizes = [4, 484], strides = [1, 1]} : vector<4x486xbf16> to vector<4x484xbf16>
    %c8 = arith.constant 8 : index
    %c0_40 = arith.constant 0 : index
    %c0_41 = arith.constant 0 : index
    %51 = vector.load %arg3[%c8, %c0_40, %c0_41] : memref<9x8x4xbf16, #tpu.memory_space<vmem>>, vector<1x8x4xbf16>
    %52 = vector.shape_cast %51 : vector<1x8x4xbf16> to vector<8x4xbf16>
    %cst_42 = arith.constant dense<0.000000e+00> : vector<8x484xf32>
    %53 = tpu.matmul %52, %50, %cst_42 {dimension_numbers = #tpu.dot_dimension_numbers<[1], [0], [0], [1], [0, 0, 1, 1], [], []>} : vector<8x4xbf16>, vector<4x484xbf16>, vector<8x484xf32> -> vector<8x484xf32>
    %54 = arith.addf %49, %53 : vector<8x484xf32>
    %55 = arith.addf %39, %54 : vector<8x484xf32>
    %56 = vector.broadcast %8 : vector<8x1xf32> to vector<8x484xf32>
    %57 = arith.addf %55, %56 : vector<8x484xf32>
    %cst_43 = arith.constant 0.000000e+00 : f32
    %58 = vector.broadcast %cst_43 : f32 to vector<8x484xf32>
    %59 = arith.maximumf %57, %58 : vector<8x484xf32>
    %60 = vector.extract_strided_slice %59 {offsets = [0, 0], sizes = [1, 484], strides = [1, 1]} : vector<8x484xf32> to vector<1x484xf32>
    %61 = arith.mulf %60, %6 : vector<1x484xf32>
    %62 = arith.truncf %61 : vector<1x484xf32> to vector<1x484xbf16>
    %c4_44 = arith.constant 4 : index
    %c69 = arith.constant 69 : index
    %63 = vector.load %arg13[%c4_44, %c69] : memref<10x622xbf16, #tpu.memory_space<vmem>>, vector<1x484xbf16>
    tpu.vector_store %arg13[%c4_44, %c69], %62 {strides = array<i32>} : memref<10x622xbf16, #tpu.memory_space<vmem>>, vector<1x484xbf16>,
    %c1_45 = arith.constant 1 : index
    %c0_46 = arith.constant 0 : index
    %c0_47 = arith.constant 0 : index
    %64 = vector.load %arg9[%c1_45, %c0_46, %c0_47] : memref<6x8x1xf32, #tpu.memory_space<vmem>>, vector<1x8x1xf32>
    %65 = vector.shape_cast %64 : vector<1x8x1xf32> to vector<8x1xf32>
    %c0_48 = arith.constant 0 : index
    %c23 = arith.constant 23 : index
    %66 = vector.load %arg13[%c0_48, %c23] : memref<10x622xbf16, #tpu.memory_space<vmem>>, vector<5x488xbf16>
    %67 = vector.extract_strided_slice %66 {offsets = [0, 0], sizes = [5, 484], strides = [1, 1]} : vector<5x488xbf16> to vector<5x484xbf16>
    %c0_49 = arith.constant 0 : index
    %c0_50 = arith.constant 0 : index
    %c0_51 = arith.constant 0 : index
    %68 = vector.load %arg4[%c0_49, %c0_50, %c0_51] : memref<9x8x5xbf16, #tpu.memory_space<vmem>>, vector<1x8x5xbf16>
    %69 = vector.shape_cast %68 : vector<1x8x5xbf16> to vector<8x5xbf16>
    %cst_52 = arith.constant dense<0.000000e+00> : vector<8x484xf32>
    %70 = tpu.matmul %69, %67, %cst_52 {dimension_numbers = #tpu.dot_dimension_numbers<[1], [0], [0], [1], [0, 0, 1, 1], [], []>} : vector<8x5xbf16>, vector<5x484xbf16>, vector<8x484xf32> -> vector<8x484xf32>
    %71 = vector.extract_strided_slice %66 {offsets = [0, 2], sizes = [5, 484], strides = [1, 1]} : vector<5x488xbf16> to vector<5x484xbf16>
    %c1_53 = arith.constant 1 : index
    %c0_54 = arith.constant 0 : index
    %c0_55 = arith.constant 0 : index
    %72 = vector.load %arg4[%c1_53, %c0_54, %c0_55] : memref<9x8x5xbf16, #tpu.memory_space<vmem>>, vector<1x8x5xbf16>
    %73 = vector.shape_cast %72 : vector<1x8x5xbf16> to vector<8x5xbf16>
    %cst_56 = arith.constant dense<0.000000e+00> : vector<8x484xf32>
    %74 = tpu.matmul %73, %71, %cst_56 {dimension_numbers = #tpu.dot_dimension_numbers<[1], [0], [0], [1], [0, 0, 1, 1], [], []>} : vector<8x5xbf16>, vector<5x484xbf16>, vector<8x484xf32> -> vector<8x484xf32>
    %75 = arith.addf %70, %74 : vector<8x484xf32>
    %76 = vector.extract_strided_slice %66 {offsets = [0, 4], sizes = [5, 484], strides = [1, 1]} : vector<5x488xbf16> to vector<5x484xbf16>
    %c2_57 = arith.constant 2 : index
    %c0_58 = arith.constant 0 : index
    %c0_59 = arith.constant 0 : index
    %77 = vector.load %arg4[%c2_57, %c0_58, %c0_59] : memref<9x8x5xbf16, #tpu.memory_space<vmem>>, vector<1x8x5xbf16>
    %78 = vector.shape_cast %77 : vector<1x8x5xbf16> to vector<8x5xbf16>
    %cst_60 = arith.constant dense<0.000000e+00> : vector<8x484xf32>
    %79 = tpu.matmul %78, %76, %cst_60 {dimension_numbers = #tpu.dot_dimension_numbers<[1], [0], [0], [1], [0, 0, 1, 1], [], []>} : vector<8x5xbf16>, vector<5x484xbf16>, vector<8x484xf32> -> vector<8x484xf32>
    %80 = arith.addf %75, %79 : vector<8x484xf32>
    %c0_61 = arith.constant 0 : index
    %c67 = arith.constant 67 : index
    %81 = vector.load %arg13[%c0_61, %c67] : memref<10x622xbf16, #tpu.memory_space<vmem>>, vector<5x488xbf16>
    %82 = vector.extract_strided_slice %81 {offsets = [0, 0], sizes = [5, 484], strides = [1, 1]} : vector<5x488xbf16> to vector<5x484xbf16>
    %c3_62 = arith.constant 3 : index
    %c0_63 = arith.constant 0 : index
    %c0_64 = arith.constant 0 : index
    %83 = vector.load %arg4[%c3_62, %c0_63, %c0_64] : memref<9x8x5xbf16, #tpu.memory_space<vmem>>, vector<1x8x5xbf16>
    %84 = vector.shape_cast %83 : vector<1x8x5xbf16> to vector<8x5xbf16>
    %cst_65 = arith.constant dense<0.000000e+00> : vector<8x484xf32>
    %85 = tpu.matmul %84, %82, %cst_65 {dimension_numbers = #tpu.dot_dimension_numbers<[1], [0], [0], [1], [0, 0, 1, 1], [], []>} : vector<8x5xbf16>, vector<5x484xbf16>, vector<8x484xf32> -> vector<8x484xf32>
    %86 = vector.extract_strided_slice %81 {offsets = [0, 2], sizes = [5, 484], strides = [1, 1]} : vector<5x488xbf16> to vector<5x484xbf16>
    %c4_66 = arith.constant 4 : index
    %c0_67 = arith.constant 0 : index
    %c0_68 = arith.constant 0 : index
    %87 = vector.load %arg4[%c4_66, %c0_67, %c0_68] : memref<9x8x5xbf16, #tpu.memory_space<vmem>>, vector<1x8x5xbf16>
    %88 = vector.shape_cast %87 : vector<1x8x5xbf16> to vector<8x5xbf16>
    %cst_69 = arith.constant dense<0.000000e+00> : vector<8x484xf32>
    %89 = tpu.matmul %88, %86, %cst_69 {dimension_numbers = #tpu.dot_dimension_numbers<[1], [0], [0], [1], [0, 0, 1, 1], [], []>} : vector<8x5xbf16>, vector<5x484xbf16>, vector<8x484xf32> -> vector<8x484xf32>
    %90 = arith.addf %85, %89 : vector<8x484xf32>
    %91 = vector.extract_strided_slice %81 {offsets = [0, 4], sizes = [5, 484], strides = [1, 1]} : vector<5x488xbf16> to vector<5x484xbf16>
    %c5_70 = arith.constant 5 : index
    %c0_71 = arith.constant 0 : index
    %c0_72 = arith.constant 0 : index
    %92 = vector.load %arg4[%c5_70, %c0_71, %c0_72] : memref<9x8x5xbf16, #tpu.memory_space<vmem>>, vector<1x8x5xbf16>
    %93 = vector.shape_cast %92 : vector<1x8x5xbf16> to vector<8x5xbf16>
    %cst_73 = arith.constant dense<0.000000e+00> : vector<8x484xf32>
    %94 = tpu.matmul %93, %91, %cst_73 {dimension_numbers = #tpu.dot_dimension_numbers<[1], [0], [0], [1], [0, 0, 1, 1], [], []>} : vector<8x5xbf16>, vector<5x484xbf16>, vector<8x484xf32> -> vector<8x484xf32>
    %95 = arith.addf %90, %94 : vector<8x484xf32>
    %96 = arith.addf %80, %95 : vector<8x484xf32>
    %c0_74 = arith.constant 0 : index
    %c111 = arith.constant 111 : index
    %97 = vector.load %arg13[%c0_74, %c111] : memref<10x622xbf16, #tpu.memory_space<vmem>>, vector<5x488xbf16>
    %98 = vector.extract_strided_slice %97 {offsets = [0, 0], sizes = [5, 484], strides = [1, 1]} : vector<5x488xbf16> to vector<5x484xbf16>
    %c6_75 = arith.constant 6 : index
    %c0_76 = arith.constant 0 : index
    %c0_77 = arith.constant 0 : index
    %99 = vector.load %arg4[%c6_75, %c0_76, %c0_77] : memref<9x8x5xbf16, #tpu.memory_space<vmem>>, vector<1x8x5xbf16>
    %100 = vector.shape_cast %99 : vector<1x8x5xbf16> to vector<8x5xbf16>
    %cst_78 = arith.constant dense<0.000000e+00> : vector<8x484xf32>
    %101 = tpu.matmul %100, %98, %cst_78 {dimension_numbers = #tpu.dot_dimension_numbers<[1], [0], [0], [1], [0, 0, 1, 1], [], []>} : vector<8x5xbf16>, vector<5x484xbf16>, vector<8x484xf32> -> vector<8x484xf32>
    %102 = vector.extract_strided_slice %97 {offsets = [0, 2], sizes = [5, 484], strides = [1, 1]} : vector<5x488xbf16> to vector<5x484xbf16>
    %c7_79 = arith.constant 7 : index
    %c0_80 = arith.constant 0 : index
    %c0_81 = arith.constant 0 : index
    %103 = vector.load %arg4[%c7_79, %c0_80, %c0_81] : memref<9x8x5xbf16, #tpu.memory_space<vmem>>, vector<1x8x5xbf16>
    %104 = vector.shape_cast %103 : vector<1x8x5xbf16> to vector<8x5xbf16>
    %cst_82 = arith.constant dense<0.000000e+00> : vector<8x484xf32>
    %105 = tpu.matmul %104, %102, %cst_82 {dimension_numbers = #tpu.dot_dimension_numbers<[1], [0], [0], [1], [0, 0, 1, 1], [], []>} : vector<8x5xbf16>, vector<5x484xbf16>, vector<8x484xf32> -> vector<8x484xf32>
    %106 = arith.addf %101, %105 : vector<8x484xf32>
    %107 = vector.extract_strided_slice %97 {offsets = [0, 4], sizes = [5, 484], strides = [1, 1]} : vector<5x488xbf16> to vector<5x484xbf16>
    %c8_83 = arith.constant 8 : index
    %c0_84 = arith.constant 0 : index
    %c0_85 = arith.constant 0 : index
    %108 = vector.load %arg4[%c8_83, %c0_84, %c0_85] : memref<9x8x5xbf16, #tpu.memory_space<vmem>>, vector<1x8x5xbf16>
    %109 = vector.shape_cast %108 : vector<1x8x5xbf16> to vector<8x5xbf16>
    %cst_86 = arith.constant dense<0.000000e+00> : vector<8x484xf32>
    %110 = tpu.matmul %109, %107, %cst_86 {dimension_numbers = #tpu.dot_dimension_numbers<[1], [0], [0], [1], [0, 0, 1, 1], [], []>} : vector<8x5xbf16>, vector<5x484xbf16>, vector<8x484xf32> -> vector<8x484xf32>
    %111 = arith.addf %106, %110 : vector<8x484xf32>
    %112 = arith.addf %96, %111 : vector<8x484xf32>
    %113 = vector.broadcast %65 : vector<8x1xf32> to vector<8x484xf32>
    %114 = arith.addf %112, %113 : vector<8x484xf32>
    %cst_87 = arith.constant 0.000000e+00 : f32
    %115 = vector.broadcast %cst_87 : f32 to vector<8x484xf32>
    %116 = arith.maximumf %114, %115 : vector<8x484xf32>
    %117 = vector.extract_strided_slice %116 {offsets = [0, 0], sizes = [1, 484], strides = [1, 1]} : vector<8x484xf32> to vector<1x484xf32>
    %118 = arith.mulf %117, %6 : vector<1x484xf32>
    %119 = arith.truncf %118 : vector<1x484xf32> to vector<1x484xbf16>
    %c5_88 = arith.constant 5 : index
    %c69_89 = arith.constant 69 : index
    %120 = vector.load %arg13[%c5_88, %c69_89] : memref<10x622xbf16, #tpu.memory_space<vmem>>, vector<1x484xbf16>
    tpu.vector_store %arg13[%c5_88, %c69_89], %119 {strides = array<i32>} : memref<10x622xbf16, #tpu.memory_space<vmem>>, vector<1x484xbf16>,
    %c2_90 = arith.constant 2 : index
    %c0_91 = arith.constant 0 : index
    %c0_92 = arith.constant 0 : index
    %121 = vector.load %arg9[%c2_90, %c0_91, %c0_92] : memref<6x8x1xf32, #tpu.memory_space<vmem>>, vector<1x8x1xf32>
    %122 = vector.shape_cast %121 : vector<1x8x1xf32> to vector<8x1xf32>
    %c0_93 = arith.constant 0 : index
    %c0_94 = arith.constant 0 : index
    %123 = vector.load %arg13[%c0_93, %c0_94] : memref<10x622xbf16, #tpu.memory_space<vmem>>, vector<6x490xbf16>
    %124 = vector.extract_strided_slice %123 {offsets = [0, 0], sizes = [6, 484], strides = [1, 1]} : vector<6x490xbf16> to vector<6x484xbf16>
    %c0_95 = arith.constant 0 : index
    %c0_96 = arith.constant 0 : index
    %c0_97 = arith.constant 0 : index
    %125 = vector.load %arg5[%c0_95, %c0_96, %c0_97] : memref<9x8x6xbf16, #tpu.memory_space<vmem>>, vector<1x8x6xbf16>
    %126 = vector.shape_cast %125 : vector<1x8x6xbf16> to vector<8x6xbf16>
    %cst_98 = arith.constant dense<0.000000e+00> : vector<8x484xf32>
    %127 = tpu.matmul %126, %124, %cst_98 {dimension_numbers = #tpu.dot_dimension_numbers<[1], [0], [0], [1], [0, 0, 1, 1], [], []>} : vector<8x6xbf16>, vector<6x484xbf16>, vector<8x484xf32> -> vector<8x484xf32>
    %128 = vector.extract_strided_slice %123 {offsets = [0, 3], sizes = [6, 484], strides = [1, 1]} : vector<6x490xbf16> to vector<6x484xbf16>
    %c1_99 = arith.constant 1 : index
    %c0_100 = arith.constant 0 : index
    %c0_101 = arith.constant 0 : index
    %129 = vector.load %arg5[%c1_99, %c0_100, %c0_101] : memref<9x8x6xbf16, #tpu.memory_space<vmem>>, vector<1x8x6xbf16>
    %130 = vector.shape_cast %129 : vector<1x8x6xbf16> to vector<8x6xbf16>
    %cst_102 = arith.constant dense<0.000000e+00> : vector<8x484xf32>
    %131 = tpu.matmul %130, %128, %cst_102 {dimension_numbers = #tpu.dot_dimension_numbers<[1], [0], [0], [1], [0, 0, 1, 1], [], []>} : vector<8x6xbf16>, vector<6x484xbf16>, vector<8x484xf32> -> vector<8x484xf32>
    %132 = arith.addf %127, %131 : vector<8x484xf32>
    %133 = vector.extract_strided_slice %123 {offsets = [0, 6], sizes = [6, 484], strides = [1, 1]} : vector<6x490xbf16> to vector<6x484xbf16>
    %c2_103 = arith.constant 2 : index
    %c0_104 = arith.constant 0 : index
    %c0_105 = arith.constant 0 : index
    %134 = vector.load %arg5[%c2_103, %c0_104, %c0_105] : memref<9x8x6xbf16, #tpu.memory_space<vmem>>, vector<1x8x6xbf16>
    %135 = vector.shape_cast %134 : vector<1x8x6xbf16> to vector<8x6xbf16>
    %cst_106 = arith.constant dense<0.000000e+00> : vector<8x484xf32>
    %136 = tpu.matmul %135, %133, %cst_106 {dimension_numbers = #tpu.dot_dimension_numbers<[1], [0], [0], [1], [0, 0, 1, 1], [], []>} : vector<8x6xbf16>, vector<6x484xbf16>, vector<8x484xf32> -> vector<8x484xf32>
    %137 = arith.addf %132, %136 : vector<8x484xf32>
    %c0_107 = arith.constant 0 : index
    %c66 = arith.constant 66 : index
    %138 = vector.load %arg13[%c0_107, %c66] : memref<10x622xbf16, #tpu.memory_space<vmem>>, vector<6x490xbf16>
    %139 = vector.extract_strided_slice %138 {offsets = [0, 0], sizes = [6, 484], strides = [1, 1]} : vector<6x490xbf16> to vector<6x484xbf16>
    %c3_108 = arith.constant 3 : index
    %c0_109 = arith.constant 0 : index
    %c0_110 = arith.constant 0 : index
    %140 = vector.load %arg5[%c3_108, %c0_109, %c0_110] : memref<9x8x6xbf16, #tpu.memory_space<vmem>>, vector<1x8x6xbf16>
    %141 = vector.shape_cast %140 : vector<1x8x6xbf16> to vector<8x6xbf16>
    %cst_111 = arith.constant dense<0.000000e+00> : vector<8x484xf32>
    %142 = tpu.matmul %141, %139, %cst_111 {dimension_numbers = #tpu.dot_dimension_numbers<[1], [0], [0], [1], [0, 0, 1, 1], [], []>} : vector<8x6xbf16>, vector<6x484xbf16>, vector<8x484xf32> -> vector<8x484xf32>
    %143 = vector.extract_strided_slice %138 {offsets = [0, 3], sizes = [6, 484], strides = [1, 1]} : vector<6x490xbf16> to vector<6x484xbf16>
    %c4_112 = arith.constant 4 : index
    %c0_113 = arith.constant 0 : index
    %c0_114 = arith.constant 0 : index
    %144 = vector.load %arg5[%c4_112, %c0_113, %c0_114] : memref<9x8x6xbf16, #tpu.memory_space<vmem>>, vector<1x8x6xbf16>
    %145 = vector.shape_cast %144 : vector<1x8x6xbf16> to vector<8x6xbf16>
    %cst_115 = arith.constant dense<0.000000e+00> : vector<8x484xf32>
    %146 = tpu.matmul %145, %143, %cst_115 {dimension_numbers = #tpu.dot_dimension_numbers<[1], [0], [0], [1], [0, 0, 1, 1], [], []>} : vector<8x6xbf16>, vector<6x484xbf16>, vector<8x484xf32> -> vector<8x484xf32>
    %147 = arith.addf %142, %146 : vector<8x484xf32>
    %148 = vector.extract_strided_slice %138 {offsets = [0, 6], sizes = [6, 484], strides = [1, 1]} : vector<6x490xbf16> to vector<6x484xbf16>
    %c5_116 = arith.constant 5 : index
    %c0_117 = arith.constant 0 : index
    %c0_118 = arith.constant 0 : index
    %149 = vector.load %arg5[%c5_116, %c0_117, %c0_118] : memref<9x8x6xbf16, #tpu.memory_space<vmem>>, vector<1x8x6xbf16>
    %150 = vector.shape_cast %149 : vector<1x8x6xbf16> to vector<8x6xbf16>
    %cst_119 = arith.constant dense<0.000000e+00> : vector<8x484xf32>
    %151 = tpu.matmul %150, %148, %cst_119 {dimension_numbers = #tpu.dot_dimension_numbers<[1], [0], [0], [1], [0, 0, 1, 1], [], []>} : vector<8x6xbf16>, vector<6x484xbf16>, vector<8x484xf32> -> vector<8x484xf32>
    %152 = arith.addf %147, %151 : vector<8x484xf32>
    %153 = arith.addf %137, %152 : vector<8x484xf32>
    %c0_120 = arith.constant 0 : index
    %c132 = arith.constant 132 : index
    %154 = vector.load %arg13[%c0_120, %c132] : memref<10x622xbf16, #tpu.memory_space<vmem>>, vector<6x490xbf16>
    %155 = vector.extract_strided_slice %154 {offsets = [0, 0], sizes = [6, 484], strides = [1, 1]} : vector<6x490xbf16> to vector<6x484xbf16>
    %c6_121 = arith.constant 6 : index
    %c0_122 = arith.constant 0 : index
    %c0_123 = arith.constant 0 : index
    %156 = vector.load %arg5[%c6_121, %c0_122, %c0_123] : memref<9x8x6xbf16, #tpu.memory_space<vmem>>, vector<1x8x6xbf16>
    %157 = vector.shape_cast %156 : vector<1x8x6xbf16> to vector<8x6xbf16>
    %cst_124 = arith.constant dense<0.000000e+00> : vector<8x484xf32>
    %158 = tpu.matmul %157, %155, %cst_124 {dimension_numbers = #tpu.dot_dimension_numbers<[1], [0], [0], [1], [0, 0, 1, 1], [], []>} : vector<8x6xbf16>, vector<6x484xbf16>, vector<8x484xf32> -> vector<8x484xf32>
    %159 = vector.extract_strided_slice %154 {offsets = [0, 3], sizes = [6, 484], strides = [1, 1]} : vector<6x490xbf16> to vector<6x484xbf16>
    %c7_125 = arith.constant 7 : index
    %c0_126 = arith.constant 0 : index
    %c0_127 = arith.constant 0 : index
    %160 = vector.load %arg5[%c7_125, %c0_126, %c0_127] : memref<9x8x6xbf16, #tpu.memory_space<vmem>>, vector<1x8x6xbf16>
    %161 = vector.shape_cast %160 : vector<1x8x6xbf16> to vector<8x6xbf16>
    %cst_128 = arith.constant dense<0.000000e+00> : vector<8x484xf32>
    %162 = tpu.matmul %161, %159, %cst_128 {dimension_numbers = #tpu.dot_dimension_numbers<[1], [0], [0], [1], [0, 0, 1, 1], [], []>} : vector<8x6xbf16>, vector<6x484xbf16>, vector<8x484xf32> -> vector<8x484xf32>
    %163 = arith.addf %158, %162 : vector<8x484xf32>
    %164 = vector.extract_strided_slice %154 {offsets = [0, 6], sizes = [6, 484], strides = [1, 1]} : vector<6x490xbf16> to vector<6x484xbf16>
    %c8_129 = arith.constant 8 : index
    %c0_130 = arith.constant 0 : index
    %c0_131 = arith.constant 0 : index
    %165 = vector.load %arg5[%c8_129, %c0_130, %c0_131] : memref<9x8x6xbf16, #tpu.memory_space<vmem>>, vector<1x8x6xbf16>
    %166 = vector.shape_cast %165 : vector<1x8x6xbf16> to vector<8x6xbf16>
    %cst_132 = arith.constant dense<0.000000e+00> : vector<8x484xf32>
    %167 = tpu.matmul %166, %164, %cst_132 {dimension_numbers = #tpu.dot_dimension_numbers<[1], [0], [0], [1], [0, 0, 1, 1], [], []>} : vector<8x6xbf16>, vector<6x484xbf16>, vector<8x484xf32> -> vector<8x484xf32>
    %168 = arith.addf %163, %167 : vector<8x484xf32>
    %169 = arith.addf %153, %168 : vector<8x484xf32>
    %170 = vector.broadcast %122 : vector<8x1xf32> to vector<8x484xf32>
    %171 = arith.addf %169, %170 : vector<8x484xf32>
    %cst_133 = arith.constant 0.000000e+00 : f32
    %172 = vector.broadcast %cst_133 : f32 to vector<8x484xf32>
    %173 = arith.maximumf %171, %172 : vector<8x484xf32>
    %174 = vector.extract_strided_slice %173 {offsets = [0, 0], sizes = [1, 484], strides = [1, 1]} : vector<8x484xf32> to vector<1x484xf32>
    %175 = arith.mulf %174, %6 : vector<1x484xf32>
    %176 = arith.truncf %175 : vector<1x484xf32> to vector<1x484xbf16>
    %c6_134 = arith.constant 6 : index
    %c69_135 = arith.constant 69 : index
    %177 = vector.load %arg13[%c6_134, %c69_135] : memref<10x622xbf16, #tpu.memory_space<vmem>>, vector<1x484xbf16>
    tpu.vector_store %arg13[%c6_134, %c69_135], %176 {strides = array<i32>} : memref<10x622xbf16, #tpu.memory_space<vmem>>, vector<1x484xbf16>,
    %c3_136 = arith.constant 3 : index
    %c0_137 = arith.constant 0 : index
    %c0_138 = arith.constant 0 : index
    %178 = vector.load %arg9[%c3_136, %c0_137, %c0_138] : memref<6x8x1xf32, #tpu.memory_space<vmem>>, vector<1x8x1xf32>
    %179 = vector.shape_cast %178 : vector<1x8x1xf32> to vector<8x1xf32>
    %c0_139 = arith.constant 0 : index
    %c46_140 = arith.constant 46 : index
    %180 = vector.load %arg13[%c0_139, %c46_140] : memref<10x622xbf16, #tpu.memory_space<vmem>>, vector<7x486xbf16>
    %181 = vector.extract_strided_slice %180 {offsets = [0, 0], sizes = [7, 484], strides = [1, 1]} : vector<7x486xbf16> to vector<7x484xbf16>
    %c0_141 = arith.constant 0 : index
    %c0_142 = arith.constant 0 : index
    %c0_143 = arith.constant 0 : index
    %182 = vector.load %arg6[%c0_141, %c0_142, %c0_143] : memref<9x8x7xbf16, #tpu.memory_space<vmem>>, vector<1x8x7xbf16>
    %183 = vector.shape_cast %182 : vector<1x8x7xbf16> to vector<8x7xbf16>
    %cst_144 = arith.constant dense<0.000000e+00> : vector<8x484xf32>
    %184 = tpu.matmul %183, %181, %cst_144 {dimension_numbers = #tpu.dot_dimension_numbers<[1], [0], [0], [1], [0, 0, 1, 1], [], []>} : vector<8x7xbf16>, vector<7x484xbf16>, vector<8x484xf32> -> vector<8x484xf32>
    %185 = vector.extract_strided_slice %180 {offsets = [0, 1], sizes = [7, 484], strides = [1, 1]} : vector<7x486xbf16> to vector<7x484xbf16>
    %c1_145 = arith.constant 1 : index
    %c0_146 = arith.constant 0 : index
    %c0_147 = arith.constant 0 : index
    %186 = vector.load %arg6[%c1_145, %c0_146, %c0_147] : memref<9x8x7xbf16, #tpu.memory_space<vmem>>, vector<1x8x7xbf16>
    %187 = vector.shape_cast %186 : vector<1x8x7xbf16> to vector<8x7xbf16>
    %cst_148 = arith.constant dense<0.000000e+00> : vector<8x484xf32>
    %188 = tpu.matmul %187, %185, %cst_148 {dimension_numbers = #tpu.dot_dimension_numbers<[1], [0], [0], [1], [0, 0, 1, 1], [], []>} : vector<8x7xbf16>, vector<7x484xbf16>, vector<8x484xf32> -> vector<8x484xf32>
    %189 = arith.addf %184, %188 : vector<8x484xf32>
    %190 = vector.extract_strided_slice %180 {offsets = [0, 2], sizes = [7, 484], strides = [1, 1]} : vector<7x486xbf16> to vector<7x484xbf16>
    %c2_149 = arith.constant 2 : index
    %c0_150 = arith.constant 0 : index
    %c0_151 = arith.constant 0 : index
    %191 = vector.load %arg6[%c2_149, %c0_150, %c0_151] : memref<9x8x7xbf16, #tpu.memory_space<vmem>>, vector<1x8x7xbf16>
    %192 = vector.shape_cast %191 : vector<1x8x7xbf16> to vector<8x7xbf16>
    %cst_152 = arith.constant dense<0.000000e+00> : vector<8x484xf32>
    %193 = tpu.matmul %192, %190, %cst_152 {dimension_numbers = #tpu.dot_dimension_numbers<[1], [0], [0], [1], [0, 0, 1, 1], [], []>} : vector<8x7xbf16>, vector<7x484xbf16>, vector<8x484xf32> -> vector<8x484xf32>
    %194 = arith.addf %189, %193 : vector<8x484xf32>
    %c0_153 = arith.constant 0 : index
    %c68_154 = arith.constant 68 : index
    %195 = vector.load %arg13[%c0_153, %c68_154] : memref<10x622xbf16, #tpu.memory_space<vmem>>, vector<7x486xbf16>
    %196 = vector.extract_strided_slice %195 {offsets = [0, 0], sizes = [7, 484], strides = [1, 1]} : vector<7x486xbf16> to vector<7x484xbf16>
    %c3_155 = arith.constant 3 : index
    %c0_156 = arith.constant 0 : index
    %c0_157 = arith.constant 0 : index
    %197 = vector.load %arg6[%c3_155, %c0_156, %c0_157] : memref<9x8x7xbf16, #tpu.memory_space<vmem>>, vector<1x8x7xbf16>
    %198 = vector.shape_cast %197 : vector<1x8x7xbf16> to vector<8x7xbf16>
    %cst_158 = arith.constant dense<0.000000e+00> : vector<8x484xf32>
    %199 = tpu.matmul %198, %196, %cst_158 {dimension_numbers = #tpu.dot_dimension_numbers<[1], [0], [0], [1], [0, 0, 1, 1], [], []>} : vector<8x7xbf16>, vector<7x484xbf16>, vector<8x484xf32> -> vector<8x484xf32>
    %200 = vector.extract_strided_slice %195 {offsets = [0, 1], sizes = [7, 484], strides = [1, 1]} : vector<7x486xbf16> to vector<7x484xbf16>
    %c4_159 = arith.constant 4 : index
    %c0_160 = arith.constant 0 : index
    %c0_161 = arith.constant 0 : index
    %201 = vector.load %arg6[%c4_159, %c0_160, %c0_161] : memref<9x8x7xbf16, #tpu.memory_space<vmem>>, vector<1x8x7xbf16>
    %202 = vector.shape_cast %201 : vector<1x8x7xbf16> to vector<8x7xbf16>
    %cst_162 = arith.constant dense<0.000000e+00> : vector<8x484xf32>
    %203 = tpu.matmul %202, %200, %cst_162 {dimension_numbers = #tpu.dot_dimension_numbers<[1], [0], [0], [1], [0, 0, 1, 1], [], []>} : vector<8x7xbf16>, vector<7x484xbf16>, vector<8x484xf32> -> vector<8x484xf32>
    %204 = arith.addf %199, %203 : vector<8x484xf32>
    %205 = vector.extract_strided_slice %195 {offsets = [0, 2], sizes = [7, 484], strides = [1, 1]} : vector<7x486xbf16> to vector<7x484xbf16>
    %c5_163 = arith.constant 5 : index
    %c0_164 = arith.constant 0 : index
    %c0_165 = arith.constant 0 : index
    %206 = vector.load %arg6[%c5_163, %c0_164, %c0_165] : memref<9x8x7xbf16, #tpu.memory_space<vmem>>, vector<1x8x7xbf16>
    %207 = vector.shape_cast %206 : vector<1x8x7xbf16> to vector<8x7xbf16>
    %cst_166 = arith.constant dense<0.000000e+00> : vector<8x484xf32>
    %208 = tpu.matmul %207, %205, %cst_166 {dimension_numbers = #tpu.dot_dimension_numbers<[1], [0], [0], [1], [0, 0, 1, 1], [], []>} : vector<8x7xbf16>, vector<7x484xbf16>, vector<8x484xf32> -> vector<8x484xf32>
    %209 = arith.addf %204, %208 : vector<8x484xf32>
    %210 = arith.addf %194, %209 : vector<8x484xf32>
    %c0_167 = arith.constant 0 : index
    %c90_168 = arith.constant 90 : index
    %211 = vector.load %arg13[%c0_167, %c90_168] : memref<10x622xbf16, #tpu.memory_space<vmem>>, vector<7x486xbf16>
    %212 = vector.extract_strided_slice %211 {offsets = [0, 0], sizes = [7, 484], strides = [1, 1]} : vector<7x486xbf16> to vector<7x484xbf16>
    %c6_169 = arith.constant 6 : index
    %c0_170 = arith.constant 0 : index
    %c0_171 = arith.constant 0 : index
    %213 = vector.load %arg6[%c6_169, %c0_170, %c0_171] : memref<9x8x7xbf16, #tpu.memory_space<vmem>>, vector<1x8x7xbf16>
    %214 = vector.shape_cast %213 : vector<1x8x7xbf16> to vector<8x7xbf16>
    %cst_172 = arith.constant dense<0.000000e+00> : vector<8x484xf32>
    %215 = tpu.matmul %214, %212, %cst_172 {dimension_numbers = #tpu.dot_dimension_numbers<[1], [0], [0], [1], [0, 0, 1, 1], [], []>} : vector<8x7xbf16>, vector<7x484xbf16>, vector<8x484xf32> -> vector<8x484xf32>
    %216 = vector.extract_strided_slice %211 {offsets = [0, 1], sizes = [7, 484], strides = [1, 1]} : vector<7x486xbf16> to vector<7x484xbf16>
    %c7_173 = arith.constant 7 : index
    %c0_174 = arith.constant 0 : index
    %c0_175 = arith.constant 0 : index
    %217 = vector.load %arg6[%c7_173, %c0_174, %c0_175] : memref<9x8x7xbf16, #tpu.memory_space<vmem>>, vector<1x8x7xbf16>
    %218 = vector.shape_cast %217 : vector<1x8x7xbf16> to vector<8x7xbf16>
    %cst_176 = arith.constant dense<0.000000e+00> : vector<8x484xf32>
    %219 = tpu.matmul %218, %216, %cst_176 {dimension_numbers = #tpu.dot_dimension_numbers<[1], [0], [0], [1], [0, 0, 1, 1], [], []>} : vector<8x7xbf16>, vector<7x484xbf16>, vector<8x484xf32> -> vector<8x484xf32>
    %220 = arith.addf %215, %219 : vector<8x484xf32>
    %221 = vector.extract_strided_slice %211 {offsets = [0, 2], sizes = [7, 484], strides = [1, 1]} : vector<7x486xbf16> to vector<7x484xbf16>
    %c8_177 = arith.constant 8 : index
    %c0_178 = arith.constant 0 : index
    %c0_179 = arith.constant 0 : index
    %222 = vector.load %arg6[%c8_177, %c0_178, %c0_179] : memref<9x8x7xbf16, #tpu.memory_space<vmem>>, vector<1x8x7xbf16>
    %223 = vector.shape_cast %222 : vector<1x8x7xbf16> to vector<8x7xbf16>
    %cst_180 = arith.constant dense<0.000000e+00> : vector<8x484xf32>
    %224 = tpu.matmul %223, %221, %cst_180 {dimension_numbers = #tpu.dot_dimension_numbers<[1], [0], [0], [1], [0, 0, 1, 1], [], []>} : vector<8x7xbf16>, vector<7x484xbf16>, vector<8x484xf32> -> vector<8x484xf32>
    %225 = arith.addf %220, %224 : vector<8x484xf32>
    %226 = arith.addf %210, %225 : vector<8x484xf32>
    %227 = vector.broadcast %179 : vector<8x1xf32> to vector<8x484xf32>
    %228 = arith.addf %226, %227 : vector<8x484xf32>
    %cst_181 = arith.constant 0.000000e+00 : f32
    %229 = vector.broadcast %cst_181 : f32 to vector<8x484xf32>
    %230 = arith.maximumf %228, %229 : vector<8x484xf32>
    %231 = vector.extract_strided_slice %230 {offsets = [0, 0], sizes = [1, 484], strides = [1, 1]} : vector<8x484xf32> to vector<1x484xf32>
    %232 = arith.mulf %231, %6 : vector<1x484xf32>
    %233 = arith.truncf %232 : vector<1x484xf32> to vector<1x484xbf16>
    %c7_182 = arith.constant 7 : index
    %c69_183 = arith.constant 69 : index
    %234 = vector.load %arg13[%c7_182, %c69_183] : memref<10x622xbf16, #tpu.memory_space<vmem>>, vector<1x484xbf16>
    tpu.vector_store %arg13[%c7_182, %c69_183], %233 {strides = array<i32>} : memref<10x622xbf16, #tpu.memory_space<vmem>>, vector<1x484xbf16>,
    %c4_184 = arith.constant 4 : index
    %c0_185 = arith.constant 0 : index
    %c0_186 = arith.constant 0 : index
    %235 = vector.load %arg9[%c4_184, %c0_185, %c0_186] : memref<6x8x1xf32, #tpu.memory_space<vmem>>, vector<1x8x1xf32>
    %236 = vector.shape_cast %235 : vector<1x8x1xf32> to vector<8x1xf32>
    %c0_187 = arith.constant 0 : index
    %c23_188 = arith.constant 23 : index
    %237 = vector.load %arg13[%c0_187, %c23_188] : memref<10x622xbf16, #tpu.memory_space<vmem>>, vector<8x488xbf16>
    %238 = vector.extract_strided_slice %237 {offsets = [0, 0], sizes = [8, 484], strides = [1, 1]} : vector<8x488xbf16> to vector<8x484xbf16>
    %c0_189 = arith.constant 0 : index
    %c0_190 = arith.constant 0 : index
    %c0_191 = arith.constant 0 : index
    %239 = vector.load %arg7[%c0_189, %c0_190, %c0_191] : memref<9x8x8xbf16, #tpu.memory_space<vmem>>, vector<1x8x8xbf16>
    %240 = vector.shape_cast %239 : vector<1x8x8xbf16> to vector<8x8xbf16>
    %cst_192 = arith.constant dense<0.000000e+00> : vector<8x484xf32>
    %241 = tpu.matmul %240, %238, %cst_192 {dimension_numbers = #tpu.dot_dimension_numbers<[1], [0], [0], [1], [0, 0, 1, 1], [], []>} : vector<8x8xbf16>, vector<8x484xbf16>, vector<8x484xf32> -> vector<8x484xf32>
    %242 = vector.extract_strided_slice %237 {offsets = [0, 2], sizes = [8, 484], strides = [1, 1]} : vector<8x488xbf16> to vector<8x484xbf16>
    %c1_193 = arith.constant 1 : index
    %c0_194 = arith.constant 0 : index
    %c0_195 = arith.constant 0 : index
    %243 = vector.load %arg7[%c1_193, %c0_194, %c0_195] : memref<9x8x8xbf16, #tpu.memory_space<vmem>>, vector<1x8x8xbf16>
    %244 = vector.shape_cast %243 : vector<1x8x8xbf16> to vector<8x8xbf16>
    %cst_196 = arith.constant dense<0.000000e+00> : vector<8x484xf32>
    %245 = tpu.matmul %244, %242, %cst_196 {dimension_numbers = #tpu.dot_dimension_numbers<[1], [0], [0], [1], [0, 0, 1, 1], [], []>} : vector<8x8xbf16>, vector<8x484xbf16>, vector<8x484xf32> -> vector<8x484xf32>
    %246 = arith.addf %241, %245 : vector<8x484xf32>
    %247 = vector.extract_strided_slice %237 {offsets = [0, 4], sizes = [8, 484], strides = [1, 1]} : vector<8x488xbf16> to vector<8x484xbf16>
    %c2_197 = arith.constant 2 : index
    %c0_198 = arith.constant 0 : index
    %c0_199 = arith.constant 0 : index
    %248 = vector.load %arg7[%c2_197, %c0_198, %c0_199] : memref<9x8x8xbf16, #tpu.memory_space<vmem>>, vector<1x8x8xbf16>
    %249 = vector.shape_cast %248 : vector<1x8x8xbf16> to vector<8x8xbf16>
    %cst_200 = arith.constant dense<0.000000e+00> : vector<8x484xf32>
    %250 = tpu.matmul %249, %247, %cst_200 {dimension_numbers = #tpu.dot_dimension_numbers<[1], [0], [0], [1], [0, 0, 1, 1], [], []>} : vector<8x8xbf16>, vector<8x484xbf16>, vector<8x484xf32> -> vector<8x484xf32>
    %251 = arith.addf %246, %250 : vector<8x484xf32>
    %c0_201 = arith.constant 0 : index
    %c67_202 = arith.constant 67 : index
    %252 = vector.load %arg13[%c0_201, %c67_202] : memref<10x622xbf16, #tpu.memory_space<vmem>>, vector<8x488xbf16>
    %253 = vector.extract_strided_slice %252 {offsets = [0, 0], sizes = [8, 484], strides = [1, 1]} : vector<8x488xbf16> to vector<8x484xbf16>
    %c3_203 = arith.constant 3 : index
    %c0_204 = arith.constant 0 : index
    %c0_205 = arith.constant 0 : index
    %254 = vector.load %arg7[%c3_203, %c0_204, %c0_205] : memref<9x8x8xbf16, #tpu.memory_space<vmem>>, vector<1x8x8xbf16>
    %255 = vector.shape_cast %254 : vector<1x8x8xbf16> to vector<8x8xbf16>
    %cst_206 = arith.constant dense<0.000000e+00> : vector<8x484xf32>
    %256 = tpu.matmul %255, %253, %cst_206 {dimension_numbers = #tpu.dot_dimension_numbers<[1], [0], [0], [1], [0, 0, 1, 1], [], []>} : vector<8x8xbf16>, vector<8x484xbf16>, vector<8x484xf32> -> vector<8x484xf32>
    %257 = vector.extract_strided_slice %252 {offsets = [0, 2], sizes = [8, 484], strides = [1, 1]} : vector<8x488xbf16> to vector<8x484xbf16>
    %c4_207 = arith.constant 4 : index
    %c0_208 = arith.constant 0 : index
    %c0_209 = arith.constant 0 : index
    %258 = vector.load %arg7[%c4_207, %c0_208, %c0_209] : memref<9x8x8xbf16, #tpu.memory_space<vmem>>, vector<1x8x8xbf16>
    %259 = vector.shape_cast %258 : vector<1x8x8xbf16> to vector<8x8xbf16>
    %cst_210 = arith.constant dense<0.000000e+00> : vector<8x484xf32>
    %260 = tpu.matmul %259, %257, %cst_210 {dimension_numbers = #tpu.dot_dimension_numbers<[1], [0], [0], [1], [0, 0, 1, 1], [], []>} : vector<8x8xbf16>, vector<8x484xbf16>, vector<8x484xf32> -> vector<8x484xf32>
    %261 = arith.addf %256, %260 : vector<8x484xf32>
    %262 = vector.extract_strided_slice %252 {offsets = [0, 4], sizes = [8, 484], strides = [1, 1]} : vector<8x488xbf16> to vector<8x484xbf16>
    %c5_211 = arith.constant 5 : index
    %c0_212 = arith.constant 0 : index
    %c0_213 = arith.constant 0 : index
    %263 = vector.load %arg7[%c5_211, %c0_212, %c0_213] : memref<9x8x8xbf16, #tpu.memory_space<vmem>>, vector<1x8x8xbf16>
    %264 = vector.shape_cast %263 : vector<1x8x8xbf16> to vector<8x8xbf16>
    %cst_214 = arith.constant dense<0.000000e+00> : vector<8x484xf32>
    %265 = tpu.matmul %264, %262, %cst_214 {dimension_numbers = #tpu.dot_dimension_numbers<[1], [0], [0], [1], [0, 0, 1, 1], [], []>} : vector<8x8xbf16>, vector<8x484xbf16>, vector<8x484xf32> -> vector<8x484xf32>
    %266 = arith.addf %261, %265 : vector<8x484xf32>
    %267 = arith.addf %251, %266 : vector<8x484xf32>
    %c0_215 = arith.constant 0 : index
    %c111_216 = arith.constant 111 : index
    %268 = vector.load %arg13[%c0_215, %c111_216] : memref<10x622xbf16, #tpu.memory_space<vmem>>, vector<8x488xbf16>
    %269 = vector.extract_strided_slice %268 {offsets = [0, 0], sizes = [8, 484], strides = [1, 1]} : vector<8x488xbf16> to vector<8x484xbf16>
    %c6_217 = arith.constant 6 : index
    %c0_218 = arith.constant 0 : index
    %c0_219 = arith.constant 0 : index
    %270 = vector.load %arg7[%c6_217, %c0_218, %c0_219] : memref<9x8x8xbf16, #tpu.memory_space<vmem>>, vector<1x8x8xbf16>
    %271 = vector.shape_cast %270 : vector<1x8x8xbf16> to vector<8x8xbf16>
    %cst_220 = arith.constant dense<0.000000e+00> : vector<8x484xf32>
    %272 = tpu.matmul %271, %269, %cst_220 {dimension_numbers = #tpu.dot_dimension_numbers<[1], [0], [0], [1], [0, 0, 1, 1], [], []>} : vector<8x8xbf16>, vector<8x484xbf16>, vector<8x484xf32> -> vector<8x484xf32>
    %273 = vector.extract_strided_slice %268 {offsets = [0, 2], sizes = [8, 484], strides = [1, 1]} : vector<8x488xbf16> to vector<8x484xbf16>
    %c7_221 = arith.constant 7 : index
    %c0_222 = arith.constant 0 : index
    %c0_223 = arith.constant 0 : index
    %274 = vector.load %arg7[%c7_221, %c0_222, %c0_223] : memref<9x8x8xbf16, #tpu.memory_space<vmem>>, vector<1x8x8xbf16>
    %275 = vector.shape_cast %274 : vector<1x8x8xbf16> to vector<8x8xbf16>
    %cst_224 = arith.constant dense<0.000000e+00> : vector<8x484xf32>
    %276 = tpu.matmul %275, %273, %cst_224 {dimension_numbers = #tpu.dot_dimension_numbers<[1], [0], [0], [1], [0, 0, 1, 1], [], []>} : vector<8x8xbf16>, vector<8x484xbf16>, vector<8x484xf32> -> vector<8x484xf32>
    %277 = arith.addf %272, %276 : vector<8x484xf32>
    %278 = vector.extract_strided_slice %268 {offsets = [0, 4], sizes = [8, 484], strides = [1, 1]} : vector<8x488xbf16> to vector<8x484xbf16>
    %c8_225 = arith.constant 8 : index
    %c0_226 = arith.constant 0 : index
    %c0_227 = arith.constant 0 : index
    %279 = vector.load %arg7[%c8_225, %c0_226, %c0_227] : memref<9x8x8xbf16, #tpu.memory_space<vmem>>, vector<1x8x8xbf16>
    %280 = vector.shape_cast %279 : vector<1x8x8xbf16> to vector<8x8xbf16>
    %cst_228 = arith.constant dense<0.000000e+00> : vector<8x484xf32>
    %281 = tpu.matmul %280, %278, %cst_228 {dimension_numbers = #tpu.dot_dimension_numbers<[1], [0], [0], [1], [0, 0, 1, 1], [], []>} : vector<8x8xbf16>, vector<8x484xbf16>, vector<8x484xf32> -> vector<8x484xf32>
    %282 = arith.addf %277, %281 : vector<8x484xf32>
    %283 = arith.addf %267, %282 : vector<8x484xf32>
    %284 = vector.broadcast %236 : vector<8x1xf32> to vector<8x484xf32>
    %285 = arith.addf %283, %284 : vector<8x484xf32>
    %cst_229 = arith.constant 0.000000e+00 : f32
    %286 = vector.broadcast %cst_229 : f32 to vector<8x484xf32>
    %287 = arith.maximumf %285, %286 : vector<8x484xf32>
    %288 = vector.extract_strided_slice %287 {offsets = [0, 0], sizes = [1, 484], strides = [1, 1]} : vector<8x484xf32> to vector<1x484xf32>
    %289 = arith.mulf %288, %6 : vector<1x484xf32>
    %290 = arith.truncf %289 : vector<1x484xf32> to vector<1x484xbf16>
    %c8_230 = arith.constant 8 : index
    %c69_231 = arith.constant 69 : index
    %291 = vector.load %arg13[%c8_230, %c69_231] : memref<10x622xbf16, #tpu.memory_space<vmem>>, vector<1x484xbf16>
    tpu.vector_store %arg13[%c8_230, %c69_231], %290 {strides = array<i32>} : memref<10x622xbf16, #tpu.memory_space<vmem>>, vector<1x484xbf16>,
    %c5_232 = arith.constant 5 : index
    %c0_233 = arith.constant 0 : index
    %c0_234 = arith.constant 0 : index
    %292 = vector.load %arg9[%c5_232, %c0_233, %c0_234] : memref<6x8x1xf32, #tpu.memory_space<vmem>>, vector<1x8x1xf32>
    %293 = vector.shape_cast %292 : vector<1x8x1xf32> to vector<8x1xf32>
    %c0_235 = arith.constant 0 : index
    %c0_236 = arith.constant 0 : index
    %294 = vector.load %arg13[%c0_235, %c0_236] : memref<10x622xbf16, #tpu.memory_space<vmem>>, vector<9x490xbf16>
    %295 = vector.extract_strided_slice %294 {offsets = [0, 0], sizes = [9, 484], strides = [1, 1]} : vector<9x490xbf16> to vector<9x484xbf16>
    %c0_237 = arith.constant 0 : index
    %c0_238 = arith.constant 0 : index
    %c0_239 = arith.constant 0 : index
    %296 = vector.load %arg8[%c0_237, %c0_238, %c0_239] : memref<9x8x9xbf16, #tpu.memory_space<vmem>>, vector<1x8x9xbf16>
    %297 = vector.shape_cast %296 : vector<1x8x9xbf16> to vector<8x9xbf16>
    %cst_240 = arith.constant dense<0.000000e+00> : vector<8x484xf32>
    %298 = tpu.matmul %297, %295, %cst_240 {dimension_numbers = #tpu.dot_dimension_numbers<[1], [0], [0], [1], [0, 0, 1, 1], [], []>} : vector<8x9xbf16>, vector<9x484xbf16>, vector<8x484xf32> -> vector<8x484xf32>
    %299 = vector.extract_strided_slice %294 {offsets = [0, 3], sizes = [9, 484], strides = [1, 1]} : vector<9x490xbf16> to vector<9x484xbf16>
    %c1_241 = arith.constant 1 : index
    %c0_242 = arith.constant 0 : index
    %c0_243 = arith.constant 0 : index
    %300 = vector.load %arg8[%c1_241, %c0_242, %c0_243] : memref<9x8x9xbf16, #tpu.memory_space<vmem>>, vector<1x8x9xbf16>
    %301 = vector.shape_cast %300 : vector<1x8x9xbf16> to vector<8x9xbf16>
    %cst_244 = arith.constant dense<0.000000e+00> : vector<8x484xf32>
    %302 = tpu.matmul %301, %299, %cst_244 {dimension_numbers = #tpu.dot_dimension_numbers<[1], [0], [0], [1], [0, 0, 1, 1], [], []>} : vector<8x9xbf16>, vector<9x484xbf16>, vector<8x484xf32> -> vector<8x484xf32>
    %303 = arith.addf %298, %302 : vector<8x484xf32>
    %304 = vector.extract_strided_slice %294 {offsets = [0, 6], sizes = [9, 484], strides = [1, 1]} : vector<9x490xbf16> to vector<9x484xbf16>
    %c2_245 = arith.constant 2 : index
    %c0_246 = arith.constant 0 : index
    %c0_247 = arith.constant 0 : index
    %305 = vector.load %arg8[%c2_245, %c0_246, %c0_247] : memref<9x8x9xbf16, #tpu.memory_space<vmem>>, vector<1x8x9xbf16>
    %306 = vector.shape_cast %305 : vector<1x8x9xbf16> to vector<8x9xbf16>
    %cst_248 = arith.constant dense<0.000000e+00> : vector<8x484xf32>
    %307 = tpu.matmul %306, %304, %cst_248 {dimension_numbers = #tpu.dot_dimension_numbers<[1], [0], [0], [1], [0, 0, 1, 1], [], []>} : vector<8x9xbf16>, vector<9x484xbf16>, vector<8x484xf32> -> vector<8x484xf32>
    %308 = arith.addf %303, %307 : vector<8x484xf32>
    %c0_249 = arith.constant 0 : index
    %c66_250 = arith.constant 66 : index
    %309 = vector.load %arg13[%c0_249, %c66_250] : memref<10x622xbf16, #tpu.memory_space<vmem>>, vector<9x490xbf16>
    %310 = vector.extract_strided_slice %309 {offsets = [0, 0], sizes = [9, 484], strides = [1, 1]} : vector<9x490xbf16> to vector<9x484xbf16>
    %c3_251 = arith.constant 3 : index
    %c0_252 = arith.constant 0 : index
    %c0_253 = arith.constant 0 : index
    %311 = vector.load %arg8[%c3_251, %c0_252, %c0_253] : memref<9x8x9xbf16, #tpu.memory_space<vmem>>, vector<1x8x9xbf16>
    %312 = vector.shape_cast %311 : vector<1x8x9xbf16> to vector<8x9xbf16>
    %cst_254 = arith.constant dense<0.000000e+00> : vector<8x484xf32>
    %313 = tpu.matmul %312, %310, %cst_254 {dimension_numbers = #tpu.dot_dimension_numbers<[1], [0], [0], [1], [0, 0, 1, 1], [], []>} : vector<8x9xbf16>, vector<9x484xbf16>, vector<8x484xf32> -> vector<8x484xf32>
    %314 = vector.extract_strided_slice %309 {offsets = [0, 3], sizes = [9, 484], strides = [1, 1]} : vector<9x490xbf16> to vector<9x484xbf16>
    %c4_255 = arith.constant 4 : index
    %c0_256 = arith.constant 0 : index
    %c0_257 = arith.constant 0 : index
    %315 = vector.load %arg8[%c4_255, %c0_256, %c0_257] : memref<9x8x9xbf16, #tpu.memory_space<vmem>>, vector<1x8x9xbf16>
    %316 = vector.shape_cast %315 : vector<1x8x9xbf16> to vector<8x9xbf16>
    %cst_258 = arith.constant dense<0.000000e+00> : vector<8x484xf32>
    %317 = tpu.matmul %316, %314, %cst_258 {dimension_numbers = #tpu.dot_dimension_numbers<[1], [0], [0], [1], [0, 0, 1, 1], [], []>} : vector<8x9xbf16>, vector<9x484xbf16>, vector<8x484xf32> -> vector<8x484xf32>
    %318 = arith.addf %313, %317 : vector<8x484xf32>
    %319 = vector.extract_strided_slice %309 {offsets = [0, 6], sizes = [9, 484], strides = [1, 1]} : vector<9x490xbf16> to vector<9x484xbf16>
    %c5_259 = arith.constant 5 : index
    %c0_260 = arith.constant 0 : index
    %c0_261 = arith.constant 0 : index
    %320 = vector.load %arg8[%c5_259, %c0_260, %c0_261] : memref<9x8x9xbf16, #tpu.memory_space<vmem>>, vector<1x8x9xbf16>
    %321 = vector.shape_cast %320 : vector<1x8x9xbf16> to vector<8x9xbf16>
    %cst_262 = arith.constant dense<0.000000e+00> : vector<8x484xf32>
    %322 = tpu.matmul %321, %319, %cst_262 {dimension_numbers = #tpu.dot_dimension_numbers<[1], [0], [0], [1], [0, 0, 1, 1], [], []>} : vector<8x9xbf16>, vector<9x484xbf16>, vector<8x484xf32> -> vector<8x484xf32>
    %323 = arith.addf %318, %322 : vector<8x484xf32>
    %324 = arith.addf %308, %323 : vector<8x484xf32>
    %c0_263 = arith.constant 0 : index
    %c132_264 = arith.constant 132 : index
    %325 = vector.load %arg13[%c0_263, %c132_264] : memref<10x622xbf16, #tpu.memory_space<vmem>>, vector<9x490xbf16>
    %326 = vector.extract_strided_slice %325 {offsets = [0, 0], sizes = [9, 484], strides = [1, 1]} : vector<9x490xbf16> to vector<9x484xbf16>
    %c6_265 = arith.constant 6 : index
    %c0_266 = arith.constant 0 : index
    %c0_267 = arith.constant 0 : index
    %327 = vector.load %arg8[%c6_265, %c0_266, %c0_267] : memref<9x8x9xbf16, #tpu.memory_space<vmem>>, vector<1x8x9xbf16>
    %328 = vector.shape_cast %327 : vector<1x8x9xbf16> to vector<8x9xbf16>
    %cst_268 = arith.constant dense<0.000000e+00> : vector<8x484xf32>
    %329 = tpu.matmul %328, %326, %cst_268 {dimension_numbers = #tpu.dot_dimension_numbers<[1], [0], [0], [1], [0, 0, 1, 1], [], []>} : vector<8x9xbf16>, vector<9x484xbf16>, vector<8x484xf32> -> vector<8x484xf32>
    %330 = vector.extract_strided_slice %325 {offsets = [0, 3], sizes = [9, 484], strides = [1, 1]} : vector<9x490xbf16> to vector<9x484xbf16>
    %c7_269 = arith.constant 7 : index
    %c0_270 = arith.constant 0 : index
    %c0_271 = arith.constant 0 : index
    %331 = vector.load %arg8[%c7_269, %c0_270, %c0_271] : memref<9x8x9xbf16, #tpu.memory_space<vmem>>, vector<1x8x9xbf16>
    %332 = vector.shape_cast %331 : vector<1x8x9xbf16> to vector<8x9xbf16>
    %cst_272 = arith.constant dense<0.000000e+00> : vector<8x484xf32>
    %333 = tpu.matmul %332, %330, %cst_272 {dimension_numbers = #tpu.dot_dimension_numbers<[1], [0], [0], [1], [0, 0, 1, 1], [], []>} : vector<8x9xbf16>, vector<9x484xbf16>, vector<8x484xf32> -> vector<8x484xf32>
    %334 = arith.addf %329, %333 : vector<8x484xf32>
    %335 = vector.extract_strided_slice %325 {offsets = [0, 6], sizes = [9, 484], strides = [1, 1]} : vector<9x490xbf16> to vector<9x484xbf16>
    %c8_273 = arith.constant 8 : index
    %c0_274 = arith.constant 0 : index
    %c0_275 = arith.constant 0 : index
    %336 = vector.load %arg8[%c8_273, %c0_274, %c0_275] : memref<9x8x9xbf16, #tpu.memory_space<vmem>>, vector<1x8x9xbf16>
    %337 = vector.shape_cast %336 : vector<1x8x9xbf16> to vector<8x9xbf16>
    %cst_276 = arith.constant dense<0.000000e+00> : vector<8x484xf32>
    %338 = tpu.matmul %337, %335, %cst_276 {dimension_numbers = #tpu.dot_dimension_numbers<[1], [0], [0], [1], [0, 0, 1, 1], [], []>} : vector<8x9xbf16>, vector<9x484xbf16>, vector<8x484xf32> -> vector<8x484xf32>
    %339 = arith.addf %334, %338 : vector<8x484xf32>
    %340 = arith.addf %324, %339 : vector<8x484xf32>
    %341 = vector.broadcast %293 : vector<8x1xf32> to vector<8x484xf32>
    %342 = arith.addf %340, %341 : vector<8x484xf32>
    %cst_277 = arith.constant 0.000000e+00 : f32
    %343 = vector.broadcast %cst_277 : f32 to vector<8x484xf32>
    %344 = arith.maximumf %342, %343 : vector<8x484xf32>
    %345 = vector.extract_strided_slice %344 {offsets = [0, 0], sizes = [1, 484], strides = [1, 1]} : vector<8x484xf32> to vector<1x484xf32>
    %346 = arith.mulf %345, %6 : vector<1x484xf32>
    %347 = arith.truncf %346 : vector<1x484xf32> to vector<1x484xbf16>
    %c9 = arith.constant 9 : index
    %c69_278 = arith.constant 69 : index
    %348 = vector.load %arg13[%c9, %c69_278] : memref<10x622xbf16, #tpu.memory_space<vmem>>, vector<1x484xbf16>
    tpu.vector_store %arg13[%c9, %c69_278], %347 {strides = array<i32>} : memref<10x622xbf16, #tpu.memory_space<vmem>>, vector<1x484xbf16>,
    %c0_279 = arith.constant 0 : index
    %c69_280 = arith.constant 69 : index
    %349 = vector.load %arg13[%c0_279, %c69_280] : memref<10x622xbf16, #tpu.memory_space<vmem>>, vector<4x484xbf16>
    %350 = arith.extf %349 : vector<4x484xbf16> to vector<4x484xf32>
    %cst_281 = arith.constant 5.000000e-01 : f32
    %351 = vector.broadcast %cst_281 : f32 to vector<1x484xf32>
    %352 = arith.cmpf ogt, %6, %351 : vector<1x484xf32>
    %cst_282 = arith.constant -3.40282347E+38 : f32
    %353 = vector.shape_cast %352 : vector<1x484xi1> to vector<1x484xi1>
    %354 = vector.broadcast %353 : vector<1x484xi1> to vector<4x484xi1>
    %355 = vector.broadcast %cst_282 : f32 to vector<4x484xf32>
    %356 = arith.select %354, %350, %355 : vector<4x484xi1>, vector<4x484xf32>
    %cst_283 = arith.constant dense<0xFF800000> : vector<4xf32>
    %357 = vector.multi_reduction <maximumf>, %356, %cst_283 [1] : vector<4x484xf32> to vector<4xf32>
    %358 = vector.shape_cast %357 : vector<4xf32> to vector<4x1xf32>
    %c4_284 = arith.constant 4 : index
    %c69_285 = arith.constant 69 : index
    %359 = vector.load %arg13[%c4_284, %c69_285] : memref<10x622xbf16, #tpu.memory_space<vmem>>, vector<6x484xbf16>
    %360 = arith.extf %359 : vector<6x484xbf16> to vector<6x484xf32>
    %cst_286 = arith.constant dense<0xFF800000> : vector<6xf32>
    %361 = vector.multi_reduction <maximumf>, %360, %cst_286 [1] : vector<6x484xf32> to vector<6xf32>
    %362 = vector.shape_cast %361 : vector<6xf32> to vector<6x1xf32>
    %c0_287 = arith.constant 0 : index
    %c0_288 = arith.constant 0 : index
    %363 = vector.load %arg10[%c0_287, %c0_288] : memref<10x128xf32, #tpu.memory_space<vmem>>, vector<4x128xf32>
    %364 = vector.broadcast %358 : vector<4x1xf32> to vector<4x128xf32>
    %365 = arith.mulf %363, %364 : vector<4x128xf32>
    %cst_289 = arith.constant dense<0.000000e+00> : vector<128xf32>
    %366 = vector.multi_reduction <add>, %365, %cst_289 [0] : vector<4x128xf32> to vector<128xf32>
    %367 = vector.shape_cast %366 : vector<128xf32> to vector<1x128xf32>
    %c4_290 = arith.constant 4 : index
    %c0_291 = arith.constant 0 : index
    %368 = vector.load %arg10[%c4_290, %c0_291] : memref<10x128xf32, #tpu.memory_space<vmem>>, vector<6x128xf32>
    %369 = vector.broadcast %362 : vector<6x1xf32> to vector<6x128xf32>
    %370 = arith.mulf %368, %369 : vector<6x128xf32>
    %cst_292 = arith.constant dense<0.000000e+00> : vector<128xf32>
    %371 = vector.multi_reduction <add>, %370, %cst_292 [0] : vector<6x128xf32> to vector<128xf32>
    %372 = vector.shape_cast %371 : vector<128xf32> to vector<1x128xf32>
    %373 = arith.addf %367, %372 : vector<1x128xf32>
    %c0_293 = arith.constant 0 : index
    %c0_294 = arith.constant 0 : index
    %374 = vector.load %arg11[%c0_293, %c0_294] : memref<1x128xf32, #tpu.memory_space<vmem>>, vector<1x128xf32>
    %375 = arith.addf %373, %374 : vector<1x128xf32>
    %c0_295 = arith.constant 0 : index
    %c0_296 = arith.constant 0 : index
    %c0_297 = arith.constant 0 : index
    %376 = vector.load %arg12[%c0_295, %c0_296, %c0_297] : memref<1x1x128xf32, #tpu.memory_space<vmem>>, vector<1x1x128xf32>
    %377 = vector.shape_cast %376 : vector<1x1x128xf32> to vector<1x128xf32>
    %378 = vector.shape_cast %375 : vector<1x128xf32> to vector<1x1x128xf32>
    tpu.vector_store %arg12[%c0_295, %c0_296, %c0_297], %378 {strides = array<i32>} : memref<1x1x128xf32, #tpu.memory_space<vmem>>, vector<1x1x128xf32>,
    return
  }
  func.func @transform_0(%arg0: i32) -> (i32, i32, i32) {
    %c0_i32 = arith.constant 0 : i32
    %c0_i32_0 = arith.constant 0 : i32
    %c0_i32_1 = arith.constant 0 : i32
    return %arg0, %c0_i32, %c0_i32_0 : i32, i32, i32
  }
  func.func @transform_1(%arg0: i32) -> (i32, i32) {
    %c0_i32 = arith.constant 0 : i32
    %c0_i32_0 = arith.constant 0 : i32
    %c0_i32_1 = arith.constant 0 : i32
    return %c0_i32, %c0_i32_0 : i32, i32
  }
  func.func @transform_2(%arg0: i32) -> (i32, i32, i32) {
    %c0_i32 = arith.constant 0 : i32
    %c0_i32_0 = arith.constant 0 : i32
    %c0_i32_1 = arith.constant 0 : i32
    %c0_i32_2 = arith.constant 0 : i32
    return %c0_i32, %c0_i32_0, %c0_i32_1 : i32, i32, i32
  }
  func.func @transform_3(%arg0: i32) -> (i32, i32, i32) {
    %c0_i32 = arith.constant 0 : i32
    %c0_i32_0 = arith.constant 0 : i32
    %c0_i32_1 = arith.constant 0 : i32
    %c0_i32_2 = arith.constant 0 : i32
    return %c0_i32, %c0_i32_0, %c0_i32_1 : i32, i32, i32
  }
  func.func @transform_4(%arg0: i32) -> (i32, i32, i32) {
    %c0_i32 = arith.constant 0 : i32
    %c0_i32_0 = arith.constant 0 : i32
    %c0_i32_1 = arith.constant 0 : i32
    %c0_i32_2 = arith.constant 0 : i32
    return %c0_i32, %c0_i32_0, %c0_i32_1 : i32, i32, i32
  }
  func.func @transform_5(%arg0: i32) -> (i32, i32, i32) {
    %c0_i32 = arith.constant 0 : i32
    %c0_i32_0 = arith.constant 0 : i32
    %c0_i32_1 = arith.constant 0 : i32
    %c0_i32_2 = arith.constant 0 : i32
    return %c0_i32, %c0_i32_0, %c0_i32_1 : i32, i32, i32
  }
  func.func @transform_6(%arg0: i32) -> (i32, i32, i32) {
    %c0_i32 = arith.constant 0 : i32
    %c0_i32_0 = arith.constant 0 : i32
    %c0_i32_1 = arith.constant 0 : i32
    %c0_i32_2 = arith.constant 0 : i32
    return %c0_i32, %c0_i32_0, %c0_i32_1 : i32, i32, i32
  }
  func.func @transform_7(%arg0: i32) -> (i32, i32, i32) {
    %c0_i32 = arith.constant 0 : i32
    %c0_i32_0 = arith.constant 0 : i32
    %c0_i32_1 = arith.constant 0 : i32
    %c0_i32_2 = arith.constant 0 : i32
    return %c0_i32, %c0_i32_0, %c0_i32_1 : i32, i32, i32
  }
  func.func @transform_8(%arg0: i32) -> (i32, i32, i32) {
    %c0_i32 = arith.constant 0 : i32
    %c0_i32_0 = arith.constant 0 : i32
    %c0_i32_1 = arith.constant 0 : i32
    %c0_i32_2 = arith.constant 0 : i32
    return %c0_i32, %c0_i32_0, %c0_i32_1 : i32, i32, i32
  }
  func.func @transform_9(%arg0: i32) -> (i32, i32) {
    %c0_i32 = arith.constant 0 : i32
    %c0_i32_0 = arith.constant 0 : i32
    %c0_i32_1 = arith.constant 0 : i32
    return %c0_i32, %c0_i32_0 : i32, i32
  }
  func.func @transform_10(%arg0: i32) -> (i32, i32) {
    %c0_i32 = arith.constant 0 : i32
    %c0_i32_0 = arith.constant 0 : i32
    %c0_i32_1 = arith.constant 0 : i32
    return %c0_i32, %c0_i32_0 : i32, i32
  }
  func.func @transform_11(%arg0: i32) -> (i32, i32, i32) {
    %c0_i32 = arith.constant 0 : i32
    %c0_i32_0 = arith.constant 0 : i32
    %c0_i32_1 = arith.constant 0 : i32
    return %arg0, %c0_i32, %c0_i32_0 : i32, i32, i32
  }
}

</mosaic_0001>

<llo_original>
// kernel: tpu_custom_call.1
$region0: #{tpu_custom_call.1}
  #allocation0 [shape = 'u32[]', space=smem, size = 0x4, offset = 0x4, fixed_abs, tag = 'smem constant byte address 0x4 - core index']
  #allocation1 [shape = 'u32[144,128]{1,0:T(1,128)}', space=vmem, size = 0x12000, scoped, tag = 'internal scratch']
  #allocation2 [shape = 'bf16[10,622]{1,0:T(8,128)(2,1)}', space=vmem, size = 0x5000, scoped, tag = 'scratch operand']
  %s0 = inlined_call_operand.vmem [shape: bf16[2,4,622], index: 0, kind: input, shape index: {}]
  %s1 = inlined_call_operand.vmem [shape: f32[1,484], index: 1, kind: input, shape index: {}]
  %s2 = inlined_call_operand.vmem [shape: bf16[9,8,4], index: 2, kind: input, shape index: {}]
  %s3 = inlined_call_operand.vmem [shape: bf16[9,8,5], index: 3, kind: input, shape index: {}]
  %s4 = inlined_call_operand.vmem [shape: bf16[9,8,6], index: 4, kind: input, shape index: {}]
  %s5 = inlined_call_operand.vmem [shape: bf16[9,8,7], index: 5, kind: input, shape index: {}]
  %s6 = inlined_call_operand.vmem [shape: bf16[9,8,8], index: 6, kind: input, shape index: {}]
  %s7 = inlined_call_operand.vmem [shape: bf16[9,8,9], index: 7, kind: input, shape index: {}]
  %s8 = inlined_call_operand.vmem [shape: f32[6,8,1], index: 8, kind: input, shape index: {}]
  %s9 = inlined_call_operand.vmem [shape: f32[10,128], index: 9, kind: input, shape index: {}]
  %s10 = inlined_call_operand.vmem [shape: f32[1,128], index: 10, kind: input, shape index: {}]
  %s11 = inlined_call_operand.hbm [shape: f32[2,1,128], index: 11, kind: output, shape index: {}]
  %s12 = sld [smem:[#allocation0]]
  $region77: #{tpu_custom_call.1} parent=0
    _
  %s14 = ssub.s32 1, %s12
  %s15 = scalar_select 0, %s14, %s12
  $region1: #{tpu_custom_call.1} parent=0
    #allocation3 [shape = 'u8[1024]{0}', space=vmem, size = 0x400, scoped, tag = 'output window, operand 0']
    #allocation4 [shape = 's32[2]{0}', space=sflag, size = 0x8, scoped, tag = 'scoped memory for tpu_custom_call.1']
    %16 = vsyncpa [#allocation4], 0
    %s17 = scalar_lea.sflag [#allocation4], 1
    %18 = vsyncpa %s17, 0
    loop: start=0, step=1, limit=4
    $region2: #{tpu_custom_call.1} parent=1 // loop_pre_header
      _
    $region3: #{tpu_custom_call.1} parent=1 // loop_header
      %s20 = sphi 0, %s24
      %p21 = scmp.ge.s32.totalorder %s20, 4
      %s30 = sphi 0, %s32
      %s33 = sphi 0, %s30
      %s34 = sphi 0, %s33
      %s50 = sphi 0, %s34
      %s54 = sphi 0, %s54
      %s56 = sphi 0, %s54
      %s57 = sphi 0, %s56
      %s71 = sphi 0, %s57
      %s75 = sphi 0, %s75
      %s77 = sphi 0, %s75
      %s78 = sphi 0, %s77
      %s92 = sphi 0, %s78
      %s96 = sphi 0, %s96
      %s98 = sphi 0, %s96
      %s99 = sphi 0, %s98
      %s113 = sphi 0, %s99
      %s117 = sphi 0, %s117
      %s119 = sphi 0, %s117
      %s120 = sphi 0, %s119
      %s134 = sphi 0, %s120
      %s138 = sphi 0, %s138
      %s140 = sphi 0, %s138
      %s141 = sphi 0, %s140
      %s155 = sphi 0, %s141
      %s159 = sphi 0, %s159
      %s161 = sphi 0, %s159
      %s162 = sphi 0, %s161
      %s176 = sphi 0, %s162
      %s180 = sphi 0, %s180
      %s182 = sphi 0, %s180
      %s183 = sphi 0, %s182
      %s197 = sphi 0, %s183
      %s201 = sphi 0, %s201
      %s203 = sphi 0, %s201
      %s204 = sphi 0, %s203
      %s218 = sphi 0, %s204
      %s222 = sphi 0, %s222
      %s224 = sphi 0, %s222
      %s225 = sphi 0, %s224
      %s239 = sphi 0, %s225
      %s243 = sphi 0, %s243
      %s245 = sphi 0, %s243
      %s246 = sphi 0, %s245
      %s260 = sphi 0, %s246
      %s266 = sphi 0, %s268
      %s269 = sphi 0, %s266
      %s270 = sphi 0, %s269
      %s286 = sphi 0, %s270
    $region4: #{tpu_custom_call.1} parent=1 // loop_header_branch
      %23 = sbr.rel (%p21) target = $region8
    $region5: #{tpu_custom_call.1} parent=1 // loop_body
      %s25 = ssub.s32 %s20, 1
      %s26 = ssub.s32 %s20, 2
      %s27 = sadd.s32 %s20, 1
      %s28 = ssub.s32 %s20, %s27
      %p29 = scmp.eq.s32.totalorder %s28, 0
      %s31 = sadd.s32 %s30, 1
      %s32 = scalar_select %p29, %s30, %s31
      %p35 = pneg %p29
      %p36 = scmp.eq.s32.totalorder %s20, 1
      %p37 = por %p35, %p36
      %p38 = scmp.ne.s32.totalorder %s30, %s33
      %p39 = scmp.eq.s32.totalorder %s20, 0
      %p40 = por %p38, %p39
      %p41 = scmp.ne.s32.totalorder %s30, %s33
      %p42 = scmp.eq.s32.totalorder %s25, 1
      %p43 = por %p41, %p42
      %p44 = scmp.ne.s32.totalorder %s33, %s34
      %p45 = scmp.eq.s32.totalorder %s25, 0
      %p46 = por %p44, %p45
      %p47 = scmp.ne.s32.totalorder %s33, %s34
      %p48 = scmp.eq.s32.totalorder %s26, 1
      %p49 = por %p47, %p48
      %p51 = scmp.ne.s32.totalorder %s34, %s50
      %p52 = scmp.eq.s32.totalorder %s26, 0
      %p53 = por %p51, %p52
      %s55 = sadd.s32 %s54, 1
      %p58 = scmp.eq.s32.totalorder %s20, 1
      %p59 = scmp.ne.s32.totalorder %s54, %s56
      %p60 = scmp.eq.s32.totalorder %s20, 0
      %p61 = por %p59, %p60
      %p62 = scmp.ne.s32.totalorder %s54, %s56
      %p63 = scmp.eq.s32.totalorder %s25, 1
      %p64 = por %p62, %p63
      %p65 = scmp.ne.s32.totalorder %s56, %s57
      %p66 = scmp.eq.s32.totalorder %s25, 0
      %p67 = por %p65, %p66
      %p68 = scmp.ne.s32.totalorder %s56, %s57
      %p69 = scmp.eq.s32.totalorder %s26, 1
      %p70 = por %p68, %p69
      %p72 = scmp.ne.s32.totalorder %s57, %s71
      %p73 = scmp.eq.s32.totalorder %s26, 0
      %p74 = por %p72, %p73
      %s76 = sadd.s32 %s75, 1
      %p79 = scmp.eq.s32.totalorder %s20, 1
      %p80 = scmp.ne.s32.totalorder %s75, %s77
      %p81 = scmp.eq.s32.totalorder %s20, 0
      %p82 = por %p80, %p81
      %p83 = scmp.ne.s32.totalorder %s75, %s77
      %p84 = scmp.eq.s32.totalorder %s25, 1
      %p85 = por %p83, %p84
      %p86 = scmp.ne.s32.totalorder %s77, %s78
      %p87 = scmp.eq.s32.totalorder %s25, 0
      %p88 = por %p86, %p87
      %p89 = scmp.ne.s32.totalorder %s77, %s78
      %p90 = scmp.eq.s32.totalorder %s26, 1
      %p91 = por %p89, %p90
      %p93 = scmp.ne.s32.totalorder %s78, %s92
      %p94 = scmp.eq.s32.totalorder %s26, 0
      %p95 = por %p93, %p94
      %s97 = sadd.s32 %s96, 1
      %p100 = scmp.eq.s32.totalorder %s20, 1
      %p101 = scmp.ne.s32.totalorder %s96, %s98
      %p102 = scmp.eq.s32.totalorder %s20, 0
      %p103 = por %p101, %p102
      %p104 = scmp.ne.s32.totalorder %s96, %s98
      %p105 = scmp.eq.s32.totalorder %s25, 1
      %p106 = por %p104, %p105
      %p107 = scmp.ne.s32.totalorder %s98, %s99
      %p108 = scmp.eq.s32.totalorder %s25, 0
      %p109 = por %p107, %p108
      %p110 = scmp.ne.s32.totalorder %s98, %s99
      %p111 = scmp.eq.s32.totalorder %s26, 1
      %p112 = por %p110, %p111
      %p114 = scmp.ne.s32.totalorder %s99, %s113
      %p115 = scmp.eq.s32.totalorder %s26, 0
      %p116 = por %p114, %p115
      %s118 = sadd.s32 %s117, 1
      %p121 = scmp.eq.s32.totalorder %s20, 1
      %p122 = scmp.ne.s32.totalorder %s117, %s119
      %p123 = scmp.eq.s32.totalorder %s20, 0
      %p124 = por %p122, %p123
      %p125 = scmp.ne.s32.totalorder %s117, %s119
      %p126 = scmp.eq.s32.totalorder %s25, 1
      %p127 = por %p125, %p126
      %p128 = scmp.ne.s32.totalorder %s119, %s120
      %p129 = scmp.eq.s32.totalorder %s25, 0
      %p130 = por %p128, %p129
      %p131 = scmp.ne.s32.totalorder %s119, %s120
      %p132 = scmp.eq.s32.totalorder %s26, 1
      %p133 = por %p131, %p132
      %p135 = scmp.ne.s32.totalorder %s120, %s134
      %p136 = scmp.eq.s32.totalorder %s26, 0
      %p137 = por %p135, %p136
      %s139 = sadd.s32 %s138, 1
      %p142 = scmp.eq.s32.totalorder %s20, 1
      %p143 = scmp.ne.s32.totalorder %s138, %s140
      %p144 = scmp.eq.s32.totalorder %s20, 0
      %p145 = por %p143, %p144
      %p146 = scmp.ne.s32.totalorder %s138, %s140
      %p147 = scmp.eq.s32.totalorder %s25, 1
      %p148 = por %p146, %p147
      %p149 = scmp.ne.s32.totalorder %s140, %s141
      %p150 = scmp.eq.s32.totalorder %s25, 0
      %p151 = por %p149, %p150
      %p152 = scmp.ne.s32.totalorder %s140, %s141
      %p153 = scmp.eq.s32.totalorder %s26, 1
      %p154 = por %p152, %p153
      %p156 = scmp.ne.s32.totalorder %s141, %s155
      %p157 = scmp.eq.s32.totalorder %s26, 0
      %p158 = por %p156, %p157
      %s160 = sadd.s32 %s159, 1
      %p163 = scmp.eq.s32.totalorder %s20, 1
      %p164 = scmp.ne.s32.totalorder %s159, %s161
      %p165 = scmp.eq.s32.totalorder %s20, 0
      %p166 = por %p164, %p165
      %p167 = scmp.ne.s32.totalorder %s159, %s161
      %p168 = scmp.eq.s32.totalorder %s25, 1
      %p169 = por %p167, %p168
      %p170 = scmp.ne.s32.totalorder %s161, %s162
      %p171 = scmp.eq.s32.totalorder %s25, 0
      %p172 = por %p170, %p171
      %p173 = scmp.ne.s32.totalorder %s161, %s162
      %p174 = scmp.eq.s32.totalorder %s26, 1
      %p175 = por %p173, %p174
      %p177 = scmp.ne.s32.totalorder %s162, %s176
      %p178 = scmp.eq.s32.totalorder %s26, 0
      %p179 = por %p177, %p178
      %s181 = sadd.s32 %s180, 1
      %p184 = scmp.eq.s32.totalorder %s20, 1
      %p185 = scmp.ne.s32.totalorder %s180, %s182
      %p186 = scmp.eq.s32.totalorder %s20, 0
      %p187 = por %p185, %p186
      %p188 = scmp.ne.s32.totalorder %s180, %s182
      %p189 = scmp.eq.s32.totalorder %s25, 1
      %p190 = por %p188, %p189
      %p191 = scmp.ne.s32.totalorder %s182, %s183
      %p192 = scmp.eq.s32.totalorder %s25, 0
      %p193 = por %p191, %p192
      %p194 = scmp.ne.s32.totalorder %s182, %s183
      %p195 = scmp.eq.s32.totalorder %s26, 1
      %p196 = por %p194, %p195
      %p198 = scmp.ne.s32.totalorder %s183, %s197
      %p199 = scmp.eq.s32.totalorder %s26, 0
      %p200 = por %p198, %p199
      %s202 = sadd.s32 %s201, 1
      %p205 = scmp.eq.s32.totalorder %s20, 1
      %p206 = scmp.ne.s32.totalorder %s201, %s203
      %p207 = scmp.eq.s32.totalorder %s20, 0
      %p208 = por %p206, %p207
      %p209 = scmp.ne.s32.totalorder %s201, %s203
      %p210 = scmp.eq.s32.totalorder %s25, 1
      %p211 = por %p209, %p210
      %p212 = scmp.ne.s32.totalorder %s203, %s204
      %p213 = scmp.eq.s32.totalorder %s25, 0
      %p214 = por %p212, %p213
      %p215 = scmp.ne.s32.totalorder %s203, %s204
      %p216 = scmp.eq.s32.totalorder %s26, 1
      %p217 = por %p215, %p216
      %p219 = scmp.ne.s32.totalorder %s204, %s218
      %p220 = scmp.eq.s32.totalorder %s26, 0
      %p221 = por %p219, %p220
      %s223 = sadd.s32 %s222, 1
      %p226 = scmp.eq.s32.totalorder %s20, 1
      %p227 = scmp.ne.s32.totalorder %s222, %s224
      %p228 = scmp.eq.s32.totalorder %s20, 0
      %p229 = por %p227, %p228
      %p230 = scmp.ne.s32.totalorder %s222, %s224
      %p231 = scmp.eq.s32.totalorder %s25, 1
      %p232 = por %p230, %p231
      %p233 = scmp.ne.s32.totalorder %s224, %s225
      %p234 = scmp.eq.s32.totalorder %s25, 0
      %p235 = por %p233, %p234
      %p236 = scmp.ne.s32.totalorder %s224, %s225
      %p237 = scmp.eq.s32.totalorder %s26, 1
      %p238 = por %p236, %p237
      %p240 = scmp.ne.s32.totalorder %s225, %s239
      %p241 = scmp.eq.s32.totalorder %s26, 0
      %p242 = por %p240, %p241
      %s244 = sadd.s32 %s243, 1
      %p247 = scmp.eq.s32.totalorder %s20, 1
      %p248 = scmp.ne.s32.totalorder %s243, %s245
      %p249 = scmp.eq.s32.totalorder %s20, 0
      %p250 = por %p248, %p249
      %p251 = scmp.ne.s32.totalorder %s243, %s245
      %p252 = scmp.eq.s32.totalorder %s25, 1
      %p253 = por %p251, %p252
      %p254 = scmp.ne.s32.totalorder %s245, %s246
      %p255 = scmp.eq.s32.totalorder %s25, 0
      %p256 = por %p254, %p255
      %p257 = scmp.ne.s32.totalorder %s245, %s246
      %p258 = scmp.eq.s32.totalorder %s26, 1
      %p259 = por %p257, %p258
      %p261 = scmp.ne.s32.totalorder %s246, %s260
      %p262 = scmp.eq.s32.totalorder %s26, 0
      %p263 = por %p261, %p262
      %s264 = ssub.s32 %s20, %s27
      %p265 = scmp.eq.s32.totalorder %s264, 0
      %s267 = sadd.s32 %s266, 1
      %s268 = scalar_select %p265, %s266, %s267
      %p271 = pneg %p265
      %p272 = scmp.eq.s32.totalorder %s20, 1
      %p273 = por %p271, %p272
      %p274 = scmp.ne.s32.totalorder %s266, %s269
      %p275 = scmp.eq.s32.totalorder %s20, 0
      %p276 = por %p274, %p275
      %p277 = scmp.ne.s32.totalorder %s266, %s269
      %p278 = scmp.eq.s32.totalorder %s25, 1
      %p279 = por %p277, %p278
      %p280 = scmp.ne.s32.totalorder %s269, %s270
      %p281 = scmp.eq.s32.totalorder %s25, 0
      %p282 = por %p280, %p281
      %p283 = scmp.ne.s32.totalorder %s269, %s270
      %p284 = scmp.eq.s32.totalorder %s26, 1
      %p285 = por %p283, %p284
      %p287 = scmp.ne.s32.totalorder %s270, %s286
      %p288 = scmp.eq.s32.totalorder %s26, 0
      %p289 = por %p287, %p288
      %p290 = scmp.le.s32.totalorder 1, %s20
      %p291 = scmp.lt.s32.totalorder %s20, 3
      %p292 = pnand %p290, %p291
      %p293 = pneg %p292
      // Predicated region
      $region9: #{tpu_custom_call.1} parent=5 // pred_check
        _
      $region10: #{tpu_custom_call.1} parent=5 // pred_check_branch
        %295 = sbr.rel (%p292) target = $region12
      $region11: #{tpu_custom_call.1} parent=5 // pred_region
        %s296 = ssub.s32 %s20, 1
        // Predicated region
        $region13: #{tpu_custom_call.1} parent=11 // pred_check
          %p297 = pneg %p67
        $region14: #{tpu_custom_call.1} parent=11 // pred_check_branch
          %299 = sbr.rel (%p297) target = $region16
        $region15: #{tpu_custom_call.1} parent=11 // pred_region
          _
        $region16: #{tpu_custom_call.1} parent=11 // pred_fallthru
          _
        // Predicated region
        $region17: #{tpu_custom_call.1} parent=11 // pred_check
          %p300 = pneg %p88
        $region18: #{tpu_custom_call.1} parent=11 // pred_check_branch
          %302 = sbr.rel (%p300) target = $region20
        $region19: #{tpu_custom_call.1} parent=11 // pred_region
          _
        $region20: #{tpu_custom_call.1} parent=11 // pred_fallthru
          _
        // Predicated region
        $region21: #{tpu_custom_call.1} parent=11 // pred_check
          %p303 = pneg %p109
        $region22: #{tpu_custom_call.1} parent=11 // pred_check_branch
          %305 = sbr.rel (%p303) target = $region24
        $region23: #{tpu_custom_call.1} parent=11 // pred_region
          _
        $region24: #{tpu_custom_call.1} parent=11 // pred_fallthru
          _
        // Predicated region
        $region25: #{tpu_custom_call.1} parent=11 // pred_check
          %p306 = pneg %p130
        $region26: #{tpu_custom_call.1} parent=11 // pred_check_branch
          %308 = sbr.rel (%p306) target = $region28
        $region27: #{tpu_custom_call.1} parent=11 // pred_region
          _
        $region28: #{tpu_custom_call.1} parent=11 // pred_fallthru
          _
        // Predicated region
        $region29: #{tpu_custom_call.1} parent=11 // pred_check
          %p309 = pneg %p151
        $region30: #{tpu_custom_call.1} parent=11 // pred_check_branch
          %311 = sbr.rel (%p309) target = $region32
        $region31: #{tpu_custom_call.1} parent=11 // pred_region
          _
        $region32: #{tpu_custom_call.1} parent=11 // pred_fallthru
          _
        // Predicated region
        $region33: #{tpu_custom_call.1} parent=11 // pred_check
          %p312 = pneg %p172
        $region34: #{tpu_custom_call.1} parent=11 // pred_check_branch
          %314 = sbr.rel (%p312) target = $region36
        $region35: #{tpu_custom_call.1} parent=11 // pred_region
          _
        $region36: #{tpu_custom_call.1} parent=11 // pred_fallthru
          _
        // Predicated region
        $region37: #{tpu_custom_call.1} parent=11 // pred_check
          %p315 = pneg %p193
        $region38: #{tpu_custom_call.1} parent=11 // pred_check_branch
          %317 = sbr.rel (%p315) target = $region40
        $region39: #{tpu_custom_call.1} parent=11 // pred_region
          _
        $region40: #{tpu_custom_call.1} parent=11 // pred_fallthru
          _
        // Predicated region
        $region41: #{tpu_custom_call.1} parent=11 // pred_check
          %p318 = pneg %p214
        $region42: #{tpu_custom_call.1} parent=11 // pred_check_branch
          %320 = sbr.rel (%p318) target = $region44
        $region43: #{tpu_custom_call.1} parent=11 // pred_region
          _
        $region44: #{tpu_custom_call.1} parent=11 // pred_fallthru
          _
        // Predicated region
        $region45: #{tpu_custom_call.1} parent=11 // pred_check
          %p321 = pneg %p235
        $region46: #{tpu_custom_call.1} parent=11 // pred_check_branch
          %323 = sbr.rel (%p321) target = $region48
        $region47: #{tpu_custom_call.1} parent=11 // pred_region
          _
        $region48: #{tpu_custom_call.1} parent=11 // pred_fallthru
          _
        // Predicated region
        $region49: #{tpu_custom_call.1} parent=11 // pred_check
          %p324 = pneg %p256
        $region50: #{tpu_custom_call.1} parent=11 // pred_check_branch
          %326 = sbr.rel (%p324) target = $region52
        $region51: #{tpu_custom_call.1} parent=11 // pred_region
          _
        $region52: #{tpu_custom_call.1} parent=11 // pred_fallthru
          _
      $region12: #{tpu_custom_call.1} parent=5 // pred_fallthru
        _
      %p327 = scmp.lt.s32.totalorder %s20, 2
      // Predicated region
      $region53: #{tpu_custom_call.1} parent=5 // pred_check
        %p328 = pneg %p327
      $region54: #{tpu_custom_call.1} parent=5 // pred_check_branch
        %330 = sbr.rel (%p328) target = $region56
      $region55: #{tpu_custom_call.1} parent=5 // pred_region
        // Predicated region
        $region57: #{tpu_custom_call.1} parent=55 // pred_check
          %p331 = pneg %p40
        $region58: #{tpu_custom_call.1} parent=55 // pred_check_branch
          %333 = sbr.rel (%p331) target = $region60
        $region59: #{tpu_custom_call.1} parent=55 // pred_region
          %p334 = scmp.lt.s32.totalorder %s20, 1
          %s335 = scalar_select %p334, %s20, 1
          %s336 = smul.addr %s335, 5
          %s337 = smul.addr %s336, 2
          %s338 = scalar_lea.vmem %s0, %s337
        $region60: #{tpu_custom_call.1} parent=55 // pred_fallthru
          _
      $region56: #{tpu_custom_call.1} parent=5 // pred_fallthru
        _
      %p339 = scmp.le.s32.totalorder 1, %s20
      %p340 = scmp.lt.s32.totalorder %s20, 3
      %p341 = pnand %p339, %p340
      %p342 = pneg %p341
      // Predicated region
      $region61: #{tpu_custom_call.1} parent=5 // pred_check
        _
      $region62: #{tpu_custom_call.1} parent=5 // pred_check_branch
        %344 = sbr.rel (%p341) target = $region64
      $region63: #{tpu_custom_call.1} parent=5 // pred_region
        %s345 = ssub.s32 %s20, 1
        %p346 = scmp.lt.s32.totalorder %s25, 1
        %s347 = scalar_select %p346, %s25, 1
        %s348 = smul.addr %s347, 5
        %s349 = smul.addr %s348, 2
        %s350 = scalar_lea.vmem %s0, %s349
        %p351 = pneg %p46
        %p352 = pneg %p43
        %p353 = pneg %p67
        %p354 = pneg %p64
        %p355 = pneg %p88
        %p356 = pneg %p85
        %p357 = pneg %p109
        %p358 = pneg %p106
        %p359 = pneg %p130
        %p360 = pneg %p127
        %p361 = pneg %p151
        %p362 = pneg %p148
        %p363 = pneg %p172
        %p364 = pneg %p169
        %p365 = pneg %p193
        %p366 = pneg %p190
        %p367 = pneg %p214
        %p368 = pneg %p211
        %p369 = pneg %p235
        %p370 = pneg %p232
        %p371 = pneg %p256
        %p372 = pneg %p253
        %p373 = pneg %p282
        %p374 = pneg %p279
        %s375 = sand.u32 %s269, 1
        %s376 = scalar_lea.sflag [#allocation4], %s375
        %s377 = sand.u32 %s269, 1
        %s378 = scalar_lea.vmem [#allocation3], %s377
        %p379 = scmp.lt.s32.totalorder %s25, 1
        %s380 = scalar_select %p379, %s25, 1
        %s381 = smul.addr %s380, 5
        %s382 = smul.addr %s381, 2
        %s383 = scalar_lea.vmem %s0, %s382
        %vm385 = vcmask 560130
        %386 = vst.msk [vmem:[#allocation2] sm:$0xc] %vm385, 0
        %vm387 = vcmask 557056
        %388 = vst.msk [vmem:[#allocation2 + $0x14] sm:$0x1] %vm387, 0
        %vm389 = vcmask 896330
        %390 = vst.msk [vmem:[#allocation2 + $0x10] sm:$0xc] %vm389, 0
        %vm391 = vcmask 893256
        %392 = vst.msk [vmem:[#allocation2 + $0x24] sm:$0x1] %vm391, 0
        %v393 = vld [vmem:[%s383] sm:$0xff]
        %v394 = vld [vmem:[%s383 + $0x8] sm:$0x3]
        %v397 = vcombine.high %v393, %v393
        %v399 = vunpack.c.l.s4 1983009808
        %v400 = vunpack.c.0.s8 %v399
        %v401 = vlaneseq
        %v402 = vshrl.u32 %v401, 7
        %v403 = vsub.s32 %v400, %v402
        %v404 = vrot.slane %v393, %v403
        %v406 = vunpack.c.l.s4 1983009808
        %v407 = vunpack.c.0.s8 %v406
        %v408 = vlaneseq
        %v409 = vshrl.u32 %v408, 7
        %v410 = vsub.s32 %v407, %v409
        %v411 = vrot.slane %v397, %v410
        %v413 = vunpack.c.l.s4 1983009808
        %v414 = vunpack.c.0.s8 %v413
        %v415 = vlaneseq
        %v416 = vshrl.u32 %v415, 7
        %v417 = vsub.s32 %v414, %v416
        %v418 = vrot.slane %v394, %v417
        %422 = vst [vmem:[#allocation2] sm:$0x33] %v404
        %423 = vst [vmem:[#allocation2 + $0x8] sm:$0x33] %v411
        %vm424 = vcmask 893952
        %425 = vst.msk [vmem:[#allocation2 + $0x10] sm:$0x3] %vm424, %v418
        %v426 = vld [vmem:[%s1] sm:$0xf]
        %v427 = vld [vmem:[%s8] sm:$0xff]
        %v428 = vld [vmem:[#allocation2] sm:$0x33]
        %v429 = vld [vmem:[#allocation2 + $0x8] sm:$0x33]
        %v430 = vld [vmem:[#allocation2 + $0x10] sm:$0x3]
        %v431 = vld [vmem:[%s2] sm:$0xf]
        %s432 = scalar_lea.vmem %s2, 4
        %v433 = vld [vmem:[%s432] sm:$0xf]
        %v437 = vunpack.c.l.b16 %v428
        %v438 = vunpack.c.h.b16 %v428
        %v439 = vunpack.c.l.b16 %v429
        %v440 = vunpack.c.h.b16 %v429
        %v441 = vunpack.c.l.b16 %v430
        %v442 = vpack.c.b16 %v437, %v437
        %v443 = vpack.c.b16 %v438, %v438
        %v444 = vpack.c.b16 %v439, %v439
        %v445 = vpack.c.b16 %v440, %v440
        %v446 = vpack.c.b16 %v441, %v441
        %447 = vrot.lane.b32.xlu0 %v442, 81
        %v448 = vpop.permute.xlu0 %447
        %449 = vrot.lane.b32.xlu0 %v443, 81
        %v450 = vpop.permute.xlu0 %449
        %451 = vrot.lane.b32.xlu0 %v444, 81
        %v452 = vpop.permute.xlu0 %451
        %453 = vrot.lane.b32.xlu0 %v445, 81
        %v454 = vpop.permute.xlu0 %453
        %455 = vrot.lane.b32.xlu0 %v446, 81
        %v456 = vpop.permute.xlu0 %455
        %vm457 = vcmask 662528
        %v458 = vsel %vm457, %v448, %v450
        %v459 = vsel %vm457, %v450, %v452
        %v460 = vsel %vm457, %v452, %v454
        %v461 = vsel %vm457, %v454, %v456
        %vm462 = vcmask 31744
        %v464 = vsel %vm462, %v433, 0
        %vm466 = vcmask 1041408
        %v468 = vsel %vm466, %v458, 0
        %v471 = vsel %vm466, %v459, 0
        %v474 = vsel %vm466, %v460, 0
        %v477 = vsel %vm466, %v461, 0
        %479 = vmatprep.subr.bf16.mxu0 %v471
        %480 = vmatpush1.bf16.msra.mxu0 %v468
        %481 = vmatprep.subr.bf16.mxu0 0
        %482 = vmatpush1.bf16.msra.mxu0 0
        %483 = vmatprep.subr.bf16.mxu0 0
        %484 = vmatpush1.bf16.msra.mxu0 0
        %485 = vmatprep.subr.bf16.mxu0 0
        %486 = vmatpush1.bf16.msra.mxu0 0
        %487 = vmatprep.subr.bf16.mxu0 0
        %488 = vmatpush1.bf16.msra.mxu0 0
        %489 = vmatprep.subr.bf16.mxu0 0
        %490 = vmatpush1.bf16.msra.mxu0 0
        %491 = vmatprep.subr.bf16.mxu0 0
        %492 = vmatpush1.bf16.msra.mxu0 0
        %493 = vmatprep.subr.bf16.mxu0 0
        %494 = vmatpush1.bf16.msra.mxu0 0
        %495 = vmatprep.subr.bf16.mxu0 0
        %496 = vmatpush1.bf16.msra.mxu0 0
        %497 = vmatprep.subr.bf16.mxu0 0
        %498 = vmatpush1.bf16.msra.mxu0 0
        %499 = vmatprep.subr.bf16.mxu0 0
        %500 = vmatpush1.bf16.msra.mxu0 0
        %501 = vmatprep.subr.bf16.mxu0 0
        %502 = vmatpush1.bf16.msra.mxu0 0
        %503 = vmatprep.subr.bf16.mxu0 0
        %504 = vmatpush1.bf16.msra.mxu0 0
        %505 = vmatprep.subr.bf16.mxu0 0
        %506 = vmatpush1.bf16.msra.mxu0 0
        %507 = vmatprep.subr.bf16.mxu0 0
        %508 = vmatpush1.bf16.msra.mxu0 0
        %509 = vmatprep.subr.bf16.mxu0 0
        %510 = vmatpush1.bf16.msra.mxu0 0
        %511 = vmatprep.mubr.bf16.mxu0 0
        %512 = vmatmul.mubr.bf16.gmra.mrb[0].mxu0 %v464
        %v513 = vpop.f32.mrb[0].mxu0
        %v514 = vadd.f32 0.0, %v513
        %v515 = vpop.f32.mrb[0].mxu0
        %v516 = vadd.f32 0.0, %v515
        %v517 = vpop.f32.mrb[0].mxu0
        %v518 = vpop.f32.mrb[0].mxu0
        %519 = vdwg.mxu0
        %520 = vmatprep.subr.bf16.mxu0 %v477
        %521 = vmatpush1.bf16.msra.mxu0 %v474
        %522 = vmatprep.subr.bf16.mxu0 0
        %523 = vmatpush1.bf16.msra.mxu0 0
        %524 = vmatprep.subr.bf16.mxu0 0
        %525 = vmatpush1.bf16.msra.mxu0 0
        %526 = vmatprep.subr.bf16.mxu0 0
        %527 = vmatpush1.bf16.msra.mxu0 0
        %528 = vmatprep.subr.bf16.mxu0 0
        %529 = vmatpush1.bf16.msra.mxu0 0
        %530 = vmatprep.subr.bf16.mxu0 0
        %531 = vmatpush1.bf16.msra.mxu0 0
        %532 = vmatprep.subr.bf16.mxu0 0
        %533 = vmatpush1.bf16.msra.mxu0 0
        %534 = vmatprep.subr.bf16.mxu0 0
        %535 = vmatpush1.bf16.msra.mxu0 0
        %536 = vmatprep.subr.bf16.mxu0 0
        %537 = vmatpush1.bf16.msra.mxu0 0
        %538 = vmatprep.subr.bf16.mxu0 0
        %539 = vmatpush1.bf16.msra.mxu0 0
        %540 = vmatprep.subr.bf16.mxu0 0
        %541 = vmatpush1.bf16.msra.mxu0 0
        %542 = vmatprep.subr.bf16.mxu0 0
        %543 = vmatpush1.bf16.msra.mxu0 0
        %544 = vmatprep.subr.bf16.mxu0 0
        %545 = vmatpush1.bf16.msra.mxu0 0
        %546 = vmatprep.subr.bf16.mxu0 0
        %547 = vmatpush1.bf16.msra.mxu0 0
        %548 = vmatprep.subr.bf16.mxu0 0
        %549 = vmatpush1.bf16.msra.mxu0 0
        %550 = vmatprep.subr.bf16.mxu0 0
        %551 = vmatpush1.bf16.msra.mxu0 0
        %552 = vmatprep.mubr.bf16.mxu0 0
        %553 = vmatmul.mubr.bf16.gmra.mrb[0].mxu0 %v464
        %v554 = vpop.f32.mrb[0].mxu0
        %v555 = vadd.f32 0.0, %v554
        %v556 = vpop.f32.mrb[0].mxu0
        %v557 = vadd.f32 0.0, %v556
        %v558 = vpop.f32.mrb[0].mxu0
        %v559 = vpop.f32.mrb[0].mxu0
        %560 = vdwg.mxu0
        %561 = vrot.lane.b32.xlu0 %v442, 82
        %v562 = vpop.permute.xlu0 %561
        %563 = vrot.lane.b32.xlu0 %v443, 82
        %v564 = vpop.permute.xlu0 %563
        %565 = vrot.lane.b32.xlu0 %v444, 82
        %v566 = vpop.permute.xlu0 %565
        %567 = vrot.lane.b32.xlu0 %v445, 82
        %v568 = vpop.permute.xlu0 %567
        %569 = vrot.lane.b32.xlu0 %v446, 82
        %v570 = vpop.permute.xlu0 %569
        %vm571 = vcmask 670720
        %v572 = vsel %vm571, %v562, %v564
        %v573 = vsel %vm571, %v564, %v566
        %v574 = vsel %vm571, %v566, %v568
        %v575 = vsel %vm571, %v568, %v570
        %v577 = vsel %vm462, %v431, 0
        %v580 = vsel %vm466, %v572, 0
        %v583 = vsel %vm466, %v573, 0
        %v586 = vsel %vm466, %v574, 0
        %v589 = vsel %vm466, %v575, 0
        %591 = vmatprep.subr.bf16.mxu0 %v583
        %592 = vmatpush1.bf16.msra.mxu0 %v580
        %593 = vmatprep.subr.bf16.mxu0 0
        %594 = vmatpush1.bf16.msra.mxu0 0
        %595 = vmatprep.subr.bf16.mxu0 0
        %596 = vmatpush1.bf16.msra.mxu0 0
        %597 = vmatprep.subr.bf16.mxu0 0
        %598 = vmatpush1.bf16.msra.mxu0 0
        %599 = vmatprep.subr.bf16.mxu0 0
        %600 = vmatpush1.bf16.msra.mxu0 0
        %601 = vmatprep.subr.bf16.mxu0 0
        %602 = vmatpush1.bf16.msra.mxu0 0
        %603 = vmatprep.subr.bf16.mxu0 0
        %604 = vmatpush1.bf16.msra.mxu0 0
        %605 = vmatprep.subr.bf16.mxu0 0
        %606 = vmatpush1.bf16.msra.mxu0 0
        %607 = vmatprep.subr.bf16.mxu0 0
        %608 = vmatpush1.bf16.msra.mxu0 0
        %609 = vmatprep.subr.bf16.mxu0 0
        %610 = vmatpush1.bf16.msra.mxu0 0
        %611 = vmatprep.subr.bf16.mxu0 0
        %612 = vmatpush1.bf16.msra.mxu0 0
        %613 = vmatprep.subr.bf16.mxu0 0
        %614 = vmatpush1.bf16.msra.mxu0 0
        %615 = vmatprep.subr.bf16.mxu0 0
        %616 = vmatpush1.bf16.msra.mxu0 0
        %617 = vmatprep.subr.bf16.mxu0 0
        %618 = vmatpush1.bf16.msra.mxu0 0
        %619 = vmatprep.subr.bf16.mxu0 0
        %620 = vmatpush1.bf16.msra.mxu0 0
        %621 = vmatprep.subr.bf16.mxu0 0
        %622 = vmatpush1.bf16.msra.mxu0 0
        %623 = vmatprep.mubr.bf16.mxu0 0
        %624 = vmatmul.mubr.bf16.gmra.mrb[0].mxu0 %v577
        %v625 = vpop.f32.mrb[0].mxu0
        %v626 = vadd.f32 %v514, %v625
        %v627 = vpop.f32.mrb[0].mxu0
        %v628 = vadd.f32 %v516, %v627
        %v629 = vpop.f32.mrb[0].mxu0
        %v630 = vpop.f32.mrb[0].mxu0
        %631 = vdwg.mxu0
        %632 = vmatprep.subr.bf16.mxu0 %v589
        %633 = vmatpush1.bf16.msra.mxu0 %v586
        %634 = vmatprep.subr.bf16.mxu0 0
        %635 = vmatpush1.bf16.msra.mxu0 0
        %636 = vmatprep.subr.bf16.mxu0 0
        %637 = vmatpush1.bf16.msra.mxu0 0
        %638 = vmatprep.subr.bf16.mxu0 0
        %639 = vmatpush1.bf16.msra.mxu0 0
        %640 = vmatprep.subr.bf16.mxu0 0
        %641 = vmatpush1.bf16.msra.mxu0 0
        %642 = vmatprep.subr.bf16.mxu0 0
        %643 = vmatpush1.bf16.msra.mxu0 0
        %644 = vmatprep.subr.bf16.mxu0 0
        %645 = vmatpush1.bf16.msra.mxu0 0
        %646 = vmatprep.subr.bf16.mxu0 0
        %647 = vmatpush1.bf16.msra.mxu0 0
        %648 = vmatprep.subr.bf16.mxu0 0
        %649 = vmatpush1.bf16.msra.mxu0 0
        %650 = vmatprep.subr.bf16.mxu0 0
        %651 = vmatpush1.bf16.msra.mxu0 0
        %652 = vmatprep.subr.bf16.mxu0 0
        %653 = vmatpush1.bf16.msra.mxu0 0
        %654 = vmatprep.subr.bf16.mxu0 0
        %655 = vmatpush1.bf16.msra.mxu0 0
        %656 = vmatprep.subr.bf16.mxu0 0
        %657 = vmatpush1.bf16.msra.mxu0 0
        %658 = vmatprep.subr.bf16.mxu0 0
        %659 = vmatpush1.bf16.msra.mxu0 0
        %660 = vmatprep.subr.bf16.mxu0 0
        %661 = vmatpush1.bf16.msra.mxu0 0
        %662 = vmatprep.subr.bf16.mxu0 0
        %663 = vmatpush1.bf16.msra.mxu0 0
        %664 = vmatprep.mubr.bf16.mxu0 0
        %665 = vmatmul.mubr.bf16.gmra.mrb[0].mxu0 %v577
        %v666 = vpop.f32.mrb[0].mxu0
        %v667 = vadd.f32 %v555, %v666
        %v668 = vpop.f32.mrb[0].mxu0
        %v669 = vadd.f32 %v557, %v668
        %v670 = vpop.f32.mrb[0].mxu0
        %v671 = vpop.f32.mrb[0].mxu0
        %672 = vdwg.mxu0
        %s673 = scalar_lea.vmem %s2, 8
        %v674 = vld [vmem:[%s673] sm:$0xf]
        %675 = vrot.lane.b32.xlu0 %v442, 80
        %v676 = vpop.permute.xlu0 %675
        %677 = vrot.lane.b32.xlu0 %v443, 80
        %v678 = vpop.permute.xlu0 %677
        %679 = vrot.lane.b32.xlu0 %v444, 80
        %v680 = vpop.permute.xlu0 %679
        %681 = vrot.lane.b32.xlu0 %v445, 80
        %v682 = vpop.permute.xlu0 %681
        %683 = vrot.lane.b32.xlu0 %v446, 80
        %v684 = vpop.permute.xlu0 %683
        %vm685 = vcmask 654336
        %v686 = vsel %vm685, %v676, %v678
        %v687 = vsel %vm685, %v678, %v680
        %v688 = vsel %vm685, %v680, %v682
        %v689 = vsel %vm685, %v682, %v684
        %v691 = vsel %vm462, %v674, 0
        %v694 = vsel %vm466, %v686, 0
        %v697 = vsel %vm466, %v687, 0
        %v700 = vsel %vm466, %v688, 0
        %v703 = vsel %vm466, %v689, 0
        %705 = vmatprep.subr.bf16.mxu0 %v697
        %706 = vmatpush1.bf16.msra.mxu0 %v694
        %707 = vmatprep.subr.bf16.mxu0 0
        %708 = vmatpush1.bf16.msra.mxu0 0
        %709 = vmatprep.subr.bf16.mxu0 0
        %710 = vmatpush1.bf16.msra.mxu0 0
        %711 = vmatprep.subr.bf16.mxu0 0
        %712 = vmatpush1.bf16.msra.mxu0 0
        %713 = vmatprep.subr.bf16.mxu0 0
        %714 = vmatpush1.bf16.msra.mxu0 0
        %715 = vmatprep.subr.bf16.mxu0 0
        %716 = vmatpush1.bf16.msra.mxu0 0
        %717 = vmatprep.subr.bf16.mxu0 0
        %718 = vmatpush1.bf16.msra.mxu0 0
        %719 = vmatprep.subr.bf16.mxu0 0
        %720 = vmatpush1.bf16.msra.mxu0 0
        %721 = vmatprep.subr.bf16.mxu0 0
        %722 = vmatpush1.bf16.msra.mxu0 0
        %723 = vmatprep.subr.bf16.mxu0 0
        %724 = vmatpush1.bf16.msra.mxu0 0
        %725 = vmatprep.subr.bf16.mxu0 0
        %726 = vmatpush1.bf16.msra.mxu0 0
        %727 = vmatprep.subr.bf16.mxu0 0
        %728 = vmatpush1.bf16.msra.mxu0 0
        %729 = vmatprep.subr.bf16.mxu0 0
        %730 = vmatpush1.bf16.msra.mxu0 0
        %731 = vmatprep.subr.bf16.mxu0 0
        %732 = vmatpush1.bf16.msra.mxu0 0
        %733 = vmatprep.subr.bf16.mxu0 0
        %734 = vmatpush1.bf16.msra.mxu0 0
        %735 = vmatprep.subr.bf16.mxu0 0
        %736 = vmatpush1.bf16.msra.mxu0 0
        %737 = vmatprep.mubr.bf16.mxu0 0
        %738 = vmatmul.mubr.bf16.gmra.mrb[0].mxu0 %v691
        %v739 = vpop.f32.mrb[0].mxu0
        %v740 = vadd.f32 0.0, %v739
        %v741 = vpop.f32.mrb[0].mxu0
        %v742 = vadd.f32 0.0, %v741
        %v743 = vpop.f32.mrb[0].mxu0
        %v744 = vpop.f32.mrb[0].mxu0
        %745 = vdwg.mxu0
        %746 = vmatprep.subr.bf16.mxu0 %v703
        %747 = vmatpush1.bf16.msra.mxu0 %v700
        %748 = vmatprep.subr.bf16.mxu0 0
        %749 = vmatpush1.bf16.msra.mxu0 0
        %750 = vmatprep.subr.bf16.mxu0 0
        %751 = vmatpush1.bf16.msra.mxu0 0
        %752 = vmatprep.subr.bf16.mxu0 0
        %753 = vmatpush1.bf16.msra.mxu0 0
        %754 = vmatprep.subr.bf16.mxu0 0
        %755 = vmatpush1.bf16.msra.mxu0 0
        %756 = vmatprep.subr.bf16.mxu0 0
        %757 = vmatpush1.bf16.msra.mxu0 0
        %758 = vmatprep.subr.bf16.mxu0 0
        %759 = vmatpush1.bf16.msra.mxu0 0
        %760 = vmatprep.subr.bf16.mxu0 0
        %761 = vmatpush1.bf16.msra.mxu0 0
        %762 = vmatprep.subr.bf16.mxu0 0
        %763 = vmatpush1.bf16.msra.mxu0 0
        %764 = vmatprep.subr.bf16.mxu0 0
        %765 = vmatpush1.bf16.msra.mxu0 0
        %766 = vmatprep.subr.bf16.mxu0 0
        %767 = vmatpush1.bf16.msra.mxu0 0
        %768 = vmatprep.subr.bf16.mxu0 0
        %769 = vmatpush1.bf16.msra.mxu0 0
        %770 = vmatprep.subr.bf16.mxu0 0
        %771 = vmatpush1.bf16.msra.mxu0 0
        %772 = vmatprep.subr.bf16.mxu0 0
        %773 = vmatpush1.bf16.msra.mxu0 0
        %774 = vmatprep.subr.bf16.mxu0 0
        %775 = vmatpush1.bf16.msra.mxu0 0
        %776 = vmatprep.subr.bf16.mxu0 0
        %777 = vmatpush1.bf16.msra.mxu0 0
        %778 = vmatprep.mubr.bf16.mxu0 0
        %779 = vmatmul.mubr.bf16.gmra.mrb[0].mxu0 %v691
        %v780 = vpop.f32.mrb[0].mxu0
        %v781 = vadd.f32 0.0, %v780
        %v782 = vpop.f32.mrb[0].mxu0
        %v783 = vadd.f32 0.0, %v782
        %v784 = vpop.f32.mrb[0].mxu0
        %v785 = vpop.f32.mrb[0].mxu0
        %786 = vdwg.mxu0
        %v787 = vadd.f32 %v626, %v740
        %v788 = vadd.f32 %v628, %v742
        %v789 = vadd.f32 %v667, %v781
        %v790 = vadd.f32 %v669, %v783
        %s791 = scalar_lea.vmem %s2, 12
        %v792 = vld [vmem:[%s791] sm:$0xf]
        %s793 = scalar_lea.vmem %s2, 16
        %v794 = vld [vmem:[%s793] sm:$0xf]
        %795 = vrot.lane.b32.xlu0 %v442, 59
        %v796 = vpop.permute.xlu0 %795
        %797 = vrot.lane.b32.xlu0 %v443, 59
        %v798 = vpop.permute.xlu0 %797
        %799 = vrot.lane.b32.xlu0 %v444, 59
        %v800 = vpop.permute.xlu0 %799
        %801 = vrot.lane.b32.xlu0 %v445, 59
        %v802 = vpop.permute.xlu0 %801
        %803 = vrot.lane.b32.xlu0 %v446, 59
        %v804 = vpop.permute.xlu0 %803
        %vm805 = vcmask 482304
        %v806 = vsel %vm805, %v796, %v798
        %v807 = vsel %vm805, %v798, %v800
        %v808 = vsel %vm805, %v800, %v802
        %v809 = vsel %vm805, %v802, %v804
        %v811 = vsel %vm462, %v794, 0
        %v814 = vsel %vm466, %v806, 0
        %v817 = vsel %vm466, %v807, 0
        %v820 = vsel %vm466, %v808, 0
        %v823 = vsel %vm466, %v809, 0
        %825 = vmatprep.subr.bf16.mxu0 %v817
        %826 = vmatpush1.bf16.msra.mxu0 %v814
        %827 = vmatprep.subr.bf16.mxu0 0
        %828 = vmatpush1.bf16.msra.mxu0 0
        %829 = vmatprep.subr.bf16.mxu0 0
        %830 = vmatpush1.bf16.msra.mxu0 0
        %831 = vmatprep.subr.bf16.mxu0 0
        %832 = vmatpush1.bf16.msra.mxu0 0
        %833 = vmatprep.subr.bf16.mxu0 0
        %834 = vmatpush1.bf16.msra.mxu0 0
        %835 = vmatprep.subr.bf16.mxu0 0
        %836 = vmatpush1.bf16.msra.mxu0 0
        %837 = vmatprep.subr.bf16.mxu0 0
        %838 = vmatpush1.bf16.msra.mxu0 0
        %839 = vmatprep.subr.bf16.mxu0 0
        %840 = vmatpush1.bf16.msra.mxu0 0
        %841 = vmatprep.subr.bf16.mxu0 0
        %842 = vmatpush1.bf16.msra.mxu0 0
        %843 = vmatprep.subr.bf16.mxu0 0
        %844 = vmatpush1.bf16.msra.mxu0 0
        %845 = vmatprep.subr.bf16.mxu0 0
        %846 = vmatpush1.bf16.msra.mxu0 0
        %847 = vmatprep.subr.bf16.mxu0 0
        %848 = vmatpush1.bf16.msra.mxu0 0
        %849 = vmatprep.subr.bf16.mxu0 0
        %850 = vmatpush1.bf16.msra.mxu0 0
        %851 = vmatprep.subr.bf16.mxu0 0
        %852 = vmatpush1.bf16.msra.mxu0 0
        %853 = vmatprep.subr.bf16.mxu0 0
        %854 = vmatpush1.bf16.msra.mxu0 0
        %855 = vmatprep.subr.bf16.mxu0 0
        %856 = vmatpush1.bf16.msra.mxu0 0
        %857 = vmatprep.mubr.bf16.mxu0 0
        %858 = vmatmul.mubr.bf16.gmra.mrb[0].mxu0 %v811
        %v859 = vpop.f32.mrb[0].mxu0
        %v860 = vadd.f32 0.0, %v859
        %v861 = vpop.f32.mrb[0].mxu0
        %v862 = vadd.f32 0.0, %v861
        %v863 = vpop.f32.mrb[0].mxu0
        %v864 = vpop.f32.mrb[0].mxu0
        %865 = vdwg.mxu0
        %866 = vmatprep.subr.bf16.mxu0 %v823
        %867 = vmatpush1.bf16.msra.mxu0 %v820
        %868 = vmatprep.subr.bf16.mxu0 0
        %869 = vmatpush1.bf16.msra.mxu0 0
        %870 = vmatprep.subr.bf16.mxu0 0
        %871 = vmatpush1.bf16.msra.mxu0 0
        %872 = vmatprep.subr.bf16.mxu0 0
        %873 = vmatpush1.bf16.msra.mxu0 0
        %874 = vmatprep.subr.bf16.mxu0 0
        %875 = vmatpush1.bf16.msra.mxu0 0
        %876 = vmatprep.subr.bf16.mxu0 0
        %877 = vmatpush1.bf16.msra.mxu0 0
        %878 = vmatprep.subr.bf16.mxu0 0
        %879 = vmatpush1.bf16.msra.mxu0 0
        %880 = vmatprep.subr.bf16.mxu0 0
        %881 = vmatpush1.bf16.msra.mxu0 0
        %882 = vmatprep.subr.bf16.mxu0 0
        %883 = vmatpush1.bf16.msra.mxu0 0
        %884 = vmatprep.subr.bf16.mxu0 0
        %885 = vmatpush1.bf16.msra.mxu0 0
        %886 = vmatprep.subr.bf16.mxu0 0
        %887 = vmatpush1.bf16.msra.mxu0 0
        %888 = vmatprep.subr.bf16.mxu0 0
        %889 = vmatpush1.bf16.msra.mxu0 0
        %890 = vmatprep.subr.bf16.mxu0 0
        %891 = vmatpush1.bf16.msra.mxu0 0
        %892 = vmatprep.subr.bf16.mxu0 0
        %893 = vmatpush1.bf16.msra.mxu0 0
        %894 = vmatprep.subr.bf16.mxu0 0
        %895 = vmatpush1.bf16.msra.mxu0 0
        %896 = vmatprep.subr.bf16.mxu0 0
        %897 = vmatpush1.bf16.msra.mxu0 0
        %898 = vmatprep.mubr.bf16.mxu0 0
        %899 = vmatmul.mubr.bf16.gmra.mrb[0].mxu0 %v811
        %v900 = vpop.f32.mrb[0].mxu0
        %v901 = vadd.f32 0.0, %v900
        %v902 = vpop.f32.mrb[0].mxu0
        %v903 = vadd.f32 0.0, %v902
        %v904 = vpop.f32.mrb[0].mxu0
        %v905 = vpop.f32.mrb[0].mxu0
        %906 = vdwg.mxu0
        %907 = vrot.lane.b32.xlu0 %v442, 60
        %v908 = vpop.permute.xlu0 %907
        %909 = vrot.lane.b32.xlu0 %v443, 60
        %v910 = vpop.permute.xlu0 %909
        %911 = vrot.lane.b32.xlu0 %v444, 60
        %v912 = vpop.permute.xlu0 %911
        %913 = vrot.lane.b32.xlu0 %v445, 60
        %v914 = vpop.permute.xlu0 %913
        %915 = vrot.lane.b32.xlu0 %v446, 60
        %v916 = vpop.permute.xlu0 %915
        %vm917 = vcmask 490496
        %v918 = vsel %vm917, %v908, %v910
        %v919 = vsel %vm917, %v910, %v912
        %v920 = vsel %vm917, %v912, %v914
        %v921 = vsel %vm917, %v914, %v916
        %v923 = vsel %vm462, %v792, 0
        %v926 = vsel %vm466, %v918, 0
        %v929 = vsel %vm466, %v919, 0
        %v932 = vsel %vm466, %v920, 0
        %v935 = vsel %vm466, %v921, 0
        %937 = vmatprep.subr.bf16.mxu0 %v929
        %938 = vmatpush1.bf16.msra.mxu0 %v926
        %939 = vmatprep.subr.bf16.mxu0 0
        %940 = vmatpush1.bf16.msra.mxu0 0
        %941 = vmatprep.subr.bf16.mxu0 0
        %942 = vmatpush1.bf16.msra.mxu0 0
        %943 = vmatprep.subr.bf16.mxu0 0
        %944 = vmatpush1.bf16.msra.mxu0 0
        %945 = vmatprep.subr.bf16.mxu0 0
        %946 = vmatpush1.bf16.msra.mxu0 0
        %947 = vmatprep.subr.bf16.mxu0 0
        %948 = vmatpush1.bf16.msra.mxu0 0
        %949 = vmatprep.subr.bf16.mxu0 0
        %950 = vmatpush1.bf16.msra.mxu0 0
        %951 = vmatprep.subr.bf16.mxu0 0
        %952 = vmatpush1.bf16.msra.mxu0 0
        %953 = vmatprep.subr.bf16.mxu0 0
        %954 = vmatpush1.bf16.msra.mxu0 0
        %955 = vmatprep.subr.bf16.mxu0 0
        %956 = vmatpush1.bf16.msra.mxu0 0
        %957 = vmatprep.subr.bf16.mxu0 0
        %958 = vmatpush1.bf16.msra.mxu0 0
        %959 = vmatprep.subr.bf16.mxu0 0
        %960 = vmatpush1.bf16.msra.mxu0 0
        %961 = vmatprep.subr.bf16.mxu0 0
        %962 = vmatpush1.bf16.msra.mxu0 0
        %963 = vmatprep.subr.bf16.mxu0 0
        %964 = vmatpush1.bf16.msra.mxu0 0
        %965 = vmatprep.subr.bf16.mxu0 0
        %966 = vmatpush1.bf16.msra.mxu0 0
        %967 = vmatprep.subr.bf16.mxu0 0
        %968 = vmatpush1.bf16.msra.mxu0 0
        %969 = vmatprep.mubr.bf16.mxu0 0
        %970 = vmatmul.mubr.bf16.gmra.mrb[0].mxu0 %v923
        %v971 = vpop.f32.mrb[0].mxu0
        %v972 = vadd.f32 %v860, %v971
        %v973 = vpop.f32.mrb[0].mxu0
        %v974 = vadd.f32 %v862, %v973
        %v975 = vpop.f32.mrb[0].mxu0
        %v976 = vpop.f32.mrb[0].mxu0
        %977 = vdwg.mxu0
        %978 = vmatprep.subr.bf16.mxu0 %v935
        %979 = vmatpush1.bf16.msra.mxu0 %v932
        %980 = vmatprep.subr.bf16.mxu0 0
        %981 = vmatpush1.bf16.msra.mxu0 0
        %982 = vmatprep.subr.bf16.mxu0 0
        %983 = vmatpush1.bf16.msra.mxu0 0
        %984 = vmatprep.subr.bf16.mxu0 0
        %985 = vmatpush1.bf16.msra.mxu0 0
        %986 = vmatprep.subr.bf16.mxu0 0
        %987 = vmatpush1.bf16.msra.mxu0 0
        %988 = vmatprep.subr.bf16.mxu0 0
        %989 = vmatpush1.bf16.msra.mxu0 0
        %990 = vmatprep.subr.bf16.mxu0 0
        %991 = vmatpush1.bf16.msra.mxu0 0
        %992 = vmatprep.subr.bf16.mxu0 0
        %993 = vmatpush1.bf16.msra.mxu0 0
        %994 = vmatprep.subr.bf16.mxu0 0
        %995 = vmatpush1.bf16.msra.mxu0 0
        %996 = vmatprep.subr.bf16.mxu0 0
        %997 = vmatpush1.bf16.msra.mxu0 0
        %998 = vmatprep.subr.bf16.mxu0 0
        %999 = vmatpush1.bf16.msra.mxu0 0
        %1000 = vmatprep.subr.bf16.mxu0 0
        %1001 = vmatpush1.bf16.msra.mxu0 0
        %1002 = vmatprep.subr.bf16.mxu0 0
        %1003 = vmatpush1.bf16.msra.mxu0 0
        %1004 = vmatprep.subr.bf16.mxu0 0
        %1005 = vmatpush1.bf16.msra.mxu0 0
        %1006 = vmatprep.subr.bf16.mxu0 0
        %1007 = vmatpush1.bf16.msra.mxu0 0
        %1008 = vmatprep.subr.bf16.mxu0 0
        %1009 = vmatpush1.bf16.msra.mxu0 0
        %1010 = vmatprep.mubr.bf16.mxu0 0
        %1011 = vmatmul.mubr.bf16.gmra.mrb[0].mxu0 %v923
        %v1012 = vpop.f32.mrb[0].mxu0
        %v1013 = vadd.f32 %v901, %v1012
        %v1014 = vpop.f32.mrb[0].mxu0
        %v1015 = vadd.f32 %v903, %v1014
        %v1016 = vpop.f32.mrb[0].mxu0
        %v1017 = vpop.f32.mrb[0].mxu0
        %1018 = vdwg.mxu0
        %s1019 = scalar_lea.vmem %s2, 20
        %v1020 = vld [vmem:[%s1019] sm:$0xf]
        %1021 = vrot.lane.b32.xlu0 %v442, 58
        %v1022 = vpop.permute.xlu0 %1021
        %1023 = vrot.lane.b32.xlu0 %v443, 58
        %v1024 = vpop.permute.xlu0 %1023
        %1025 = vrot.lane.b32.xlu0 %v444, 58
        %v1026 = vpop.permute.xlu0 %1025
        %1027 = vrot.lane.b32.xlu0 %v445, 58
        %v1028 = vpop.permute.xlu0 %1027
        %1029 = vrot.lane.b32.xlu0 %v446, 58
        %v1030 = vpop.permute.xlu0 %1029
        %vm1031 = vcmask 474112
        %v1032 = vsel %vm1031, %v1022, %v1024
        %v1033 = vsel %vm1031, %v1024, %v1026
        %v1034 = vsel %vm1031, %v1026, %v1028
        %v1035 = vsel %vm1031, %v1028, %v1030
        %v1037 = vsel %vm462, %v1020, 0
        %v1040 = vsel %vm466, %v1032, 0
        %v1043 = vsel %vm466, %v1033, 0
        %v1046 = vsel %vm466, %v1034, 0
        %v1049 = vsel %vm466, %v1035, 0
        %1051 = vmatprep.subr.bf16.mxu0 %v1043
        %1052 = vmatpush1.bf16.msra.mxu0 %v1040
        %1053 = vmatprep.subr.bf16.mxu0 0
        %1054 = vmatpush1.bf16.msra.mxu0 0
        %1055 = vmatprep.subr.bf16.mxu0 0
        %1056 = vmatpush1.bf16.msra.mxu0 0
        %1057 = vmatprep.subr.bf16.mxu0 0
        %1058 = vmatpush1.bf16.msra.mxu0 0
        %1059 = vmatprep.subr.bf16.mxu0 0
        %1060 = vmatpush1.bf16.msra.mxu0 0
        %1061 = vmatprep.subr.bf16.mxu0 0
        %1062 = vmatpush1.bf16.msra.mxu0 0
        %1063 = vmatprep.subr.bf16.mxu0 0
        %1064 = vmatpush1.bf16.msra.mxu0 0
        %1065 = vmatprep.subr.bf16.mxu0 0
        %1066 = vmatpush1.bf16.msra.mxu0 0
        %1067 = vmatprep.subr.bf16.mxu0 0
        %1068 = vmatpush1.bf16.msra.mxu0 0
        %1069 = vmatprep.subr.bf16.mxu0 0
        %1070 = vmatpush1.bf16.msra.mxu0 0
        %1071 = vmatprep.subr.bf16.mxu0 0
        %1072 = vmatpush1.bf16.msra.mxu0 0
        %1073 = vmatprep.subr.bf16.mxu0 0
        %1074 = vmatpush1.bf16.msra.mxu0 0
        %1075 = vmatprep.subr.bf16.mxu0 0
        %1076 = vmatpush1.bf16.msra.mxu0 0
        %1077 = vmatprep.subr.bf16.mxu0 0
        %1078 = vmatpush1.bf16.msra.mxu0 0
        %1079 = vmatprep.subr.bf16.mxu0 0
        %1080 = vmatpush1.bf16.msra.mxu0 0
        %1081 = vmatprep.subr.bf16.mxu0 0
        %1082 = vmatpush1.bf16.msra.mxu0 0
        %1083 = vmatprep.mubr.bf16.mxu0 0
        %1084 = vmatmul.mubr.bf16.gmra.mrb[0].mxu0 %v1037
        %v1085 = vpop.f32.mrb[0].mxu0
        %v1086 = vadd.f32 0.0, %v1085
        %v1087 = vpop.f32.mrb[0].mxu0
        %v1088 = vadd.f32 0.0, %v1087
        %v1089 = vpop.f32.mrb[0].mxu0
        %v1090 = vpop.f32.mrb[0].mxu0
        %1091 = vdwg.mxu0
        %1092 = vmatprep.subr.bf16.mxu0 %v1049
        %1093 = vmatpush1.bf16.msra.mxu0 %v1046
        %1094 = vmatprep.subr.bf16.mxu0 0
        %1095 = vmatpush1.bf16.msra.mxu0 0
        %1096 = vmatprep.subr.bf16.mxu0 0
        %1097 = vmatpush1.bf16.msra.mxu0 0
        %1098 = vmatprep.subr.bf16.mxu0 0
        %1099 = vmatpush1.bf16.msra.mxu0 0
        %1100 = vmatprep.subr.bf16.mxu0 0
        %1101 = vmatpush1.bf16.msra.mxu0 0
        %1102 = vmatprep.subr.bf16.mxu0 0
        %1103 = vmatpush1.bf16.msra.mxu0 0
        %1104 = vmatprep.subr.bf16.mxu0 0
        %1105 = vmatpush1.bf16.msra.mxu0 0
        %1106 = vmatprep.subr.bf16.mxu0 0
        %1107 = vmatpush1.bf16.msra.mxu0 0
        %1108 = vmatprep.subr.bf16.mxu0 0
        %1109 = vmatpush1.bf16.msra.mxu0 0
        %1110 = vmatprep.subr.bf16.mxu0 0
        %1111 = vmatpush1.bf16.msra.mxu0 0
        %1112 = vmatprep.subr.bf16.mxu0 0
        %1113 = vmatpush1.bf16.msra.mxu0 0
        %1114 = vmatprep.subr.bf16.mxu0 0
        %1115 = vmatpush1.bf16.msra.mxu0 0
        %1116 = vmatprep.subr.bf16.mxu0 0
        %1117 = vmatpush1.bf16.msra.mxu0 0
        %1118 = vmatprep.subr.bf16.mxu0 0
        %1119 = vmatpush1.bf16.msra.mxu0 0
        %1120 = vmatprep.subr.bf16.mxu0 0
        %1121 = vmatpush1.bf16.msra.mxu0 0
        %1122 = vmatprep.subr.bf16.mxu0 0
        %1123 = vmatpush1.bf16.msra.mxu0 0
        %1124 = vmatprep.mubr.bf16.mxu0 0
        %1125 = vmatmul.mubr.bf16.gmra.mrb[0].mxu0 %v1037
        %v1126 = vpop.f32.mrb[0].mxu0
        %v1127 = vadd.f32 0.0, %v1126
        %v1128 = vpop.f32.mrb[0].mxu0
        %v1129 = vadd.f32 0.0, %v1128
        %v1130 = vpop.f32.mrb[0].mxu0
        %v1131 = vpop.f32.mrb[0].mxu0
        %1132 = vdwg.mxu0
        %v1133 = vadd.f32 %v972, %v1086
        %v1134 = vadd.f32 %v974, %v1088
        %v1135 = vadd.f32 %v1013, %v1127
        %v1136 = vadd.f32 %v1015, %v1129
        %v1137 = vadd.f32 %v787, %v1133
        %v1138 = vadd.f32 %v788, %v1134
        %v1139 = vadd.f32 %v789, %v1135
        %v1140 = vadd.f32 %v790, %v1136
        %s1141 = scalar_lea.vmem %s2, 24
        %v1142 = vld [vmem:[%s1141] sm:$0xf]
        %s1143 = scalar_lea.vmem %s2, 28
        %v1144 = vld [vmem:[%s1143] sm:$0xf]
        %1145 = vrot.lane.b32.xlu0 %v442, 37
        %v1146 = vpop.permute.xlu0 %1145
        %1147 = vrot.lane.b32.xlu0 %v443, 37
        %v1148 = vpop.permute.xlu0 %1147
        %1149 = vrot.lane.b32.xlu0 %v444, 37
        %v1150 = vpop.permute.xlu0 %1149
        %1151 = vrot.lane.b32.xlu0 %v445, 37
        %v1152 = vpop.permute.xlu0 %1151
        %1153 = vrot.lane.b32.xlu0 %v446, 37
        %v1154 = vpop.permute.xlu0 %1153
        %vm1155 = vcmask 302080
        %v1156 = vsel %vm1155, %v1146, %v1148
        %v1157 = vsel %vm1155, %v1148, %v1150
        %v1158 = vsel %vm1155, %v1150, %v1152
        %v1159 = vsel %vm1155, %v1152, %v1154
        %v1161 = vsel %vm462, %v1144, 0
        %v1164 = vsel %vm466, %v1156, 0
        %v1167 = vsel %vm466, %v1157, 0
        %v1170 = vsel %vm466, %v1158, 0
        %v1173 = vsel %vm466, %v1159, 0
        %1175 = vmatprep.subr.bf16.mxu0 %v1167
        %1176 = vmatpush1.bf16.msra.mxu0 %v1164
        %1177 = vmatprep.subr.bf16.mxu0 0
        %1178 = vmatpush1.bf16.msra.mxu0 0
        %1179 = vmatprep.subr.bf16.mxu0 0
        %1180 = vmatpush1.bf16.msra.mxu0 0
        %1181 = vmatprep.subr.bf16.mxu0 0
        %1182 = vmatpush1.bf16.msra.mxu0 0
        %1183 = vmatprep.subr.bf16.mxu0 0
        %1184 = vmatpush1.bf16.msra.mxu0 0
        %1185 = vmatprep.subr.bf16.mxu0 0
        %1186 = vmatpush1.bf16.msra.mxu0 0
        %1187 = vmatprep.subr.bf16.mxu0 0
        %1188 = vmatpush1.bf16.msra.mxu0 0
        %1189 = vmatprep.subr.bf16.mxu0 0
        %1190 = vmatpush1.bf16.msra.mxu0 0
        %1191 = vmatprep.subr.bf16.mxu0 0
        %1192 = vmatpush1.bf16.msra.mxu0 0
        %1193 = vmatprep.subr.bf16.mxu0 0
        %1194 = vmatpush1.bf16.msra.mxu0 0
        %1195 = vmatprep.subr.bf16.mxu0 0
        %1196 = vmatpush1.bf16.msra.mxu0 0
        %1197 = vmatprep.subr.bf16.mxu0 0
        %1198 = vmatpush1.bf16.msra.mxu0 0
        %1199 = vmatprep.subr.bf16.mxu0 0
        %1200 = vmatpush1.bf16.msra.mxu0 0
        %1201 = vmatprep.subr.bf16.mxu0 0
        %1202 = vmatpush1.bf16.msra.mxu0 0
        %1203 = vmatprep.subr.bf16.mxu0 0
        %1204 = vmatpush1.bf16.msra.mxu0 0
        %1205 = vmatprep.subr.bf16.mxu0 0
        %1206 = vmatpush1.bf16.msra.mxu0 0
        %1207 = vmatprep.mubr.bf16.mxu0 0
        %1208 = vmatmul.mubr.bf16.gmra.mrb[0].mxu0 %v1161
        %v1209 = vpop.f32.mrb[0].mxu0
        %v1210 = vadd.f32 0.0, %v1209
        %v1211 = vpop.f32.mrb[0].mxu0
        %v1212 = vadd.f32 0.0, %v1211
        %v1213 = vpop.f32.mrb[0].mxu0
        %v1214 = vpop.f32.mrb[0].mxu0
        %1215 = vdwg.mxu0
        %1216 = vmatprep.subr.bf16.mxu0 %v1173
        %1217 = vmatpush1.bf16.msra.mxu0 %v1170
        %1218 = vmatprep.subr.bf16.mxu0 0
        %1219 = vmatpush1.bf16.msra.mxu0 0
        %1220 = vmatprep.subr.bf16.mxu0 0
        %1221 = vmatpush1.bf16.msra.mxu0 0
        %1222 = vmatprep.subr.bf16.mxu0 0
        %1223 = vmatpush1.bf16.msra.mxu0 0
        %1224 = vmatprep.subr.bf16.mxu0 0
        %1225 = vmatpush1.bf16.msra.mxu0 0
        %1226 = vmatprep.subr.bf16.mxu0 0
        %1227 = vmatpush1.bf16.msra.mxu0 0
        %1228 = vmatprep.subr.bf16.mxu0 0
        %1229 = vmatpush1.bf16.msra.mxu0 0
        %1230 = vmatprep.subr.bf16.mxu0 0
        %1231 = vmatpush1.bf16.msra.mxu0 0
        %1232 = vmatprep.subr.bf16.mxu0 0
        %1233 = vmatpush1.bf16.msra.mxu0 0
        %1234 = vmatprep.subr.bf16.mxu0 0
        %1235 = vmatpush1.bf16.msra.mxu0 0
        %1236 = vmatprep.subr.bf16.mxu0 0
        %1237 = vmatpush1.bf16.msra.mxu0 0
        %1238 = vmatprep.subr.bf16.mxu0 0
        %1239 = vmatpush1.bf16.msra.mxu0 0
        %1240 = vmatprep.subr.bf16.mxu0 0
        %1241 = vmatpush1.bf16.msra.mxu0 0
        %1242 = vmatprep.subr.bf16.mxu0 0
        %1243 = vmatpush1.bf16.msra.mxu0 0
        %1244 = vmatprep.subr.bf16.mxu0 0
        %1245 = vmatpush1.bf16.msra.mxu0 0
        %1246 = vmatprep.subr.bf16.mxu0 0
        %1247 = vmatpush1.bf16.msra.mxu0 0
        %1248 = vmatprep.mubr.bf16.mxu0 0
        %1249 = vmatmul.mubr.bf16.gmra.mrb[0].mxu0 %v1161
        %v1250 = vpop.f32.mrb[0].mxu0
        %v1251 = vadd.f32 0.0, %v1250
        %v1252 = vpop.f32.mrb[0].mxu0
        %v1253 = vadd.f32 0.0, %v1252
        %v1254 = vpop.f32.mrb[0].mxu0
        %v1255 = vpop.f32.mrb[0].mxu0
        %1256 = vdwg.mxu0
        %1257 = vrot.lane.b32.xlu0 %v442, 38
        %v1258 = vpop.permute.xlu0 %1257
        %1259 = vrot.lane.b32.xlu0 %v443, 38
        %v1260 = vpop.permute.xlu0 %1259
        %1261 = vrot.lane.b32.xlu0 %v444, 38
        %v1262 = vpop.permute.xlu0 %1261
        %1263 = vrot.lane.b32.xlu0 %v445, 38
        %v1264 = vpop.permute.xlu0 %1263
        %1265 = vrot.lane.b32.xlu0 %v446, 38
        %v1266 = vpop.permute.xlu0 %1265
        %vm1267 = vcmask 310272
        %v1268 = vsel %vm1267, %v1258, %v1260
        %v1269 = vsel %vm1267, %v1260, %v1262
        %v1270 = vsel %vm1267, %v1262, %v1264
        %v1271 = vsel %vm1267, %v1264, %v1266
        %v1273 = vsel %vm462, %v1142, 0
        %v1276 = vsel %vm466, %v1268, 0
        %v1279 = vsel %vm466, %v1269, 0
        %v1282 = vsel %vm466, %v1270, 0
        %v1285 = vsel %vm466, %v1271, 0
        %1287 = vmatprep.subr.bf16.mxu0 %v1279
        %1288 = vmatpush1.bf16.msra.mxu0 %v1276
        %1289 = vmatprep.subr.bf16.mxu0 0
        %1290 = vmatpush1.bf16.msra.mxu0 0
        %1291 = vmatprep.subr.bf16.mxu0 0
        %1292 = vmatpush1.bf16.msra.mxu0 0
        %1293 = vmatprep.subr.bf16.mxu0 0
        %1294 = vmatpush1.bf16.msra.mxu0 0
        %1295 = vmatprep.subr.bf16.mxu0 0
        %1296 = vmatpush1.bf16.msra.mxu0 0
        %1297 = vmatprep.subr.bf16.mxu0 0
        %1298 = vmatpush1.bf16.msra.mxu0 0
        %1299 = vmatprep.subr.bf16.mxu0 0
        %1300 = vmatpush1.bf16.msra.mxu0 0
        %1301 = vmatprep.subr.bf16.mxu0 0
        %1302 = vmatpush1.bf16.msra.mxu0 0
        %1303 = vmatprep.subr.bf16.mxu0 0
        %1304 = vmatpush1.bf16.msra.mxu0 0
        %1305 = vmatprep.subr.bf16.mxu0 0
        %1306 = vmatpush1.bf16.msra.mxu0 0
        %1307 = vmatprep.subr.bf16.mxu0 0
        %1308 = vmatpush1.bf16.msra.mxu0 0
        %1309 = vmatprep.subr.bf16.mxu0 0
        %1310 = vmatpush1.bf16.msra.mxu0 0
        %1311 = vmatprep.subr.bf16.mxu0 0
        %1312 = vmatpush1.bf16.msra.mxu0 0
        %1313 = vmatprep.subr.bf16.mxu0 0
        %1314 = vmatpush1.bf16.msra.mxu0 0
        %1315 = vmatprep.subr.bf16.mxu0 0
        %1316 = vmatpush1.bf16.msra.mxu0 0
        %1317 = vmatprep.subr.bf16.mxu0 0
        %1318 = vmatpush1.bf16.msra.mxu0 0
        %1319 = vmatprep.mubr.bf16.mxu0 0
        %1320 = vmatmul.mubr.bf16.gmra.mrb[0].mxu0 %v1273
        %v1321 = vpop.f32.mrb[0].mxu0
        %v1322 = vadd.f32 %v1210, %v1321
        %v1323 = vpop.f32.mrb[0].mxu0
        %v1324 = vadd.f32 %v1212, %v1323
        %v1325 = vpop.f32.mrb[0].mxu0
        %v1326 = vpop.f32.mrb[0].mxu0
        %1327 = vdwg.mxu0
        %1328 = vmatprep.subr.bf16.mxu0 %v1285
        %1329 = vmatpush1.bf16.msra.mxu0 %v1282
        %1330 = vmatprep.subr.bf16.mxu0 0
        %1331 = vmatpush1.bf16.msra.mxu0 0
        %1332 = vmatprep.subr.bf16.mxu0 0
        %1333 = vmatpush1.bf16.msra.mxu0 0
        %1334 = vmatprep.subr.bf16.mxu0 0
        %1335 = vmatpush1.bf16.msra.mxu0 0
        %1336 = vmatprep.subr.bf16.mxu0 0
        %1337 = vmatpush1.bf16.msra.mxu0 0
        %1338 = vmatprep.subr.bf16.mxu0 0
        %1339 = vmatpush1.bf16.msra.mxu0 0
        %1340 = vmatprep.subr.bf16.mxu0 0
        %1341 = vmatpush1.bf16.msra.mxu0 0
        %1342 = vmatprep.subr.bf16.mxu0 0
        %1343 = vmatpush1.bf16.msra.mxu0 0
        %1344 = vmatprep.subr.bf16.mxu0 0
        %1345 = vmatpush1.bf16.msra.mxu0 0
        %1346 = vmatprep.subr.bf16.mxu0 0
        %1347 = vmatpush1.bf16.msra.mxu0 0
        %1348 = vmatprep.subr.bf16.mxu0 0
        %1349 = vmatpush1.bf16.msra.mxu0 0
        %1350 = vmatprep.subr.bf16.mxu0 0
        %1351 = vmatpush1.bf16.msra.mxu0 0
        %1352 = vmatprep.subr.bf16.mxu0 0
        %1353 = vmatpush1.bf16.msra.mxu0 0
        %1354 = vmatprep.subr.bf16.mxu0 0
        %1355 = vmatpush1.bf16.msra.mxu0 0
        %1356 = vmatprep.subr.bf16.mxu0 0
        %1357 = vmatpush1.bf16.msra.mxu0 0
        %1358 = vmatprep.subr.bf16.mxu0 0
        %1359 = vmatpush1.bf16.msra.mxu0 0
        %1360 = vmatprep.mubr.bf16.mxu0 0
        %1361 = vmatmul.mubr.bf16.gmra.mrb[0].mxu0 %v1273
        %v1362 = vpop.f32.mrb[0].mxu0
        %v1363 = vadd.f32 %v1251, %v1362
        %v1364 = vpop.f32.mrb[0].mxu0
        %v1365 = vadd.f32 %v1253, %v1364
        %v1366 = vpop.f32.mrb[0].mxu0
        %v1367 = vpop.f32.mrb[0].mxu0
        %1368 = vdwg.mxu0
        %s1369 = scalar_lea.vmem %s2, 32
        %v1370 = vld [vmem:[%s1369] sm:$0xf]
        %1371 = vrot.lane.b32.xlu0 %v442, 36
        %v1372 = vpop.permute.xlu0 %1371
        %1373 = vrot.lane.b32.xlu0 %v443, 36
        %v1374 = vpop.permute.xlu0 %1373
        %1375 = vrot.lane.b32.xlu0 %v444, 36
        %v1376 = vpop.permute.xlu0 %1375
        %1377 = vrot.lane.b32.xlu0 %v445, 36
        %v1378 = vpop.permute.xlu0 %1377
        %1379 = vrot.lane.b32.xlu0 %v446, 36
        %v1380 = vpop.permute.xlu0 %1379
        %vm1381 = vcmask 293888
        %v1382 = vsel %vm1381, %v1372, %v1374
        %v1383 = vsel %vm1381, %v1374, %v1376
        %v1384 = vsel %vm1381, %v1376, %v1378
        %v1385 = vsel %vm1381, %v1378, %v1380
        %v1387 = vsel %vm462, %v1370, 0
        %v1390 = vsel %vm466, %v1382, 0
        %v1393 = vsel %vm466, %v1383, 0
        %v1396 = vsel %vm466, %v1384, 0
        %v1399 = vsel %vm466, %v1385, 0
        %1401 = vmatprep.subr.bf16.mxu0 %v1393
        %1402 = vmatpush1.bf16.msra.mxu0 %v1390
        %1403 = vmatprep.subr.bf16.mxu0 0
        %1404 = vmatpush1.bf16.msra.mxu0 0
        %1405 = vmatprep.subr.bf16.mxu0 0
        %1406 = vmatpush1.bf16.msra.mxu0 0
        %1407 = vmatprep.subr.bf16.mxu0 0
        %1408 = vmatpush1.bf16.msra.mxu0 0
        %1409 = vmatprep.subr.bf16.mxu0 0
        %1410 = vmatpush1.bf16.msra.mxu0 0
        %1411 = vmatprep.subr.bf16.mxu0 0
        %1412 = vmatpush1.bf16.msra.mxu0 0
        %1413 = vmatprep.subr.bf16.mxu0 0
        %1414 = vmatpush1.bf16.msra.mxu0 0
        %1415 = vmatprep.subr.bf16.mxu0 0
        %1416 = vmatpush1.bf16.msra.mxu0 0
        %1417 = vmatprep.subr.bf16.mxu0 0
        %1418 = vmatpush1.bf16.msra.mxu0 0
        %1419 = vmatprep.subr.bf16.mxu0 0
        %1420 = vmatpush1.bf16.msra.mxu0 0
        %1421 = vmatprep.subr.bf16.mxu0 0
        %1422 = vmatpush1.bf16.msra.mxu0 0
        %1423 = vmatprep.subr.bf16.mxu0 0
        %1424 = vmatpush1.bf16.msra.mxu0 0
        %1425 = vmatprep.subr.bf16.mxu0 0
        %1426 = vmatpush1.bf16.msra.mxu0 0
        %1427 = vmatprep.subr.bf16.mxu0 0
        %1428 = vmatpush1.bf16.msra.mxu0 0
        %1429 = vmatprep.subr.bf16.mxu0 0
        %1430 = vmatpush1.bf16.msra.mxu0 0
        %1431 = vmatprep.subr.bf16.mxu0 0
        %1432 = vmatpush1.bf16.msra.mxu0 0
        %1433 = vmatprep.mubr.bf16.mxu0 0
        %1434 = vmatmul.mubr.bf16.gmra.mrb[0].mxu0 %v1387
        %v1435 = vpop.f32.mrb[0].mxu0
        %v1436 = vadd.f32 0.0, %v1435
        %v1437 = vpop.f32.mrb[0].mxu0
        %v1438 = vadd.f32 0.0, %v1437
        %v1439 = vpop.f32.mrb[0].mxu0
        %v1440 = vpop.f32.mrb[0].mxu0
        %1441 = vdwg.mxu0
        %1442 = vmatprep.subr.bf16.mxu0 %v1399
        %1443 = vmatpush1.bf16.msra.mxu0 %v1396
        %1444 = vmatprep.subr.bf16.mxu0 0
        %1445 = vmatpush1.bf16.msra.mxu0 0
        %1446 = vmatprep.subr.bf16.mxu0 0
        %1447 = vmatpush1.bf16.msra.mxu0 0
        %1448 = vmatprep.subr.bf16.mxu0 0
        %1449 = vmatpush1.bf16.msra.mxu0 0
        %1450 = vmatprep.subr.bf16.mxu0 0
        %1451 = vmatpush1.bf16.msra.mxu0 0
        %1452 = vmatprep.subr.bf16.mxu0 0
        %1453 = vmatpush1.bf16.msra.mxu0 0
        %1454 = vmatprep.subr.bf16.mxu0 0
        %1455 = vmatpush1.bf16.msra.mxu0 0
        %1456 = vmatprep.subr.bf16.mxu0 0
        %1457 = vmatpush1.bf16.msra.mxu0 0
        %1458 = vmatprep.subr.bf16.mxu0 0
        %1459 = vmatpush1.bf16.msra.mxu0 0
        %1460 = vmatprep.subr.bf16.mxu0 0
        %1461 = vmatpush1.bf16.msra.mxu0 0
        %1462 = vmatprep.subr.bf16.mxu0 0
        %1463 = vmatpush1.bf16.msra.mxu0 0
        %1464 = vmatprep.subr.bf16.mxu0 0
        %1465 = vmatpush1.bf16.msra.mxu0 0
        %1466 = vmatprep.subr.bf16.mxu0 0
        %1467 = vmatpush1.bf16.msra.mxu0 0
        %1468 = vmatprep.subr.bf16.mxu0 0
        %1469 = vmatpush1.bf16.msra.mxu0 0
        %1470 = vmatprep.subr.bf16.mxu0 0
        %1471 = vmatpush1.bf16.msra.mxu0 0
        %1472 = vmatprep.subr.bf16.mxu0 0
        %1473 = vmatpush1.bf16.msra.mxu0 0
        %1474 = vmatprep.mubr.bf16.mxu0 0
        %1475 = vmatmul.mubr.bf16.gmra.mrb[0].mxu0 %v1387
        %v1476 = vpop.f32.mrb[0].mxu0
        %v1477 = vadd.f32 0.0, %v1476
        %v1478 = vpop.f32.mrb[0].mxu0
        %v1479 = vadd.f32 0.0, %v1478
        %v1480 = vpop.f32.mrb[0].mxu0
        %v1481 = vpop.f32.mrb[0].mxu0
        %1482 = vdwg.mxu0
        %v1483 = vadd.f32 %v1322, %v1436
        %v1484 = vadd.f32 %v1324, %v1438
        %v1485 = vadd.f32 %v1363, %v1477
        %v1486 = vadd.f32 %v1365, %v1479
        %v1487 = vadd.f32 %v1137, %v1483
        %v1488 = vadd.f32 %v1138, %v1484
        %v1489 = vadd.f32 %v1139, %v1485
        %v1490 = vadd.f32 %v1140, %v1486
        %1492 = vset.pattern.permute.xlu0 0
        %1493 = vperm.xlu0 %1492, %v427
        %v1494 = vpop.permute.xlu0 %1493
        %v1496 = vadd.f32 %v1487, %v1494
        %v1497 = vadd.f32 %v1488, %v1494
        %v1498 = vadd.f32 %v1489, %v1494
        %v1499 = vadd.f32 %v1490, %v1494
        %v1500 = vmax.f32 %v1496, 0.0
        %v1501 = vmax.f32 %v1497, 0.0
        %v1502 = vmax.f32 %v1498, 0.0
        %v1503 = vmax.f32 %v1499, 0.0
        %v1505 = vlaneseq
        %v1506 = vshrl.u32 %v1505, 7
        %v1507 = vsub.s32 0, %v1506
        %v1508 = vrot.slane %v426, %v1507
        %v1509 = vlaneseq
        %v1510 = vshrl.u32 %v1509, 7
        %v1511 = vsub.s32 1, %v1510
        %v1512 = vrot.slane %v426, %v1511
        %v1513 = vlaneseq
        %v1514 = vshrl.u32 %v1513, 7
        %v1515 = vsub.s32 2, %v1514
        %v1516 = vrot.slane %v426, %v1515
        %v1517 = vlaneseq
        %v1518 = vshrl.u32 %v1517, 7
        %v1519 = vsub.s32 3, %v1518
        %v1520 = vrot.slane %v426, %v1519
        %v1525 = vmul.f32 %v1500, %v1508
        %v1526 = vmul.f32 %v1501, %v1512
        %v1527 = vmul.f32 %v1502, %v1516
        %v1528 = vmul.f32 %v1503, %v1520
        %v1529 = vpack.c.bf16 %v1525, %v1525
        %v1530 = vpack.c.bf16 %v1526, %v1526
        %v1531 = vpack.c.bf16 %v1527, %v1527
        %v1532 = vpack.c.bf16 %v1528, %v1528
        %v1537 = vunpack.c.l.b16 %v1529
        %v1538 = vunpack.c.l.b16 %v1530
        %v1539 = vunpack.c.l.b16 %v1531
        %v1540 = vunpack.c.l.b16 %v1532
        %v1541 = vpack.c.b16 %v1538, %v1537
        %v1542 = vpack.c.b16 %v1540, %v1539
        %v1543 = vrot.slane %v1541, 6
        %v1544 = vrot.slane %v1542, 6
        %1545 = vrot.lane.b32.xlu0 %v1543, 69
        %v1546 = vpop.permute.xlu0 %1545
        %1547 = vrot.lane.b32.xlu0 %v1544, 69
        %v1548 = vpop.permute.xlu0 %1547
        %v1549 = vrot.slane %v1546, 4
        %v1550 = vrot.slane %v1548, 4
        %vm1551 = vcmask 564224
        %v1552 = vsel %vm1551, %v1549, %v1546
        %vm1553 = vcmask 1043456
        %v1554 = vsel %vm1553, %v1549, %v1550
        %v1555 = vsel %vm1551, %v1554, %v1548
        %vm1559 = vcmask 1042986
        %vm1560 = vsmask.f32 2304
        %vm1561 = vmand %vm1559, %vm1560
        %vm1562 = vcmask 1046534
        %vm1563 = vsmask.f32 6400
        %vm1564 = vmand %vm1562, %vm1563
        %vm1565 = vmor %vm1564, %vm1561
        %v1566 = vld [vmem:[#allocation2] sm:$0x44]
        %v1567 = vsel %vm1565, %v1552, %v1566
        %1568 = vst [vmem:[#allocation2] sm:$0x44] %v1567
        %vm1569 = vcmask 1042434
        %vm1570 = vmand %vm1569, %vm1560
        %vm1571 = vmor %vm1564, %vm1570
        %v1572 = vld [vmem:[#allocation2 + $0x8] sm:$0x44]
        %v1573 = vsel %vm1571, %v1555, %v1572
        %1574 = vst [vmem:[#allocation2 + $0x8] sm:$0x44] %v1573
        %vm1575 = vcmask 329730
        %vm1576 = vmand %vm1575, %vm1560
        %v1577 = vld [vmem:[#allocation2 + $0x10] sm:$0x4]
        %v1578 = vsel %vm1576, %v1550, %v1577
        %1579 = vst [vmem:[#allocation2 + $0x10] sm:$0x4] %v1578
        %s1580 = scalar_lea.vmem %s8, 8
        %v1581 = vld [vmem:[%s1580] sm:$0xff]
        %v1582 = vld [vmem:[#allocation2] sm:$0x77]
        %v1583 = vld [vmem:[#allocation2 + $0x8] sm:$0x77]
        %v1584 = vld [vmem:[%s3] sm:$0xf]
        %s1585 = scalar_lea.vmem %s3, 4
        %v1586 = vld [vmem:[%s1585] sm:$0xf]
        %v1589 = vunpack.c.l.b16 %v1582
        %v1590 = vunpack.c.h.b16 %v1582
        %v1591 = vunpack.c.l.b16 %v1583
        %v1592 = vunpack.c.h.b16 %v1583
        %v1593 = vpack.c.b16 %v1589, %v1589
        %v1594 = vpack.c.b16 %v1590, %v1590
        %v1595 = vpack.c.b16 %v1591, %v1591
        %v1596 = vpack.c.b16 %v1592, %v1592
        %1597 = vrot.lane.b32.xlu0 %v1593, 103
        %v1598 = vpop.permute.xlu0 %1597
        %1599 = vrot.lane.b32.xlu0 %v1594, 103
        %v1600 = vpop.permute.xlu0 %1599
        %1601 = vrot.lane.b32.xlu0 %v1595, 103
        %v1602 = vpop.permute.xlu0 %1601
        %1603 = vrot.lane.b32.xlu0 %v1596, 103
        %v1604 = vpop.permute.xlu0 %1603
        %vm1605 = vcmask 842752
        %v1606 = vsel %vm1605, %v1598, %v1600
        %v1607 = vsel %vm1605, %v1600, %v1602
        %v1608 = vsel %vm1605, %v1602, %v1604
        %vm1609 = vcmask 39936
        %v1611 = vsel %vm1609, %v1586, 0
        %vm1613 = vcmask 1042432
        %v1614 = vsel %vm466, 4294967295, 65535
        %v1615 = vsel %vm1613, %v1614, 0
        %v1617 = vand.u32 %v1606, %v1615
        %v1620 = vand.u32 %v1607, %v1615
        %v1623 = vand.u32 %v1608, %v1615
        %v1626 = vand.u32 %v1604, %v1615
        %1628 = vmatprep.subr.bf16.mxu0 %v1620
        %1629 = vmatpush1.bf16.msra.mxu0 %v1617
        %1630 = vmatprep.subr.bf16.mxu0 0
        %1631 = vmatpush1.bf16.msra.mxu0 0
        %1632 = vmatprep.subr.bf16.mxu0 0
        %1633 = vmatpush1.bf16.msra.mxu0 0
        %1634 = vmatprep.subr.bf16.mxu0 0
        %1635 = vmatpush1.bf16.msra.mxu0 0
        %1636 = vmatprep.subr.bf16.mxu0 0
        %1637 = vmatpush1.bf16.msra.mxu0 0
        %1638 = vmatprep.subr.bf16.mxu0 0
        %1639 = vmatpush1.bf16.msra.mxu0 0
        %1640 = vmatprep.subr.bf16.mxu0 0
        %1641 = vmatpush1.bf16.msra.mxu0 0
        %1642 = vmatprep.subr.bf16.mxu0 0
        %1643 = vmatpush1.bf16.msra.mxu0 0
        %1644 = vmatprep.subr.bf16.mxu0 0
        %1645 = vmatpush1.bf16.msra.mxu0 0
        %1646 = vmatprep.subr.bf16.mxu0 0
        %1647 = vmatpush1.bf16.msra.mxu0 0
        %1648 = vmatprep.subr.bf16.mxu0 0
        %1649 = vmatpush1.bf16.msra.mxu0 0
        %1650 = vmatprep.subr.bf16.mxu0 0
        %1651 = vmatpush1.bf16.msra.mxu0 0
        %1652 = vmatprep.subr.bf16.mxu0 0
        %1653 = vmatpush1.bf16.msra.mxu0 0
        %1654 = vmatprep.subr.bf16.mxu0 0
        %1655 = vmatpush1.bf16.msra.mxu0 0
        %1656 = vmatprep.subr.bf16.mxu0 0
        %1657 = vmatpush1.bf16.msra.mxu0 0
        %1658 = vmatprep.subr.bf16.mxu0 0
        %1659 = vmatpush1.bf16.msra.mxu0 0
        %1660 = vmatprep.mubr.bf16.mxu0 0
        %1661 = vmatmul.mubr.bf16.gmra.mrb[0].mxu0 %v1611
        %v1662 = vpop.f32.mrb[0].mxu0
        %v1663 = vadd.f32 0.0, %v1662
        %v1664 = vpop.f32.mrb[0].mxu0
        %v1665 = vadd.f32 0.0, %v1664
        %v1666 = vpop.f32.mrb[0].mxu0
        %v1667 = vpop.f32.mrb[0].mxu0
        %1668 = vdwg.mxu0
        %1669 = vmatprep.subr.bf16.mxu0 %v1626
        %1670 = vmatpush1.bf16.msra.mxu0 %v1623
        %1671 = vmatprep.subr.bf16.mxu0 0
        %1672 = vmatpush1.bf16.msra.mxu0 0
        %1673 = vmatprep.subr.bf16.mxu0 0
        %1674 = vmatpush1.bf16.msra.mxu0 0
        %1675 = vmatprep.subr.bf16.mxu0 0
        %1676 = vmatpush1.bf16.msra.mxu0 0
        %1677 = vmatprep.subr.bf16.mxu0 0
        %1678 = vmatpush1.bf16.msra.mxu0 0
        %1679 = vmatprep.subr.bf16.mxu0 0
        %1680 = vmatpush1.bf16.msra.mxu0 0
        %1681 = vmatprep.subr.bf16.mxu0 0
        %1682 = vmatpush1.bf16.msra.mxu0 0
        %1683 = vmatprep.subr.bf16.mxu0 0
        %1684 = vmatpush1.bf16.msra.mxu0 0
        %1685 = vmatprep.subr.bf16.mxu0 0
        %1686 = vmatpush1.bf16.msra.mxu0 0
        %1687 = vmatprep.subr.bf16.mxu0 0
        %1688 = vmatpush1.bf16.msra.mxu0 0
        %1689 = vmatprep.subr.bf16.mxu0 0
        %1690 = vmatpush1.bf16.msra.mxu0 0
        %1691 = vmatprep.subr.bf16.mxu0 0
        %1692 = vmatpush1.bf16.msra.mxu0 0
        %1693 = vmatprep.subr.bf16.mxu0 0
        %1694 = vmatpush1.bf16.msra.mxu0 0
        %1695 = vmatprep.subr.bf16.mxu0 0
        %1696 = vmatpush1.bf16.msra.mxu0 0
        %1697 = vmatprep.subr.bf16.mxu0 0
        %1698 = vmatpush1.bf16.msra.mxu0 0
        %1699 = vmatprep.subr.bf16.mxu0 0
        %1700 = vmatpush1.bf16.msra.mxu0 0
        %1701 = vmatprep.mubr.bf16.mxu0 0
        %1702 = vmatmul.mubr.bf16.gmra.mrb[0].mxu0 %v1611
        %v1703 = vpop.f32.mrb[0].mxu0
        %v1704 = vadd.f32 0.0, %v1703
        %v1705 = vpop.f32.mrb[0].mxu0
        %v1706 = vadd.f32 0.0, %v1705
        %v1707 = vpop.f32.mrb[0].mxu0
        %v1708 = vpop.f32.mrb[0].mxu0
        %1709 = vdwg.mxu0
        %1710 = vrot.lane.b32.xlu0 %v1593, 105
        %v1711 = vpop.permute.xlu0 %1710
        %1712 = vrot.lane.b32.xlu0 %v1594, 105
        %v1713 = vpop.permute.xlu0 %1712
        %1714 = vrot.lane.b32.xlu0 %v1595, 105
        %v1715 = vpop.permute.xlu0 %1714
        %1716 = vrot.lane.b32.xlu0 %v1596, 105
        %v1717 = vpop.permute.xlu0 %1716
        %vm1718 = vcmask 859136
        %v1719 = vsel %vm1718, %v1711, %v1713
        %v1720 = vsel %vm1718, %v1713, %v1715
        %v1721 = vsel %vm1718, %v1715, %v1717
        %v1723 = vsel %vm1609, %v1584, 0
        %v1726 = vand.u32 %v1719, %v1615
        %v1729 = vand.u32 %v1720, %v1615
        %v1732 = vand.u32 %v1721, %v1615
        %v1735 = vand.u32 %v1717, %v1615
        %1737 = vmatprep.subr.bf16.mxu0 %v1729
        %1738 = vmatpush1.bf16.msra.mxu0 %v1726
        %1739 = vmatprep.subr.bf16.mxu0 0
        %1740 = vmatpush1.bf16.msra.mxu0 0
        %1741 = vmatprep.subr.bf16.mxu0 0
        %1742 = vmatpush1.bf16.msra.mxu0 0
        %1743 = vmatprep.subr.bf16.mxu0 0
        %1744 = vmatpush1.bf16.msra.mxu0 0
        %1745 = vmatprep.subr.bf16.mxu0 0
        %1746 = vmatpush1.bf16.msra.mxu0 0
        %1747 = vmatprep.subr.bf16.mxu0 0
        %1748 = vmatpush1.bf16.msra.mxu0 0
        %1749 = vmatprep.subr.bf16.mxu0 0
        %1750 = vmatpush1.bf16.msra.mxu0 0
        %1751 = vmatprep.subr.bf16.mxu0 0
        %1752 = vmatpush1.bf16.msra.mxu0 0
        %1753 = vmatprep.subr.bf16.mxu0 0
        %1754 = vmatpush1.bf16.msra.mxu0 0
        %1755 = vmatprep.subr.bf16.mxu0 0
        %1756 = vmatpush1.bf16.msra.mxu0 0
        %1757 = vmatprep.subr.bf16.mxu0 0
        %1758 = vmatpush1.bf16.msra.mxu0 0
        %1759 = vmatprep.subr.bf16.mxu0 0
        %1760 = vmatpush1.bf16.msra.mxu0 0
        %1761 = vmatprep.subr.bf16.mxu0 0
        %1762 = vmatpush1.bf16.msra.mxu0 0
        %1763 = vmatprep.subr.bf16.mxu0 0
        %1764 = vmatpush1.bf16.msra.mxu0 0
        %1765 = vmatprep.subr.bf16.mxu0 0
        %1766 = vmatpush1.bf16.msra.mxu0 0
        %1767 = vmatprep.subr.bf16.mxu0 0
        %1768 = vmatpush1.bf16.msra.mxu0 0
        %1769 = vmatprep.mubr.bf16.mxu0 0
        %1770 = vmatmul.mubr.bf16.gmra.mrb[0].mxu0 %v1723
        %v1771 = vpop.f32.mrb[0].mxu0
        %v1772 = vadd.f32 %v1663, %v1771
        %v1773 = vpop.f32.mrb[0].mxu0
        %v1774 = vadd.f32 %v1665, %v1773
        %v1775 = vpop.f32.mrb[0].mxu0
        %v1776 = vpop.f32.mrb[0].mxu0
        %1777 = vdwg.mxu0
        %1778 = vmatprep.subr.bf16.mxu0 %v1735
        %1779 = vmatpush1.bf16.msra.mxu0 %v1732
        %1780 = vmatprep.subr.bf16.mxu0 0
        %1781 = vmatpush1.bf16.msra.mxu0 0
        %1782 = vmatprep.subr.bf16.mxu0 0
        %1783 = vmatpush1.bf16.msra.mxu0 0
        %1784 = vmatprep.subr.bf16.mxu0 0
        %1785 = vmatpush1.bf16.msra.mxu0 0
        %1786 = vmatprep.subr.bf16.mxu0 0
        %1787 = vmatpush1.bf16.msra.mxu0 0
        %1788 = vmatprep.subr.bf16.mxu0 0
        %1789 = vmatpush1.bf16.msra.mxu0 0
        %1790 = vmatprep.subr.bf16.mxu0 0
        %1791 = vmatpush1.bf16.msra.mxu0 0
        %1792 = vmatprep.subr.bf16.mxu0 0
        %1793 = vmatpush1.bf16.msra.mxu0 0
        %1794 = vmatprep.subr.bf16.mxu0 0
        %1795 = vmatpush1.bf16.msra.mxu0 0
        %1796 = vmatprep.subr.bf16.mxu0 0
        %1797 = vmatpush1.bf16.msra.mxu0 0
        %1798 = vmatprep.subr.bf16.mxu0 0
        %1799 = vmatpush1.bf16.msra.mxu0 0
        %1800 = vmatprep.subr.bf16.mxu0 0
        %1801 = vmatpush1.bf16.msra.mxu0 0
        %1802 = vmatprep.subr.bf16.mxu0 0
        %1803 = vmatpush1.bf16.msra.mxu0 0
        %1804 = vmatprep.subr.bf16.mxu0 0
        %1805 = vmatpush1.bf16.msra.mxu0 0
        %1806 = vmatprep.subr.bf16.mxu0 0
        %1807 = vmatpush1.bf16.msra.mxu0 0
        %1808 = vmatprep.subr.bf16.mxu0 0
        %1809 = vmatpush1.bf16.msra.mxu0 0
        %1810 = vmatprep.mubr.bf16.mxu0 0
        %1811 = vmatmul.mubr.bf16.gmra.mrb[0].mxu0 %v1723
        %v1812 = vpop.f32.mrb[0].mxu0
        %v1813 = vadd.f32 %v1704, %v1812
        %v1814 = vpop.f32.mrb[0].mxu0
        %v1815 = vadd.f32 %v1706, %v1814
        %v1816 = vpop.f32.mrb[0].mxu0
        %v1817 = vpop.f32.mrb[0].mxu0
        %1818 = vdwg.mxu0
        %s1819 = scalar_lea.vmem %s3, 8
        %v1820 = vld [vmem:[%s1819] sm:$0xf]
        %1821 = vrot.lane.b32.xlu0 %v1593, 101
        %v1822 = vpop.permute.xlu0 %1821
        %1823 = vrot.lane.b32.xlu0 %v1594, 101
        %v1824 = vpop.permute.xlu0 %1823
        %1825 = vrot.lane.b32.xlu0 %v1595, 101
        %v1826 = vpop.permute.xlu0 %1825
        %1827 = vrot.lane.b32.xlu0 %v1596, 101
        %v1828 = vpop.permute.xlu0 %1827
        %vm1829 = vcmask 826368
        %v1830 = vsel %vm1829, %v1822, %v1824
        %v1831 = vsel %vm1829, %v1824, %v1826
        %v1832 = vsel %vm1829, %v1826, %v1828
        %v1834 = vsel %vm1609, %v1820, 0
        %v1837 = vand.u32 %v1830, %v1615
        %v1840 = vand.u32 %v1831, %v1615
        %v1843 = vand.u32 %v1832, %v1615
        %v1846 = vand.u32 %v1828, %v1615
        %1848 = vmatprep.subr.bf16.mxu0 %v1840
        %1849 = vmatpush1.bf16.msra.mxu0 %v1837
        %1850 = vmatprep.subr.bf16.mxu0 0
        %1851 = vmatpush1.bf16.msra.mxu0 0
        %1852 = vmatprep.subr.bf16.mxu0 0
        %1853 = vmatpush1.bf16.msra.mxu0 0
        %1854 = vmatprep.subr.bf16.mxu0 0
        %1855 = vmatpush1.bf16.msra.mxu0 0
        %1856 = vmatprep.subr.bf16.mxu0 0
        %1857 = vmatpush1.bf16.msra.mxu0 0
        %1858 = vmatprep.subr.bf16.mxu0 0
        %1859 = vmatpush1.bf16.msra.mxu0 0
        %1860 = vmatprep.subr.bf16.mxu0 0
        %1861 = vmatpush1.bf16.msra.mxu0 0
        %1862 = vmatprep.subr.bf16.mxu0 0
        %1863 = vmatpush1.bf16.msra.mxu0 0
        %1864 = vmatprep.subr.bf16.mxu0 0
        %1865 = vmatpush1.bf16.msra.mxu0 0
        %1866 = vmatprep.subr.bf16.mxu0 0
        %1867 = vmatpush1.bf16.msra.mxu0 0
        %1868 = vmatprep.subr.bf16.mxu0 0
        %1869 = vmatpush1.bf16.msra.mxu0 0
        %1870 = vmatprep.subr.bf16.mxu0 0
        %1871 = vmatpush1.bf16.msra.mxu0 0
        %1872 = vmatprep.subr.bf16.mxu0 0
        %1873 = vmatpush1.bf16.msra.mxu0 0
        %1874 = vmatprep.subr.bf16.mxu0 0
        %1875 = vmatpush1.bf16.msra.mxu0 0
        %1876 = vmatprep.subr.bf16.mxu0 0
        %1877 = vmatpush1.bf16.msra.mxu0 0
        %1878 = vmatprep.subr.bf16.mxu0 0
        %1879 = vmatpush1.bf16.msra.mxu0 0
        %1880 = vmatprep.mubr.bf16.mxu0 0
        %1881 = vmatmul.mubr.bf16.gmra.mrb[0].mxu0 %v1834
        %v1882 = vpop.f32.mrb[0].mxu0
        %v1883 = vadd.f32 0.0, %v1882
        %v1884 = vpop.f32.mrb[0].mxu0
        %v1885 = vadd.f32 0.0, %v1884
        %v1886 = vpop.f32.mrb[0].mxu0
        %v1887 = vpop.f32.mrb[0].mxu0
        %1888 = vdwg.mxu0
        %1889 = vmatprep.subr.bf16.mxu0 %v1846
        %1890 = vmatpush1.bf16.msra.mxu0 %v1843
        %1891 = vmatprep.subr.bf16.mxu0 0
        %1892 = vmatpush1.bf16.msra.mxu0 0
        %1893 = vmatprep.subr.bf16.mxu0 0
        %1894 = vmatpush1.bf16.msra.mxu0 0
        %1895 = vmatprep.subr.bf16.mxu0 0
        %1896 = vmatpush1.bf16.msra.mxu0 0
        %1897 = vmatprep.subr.bf16.mxu0 0
        %1898 = vmatpush1.bf16.msra.mxu0 0
        %1899 = vmatprep.subr.bf16.mxu0 0
        %1900 = vmatpush1.bf16.msra.mxu0 0
        %1901 = vmatprep.subr.bf16.mxu0 0
        %1902 = vmatpush1.bf16.msra.mxu0 0
        %1903 = vmatprep.subr.bf16.mxu0 0
        %1904 = vmatpush1.bf16.msra.mxu0 0
        %1905 = vmatprep.subr.bf16.mxu0 0
        %1906 = vmatpush1.bf16.msra.mxu0 0
        %1907 = vmatprep.subr.bf16.mxu0 0
        %1908 = vmatpush1.bf16.msra.mxu0 0
        %1909 = vmatprep.subr.bf16.mxu0 0
        %1910 = vmatpush1.bf16.msra.mxu0 0
        %1911 = vmatprep.subr.bf16.mxu0 0
        %1912 = vmatpush1.bf16.msra.mxu0 0
        %1913 = vmatprep.subr.bf16.mxu0 0
        %1914 = vmatpush1.bf16.msra.mxu0 0
        %1915 = vmatprep.subr.bf16.mxu0 0
        %1916 = vmatpush1.bf16.msra.mxu0 0
        %1917 = vmatprep.subr.bf16.mxu0 0
        %1918 = vmatpush1.bf16.msra.mxu0 0
        %1919 = vmatprep.subr.bf16.mxu0 0
        %1920 = vmatpush1.bf16.msra.mxu0 0
        %1921 = vmatprep.mubr.bf16.mxu0 0
        %1922 = vmatmul.mubr.bf16.gmra.mrb[0].mxu0 %v1834
        %v1923 = vpop.f32.mrb[0].mxu0
        %v1924 = vadd.f32 0.0, %v1923
        %v1925 = vpop.f32.mrb[0].mxu0
        %v1926 = vadd.f32 0.0, %v1925
        %v1927 = vpop.f32.mrb[0].mxu0
        %v1928 = vpop.f32.mrb[0].mxu0
        %1929 = vdwg.mxu0
        %v1930 = vadd.f32 %v1772, %v1883
        %v1931 = vadd.f32 %v1774, %v1885
        %v1932 = vadd.f32 %v1813, %v1924
        %v1933 = vadd.f32 %v1815, %v1926
        %v1934 = vld [vmem:[#allocation2] sm:$0x77]
        %v1935 = vld [vmem:[#allocation2 + $0x8] sm:$0x77]
        %v1936 = vld [vmem:[#allocation2 + $0x10] sm:$0x7]
        %s1937 = scalar_lea.vmem %s3, 12
        %v1938 = vld [vmem:[%s1937] sm:$0xf]
        %s1939 = scalar_lea.vmem %s3, 16
        %v1940 = vld [vmem:[%s1939] sm:$0xf]
        %v1944 = vunpack.c.l.b16 %v1934
        %v1945 = vunpack.c.h.b16 %v1934
        %v1946 = vunpack.c.l.b16 %v1935
        %v1947 = vunpack.c.h.b16 %v1935
        %v1948 = vunpack.c.l.b16 %v1936
        %v1949 = vpack.c.b16 %v1944, %v1944
        %v1950 = vpack.c.b16 %v1945, %v1945
        %v1951 = vpack.c.b16 %v1946, %v1946
        %v1952 = vpack.c.b16 %v1947, %v1947
        %v1953 = vpack.c.b16 %v1948, %v1948
        %1954 = vrot.lane.b32.xlu0 %v1949, 59
        %v1955 = vpop.permute.xlu0 %1954
        %1956 = vrot.lane.b32.xlu0 %v1950, 59
        %v1957 = vpop.permute.xlu0 %1956
        %1958 = vrot.lane.b32.xlu0 %v1951, 59
        %v1959 = vpop.permute.xlu0 %1958
        %1960 = vrot.lane.b32.xlu0 %v1952, 59
        %v1961 = vpop.permute.xlu0 %1960
        %1962 = vrot.lane.b32.xlu0 %v1953, 59
        %v1963 = vpop.permute.xlu0 %1962
        %v1964 = vsel %vm805, %v1955, %v1957
        %v1965 = vsel %vm805, %v1957, %v1959
        %v1966 = vsel %vm805, %v1959, %v1961
        %v1967 = vsel %vm805, %v1961, %v1963
        %v1969 = vsel %vm1609, %v1940, 0
        %v1972 = vand.u32 %v1964, %v1615
        %v1975 = vand.u32 %v1965, %v1615
        %v1978 = vand.u32 %v1966, %v1615
        %v1981 = vand.u32 %v1967, %v1615
        %1983 = vmatprep.subr.bf16.mxu0 %v1975
        %1984 = vmatpush1.bf16.msra.mxu0 %v1972
        %1985 = vmatprep.subr.bf16.mxu0 0
        %1986 = vmatpush1.bf16.msra.mxu0 0
        %1987 = vmatprep.subr.bf16.mxu0 0
        %1988 = vmatpush1.bf16.msra.mxu0 0
        %1989 = vmatprep.subr.bf16.mxu0 0
        %1990 = vmatpush1.bf16.msra.mxu0 0
        %1991 = vmatprep.subr.bf16.mxu0 0
        %1992 = vmatpush1.bf16.msra.mxu0 0
        %1993 = vmatprep.subr.bf16.mxu0 0
        %1994 = vmatpush1.bf16.msra.mxu0 0
        %1995 = vmatprep.subr.bf16.mxu0 0
        %1996 = vmatpush1.bf16.msra.mxu0 0
        %1997 = vmatprep.subr.bf16.mxu0 0
        %1998 = vmatpush1.bf16.msra.mxu0 0
        %1999 = vmatprep.subr.bf16.mxu0 0
        %2000 = vmatpush1.bf16.msra.mxu0 0
        %2001 = vmatprep.subr.bf16.mxu0 0
        %2002 = vmatpush1.bf16.msra.mxu0 0
        %2003 = vmatprep.subr.bf16.mxu0 0
        %2004 = vmatpush1.bf16.msra.mxu0 0
        %2005 = vmatprep.subr.bf16.mxu0 0
        %2006 = vmatpush1.bf16.msra.mxu0 0
        %2007 = vmatprep.subr.bf16.mxu0 0
        %2008 = vmatpush1.bf16.msra.mxu0 0
        %2009 = vmatprep.subr.bf16.mxu0 0
        %2010 = vmatpush1.bf16.msra.mxu0 0
        %2011 = vmatprep.subr.bf16.mxu0 0
        %2012 = vmatpush1.bf16.msra.mxu0 0
        %2013 = vmatprep.subr.bf16.mxu0 0
        %2014 = vmatpush1.bf16.msra.mxu0 0
        %2015 = vmatprep.mubr.bf16.mxu0 0
        %2016 = vmatmul.mubr.bf16.gmra.mrb[0].mxu0 %v1969
        %v2017 = vpop.f32.mrb[0].mxu0
        %v2018 = vadd.f32 0.0, %v2017
        %v2019 = vpop.f32.mrb[0].mxu0
        %v2020 = vadd.f32 0.0, %v2019
        %v2021 = vpop.f32.mrb[0].mxu0
        %v2022 = vpop.f32.mrb[0].mxu0
        %2023 = vdwg.mxu0
        %2024 = vmatprep.subr.bf16.mxu0 %v1981
        %2025 = vmatpush1.bf16.msra.mxu0 %v1978
        %2026 = vmatprep.subr.bf16.mxu0 0
        %2027 = vmatpush1.bf16.msra.mxu0 0
        %2028 = vmatprep.subr.bf16.mxu0 0
        %2029 = vmatpush1.bf16.msra.mxu0 0
        %2030 = vmatprep.subr.bf16.mxu0 0
        %2031 = vmatpush1.bf16.msra.mxu0 0
        %2032 = vmatprep.subr.bf16.mxu0 0
        %2033 = vmatpush1.bf16.msra.mxu0 0
        %2034 = vmatprep.subr.bf16.mxu0 0
        %2035 = vmatpush1.bf16.msra.mxu0 0
        %2036 = vmatprep.subr.bf16.mxu0 0
        %2037 = vmatpush1.bf16.msra.mxu0 0
        %2038 = vmatprep.subr.bf16.mxu0 0
        %2039 = vmatpush1.bf16.msra.mxu0 0
        %2040 = vmatprep.subr.bf16.mxu0 0
        %2041 = vmatpush1.bf16.msra.mxu0 0
        %2042 = vmatprep.subr.bf16.mxu0 0
        %2043 = vmatpush1.bf16.msra.mxu0 0
        %2044 = vmatprep.subr.bf16.mxu0 0
        %2045 = vmatpush1.bf16.msra.mxu0 0
        %2046 = vmatprep.subr.bf16.mxu0 0
        %2047 = vmatpush1.bf16.msra.mxu0 0
        %2048 = vmatprep.subr.bf16.mxu0 0
        %2049 = vmatpush1.bf16.msra.mxu0 0
        %2050 = vmatprep.subr.bf16.mxu0 0
        %2051 = vmatpush1.bf16.msra.mxu0 0
        %2052 = vmatprep.subr.bf16.mxu0 0
        %2053 = vmatpush1.bf16.msra.mxu0 0
        %2054 = vmatprep.subr.bf16.mxu0 0
        %2055 = vmatpush1.bf16.msra.mxu0 0
        %2056 = vmatprep.mubr.bf16.mxu0 0
        %2057 = vmatmul.mubr.bf16.gmra.mrb[0].mxu0 %v1969
        %v2058 = vpop.f32.mrb[0].mxu0
        %v2059 = vadd.f32 0.0, %v2058
        %v2060 = vpop.f32.mrb[0].mxu0
        %v2061 = vadd.f32 0.0, %v2060
        %v2062 = vpop.f32.mrb[0].mxu0
        %v2063 = vpop.f32.mrb[0].mxu0
        %2064 = vdwg.mxu0
        %2065 = vrot.lane.b32.xlu0 %v1949, 61
        %v2066 = vpop.permute.xlu0 %2065
        %2067 = vrot.lane.b32.xlu0 %v1950, 61
        %v2068 = vpop.permute.xlu0 %2067
        %2069 = vrot.lane.b32.xlu0 %v1951, 61
        %v2070 = vpop.permute.xlu0 %2069
        %2071 = vrot.lane.b32.xlu0 %v1952, 61
        %v2072 = vpop.permute.xlu0 %2071
        %2073 = vrot.lane.b32.xlu0 %v1953, 61
        %v2074 = vpop.permute.xlu0 %2073
        %vm2075 = vcmask 498688
        %v2076 = vsel %vm2075, %v2066, %v2068
        %v2077 = vsel %vm2075, %v2068, %v2070
        %v2078 = vsel %vm2075, %v2070, %v2072
        %v2079 = vsel %vm2075, %v2072, %v2074
        %v2081 = vsel %vm1609, %v1938, 0
        %v2084 = vand.u32 %v2076, %v1615
        %v2087 = vand.u32 %v2077, %v1615
        %v2090 = vand.u32 %v2078, %v1615
        %v2093 = vand.u32 %v2079, %v1615
        %2095 = vmatprep.subr.bf16.mxu0 %v2087
        %2096 = vmatpush1.bf16.msra.mxu0 %v2084
        %2097 = vmatprep.subr.bf16.mxu0 0
        %2098 = vmatpush1.bf16.msra.mxu0 0
        %2099 = vmatprep.subr.bf16.mxu0 0
        %2100 = vmatpush1.bf16.msra.mxu0 0
        %2101 = vmatprep.subr.bf16.mxu0 0
        %2102 = vmatpush1.bf16.msra.mxu0 0
        %2103 = vmatprep.subr.bf16.mxu0 0
        %2104 = vmatpush1.bf16.msra.mxu0 0
        %2105 = vmatprep.subr.bf16.mxu0 0
        %2106 = vmatpush1.bf16.msra.mxu0 0
        %2107 = vmatprep.subr.bf16.mxu0 0
        %2108 = vmatpush1.bf16.msra.mxu0 0
        %2109 = vmatprep.subr.bf16.mxu0 0
        %2110 = vmatpush1.bf16.msra.mxu0 0
        %2111 = vmatprep.subr.bf16.mxu0 0
        %2112 = vmatpush1.bf16.msra.mxu0 0
        %2113 = vmatprep.subr.bf16.mxu0 0
        %2114 = vmatpush1.bf16.msra.mxu0 0
        %2115 = vmatprep.subr.bf16.mxu0 0
        %2116 = vmatpush1.bf16.msra.mxu0 0
        %2117 = vmatprep.subr.bf16.mxu0 0
        %2118 = vmatpush1.bf16.msra.mxu0 0
        %2119 = vmatprep.subr.bf16.mxu0 0
        %2120 = vmatpush1.bf16.msra.mxu0 0
        %2121 = vmatprep.subr.bf16.mxu0 0
        %2122 = vmatpush1.bf16.msra.mxu0 0
        %2123 = vmatprep.subr.bf16.mxu0 0
        %2124 = vmatpush1.bf16.msra.mxu0 0
        %2125 = vmatprep.subr.bf16.mxu0 0
        %2126 = vmatpush1.bf16.msra.mxu0 0
        %2127 = vmatprep.mubr.bf16.mxu0 0
        %2128 = vmatmul.mubr.bf16.gmra.mrb[0].mxu0 %v2081
        %v2129 = vpop.f32.mrb[0].mxu0
        %v2130 = vadd.f32 %v2018, %v2129
        %v2131 = vpop.f32.mrb[0].mxu0
        %v2132 = vadd.f32 %v2020, %v2131
        %v2133 = vpop.f32.mrb[0].mxu0
        %v2134 = vpop.f32.mrb[0].mxu0
        %2135 = vdwg.mxu0
        %2136 = vmatprep.subr.bf16.mxu0 %v2093
        %2137 = vmatpush1.bf16.msra.mxu0 %v2090
        %2138 = vmatprep.subr.bf16.mxu0 0
        %2139 = vmatpush1.bf16.msra.mxu0 0
        %2140 = vmatprep.subr.bf16.mxu0 0
        %2141 = vmatpush1.bf16.msra.mxu0 0
        %2142 = vmatprep.subr.bf16.mxu0 0
        %2143 = vmatpush1.bf16.msra.mxu0 0
        %2144 = vmatprep.subr.bf16.mxu0 0
        %2145 = vmatpush1.bf16.msra.mxu0 0
        %2146 = vmatprep.subr.bf16.mxu0 0
        %2147 = vmatpush1.bf16.msra.mxu0 0
        %2148 = vmatprep.subr.bf16.mxu0 0
        %2149 = vmatpush1.bf16.msra.mxu0 0
        %2150 = vmatprep.subr.bf16.mxu0 0
        %2151 = vmatpush1.bf16.msra.mxu0 0
        %2152 = vmatprep.subr.bf16.mxu0 0
        %2153 = vmatpush1.bf16.msra.mxu0 0
        %2154 = vmatprep.subr.bf16.mxu0 0
        %2155 = vmatpush1.bf16.msra.mxu0 0
        %2156 = vmatprep.subr.bf16.mxu0 0
        %2157 = vmatpush1.bf16.msra.mxu0 0
        %2158 = vmatprep.subr.bf16.mxu0 0
        %2159 = vmatpush1.bf16.msra.mxu0 0
        %2160 = vmatprep.subr.bf16.mxu0 0
        %2161 = vmatpush1.bf16.msra.mxu0 0
        %2162 = vmatprep.subr.bf16.mxu0 0
        %2163 = vmatpush1.bf16.msra.mxu0 0
        %2164 = vmatprep.subr.bf16.mxu0 0
        %2165 = vmatpush1.bf16.msra.mxu0 0
        %2166 = vmatprep.subr.bf16.mxu0 0
        %2167 = vmatpush1.bf16.msra.mxu0 0
        %2168 = vmatprep.mubr.bf16.mxu0 0
        %2169 = vmatmul.mubr.bf16.gmra.mrb[0].mxu0 %v2081
        %v2170 = vpop.f32.mrb[0].mxu0
        %v2171 = vadd.f32 %v2059, %v2170
        %v2172 = vpop.f32.mrb[0].mxu0
        %v2173 = vadd.f32 %v2061, %v2172
        %v2174 = vpop.f32.mrb[0].mxu0
        %v2175 = vpop.f32.mrb[0].mxu0
        %2176 = vdwg.mxu0
        %s2177 = scalar_lea.vmem %s3, 20
        %v2178 = vld [vmem:[%s2177] sm:$0xf]
        %2179 = vrot.lane.b32.xlu0 %v1949, 57
        %v2180 = vpop.permute.xlu0 %2179
        %2181 = vrot.lane.b32.xlu0 %v1950, 57
        %v2182 = vpop.permute.xlu0 %2181
        %2183 = vrot.lane.b32.xlu0 %v1951, 57
        %v2184 = vpop.permute.xlu0 %2183
        %2185 = vrot.lane.b32.xlu0 %v1952, 57
        %v2186 = vpop.permute.xlu0 %2185
        %2187 = vrot.lane.b32.xlu0 %v1953, 57
        %v2188 = vpop.permute.xlu0 %2187
        %vm2189 = vcmask 465920
        %v2190 = vsel %vm2189, %v2180, %v2182
        %v2191 = vsel %vm2189, %v2182, %v2184
        %v2192 = vsel %vm2189, %v2184, %v2186
        %v2193 = vsel %vm2189, %v2186, %v2188
        %v2195 = vsel %vm1609, %v2178, 0
        %v2198 = vand.u32 %v2190, %v1615
        %v2201 = vand.u32 %v2191, %v1615
        %v2204 = vand.u32 %v2192, %v1615
        %v2207 = vand.u32 %v2193, %v1615
        %2209 = vmatprep.subr.bf16.mxu0 %v2201
        %2210 = vmatpush1.bf16.msra.mxu0 %v2198
        %2211 = vmatprep.subr.bf16.mxu0 0
        %2212 = vmatpush1.bf16.msra.mxu0 0
        %2213 = vmatprep.subr.bf16.mxu0 0
        %2214 = vmatpush1.bf16.msra.mxu0 0
        %2215 = vmatprep.subr.bf16.mxu0 0
        %2216 = vmatpush1.bf16.msra.mxu0 0
        %2217 = vmatprep.subr.bf16.mxu0 0
        %2218 = vmatpush1.bf16.msra.mxu0 0
        %2219 = vmatprep.subr.bf16.mxu0 0
        %2220 = vmatpush1.bf16.msra.mxu0 0
        %2221 = vmatprep.subr.bf16.mxu0 0
        %2222 = vmatpush1.bf16.msra.mxu0 0
        %2223 = vmatprep.subr.bf16.mxu0 0
        %2224 = vmatpush1.bf16.msra.mxu0 0
        %2225 = vmatprep.subr.bf16.mxu0 0
        %2226 = vmatpush1.bf16.msra.mxu0 0
        %2227 = vmatprep.subr.bf16.mxu0 0
        %2228 = vmatpush1.bf16.msra.mxu0 0
        %2229 = vmatprep.subr.bf16.mxu0 0
        %2230 = vmatpush1.bf16.msra.mxu0 0
        %2231 = vmatprep.subr.bf16.mxu0 0
        %2232 = vmatpush1.bf16.msra.mxu0 0
        %2233 = vmatprep.subr.bf16.mxu0 0
        %2234 = vmatpush1.bf16.msra.mxu0 0
        %2235 = vmatprep.subr.bf16.mxu0 0
        %2236 = vmatpush1.bf16.msra.mxu0 0
        %2237 = vmatprep.subr.bf16.mxu0 0
        %2238 = vmatpush1.bf16.msra.mxu0 0
        %2239 = vmatprep.subr.bf16.mxu0 0
        %2240 = vmatpush1.bf16.msra.mxu0 0
        %2241 = vmatprep.mubr.bf16.mxu0 0
        %2242 = vmatmul.mubr.bf16.gmra.mrb[0].mxu0 %v2195
        %v2243 = vpop.f32.mrb[0].mxu0
        %v2244 = vadd.f32 0.0, %v2243
        %v2245 = vpop.f32.mrb[0].mxu0
        %v2246 = vadd.f32 0.0, %v2245
        %v2247 = vpop.f32.mrb[0].mxu0
        %v2248 = vpop.f32.mrb[0].mxu0
        %2249 = vdwg.mxu0
        %2250 = vmatprep.subr.bf16.mxu0 %v2207
        %2251 = vmatpush1.bf16.msra.mxu0 %v2204
        %2252 = vmatprep.subr.bf16.mxu0 0
        %2253 = vmatpush1.bf16.msra.mxu0 0
        %2254 = vmatprep.subr.bf16.mxu0 0
        %2255 = vmatpush1.bf16.msra.mxu0 0
        %2256 = vmatprep.subr.bf16.mxu0 0
        %2257 = vmatpush1.bf16.msra.mxu0 0
        %2258 = vmatprep.subr.bf16.mxu0 0
        %2259 = vmatpush1.bf16.msra.mxu0 0
        %2260 = vmatprep.subr.bf16.mxu0 0
        %2261 = vmatpush1.bf16.msra.mxu0 0
        %2262 = vmatprep.subr.bf16.mxu0 0
        %2263 = vmatpush1.bf16.msra.mxu0 0
        %2264 = vmatprep.subr.bf16.mxu0 0
        %2265 = vmatpush1.bf16.msra.mxu0 0
        %2266 = vmatprep.subr.bf16.mxu0 0
        %2267 = vmatpush1.bf16.msra.mxu0 0
        %2268 = vmatprep.subr.bf16.mxu0 0
        %2269 = vmatpush1.bf16.msra.mxu0 0
        %2270 = vmatprep.subr.bf16.mxu0 0
        %2271 = vmatpush1.bf16.msra.mxu0 0
        %2272 = vmatprep.subr.bf16.mxu0 0
        %2273 = vmatpush1.bf16.msra.mxu0 0
        %2274 = vmatprep.subr.bf16.mxu0 0
        %2275 = vmatpush1.bf16.msra.mxu0 0
        %2276 = vmatprep.subr.bf16.mxu0 0
        %2277 = vmatpush1.bf16.msra.mxu0 0
        %2278 = vmatprep.subr.bf16.mxu0 0
        %2279 = vmatpush1.bf16.msra.mxu0 0
        %2280 = vmatprep.subr.bf16.mxu0 0
        %2281 = vmatpush1.bf16.msra.mxu0 0
        %2282 = vmatprep.mubr.bf16.mxu0 0
        %2283 = vmatmul.mubr.bf16.gmra.mrb[0].mxu0 %v2195
        %v2284 = vpop.f32.mrb[0].mxu0
        %v2285 = vadd.f32 0.0, %v2284
        %v2286 = vpop.f32.mrb[0].mxu0
        %v2287 = vadd.f32 0.0, %v2286
        %v2288 = vpop.f32.mrb[0].mxu0
        %v2289 = vpop.f32.mrb[0].mxu0
        %2290 = vdwg.mxu0
        %v2291 = vadd.f32 %v2130, %v2244
        %v2292 = vadd.f32 %v2132, %v2246
        %v2293 = vadd.f32 %v2171, %v2285
        %v2294 = vadd.f32 %v2173, %v2287
        %v2295 = vadd.f32 %v1930, %v2291
        %v2296 = vadd.f32 %v1931, %v2292
        %v2297 = vadd.f32 %v1932, %v2293
        %v2298 = vadd.f32 %v1933, %v2294
        %s2299 = scalar_lea.vmem %s3, 24
        %v2300 = vld [vmem:[%s2299] sm:$0xf]
        %s2301 = scalar_lea.vmem %s3, 28
        %v2302 = vld [vmem:[%s2301] sm:$0xf]
        %2303 = vrot.lane.b32.xlu0 %v1949, 15
        %v2304 = vpop.permute.xlu0 %2303
        %2305 = vrot.lane.b32.xlu0 %v1950, 15
        %v2306 = vpop.permute.xlu0 %2305
        %2307 = vrot.lane.b32.xlu0 %v1951, 15
        %v2308 = vpop.permute.xlu0 %2307
        %2309 = vrot.lane.b32.xlu0 %v1952, 15
        %v2310 = vpop.permute.xlu0 %2309
        %2311 = vrot.lane.b32.xlu0 %v1953, 15
        %v2312 = vpop.permute.xlu0 %2311
        %vm2313 = vcmask 121856
        %v2314 = vsel %vm2313, %v2304, %v2306
        %v2315 = vsel %vm2313, %v2306, %v2308
        %v2316 = vsel %vm2313, %v2308, %v2310
        %v2317 = vsel %vm2313, %v2310, %v2312
        %v2319 = vsel %vm1609, %v2302, 0
        %v2322 = vand.u32 %v2314, %v1615
        %v2325 = vand.u32 %v2315, %v1615
        %v2328 = vand.u32 %v2316, %v1615
        %v2331 = vand.u32 %v2317, %v1615
        %2333 = vmatprep.subr.bf16.mxu0 %v2325
        %2334 = vmatpush1.bf16.msra.mxu0 %v2322
        %2335 = vmatprep.subr.bf16.mxu0 0
        %2336 = vmatpush1.bf16.msra.mxu0 0
        %2337 = vmatprep.subr.bf16.mxu0 0
        %2338 = vmatpush1.bf16.msra.mxu0 0
        %2339 = vmatprep.subr.bf16.mxu0 0
        %2340 = vmatpush1.bf16.msra.mxu0 0
        %2341 = vmatprep.subr.bf16.mxu0 0
        %2342 = vmatpush1.bf16.msra.mxu0 0
        %2343 = vmatprep.subr.bf16.mxu0 0
        %2344 = vmatpush1.bf16.msra.mxu0 0
        %2345 = vmatprep.subr.bf16.mxu0 0
        %2346 = vmatpush1.bf16.msra.mxu0 0
        %2347 = vmatprep.subr.bf16.mxu0 0
        %2348 = vmatpush1.bf16.msra.mxu0 0
        %2349 = vmatprep.subr.bf16.mxu0 0
        %2350 = vmatpush1.bf16.msra.mxu0 0
        %2351 = vmatprep.subr.bf16.mxu0 0
        %2352 = vmatpush1.bf16.msra.mxu0 0
        %2353 = vmatprep.subr.bf16.mxu0 0
        %2354 = vmatpush1.bf16.msra.mxu0 0
        %2355 = vmatprep.subr.bf16.mxu0 0
        %2356 = vmatpush1.bf16.msra.mxu0 0
        %2357 = vmatprep.subr.bf16.mxu0 0
        %2358 = vmatpush1.bf16.msra.mxu0 0
        %2359 = vmatprep.subr.bf16.mxu0 0
        %2360 = vmatpush1.bf16.msra.mxu0 0
        %2361 = vmatprep.subr.bf16.mxu0 0
        %2362 = vmatpush1.bf16.msra.mxu0 0
        %2363 = vmatprep.subr.bf16.mxu0 0
        %2364 = vmatpush1.bf16.msra.mxu0 0
        %2365 = vmatprep.mubr.bf16.mxu0 0
        %2366 = vmatmul.mubr.bf16.gmra.mrb[0].mxu0 %v2319
        %v2367 = vpop.f32.mrb[0].mxu0
        %v2368 = vadd.f32 0.0, %v2367
        %v2369 = vpop.f32.mrb[0].mxu0
        %v2370 = vadd.f32 0.0, %v2369
        %v2371 = vpop.f32.mrb[0].mxu0
        %v2372 = vpop.f32.mrb[0].mxu0
        %2373 = vdwg.mxu0
        %2374 = vmatprep.subr.bf16.mxu0 %v2331
        %2375 = vmatpush1.bf16.msra.mxu0 %v2328
        %2376 = vmatprep.subr.bf16.mxu0 0
        %2377 = vmatpush1.bf16.msra.mxu0 0
        %2378 = vmatprep.subr.bf16.mxu0 0
        %2379 = vmatpush1.bf16.msra.mxu0 0
        %2380 = vmatprep.subr.bf16.mxu0 0
        %2381 = vmatpush1.bf16.msra.mxu0 0
        %2382 = vmatprep.subr.bf16.mxu0 0
        %2383 = vmatpush1.bf16.msra.mxu0 0
        %2384 = vmatprep.subr.bf16.mxu0 0
        %2385 = vmatpush1.bf16.msra.mxu0 0
        %2386 = vmatprep.subr.bf16.mxu0 0
        %2387 = vmatpush1.bf16.msra.mxu0 0
        %2388 = vmatprep.subr.bf16.mxu0 0
        %2389 = vmatpush1.bf16.msra.mxu0 0
        %2390 = vmatprep.subr.bf16.mxu0 0
        %2391 = vmatpush1.bf16.msra.mxu0 0
        %2392 = vmatprep.subr.bf16.mxu0 0
        %2393 = vmatpush1.bf16.msra.mxu0 0
        %2394 = vmatprep.subr.bf16.mxu0 0
        %2395 = vmatpush1.bf16.msra.mxu0 0
        %2396 = vmatprep.subr.bf16.mxu0 0
        %2397 = vmatpush1.bf16.msra.mxu0 0
        %2398 = vmatprep.subr.bf16.mxu0 0
        %2399 = vmatpush1.bf16.msra.mxu0 0
        %2400 = vmatprep.subr.bf16.mxu0 0
        %2401 = vmatpush1.bf16.msra.mxu0 0
        %2402 = vmatprep.subr.bf16.mxu0 0
        %2403 = vmatpush1.bf16.msra.mxu0 0
        %2404 = vmatprep.subr.bf16.mxu0 0
        %2405 = vmatpush1.bf16.msra.mxu0 0
        %2406 = vmatprep.mubr.bf16.mxu0 0
        %2407 = vmatmul.mubr.bf16.gmra.mrb[0].mxu0 %v2319
        %v2408 = vpop.f32.mrb[0].mxu0
        %v2409 = vadd.f32 0.0, %v2408
        %v2410 = vpop.f32.mrb[0].mxu0
        %v2411 = vadd.f32 0.0, %v2410
        %v2412 = vpop.f32.mrb[0].mxu0
        %v2413 = vpop.f32.mrb[0].mxu0
        %2414 = vdwg.mxu0
        %2415 = vrot.lane.b32.xlu0 %v1949, 17
        %v2416 = vpop.permute.xlu0 %2415
        %2417 = vrot.lane.b32.xlu0 %v1950, 17
        %v2418 = vpop.permute.xlu0 %2417
        %2419 = vrot.lane.b32.xlu0 %v1951, 17
        %v2420 = vpop.permute.xlu0 %2419
        %2421 = vrot.lane.b32.xlu0 %v1952, 17
        %v2422 = vpop.permute.xlu0 %2421
        %2423 = vrot.lane.b32.xlu0 %v1953, 17
        %v2424 = vpop.permute.xlu0 %2423
        %vm2425 = vcmask 138240
        %v2426 = vsel %vm2425, %v2416, %v2418
        %v2427 = vsel %vm2425, %v2418, %v2420
        %v2428 = vsel %vm2425, %v2420, %v2422
        %v2429 = vsel %vm2425, %v2422, %v2424
        %v2431 = vsel %vm1609, %v2300, 0
        %v2434 = vand.u32 %v2426, %v1615
        %v2437 = vand.u32 %v2427, %v1615
        %v2440 = vand.u32 %v2428, %v1615
        %v2443 = vand.u32 %v2429, %v1615
        %2445 = vmatprep.subr.bf16.mxu0 %v2437
        %2446 = vmatpush1.bf16.msra.mxu0 %v2434
        %2447 = vmatprep.subr.bf16.mxu0 0
        %2448 = vmatpush1.bf16.msra.mxu0 0
        %2449 = vmatprep.subr.bf16.mxu0 0
        %2450 = vmatpush1.bf16.msra.mxu0 0
        %2451 = vmatprep.subr.bf16.mxu0 0
        %2452 = vmatpush1.bf16.msra.mxu0 0
        %2453 = vmatprep.subr.bf16.mxu0 0
        %2454 = vmatpush1.bf16.msra.mxu0 0
        %2455 = vmatprep.subr.bf16.mxu0 0
        %2456 = vmatpush1.bf16.msra.mxu0 0
        %2457 = vmatprep.subr.bf16.mxu0 0
        %2458 = vmatpush1.bf16.msra.mxu0 0
        %2459 = vmatprep.subr.bf16.mxu0 0
        %2460 = vmatpush1.bf16.msra.mxu0 0
        %2461 = vmatprep.subr.bf16.mxu0 0
        %2462 = vmatpush1.bf16.msra.mxu0 0
        %2463 = vmatprep.subr.bf16.mxu0 0
        %2464 = vmatpush1.bf16.msra.mxu0 0
        %2465 = vmatprep.subr.bf16.mxu0 0
        %2466 = vmatpush1.bf16.msra.mxu0 0
        %2467 = vmatprep.subr.bf16.mxu0 0
        %2468 = vmatpush1.bf16.msra.mxu0 0
        %2469 = vmatprep.subr.bf16.mxu0 0
        %2470 = vmatpush1.bf16.msra.mxu0 0
        %2471 = vmatprep.subr.bf16.mxu0 0
        %2472 = vmatpush1.bf16.msra.mxu0 0
        %2473 = vmatprep.subr.bf16.mxu0 0
        %2474 = vmatpush1.bf16.msra.mxu0 0
        %2475 = vmatprep.subr.bf16.mxu0 0
        %2476 = vmatpush1.bf16.msra.mxu0 0
        %2477 = vmatprep.mubr.bf16.mxu0 0
        %2478 = vmatmul.mubr.bf16.gmra.mrb[0].mxu0 %v2431
        %v2479 = vpop.f32.mrb[0].mxu0
        %v2480 = vadd.f32 %v2368, %v2479
        %v2481 = vpop.f32.mrb[0].mxu0
        %v2482 = vadd.f32 %v2370, %v2481
        %v2483 = vpop.f32.mrb[0].mxu0
        %v2484 = vpop.f32.mrb[0].mxu0
        %2485 = vdwg.mxu0
        %2486 = vmatprep.subr.bf16.mxu0 %v2443
        %2487 = vmatpush1.bf16.msra.mxu0 %v2440
        %2488 = vmatprep.subr.bf16.mxu0 0
        %2489 = vmatpush1.bf16.msra.mxu0 0
        %2490 = vmatprep.subr.bf16.mxu0 0
        %2491 = vmatpush1.bf16.msra.mxu0 0
        %2492 = vmatprep.subr.bf16.mxu0 0
        %2493 = vmatpush1.bf16.msra.mxu0 0
        %2494 = vmatprep.subr.bf16.mxu0 0
        %2495 = vmatpush1.bf16.msra.mxu0 0
        %2496 = vmatprep.subr.bf16.mxu0 0
        %2497 = vmatpush1.bf16.msra.mxu0 0
        %2498 = vmatprep.subr.bf16.mxu0 0
        %2499 = vmatpush1.bf16.msra.mxu0 0
        %2500 = vmatprep.subr.bf16.mxu0 0
        %2501 = vmatpush1.bf16.msra.mxu0 0
        %2502 = vmatprep.subr.bf16.mxu0 0
        %2503 = vmatpush1.bf16.msra.mxu0 0
        %2504 = vmatprep.subr.bf16.mxu0 0
        %2505 = vmatpush1.bf16.msra.mxu0 0
        %2506 = vmatprep.subr.bf16.mxu0 0
        %2507 = vmatpush1.bf16.msra.mxu0 0
        %2508 = vmatprep.subr.bf16.mxu0 0
        %2509 = vmatpush1.bf16.msra.mxu0 0
        %2510 = vmatprep.subr.bf16.mxu0 0
        %2511 = vmatpush1.bf16.msra.mxu0 0
        %2512 = vmatprep.subr.bf16.mxu0 0
        %2513 = vmatpush1.bf16.msra.mxu0 0
        %2514 = vmatprep.subr.bf16.mxu0 0
        %2515 = vmatpush1.bf16.msra.mxu0 0
        %2516 = vmatprep.subr.bf16.mxu0 0
        %2517 = vmatpush1.bf16.msra.mxu0 0
        %2518 = vmatprep.mubr.bf16.mxu0 0
        %2519 = vmatmul.mubr.bf16.gmra.mrb[0].mxu0 %v2431
        %v2520 = vpop.f32.mrb[0].mxu0
        %v2521 = vadd.f32 %v2409, %v2520
        %v2522 = vpop.f32.mrb[0].mxu0
        %v2523 = vadd.f32 %v2411, %v2522
        %v2524 = vpop.f32.mrb[0].mxu0
        %v2525 = vpop.f32.mrb[0].mxu0
        %2526 = vdwg.mxu0
        %s2527 = scalar_lea.vmem %s3, 32
        %v2528 = vld [vmem:[%s2527] sm:$0xf]
        %2529 = vrot.lane.b32.xlu0 %v1949, 13
        %v2530 = vpop.permute.xlu0 %2529
        %2531 = vrot.lane.b32.xlu0 %v1950, 13
        %v2532 = vpop.permute.xlu0 %2531
        %2533 = vrot.lane.b32.xlu0 %v1951, 13
        %v2534 = vpop.permute.xlu0 %2533
        %2535 = vrot.lane.b32.xlu0 %v1952, 13
        %v2536 = vpop.permute.xlu0 %2535
        %2537 = vrot.lane.b32.xlu0 %v1953, 13
        %v2538 = vpop.permute.xlu0 %2537
        %vm2539 = vcmask 105472
        %v2540 = vsel %vm2539, %v2530, %v2532
        %v2541 = vsel %vm2539, %v2532, %v2534
        %v2542 = vsel %vm2539, %v2534, %v2536
        %v2543 = vsel %vm2539, %v2536, %v2538
        %v2545 = vsel %vm1609, %v2528, 0
        %v2548 = vand.u32 %v2540, %v1615
        %v2551 = vand.u32 %v2541, %v1615
        %v2554 = vand.u32 %v2542, %v1615
        %v2557 = vand.u32 %v2543, %v1615
        %2559 = vmatprep.subr.bf16.mxu0 %v2551
        %2560 = vmatpush1.bf16.msra.mxu0 %v2548
        %2561 = vmatprep.subr.bf16.mxu0 0
        %2562 = vmatpush1.bf16.msra.mxu0 0
        %2563 = vmatprep.subr.bf16.mxu0 0
        %2564 = vmatpush1.bf16.msra.mxu0 0
        %2565 = vmatprep.subr.bf16.mxu0 0
        %2566 = vmatpush1.bf16.msra.mxu0 0
        %2567 = vmatprep.subr.bf16.mxu0 0
        %2568 = vmatpush1.bf16.msra.mxu0 0
        %2569 = vmatprep.subr.bf16.mxu0 0
        %2570 = vmatpush1.bf16.msra.mxu0 0
        %2571 = vmatprep.subr.bf16.mxu0 0
        %2572 = vmatpush1.bf16.msra.mxu0 0
        %2573 = vmatprep.subr.bf16.mxu0 0
        %2574 = vmatpush1.bf16.msra.mxu0 0
        %2575 = vmatprep.subr.bf16.mxu0 0
        %2576 = vmatpush1.bf16.msra.mxu0 0
        %2577 = vmatprep.subr.bf16.mxu0 0
        %2578 = vmatpush1.bf16.msra.mxu0 0
        %2579 = vmatprep.subr.bf16.mxu0 0
        %2580 = vmatpush1.bf16.msra.mxu0 0
        %2581 = vmatprep.subr.bf16.mxu0 0
        %2582 = vmatpush1.bf16.msra.mxu0 0
        %2583 = vmatprep.subr.bf16.mxu0 0
        %2584 = vmatpush1.bf16.msra.mxu0 0
        %2585 = vmatprep.subr.bf16.mxu0 0
        %2586 = vmatpush1.bf16.msra.mxu0 0
        %2587 = vmatprep.subr.bf16.mxu0 0
        %2588 = vmatpush1.bf16.msra.mxu0 0
        %2589 = vmatprep.subr.bf16.mxu0 0
        %2590 = vmatpush1.bf16.msra.mxu0 0
        %2591 = vmatprep.mubr.bf16.mxu0 0
        %2592 = vmatmul.mubr.bf16.gmra.mrb[0].mxu0 %v2545
        %v2593 = vpop.f32.mrb[0].mxu0
        %v2594 = vadd.f32 0.0, %v2593
        %v2595 = vpop.f32.mrb[0].mxu0
        %v2596 = vadd.f32 0.0, %v2595
        %v2597 = vpop.f32.mrb[0].mxu0
        %v2598 = vpop.f32.mrb[0].mxu0
        %2599 = vdwg.mxu0
        %2600 = vmatprep.subr.bf16.mxu0 %v2557
        %2601 = vmatpush1.bf16.msra.mxu0 %v2554
        %2602 = vmatprep.subr.bf16.mxu0 0
        %2603 = vmatpush1.bf16.msra.mxu0 0
        %2604 = vmatprep.subr.bf16.mxu0 0
        %2605 = vmatpush1.bf16.msra.mxu0 0
        %2606 = vmatprep.subr.bf16.mxu0 0
        %2607 = vmatpush1.bf16.msra.mxu0 0
        %2608 = vmatprep.subr.bf16.mxu0 0
        %2609 = vmatpush1.bf16.msra.mxu0 0
        %2610 = vmatprep.subr.bf16.mxu0 0
        %2611 = vmatpush1.bf16.msra.mxu0 0
        %2612 = vmatprep.subr.bf16.mxu0 0
        %2613 = vmatpush1.bf16.msra.mxu0 0
        %2614 = vmatprep.subr.bf16.mxu0 0
        %2615 = vmatpush1.bf16.msra.mxu0 0
        %2616 = vmatprep.subr.bf16.mxu0 0
        %2617 = vmatpush1.bf16.msra.mxu0 0
        %2618 = vmatprep.subr.bf16.mxu0 0
        %2619 = vmatpush1.bf16.msra.mxu0 0
        %2620 = vmatprep.subr.bf16.mxu0 0
        %2621 = vmatpush1.bf16.msra.mxu0 0
        %2622 = vmatprep.subr.bf16.mxu0 0
        %2623 = vmatpush1.bf16.msra.mxu0 0
        %2624 = vmatprep.subr.bf16.mxu0 0
        %2625 = vmatpush1.bf16.msra.mxu0 0
        %2626 = vmatprep.subr.bf16.mxu0 0
        %2627 = vmatpush1.bf16.msra.mxu0 0
        %2628 = vmatprep.subr.bf16.mxu0 0
        %2629 = vmatpush1.bf16.msra.mxu0 0
        %2630 = vmatprep.subr.bf16.mxu0 0
        %2631 = vmatpush1.bf16.msra.mxu0 0
        %2632 = vmatprep.mubr.bf16.mxu0 0
        %2633 = vmatmul.mubr.bf16.gmra.mrb[0].mxu0 %v2545
        %v2634 = vpop.f32.mrb[0].mxu0
        %v2635 = vadd.f32 0.0, %v2634
        %v2636 = vpop.f32.mrb[0].mxu0
        %v2637 = vadd.f32 0.0, %v2636
        %v2638 = vpop.f32.mrb[0].mxu0
        %v2639 = vpop.f32.mrb[0].mxu0
        %2640 = vdwg.mxu0
        %v2641 = vadd.f32 %v2480, %v2594
        %v2642 = vadd.f32 %v2482, %v2596
        %v2643 = vadd.f32 %v2521, %v2635
        %v2644 = vadd.f32 %v2523, %v2637
        %v2645 = vadd.f32 %v2295, %v2641
        %v2646 = vadd.f32 %v2296, %v2642
        %v2647 = vadd.f32 %v2297, %v2643
        %v2648 = vadd.f32 %v2298, %v2644
        %2650 = vset.pattern.permute.xlu0 0
        %2651 = vperm.xlu0 %2650, %v1581
        %v2652 = vpop.permute.xlu0 %2651
        %v2654 = vadd.f32 %v2645, %v2652
        %v2655 = vadd.f32 %v2646, %v2652
        %v2656 = vadd.f32 %v2647, %v2652
        %v2657 = vadd.f32 %v2648, %v2652
        %v2658 = vmax.f32 %v2654, 0.0
        %v2659 = vmax.f32 %v2655, 0.0
        %v2660 = vmax.f32 %v2656, 0.0
        %v2661 = vmax.f32 %v2657, 0.0
        %v2662 = vmul.f32 %v2658, %v1508
        %v2663 = vmul.f32 %v2659, %v1512
        %v2664 = vmul.f32 %v2660, %v1516
        %v2665 = vmul.f32 %v2661, %v1520
        %v2666 = vpack.c.bf16 %v2662, %v2662
        %v2667 = vpack.c.bf16 %v2663, %v2663
        %v2668 = vpack.c.bf16 %v2664, %v2664
        %v2669 = vpack.c.bf16 %v2665, %v2665
        %v2674 = vunpack.c.l.b16 %v2666
        %v2675 = vunpack.c.l.b16 %v2667
        %v2676 = vunpack.c.l.b16 %v2668
        %v2677 = vunpack.c.l.b16 %v2669
        %v2678 = vpack.c.b16 %v2675, %v2674
        %v2679 = vpack.c.b16 %v2677, %v2676
        %v2681 = vshll.u32 %v2678, 16
        %v2683 = vrot.slane %v2681, 6
        %v2685 = vshll.u32 %v2679, 16
        %v2687 = vrot.slane %v2685, 6
        %2688 = vrot.lane.b32.xlu0 %v2683, 69
        %v2689 = vpop.permute.xlu0 %2688
        %2690 = vrot.lane.b32.xlu0 %v2687, 69
        %v2691 = vpop.permute.xlu0 %2690
        %v2692 = vrot.slane %v2689, 4
        %v2693 = vrot.slane %v2691, 4
        %v2694 = vsel %vm1551, %v2692, %v2689
        %v2695 = vsel %vm1553, %v2692, %v2693
        %v2696 = vsel %vm1551, %v2695, %v2691
        %vm2700 = vsmask.f32 7946
        %vm2701 = vmand %vm1559, %vm2700
        %vm2702 = vsmask.f32 7962
        %vm2703 = vmand %vm1562, %vm2702
        %vm2704 = vmor %vm2703, %vm2701
        %v2705 = vld [vmem:[#allocation2] sm:$0x44]
        %v2706 = vsel %vm2704, %v2694, %v2705
        %2707 = vst [vmem:[#allocation2] sm:$0x44] %v2706
        %vm2708 = vmand %vm1569, %vm2700
        %vm2709 = vmor %vm2703, %vm2708
        %v2710 = vld [vmem:[#allocation2 + $0x8] sm:$0x44]
        %v2711 = vsel %vm2709, %v2696, %v2710
        %2712 = vst [vmem:[#allocation2 + $0x8] sm:$0x44] %v2711
        %vm2713 = vmand %vm1575, %vm2700
        %v2714 = vld [vmem:[#allocation2 + $0x10] sm:$0x4]
        %v2715 = vsel %vm2713, %v2693, %v2714
        %2716 = vst [vmem:[#allocation2 + $0x10] sm:$0x4] %v2715
        %s2717 = scalar_lea.vmem %s8, 16
        %v2718 = vld [vmem:[%s2717] sm:$0xff]
        %v2719 = vld [vmem:[#allocation2] sm:$0x77]
        %v2720 = vld [vmem:[#allocation2 + $0x8] sm:$0x77]
        %v2721 = vld [vmem:[%s4] sm:$0xf]
        %s2722 = scalar_lea.vmem %s4, 4
        %v2723 = vld [vmem:[%s2722] sm:$0xf]
        %v2726 = vunpack.c.l.b16 %v2719
        %v2727 = vunpack.c.h.b16 %v2719
        %v2728 = vunpack.c.l.b16 %v2720
        %v2729 = vunpack.c.h.b16 %v2720
        %v2730 = vpack.c.b16 %v2726, %v2726
        %v2731 = vpack.c.b16 %v2727, %v2727
        %v2732 = vpack.c.b16 %v2728, %v2728
        %v2733 = vpack.c.b16 %v2729, %v2729
        %2734 = vrot.lane.b32.xlu0 %v2730, 125
        %v2735 = vpop.permute.xlu0 %2734
        %2736 = vrot.lane.b32.xlu0 %v2731, 125
        %v2737 = vpop.permute.xlu0 %2736
        %2738 = vrot.lane.b32.xlu0 %v2732, 125
        %v2739 = vpop.permute.xlu0 %2738
        %2740 = vrot.lane.b32.xlu0 %v2733, 125
        %v2741 = vpop.permute.xlu0 %2740
        %vm2742 = vcmask 1022976
        %v2743 = vsel %vm2742, %v2735, %v2737
        %v2744 = vsel %vm2742, %v2737, %v2739
        %v2745 = vsel %vm2742, %v2739, %v2741
        %vm2746 = vcmask 48128
        %v2748 = vsel %vm2746, %v2723, 0
        %v2751 = vsel %vm1613, %v2743, 0
        %v2754 = vsel %vm1613, %v2744, 0
        %v2757 = vsel %vm1613, %v2745, 0
        %v2760 = vsel %vm1613, %v2741, 0
        %2762 = vmatprep.subr.bf16.mxu0 %v2754
        %2763 = vmatpush1.bf16.msra.mxu0 %v2751
        %2764 = vmatprep.subr.bf16.mxu0 0
        %2765 = vmatpush1.bf16.msra.mxu0 0
        %2766 = vmatprep.subr.bf16.mxu0 0
        %2767 = vmatpush1.bf16.msra.mxu0 0
        %2768 = vmatprep.subr.bf16.mxu0 0
        %2769 = vmatpush1.bf16.msra.mxu0 0
        %2770 = vmatprep.subr.bf16.mxu0 0
        %2771 = vmatpush1.bf16.msra.mxu0 0
        %2772 = vmatprep.subr.bf16.mxu0 0
        %2773 = vmatpush1.bf16.msra.mxu0 0
        %2774 = vmatprep.subr.bf16.mxu0 0
        %2775 = vmatpush1.bf16.msra.mxu0 0
        %2776 = vmatprep.subr.bf16.mxu0 0
        %2777 = vmatpush1.bf16.msra.mxu0 0
        %2778 = vmatprep.subr.bf16.mxu0 0
        %2779 = vmatpush1.bf16.msra.mxu0 0
        %2780 = vmatprep.subr.bf16.mxu0 0
        %2781 = vmatpush1.bf16.msra.mxu0 0
        %2782 = vmatprep.subr.bf16.mxu0 0
        %2783 = vmatpush1.bf16.msra.mxu0 0
        %2784 = vmatprep.subr.bf16.mxu0 0
        %2785 = vmatpush1.bf16.msra.mxu0 0
        %2786 = vmatprep.subr.bf16.mxu0 0
        %2787 = vmatpush1.bf16.msra.mxu0 0
        %2788 = vmatprep.subr.bf16.mxu0 0
        %2789 = vmatpush1.bf16.msra.mxu0 0
        %2790 = vmatprep.subr.bf16.mxu0 0
        %2791 = vmatpush1.bf16.msra.mxu0 0
        %2792 = vmatprep.subr.bf16.mxu0 0
        %2793 = vmatpush1.bf16.msra.mxu0 0
        %2794 = vmatprep.mubr.bf16.mxu0 0
        %2795 = vmatmul.mubr.bf16.gmra.mrb[0].mxu0 %v2748
        %v2796 = vpop.f32.mrb[0].mxu0
        %v2797 = vadd.f32 0.0, %v2796
        %v2798 = vpop.f32.mrb[0].mxu0
        %v2799 = vadd.f32 0.0, %v2798
        %v2800 = vpop.f32.mrb[0].mxu0
        %v2801 = vpop.f32.mrb[0].mxu0
        %2802 = vdwg.mxu0
        %2803 = vmatprep.subr.bf16.mxu0 %v2760
        %2804 = vmatpush1.bf16.msra.mxu0 %v2757
        %2805 = vmatprep.subr.bf16.mxu0 0
        %2806 = vmatpush1.bf16.msra.mxu0 0
        %2807 = vmatprep.subr.bf16.mxu0 0
        %2808 = vmatpush1.bf16.msra.mxu0 0
        %2809 = vmatprep.subr.bf16.mxu0 0
        %2810 = vmatpush1.bf16.msra.mxu0 0
        %2811 = vmatprep.subr.bf16.mxu0 0
        %2812 = vmatpush1.bf16.msra.mxu0 0
        %2813 = vmatprep.subr.bf16.mxu0 0
        %2814 = vmatpush1.bf16.msra.mxu0 0
        %2815 = vmatprep.subr.bf16.mxu0 0
        %2816 = vmatpush1.bf16.msra.mxu0 0
        %2817 = vmatprep.subr.bf16.mxu0 0
        %2818 = vmatpush1.bf16.msra.mxu0 0
        %2819 = vmatprep.subr.bf16.mxu0 0
        %2820 = vmatpush1.bf16.msra.mxu0 0
        %2821 = vmatprep.subr.bf16.mxu0 0
        %2822 = vmatpush1.bf16.msra.mxu0 0
        %2823 = vmatprep.subr.bf16.mxu0 0
        %2824 = vmatpush1.bf16.msra.mxu0 0
        %2825 = vmatprep.subr.bf16.mxu0 0
        %2826 = vmatpush1.bf16.msra.mxu0 0
        %2827 = vmatprep.subr.bf16.mxu0 0
        %2828 = vmatpush1.bf16.msra.mxu0 0
        %2829 = vmatprep.subr.bf16.mxu0 0
        %2830 = vmatpush1.bf16.msra.mxu0 0
        %2831 = vmatprep.subr.bf16.mxu0 0
        %2832 = vmatpush1.bf16.msra.mxu0 0
        %2833 = vmatprep.subr.bf16.mxu0 0
        %2834 = vmatpush1.bf16.msra.mxu0 0
        %2835 = vmatprep.mubr.bf16.mxu0 0
        %2836 = vmatmul.mubr.bf16.gmra.mrb[0].mxu0 %v2748
        %v2837 = vpop.f32.mrb[0].mxu0
        %v2838 = vadd.f32 0.0, %v2837
        %v2839 = vpop.f32.mrb[0].mxu0
        %v2840 = vadd.f32 0.0, %v2839
        %v2841 = vpop.f32.mrb[0].mxu0
        %v2842 = vpop.f32.mrb[0].mxu0
        %2843 = vdwg.mxu0
        %v2845 = vsel %vm2746, %v2721, 0
        %v2848 = vsel %vm1613, %v2730, 0
        %v2851 = vsel %vm1613, %v2731, 0
        %v2854 = vsel %vm1613, %v2732, 0
        %v2857 = vsel %vm1613, %v2733, 0
        %2859 = vmatprep.subr.bf16.mxu0 %v2851
        %2860 = vmatpush1.bf16.msra.mxu0 %v2848
        %2861 = vmatprep.subr.bf16.mxu0 0
        %2862 = vmatpush1.bf16.msra.mxu0 0
        %2863 = vmatprep.subr.bf16.mxu0 0
        %2864 = vmatpush1.bf16.msra.mxu0 0
        %2865 = vmatprep.subr.bf16.mxu0 0
        %2866 = vmatpush1.bf16.msra.mxu0 0
        %2867 = vmatprep.subr.bf16.mxu0 0
        %2868 = vmatpush1.bf16.msra.mxu0 0
        %2869 = vmatprep.subr.bf16.mxu0 0
        %2870 = vmatpush1.bf16.msra.mxu0 0
        %2871 = vmatprep.subr.bf16.mxu0 0
        %2872 = vmatpush1.bf16.msra.mxu0 0
        %2873 = vmatprep.subr.bf16.mxu0 0
        %2874 = vmatpush1.bf16.msra.mxu0 0
        %2875 = vmatprep.subr.bf16.mxu0 0
        %2876 = vmatpush1.bf16.msra.mxu0 0
        %2877 = vmatprep.subr.bf16.mxu0 0
        %2878 = vmatpush1.bf16.msra.mxu0 0
        %2879 = vmatprep.subr.bf16.mxu0 0
        %2880 = vmatpush1.bf16.msra.mxu0 0
        %2881 = vmatprep.subr.bf16.mxu0 0
        %2882 = vmatpush1.bf16.msra.mxu0 0
        %2883 = vmatprep.subr.bf16.mxu0 0
        %2884 = vmatpush1.bf16.msra.mxu0 0
        %2885 = vmatprep.subr.bf16.mxu0 0
        %2886 = vmatpush1.bf16.msra.mxu0 0
        %2887 = vmatprep.subr.bf16.mxu0 0
        %2888 = vmatpush1.bf16.msra.mxu0 0
        %2889 = vmatprep.subr.bf16.mxu0 0
        %2890 = vmatpush1.bf16.msra.mxu0 0
        %2891 = vmatprep.mubr.bf16.mxu0 0
        %2892 = vmatmul.mubr.bf16.gmra.mrb[0].mxu0 %v2845
        %v2893 = vpop.f32.mrb[0].mxu0
        %v2894 = vadd.f32 %v2797, %v2893
        %v2895 = vpop.f32.mrb[0].mxu0
        %v2896 = vadd.f32 %v2799, %v2895
        %v2897 = vpop.f32.mrb[0].mxu0
        %v2898 = vpop.f32.mrb[0].mxu0
        %2899 = vdwg.mxu0
        %2900 = vmatprep.subr.bf16.mxu0 %v2857
        %2901 = vmatpush1.bf16.msra.mxu0 %v2854
        %2902 = vmatprep.subr.bf16.mxu0 0
        %2903 = vmatpush1.bf16.msra.mxu0 0
        %2904 = vmatprep.subr.bf16.mxu0 0
        %2905 = vmatpush1.bf16.msra.mxu0 0
        %2906 = vmatprep.subr.bf16.mxu0 0
        %2907 = vmatpush1.bf16.msra.mxu0 0
        %2908 = vmatprep.subr.bf16.mxu0 0
        %2909 = vmatpush1.bf16.msra.mxu0 0
        %2910 = vmatprep.subr.bf16.mxu0 0
        %2911 = vmatpush1.bf16.msra.mxu0 0
        %2912 = vmatprep.subr.bf16.mxu0 0
        %2913 = vmatpush1.bf16.msra.mxu0 0
        %2914 = vmatprep.subr.bf16.mxu0 0
        %2915 = vmatpush1.bf16.msra.mxu0 0
        %2916 = vmatprep.subr.bf16.mxu0 0
        %2917 = vmatpush1.bf16.msra.mxu0 0
        %2918 = vmatprep.subr.bf16.mxu0 0
        %2919 = vmatpush1.bf16.msra.mxu0 0
        %2920 = vmatprep.subr.bf16.mxu0 0
        %2921 = vmatpush1.bf16.msra.mxu0 0
        %2922 = vmatprep.subr.bf16.mxu0 0
        %2923 = vmatpush1.bf16.msra.mxu0 0
        %2924 = vmatprep.subr.bf16.mxu0 0
        %2925 = vmatpush1.bf16.msra.mxu0 0
        %2926 = vmatprep.subr.bf16.mxu0 0
        %2927 = vmatpush1.bf16.msra.mxu0 0
        %2928 = vmatprep.subr.bf16.mxu0 0
        %2929 = vmatpush1.bf16.msra.mxu0 0
        %2930 = vmatprep.subr.bf16.mxu0 0
        %2931 = vmatpush1.bf16.msra.mxu0 0
        %2932 = vmatprep.mubr.bf16.mxu0 0
        %2933 = vmatmul.mubr.bf16.gmra.mrb[0].mxu0 %v2845
        %v2934 = vpop.f32.mrb[0].mxu0
        %v2935 = vadd.f32 %v2838, %v2934
        %v2936 = vpop.f32.mrb[0].mxu0
        %v2937 = vadd.f32 %v2840, %v2936
        %v2938 = vpop.f32.mrb[0].mxu0
        %v2939 = vpop.f32.mrb[0].mxu0
        %2940 = vdwg.mxu0
        %s2941 = scalar_lea.vmem %s4, 8
        %v2942 = vld [vmem:[%s2941] sm:$0xf]
        %2943 = vrot.lane.b32.xlu0 %v2730, 122
        %v2944 = vpop.permute.xlu0 %2943
        %2945 = vrot.lane.b32.xlu0 %v2731, 122
        %v2946 = vpop.permute.xlu0 %2945
        %2947 = vrot.lane.b32.xlu0 %v2732, 122
        %v2948 = vpop.permute.xlu0 %2947
        %2949 = vrot.lane.b32.xlu0 %v2733, 122
        %v2950 = vpop.permute.xlu0 %2949
        %vm2951 = vcmask 998400
        %v2952 = vsel %vm2951, %v2944, %v2946
        %v2953 = vsel %vm2951, %v2946, %v2948
        %v2954 = vsel %vm2951, %v2948, %v2950
        %v2956 = vsel %vm2746, %v2942, 0
        %v2959 = vsel %vm1613, %v2952, 0
        %v2962 = vsel %vm1613, %v2953, 0
        %v2965 = vsel %vm1613, %v2954, 0
        %v2968 = vsel %vm1613, %v2950, 0
        %2970 = vmatprep.subr.bf16.mxu0 %v2962
        %2971 = vmatpush1.bf16.msra.mxu0 %v2959
        %2972 = vmatprep.subr.bf16.mxu0 0
        %2973 = vmatpush1.bf16.msra.mxu0 0
        %2974 = vmatprep.subr.bf16.mxu0 0
        %2975 = vmatpush1.bf16.msra.mxu0 0
        %2976 = vmatprep.subr.bf16.mxu0 0
        %2977 = vmatpush1.bf16.msra.mxu0 0
        %2978 = vmatprep.subr.bf16.mxu0 0
        %2979 = vmatpush1.bf16.msra.mxu0 0
        %2980 = vmatprep.subr.bf16.mxu0 0
        %2981 = vmatpush1.bf16.msra.mxu0 0
        %2982 = vmatprep.subr.bf16.mxu0 0
        %2983 = vmatpush1.bf16.msra.mxu0 0
        %2984 = vmatprep.subr.bf16.mxu0 0
        %2985 = vmatpush1.bf16.msra.mxu0 0
        %2986 = vmatprep.subr.bf16.mxu0 0
        %2987 = vmatpush1.bf16.msra.mxu0 0
        %2988 = vmatprep.subr.bf16.mxu0 0
        %2989 = vmatpush1.bf16.msra.mxu0 0
        %2990 = vmatprep.subr.bf16.mxu0 0
        %2991 = vmatpush1.bf16.msra.mxu0 0
        %2992 = vmatprep.subr.bf16.mxu0 0
        %2993 = vmatpush1.bf16.msra.mxu0 0
        %2994 = vmatprep.subr.bf16.mxu0 0
        %2995 = vmatpush1.bf16.msra.mxu0 0
        %2996 = vmatprep.subr.bf16.mxu0 0
        %2997 = vmatpush1.bf16.msra.mxu0 0
        %2998 = vmatprep.subr.bf16.mxu0 0
        %2999 = vmatpush1.bf16.msra.mxu0 0
        %3000 = vmatprep.subr.bf16.mxu0 0
        %3001 = vmatpush1.bf16.msra.mxu0 0
        %3002 = vmatprep.mubr.bf16.mxu0 0
        %3003 = vmatmul.mubr.bf16.gmra.mrb[0].mxu0 %v2956
        %v3004 = vpop.f32.mrb[0].mxu0
        %v3005 = vadd.f32 0.0, %v3004
        %v3006 = vpop.f32.mrb[0].mxu0
        %v3007 = vadd.f32 0.0, %v3006
        %v3008 = vpop.f32.mrb[0].mxu0
        %v3009 = vpop.f32.mrb[0].mxu0
        %3010 = vdwg.mxu0
        %3011 = vmatprep.subr.bf16.mxu0 %v2968
        %3012 = vmatpush1.bf16.msra.mxu0 %v2965
        %3013 = vmatprep.subr.bf16.mxu0 0
        %3014 = vmatpush1.bf16.msra.mxu0 0
        %3015 = vmatprep.subr.bf16.mxu0 0
        %3016 = vmatpush1.bf16.msra.mxu0 0
        %3017 = vmatprep.subr.bf16.mxu0 0
        %3018 = vmatpush1.bf16.msra.mxu0 0
        %3019 = vmatprep.subr.bf16.mxu0 0
        %3020 = vmatpush1.bf16.msra.mxu0 0
        %3021 = vmatprep.subr.bf16.mxu0 0
        %3022 = vmatpush1.bf16.msra.mxu0 0
        %3023 = vmatprep.subr.bf16.mxu0 0
        %3024 = vmatpush1.bf16.msra.mxu0 0
        %3025 = vmatprep.subr.bf16.mxu0 0
        %3026 = vmatpush1.bf16.msra.mxu0 0
        %3027 = vmatprep.subr.bf16.mxu0 0
        %3028 = vmatpush1.bf16.msra.mxu0 0
        %3029 = vmatprep.subr.bf16.mxu0 0
        %3030 = vmatpush1.bf16.msra.mxu0 0
        %3031 = vmatprep.subr.bf16.mxu0 0
        %3032 = vmatpush1.bf16.msra.mxu0 0
        %3033 = vmatprep.subr.bf16.mxu0 0
        %3034 = vmatpush1.bf16.msra.mxu0 0
        %3035 = vmatprep.subr.bf16.mxu0 0
        %3036 = vmatpush1.bf16.msra.mxu0 0
        %3037 = vmatprep.subr.bf16.mxu0 0
        %3038 = vmatpush1.bf16.msra.mxu0 0
        %3039 = vmatprep.subr.bf16.mxu0 0
        %3040 = vmatpush1.bf16.msra.mxu0 0
        %3041 = vmatprep.subr.bf16.mxu0 0
        %3042 = vmatpush1.bf16.msra.mxu0 0
        %3043 = vmatprep.mubr.bf16.mxu0 0
        %3044 = vmatmul.mubr.bf16.gmra.mrb[0].mxu0 %v2956
        %v3045 = vpop.f32.mrb[0].mxu0
        %v3046 = vadd.f32 0.0, %v3045
        %v3047 = vpop.f32.mrb[0].mxu0
        %v3048 = vadd.f32 0.0, %v3047
        %v3049 = vpop.f32.mrb[0].mxu0
        %v3050 = vpop.f32.mrb[0].mxu0
        %3051 = vdwg.mxu0
        %v3052 = vadd.f32 %v2894, %v3005
        %v3053 = vadd.f32 %v2896, %v3007
        %v3054 = vadd.f32 %v2935, %v3046
        %v3055 = vadd.f32 %v2937, %v3048
        %v3056 = vld [vmem:[#allocation2] sm:$0x77]
        %v3057 = vld [vmem:[#allocation2 + $0x8] sm:$0x77]
        %v3058 = vld [vmem:[#allocation2 + $0x10] sm:$0x7]
        %s3059 = scalar_lea.vmem %s4, 12
        %v3060 = vld [vmem:[%s3059] sm:$0xf]
        %s3061 = scalar_lea.vmem %s4, 16
        %v3062 = vld [vmem:[%s3061] sm:$0xf]
        %v3066 = vunpack.c.l.b16 %v3056
        %v3067 = vunpack.c.h.b16 %v3056
        %v3068 = vunpack.c.l.b16 %v3057
        %v3069 = vunpack.c.h.b16 %v3057
        %v3070 = vunpack.c.l.b16 %v3058
        %v3071 = vpack.c.b16 %v3066, %v3066
        %v3072 = vpack.c.b16 %v3067, %v3067
        %v3073 = vpack.c.b16 %v3068, %v3068
        %v3074 = vpack.c.b16 %v3069, %v3069
        %v3075 = vpack.c.b16 %v3070, %v3070
        %3076 = vrot.lane.b32.xlu0 %v3071, 59
        %v3077 = vpop.permute.xlu0 %3076
        %3078 = vrot.lane.b32.xlu0 %v3072, 59
        %v3079 = vpop.permute.xlu0 %3078
        %3080 = vrot.lane.b32.xlu0 %v3073, 59
        %v3081 = vpop.permute.xlu0 %3080
        %3082 = vrot.lane.b32.xlu0 %v3074, 59
        %v3083 = vpop.permute.xlu0 %3082
        %3084 = vrot.lane.b32.xlu0 %v3075, 59
        %v3085 = vpop.permute.xlu0 %3084
        %v3086 = vsel %vm805, %v3077, %v3079
        %v3087 = vsel %vm805, %v3079, %v3081
        %v3088 = vsel %vm805, %v3081, %v3083
        %v3089 = vsel %vm805, %v3083, %v3085
        %v3091 = vsel %vm2746, %v3062, 0
        %v3094 = vsel %vm1613, %v3086, 0
        %v3097 = vsel %vm1613, %v3087, 0
        %v3100 = vsel %vm1613, %v3088, 0
        %v3103 = vsel %vm1613, %v3089, 0
        %3105 = vmatprep.subr.bf16.mxu0 %v3097
        %3106 = vmatpush1.bf16.msra.mxu0 %v3094
        %3107 = vmatprep.subr.bf16.mxu0 0
        %3108 = vmatpush1.bf16.msra.mxu0 0
        %3109 = vmatprep.subr.bf16.mxu0 0
        %3110 = vmatpush1.bf16.msra.mxu0 0
        %3111 = vmatprep.subr.bf16.mxu0 0
        %3112 = vmatpush1.bf16.msra.mxu0 0
        %3113 = vmatprep.subr.bf16.mxu0 0
        %3114 = vmatpush1.bf16.msra.mxu0 0
        %3115 = vmatprep.subr.bf16.mxu0 0
        %3116 = vmatpush1.bf16.msra.mxu0 0
        %3117 = vmatprep.subr.bf16.mxu0 0
        %3118 = vmatpush1.bf16.msra.mxu0 0
        %3119 = vmatprep.subr.bf16.mxu0 0
        %3120 = vmatpush1.bf16.msra.mxu0 0
        %3121 = vmatprep.subr.bf16.mxu0 0
        %3122 = vmatpush1.bf16.msra.mxu0 0
        %3123 = vmatprep.subr.bf16.mxu0 0
        %3124 = vmatpush1.bf16.msra.mxu0 0
        %3125 = vmatprep.subr.bf16.mxu0 0
        %3126 = vmatpush1.bf16.msra.mxu0 0
        %3127 = vmatprep.subr.bf16.mxu0 0
        %3128 = vmatpush1.bf16.msra.mxu0 0
        %3129 = vmatprep.subr.bf16.mxu0 0
        %3130 = vmatpush1.bf16.msra.mxu0 0
        %3131 = vmatprep.subr.bf16.mxu0 0
        %3132 = vmatpush1.bf16.msra.mxu0 0
        %3133 = vmatprep.subr.bf16.mxu0 0
        %3134 = vmatpush1.bf16.msra.mxu0 0
        %3135 = vmatprep.subr.bf16.mxu0 0
        %3136 = vmatpush1.bf16.msra.mxu0 0
        %3137 = vmatprep.mubr.bf16.mxu0 0
        %3138 = vmatmul.mubr.bf16.gmra.mrb[0].mxu0 %v3091
        %v3139 = vpop.f32.mrb[0].mxu0
        %v3140 = vadd.f32 0.0, %v3139
        %v3141 = vpop.f32.mrb[0].mxu0
        %v3142 = vadd.f32 0.0, %v3141
        %v3143 = vpop.f32.mrb[0].mxu0
        %v3144 = vpop.f32.mrb[0].mxu0
        %3145 = vdwg.mxu0
        %3146 = vmatprep.subr.bf16.mxu0 %v3103
        %3147 = vmatpush1.bf16.msra.mxu0 %v3100
        %3148 = vmatprep.subr.bf16.mxu0 0
        %3149 = vmatpush1.bf16.msra.mxu0 0
        %3150 = vmatprep.subr.bf16.mxu0 0
        %3151 = vmatpush1.bf16.msra.mxu0 0
        %3152 = vmatprep.subr.bf16.mxu0 0
        %3153 = vmatpush1.bf16.msra.mxu0 0
        %3154 = vmatprep.subr.bf16.mxu0 0
        %3155 = vmatpush1.bf16.msra.mxu0 0
        %3156 = vmatprep.subr.bf16.mxu0 0
        %3157 = vmatpush1.bf16.msra.mxu0 0
        %3158 = vmatprep.subr.bf16.mxu0 0
        %3159 = vmatpush1.bf16.msra.mxu0 0
        %3160 = vmatprep.subr.bf16.mxu0 0
        %3161 = vmatpush1.bf16.msra.mxu0 0
        %3162 = vmatprep.subr.bf16.mxu0 0
        %3163 = vmatpush1.bf16.msra.mxu0 0
        %3164 = vmatprep.subr.bf16.mxu0 0
        %3165 = vmatpush1.bf16.msra.mxu0 0
        %3166 = vmatprep.subr.bf16.mxu0 0
        %3167 = vmatpush1.bf16.msra.mxu0 0
        %3168 = vmatprep.subr.bf16.mxu0 0
        %3169 = vmatpush1.bf16.msra.mxu0 0
        %3170 = vmatprep.subr.bf16.mxu0 0
        %3171 = vmatpush1.bf16.msra.mxu0 0
        %3172 = vmatprep.subr.bf16.mxu0 0
        %3173 = vmatpush1.bf16.msra.mxu0 0
        %3174 = vmatprep.subr.bf16.mxu0 0
        %3175 = vmatpush1.bf16.msra.mxu0 0
        %3176 = vmatprep.subr.bf16.mxu0 0
        %3177 = vmatpush1.bf16.msra.mxu0 0
        %3178 = vmatprep.mubr.bf16.mxu0 0
        %3179 = vmatmul.mubr.bf16.gmra.mrb[0].mxu0 %v3091
        %v3180 = vpop.f32.mrb[0].mxu0
        %v3181 = vadd.f32 0.0, %v3180
        %v3182 = vpop.f32.mrb[0].mxu0
        %v3183 = vadd.f32 0.0, %v3182
        %v3184 = vpop.f32.mrb[0].mxu0
        %v3185 = vpop.f32.mrb[0].mxu0
        %3186 = vdwg.mxu0
        %3187 = vrot.lane.b32.xlu0 %v3071, 62
        %v3188 = vpop.permute.xlu0 %3187
        %3189 = vrot.lane.b32.xlu0 %v3072, 62
        %v3190 = vpop.permute.xlu0 %3189
        %3191 = vrot.lane.b32.xlu0 %v3073, 62
        %v3192 = vpop.permute.xlu0 %3191
        %3193 = vrot.lane.b32.xlu0 %v3074, 62
        %v3194 = vpop.permute.xlu0 %3193
        %3195 = vrot.lane.b32.xlu0 %v3075, 62
        %v3196 = vpop.permute.xlu0 %3195
        %vm3197 = vcmask 506880
        %v3198 = vsel %vm3197, %v3188, %v3190
        %v3199 = vsel %vm3197, %v3190, %v3192
        %v3200 = vsel %vm3197, %v3192, %v3194
        %v3201 = vsel %vm3197, %v3194, %v3196
        %v3203 = vsel %vm2746, %v3060, 0
        %v3206 = vsel %vm1613, %v3198, 0
        %v3209 = vsel %vm1613, %v3199, 0
        %v3212 = vsel %vm1613, %v3200, 0
        %v3215 = vsel %vm1613, %v3201, 0
        %3217 = vmatprep.subr.bf16.mxu0 %v3209
        %3218 = vmatpush1.bf16.msra.mxu0 %v3206
        %3219 = vmatprep.subr.bf16.mxu0 0
        %3220 = vmatpush1.bf16.msra.mxu0 0
        %3221 = vmatprep.subr.bf16.mxu0 0
        %3222 = vmatpush1.bf16.msra.mxu0 0
        %3223 = vmatprep.subr.bf16.mxu0 0
        %3224 = vmatpush1.bf16.msra.mxu0 0
        %3225 = vmatprep.subr.bf16.mxu0 0
        %3226 = vmatpush1.bf16.msra.mxu0 0
        %3227 = vmatprep.subr.bf16.mxu0 0
        %3228 = vmatpush1.bf16.msra.mxu0 0
        %3229 = vmatprep.subr.bf16.mxu0 0
        %3230 = vmatpush1.bf16.msra.mxu0 0
        %3231 = vmatprep.subr.bf16.mxu0 0
        %3232 = vmatpush1.bf16.msra.mxu0 0
        %3233 = vmatprep.subr.bf16.mxu0 0
        %3234 = vmatpush1.bf16.msra.mxu0 0
        %3235 = vmatprep.subr.bf16.mxu0 0
        %3236 = vmatpush1.bf16.msra.mxu0 0
        %3237 = vmatprep.subr.bf16.mxu0 0
        %3238 = vmatpush1.bf16.msra.mxu0 0
        %3239 = vmatprep.subr.bf16.mxu0 0
        %3240 = vmatpush1.bf16.msra.mxu0 0
        %3241 = vmatprep.subr.bf16.mxu0 0
        %3242 = vmatpush1.bf16.msra.mxu0 0
        %3243 = vmatprep.subr.bf16.mxu0 0
        %3244 = vmatpush1.bf16.msra.mxu0 0
        %3245 = vmatprep.subr.bf16.mxu0 0
        %3246 = vmatpush1.bf16.msra.mxu0 0
        %3247 = vmatprep.subr.bf16.mxu0 0
        %3248 = vmatpush1.bf16.msra.mxu0 0
        %3249 = vmatprep.mubr.bf16.mxu0 0
        %3250 = vmatmul.mubr.bf16.gmra.mrb[0].mxu0 %v3203
        %v3251 = vpop.f32.mrb[0].mxu0
        %v3252 = vadd.f32 %v3140, %v3251
        %v3253 = vpop.f32.mrb[0].mxu0
        %v3254 = vadd.f32 %v3142, %v3253
        %v3255 = vpop.f32.mrb[0].mxu0
        %v3256 = vpop.f32.mrb[0].mxu0
        %3257 = vdwg.mxu0
        %3258 = vmatprep.subr.bf16.mxu0 %v3215
        %3259 = vmatpush1.bf16.msra.mxu0 %v3212
        %3260 = vmatprep.subr.bf16.mxu0 0
        %3261 = vmatpush1.bf16.msra.mxu0 0
        %3262 = vmatprep.subr.bf16.mxu0 0
        %3263 = vmatpush1.bf16.msra.mxu0 0
        %3264 = vmatprep.subr.bf16.mxu0 0
        %3265 = vmatpush1.bf16.msra.mxu0 0
        %3266 = vmatprep.subr.bf16.mxu0 0
        %3267 = vmatpush1.bf16.msra.mxu0 0
        %3268 = vmatprep.subr.bf16.mxu0 0
        %3269 = vmatpush1.bf16.msra.mxu0 0
        %3270 = vmatprep.subr.bf16.mxu0 0
        %3271 = vmatpush1.bf16.msra.mxu0 0
        %3272 = vmatprep.subr.bf16.mxu0 0
        %3273 = vmatpush1.bf16.msra.mxu0 0
        %3274 = vmatprep.subr.bf16.mxu0 0
        %3275 = vmatpush1.bf16.msra.mxu0 0
        %3276 = vmatprep.subr.bf16.mxu0 0
        %3277 = vmatpush1.bf16.msra.mxu0 0
        %3278 = vmatprep.subr.bf16.mxu0 0
        %3279 = vmatpush1.bf16.msra.mxu0 0
        %3280 = vmatprep.subr.bf16.mxu0 0
        %3281 = vmatpush1.bf16.msra.mxu0 0
        %3282 = vmatprep.subr.bf16.mxu0 0
        %3283 = vmatpush1.bf16.msra.mxu0 0
        %3284 = vmatprep.subr.bf16.mxu0 0
        %3285 = vmatpush1.bf16.msra.mxu0 0
        %3286 = vmatprep.subr.bf16.mxu0 0
        %3287 = vmatpush1.bf16.msra.mxu0 0
        %3288 = vmatprep.subr.bf16.mxu0 0
        %3289 = vmatpush1.bf16.msra.mxu0 0
        %3290 = vmatprep.mubr.bf16.mxu0 0
        %3291 = vmatmul.mubr.bf16.gmra.mrb[0].mxu0 %v3203
        %v3292 = vpop.f32.mrb[0].mxu0
        %v3293 = vadd.f32 %v3181, %v3292
        %v3294 = vpop.f32.mrb[0].mxu0
        %v3295 = vadd.f32 %v3183, %v3294
        %v3296 = vpop.f32.mrb[0].mxu0
        %v3297 = vpop.f32.mrb[0].mxu0
        %3298 = vdwg.mxu0
        %s3299 = scalar_lea.vmem %s4, 20
        %v3300 = vld [vmem:[%s3299] sm:$0xf]
        %3301 = vrot.lane.b32.xlu0 %v3071, 56
        %v3302 = vpop.permute.xlu0 %3301
        %3303 = vrot.lane.b32.xlu0 %v3072, 56
        %v3304 = vpop.permute.xlu0 %3303
        %3305 = vrot.lane.b32.xlu0 %v3073, 56
        %v3306 = vpop.permute.xlu0 %3305
        %3307 = vrot.lane.b32.xlu0 %v3074, 56
        %v3308 = vpop.permute.xlu0 %3307
        %3309 = vrot.lane.b32.xlu0 %v3075, 56
        %v3310 = vpop.permute.xlu0 %3309
        %vm3311 = vcmask 457728
        %v3312 = vsel %vm3311, %v3302, %v3304
        %v3313 = vsel %vm3311, %v3304, %v3306
        %v3314 = vsel %vm3311, %v3306, %v3308
        %v3315 = vsel %vm3311, %v3308, %v3310
        %v3317 = vsel %vm2746, %v3300, 0
        %v3320 = vsel %vm1613, %v3312, 0
        %v3323 = vsel %vm1613, %v3313, 0
        %v3326 = vsel %vm1613, %v3314, 0
        %v3329 = vsel %vm1613, %v3315, 0
        %3331 = vmatprep.subr.bf16.mxu0 %v3323
        %3332 = vmatpush1.bf16.msra.mxu0 %v3320
        %3333 = vmatprep.subr.bf16.mxu0 0
        %3334 = vmatpush1.bf16.msra.mxu0 0
        %3335 = vmatprep.subr.bf16.mxu0 0
        %3336 = vmatpush1.bf16.msra.mxu0 0
        %3337 = vmatprep.subr.bf16.mxu0 0
        %3338 = vmatpush1.bf16.msra.mxu0 0
        %3339 = vmatprep.subr.bf16.mxu0 0
        %3340 = vmatpush1.bf16.msra.mxu0 0
        %3341 = vmatprep.subr.bf16.mxu0 0
        %3342 = vmatpush1.bf16.msra.mxu0 0
        %3343 = vmatprep.subr.bf16.mxu0 0
        %3344 = vmatpush1.bf16.msra.mxu0 0
        %3345 = vmatprep.subr.bf16.mxu0 0
        %3346 = vmatpush1.bf16.msra.mxu0 0
        %3347 = vmatprep.subr.bf16.mxu0 0
        %3348 = vmatpush1.bf16.msra.mxu0 0
        %3349 = vmatprep.subr.bf16.mxu0 0
        %3350 = vmatpush1.bf16.msra.mxu0 0
        %3351 = vmatprep.subr.bf16.mxu0 0
        %3352 = vmatpush1.bf16.msra.mxu0 0
        %3353 = vmatprep.subr.bf16.mxu0 0
        %3354 = vmatpush1.bf16.msra.mxu0 0
        %3355 = vmatprep.subr.bf16.mxu0 0
        %3356 = vmatpush1.bf16.msra.mxu0 0
        %3357 = vmatprep.subr.bf16.mxu0 0
        %3358 = vmatpush1.bf16.msra.mxu0 0
        %3359 = vmatprep.subr.bf16.mxu0 0
        %3360 = vmatpush1.bf16.msra.mxu0 0
        %3361 = vmatprep.subr.bf16.mxu0 0
        %3362 = vmatpush1.bf16.msra.mxu0 0
        %3363 = vmatprep.mubr.bf16.mxu0 0
        %3364 = vmatmul.mubr.bf16.gmra.mrb[0].mxu0 %v3317
        %v3365 = vpop.f32.mrb[0].mxu0
        %v3366 = vadd.f32 0.0, %v3365
        %v3367 = vpop.f32.mrb[0].mxu0
        %v3368 = vadd.f32 0.0, %v3367
        %v3369 = vpop.f32.mrb[0].mxu0
        %v3370 = vpop.f32.mrb[0].mxu0
        %3371 = vdwg.mxu0
        %3372 = vmatprep.subr.bf16.mxu0 %v3329
        %3373 = vmatpush1.bf16.msra.mxu0 %v3326
        %3374 = vmatprep.subr.bf16.mxu0 0
        %3375 = vmatpush1.bf16.msra.mxu0 0
        %3376 = vmatprep.subr.bf16.mxu0 0
        %3377 = vmatpush1.bf16.msra.mxu0 0
        %3378 = vmatprep.subr.bf16.mxu0 0
        %3379 = vmatpush1.bf16.msra.mxu0 0
        %3380 = vmatprep.subr.bf16.mxu0 0
        %3381 = vmatpush1.bf16.msra.mxu0 0
        %3382 = vmatprep.subr.bf16.mxu0 0
        %3383 = vmatpush1.bf16.msra.mxu0 0
        %3384 = vmatprep.subr.bf16.mxu0 0
        %3385 = vmatpush1.bf16.msra.mxu0 0
        %3386 = vmatprep.subr.bf16.mxu0 0
        %3387 = vmatpush1.bf16.msra.mxu0 0
        %3388 = vmatprep.subr.bf16.mxu0 0
        %3389 = vmatpush1.bf16.msra.mxu0 0
        %3390 = vmatprep.subr.bf16.mxu0 0
        %3391 = vmatpush1.bf16.msra.mxu0 0
        %3392 = vmatprep.subr.bf16.mxu0 0
        %3393 = vmatpush1.bf16.msra.mxu0 0
        %3394 = vmatprep.subr.bf16.mxu0 0
        %3395 = vmatpush1.bf16.msra.mxu0 0
        %3396 = vmatprep.subr.bf16.mxu0 0
        %3397 = vmatpush1.bf16.msra.mxu0 0
        %3398 = vmatprep.subr.bf16.mxu0 0
        %3399 = vmatpush1.bf16.msra.mxu0 0
        %3400 = vmatprep.subr.bf16.mxu0 0
        %3401 = vmatpush1.bf16.msra.mxu0 0
        %3402 = vmatprep.subr.bf16.mxu0 0
        %3403 = vmatpush1.bf16.msra.mxu0 0
        %3404 = vmatprep.mubr.bf16.mxu0 0
        %3405 = vmatmul.mubr.bf16.gmra.mrb[0].mxu0 %v3317
        %v3406 = vpop.f32.mrb[0].mxu0
        %v3407 = vadd.f32 0.0, %v3406
        %v3408 = vpop.f32.mrb[0].mxu0
        %v3409 = vadd.f32 0.0, %v3408
        %v3410 = vpop.f32.mrb[0].mxu0
        %v3411 = vpop.f32.mrb[0].mxu0
        %3412 = vdwg.mxu0
        %v3413 = vadd.f32 %v3252, %v3366
        %v3414 = vadd.f32 %v3254, %v3368
        %v3415 = vadd.f32 %v3293, %v3407
        %v3416 = vadd.f32 %v3295, %v3409
        %v3417 = vadd.f32 %v3052, %v3413
        %v3418 = vadd.f32 %v3053, %v3414
        %v3419 = vadd.f32 %v3054, %v3415
        %v3420 = vadd.f32 %v3055, %v3416
        %v3421 = vld [vmem:[#allocation2 + $0x4] sm:$0x77]
        %v3422 = vld [vmem:[#allocation2 + $0xc] sm:$0x77]
        %s3423 = scalar_lea.vmem %s4, 24
        %v3424 = vld [vmem:[%s3423] sm:$0xf]
        %s3425 = scalar_lea.vmem %s4, 28
        %v3426 = vld [vmem:[%s3425] sm:$0xf]
        %v3429 = vunpack.c.l.b16 %v3421
        %v3430 = vunpack.c.h.b16 %v3421
        %v3431 = vunpack.c.l.b16 %v3422
        %v3432 = vunpack.c.h.b16 %v3422
        %v3433 = vpack.c.b16 %v3429, %v3429
        %v3434 = vpack.c.b16 %v3430, %v3430
        %v3435 = vpack.c.b16 %v3431, %v3431
        %v3436 = vpack.c.b16 %v3432, %v3432
        %3437 = vrot.lane.b32.xlu0 %v3433, 121
        %v3438 = vpop.permute.xlu0 %3437
        %3439 = vrot.lane.b32.xlu0 %v3434, 121
        %v3440 = vpop.permute.xlu0 %3439
        %3441 = vrot.lane.b32.xlu0 %v3435, 121
        %v3442 = vpop.permute.xlu0 %3441
        %3443 = vrot.lane.b32.xlu0 %v3436, 121
        %v3444 = vpop.permute.xlu0 %3443
        %vm3445 = vcmask 990208
        %v3446 = vsel %vm3445, %v3438, %v3440
        %v3447 = vsel %vm3445, %v3440, %v3442
        %v3448 = vsel %vm3445, %v3442, %v3444
        %v3450 = vsel %vm2746, %v3426, 0
        %v3453 = vsel %vm1613, %v3446, 0
        %v3456 = vsel %vm1613, %v3447, 0
        %v3459 = vsel %vm1613, %v3448, 0
        %v3462 = vsel %vm1613, %v3444, 0
        %3464 = vmatprep.subr.bf16.mxu0 %v3456
        %3465 = vmatpush1.bf16.msra.mxu0 %v3453
        %3466 = vmatprep.subr.bf16.mxu0 0
        %3467 = vmatpush1.bf16.msra.mxu0 0
        %3468 = vmatprep.subr.bf16.mxu0 0
        %3469 = vmatpush1.bf16.msra.mxu0 0
        %3470 = vmatprep.subr.bf16.mxu0 0
        %3471 = vmatpush1.bf16.msra.mxu0 0
        %3472 = vmatprep.subr.bf16.mxu0 0
        %3473 = vmatpush1.bf16.msra.mxu0 0
        %3474 = vmatprep.subr.bf16.mxu0 0
        %3475 = vmatpush1.bf16.msra.mxu0 0
        %3476 = vmatprep.subr.bf16.mxu0 0
        %3477 = vmatpush1.bf16.msra.mxu0 0
        %3478 = vmatprep.subr.bf16.mxu0 0
        %3479 = vmatpush1.bf16.msra.mxu0 0
        %3480 = vmatprep.subr.bf16.mxu0 0
        %3481 = vmatpush1.bf16.msra.mxu0 0
        %3482 = vmatprep.subr.bf16.mxu0 0
        %3483 = vmatpush1.bf16.msra.mxu0 0
        %3484 = vmatprep.subr.bf16.mxu0 0
        %3485 = vmatpush1.bf16.msra.mxu0 0
        %3486 = vmatprep.subr.bf16.mxu0 0
        %3487 = vmatpush1.bf16.msra.mxu0 0
        %3488 = vmatprep.subr.bf16.mxu0 0
        %3489 = vmatpush1.bf16.msra.mxu0 0
        %3490 = vmatprep.subr.bf16.mxu0 0
        %3491 = vmatpush1.bf16.msra.mxu0 0
        %3492 = vmatprep.subr.bf16.mxu0 0
        %3493 = vmatpush1.bf16.msra.mxu0 0
        %3494 = vmatprep.subr.bf16.mxu0 0
        %3495 = vmatpush1.bf16.msra.mxu0 0
        %3496 = vmatprep.mubr.bf16.mxu0 0
        %3497 = vmatmul.mubr.bf16.gmra.mrb[0].mxu0 %v3450
        %v3498 = vpop.f32.mrb[0].mxu0
        %v3499 = vadd.f32 0.0, %v3498
        %v3500 = vpop.f32.mrb[0].mxu0
        %v3501 = vadd.f32 0.0, %v3500
        %v3502 = vpop.f32.mrb[0].mxu0
        %v3503 = vpop.f32.mrb[0].mxu0
        %3504 = vdwg.mxu0
        %3505 = vmatprep.subr.bf16.mxu0 %v3462
        %3506 = vmatpush1.bf16.msra.mxu0 %v3459
        %3507 = vmatprep.subr.bf16.mxu0 0
        %3508 = vmatpush1.bf16.msra.mxu0 0
        %3509 = vmatprep.subr.bf16.mxu0 0
        %3510 = vmatpush1.bf16.msra.mxu0 0
        %3511 = vmatprep.subr.bf16.mxu0 0
        %3512 = vmatpush1.bf16.msra.mxu0 0
        %3513 = vmatprep.subr.bf16.mxu0 0
        %3514 = vmatpush1.bf16.msra.mxu0 0
        %3515 = vmatprep.subr.bf16.mxu0 0
        %3516 = vmatpush1.bf16.msra.mxu0 0
        %3517 = vmatprep.subr.bf16.mxu0 0
        %3518 = vmatpush1.bf16.msra.mxu0 0
        %3519 = vmatprep.subr.bf16.mxu0 0
        %3520 = vmatpush1.bf16.msra.mxu0 0
        %3521 = vmatprep.subr.bf16.mxu0 0
        %3522 = vmatpush1.bf16.msra.mxu0 0
        %3523 = vmatprep.subr.bf16.mxu0 0
        %3524 = vmatpush1.bf16.msra.mxu0 0
        %3525 = vmatprep.subr.bf16.mxu0 0
        %3526 = vmatpush1.bf16.msra.mxu0 0
        %3527 = vmatprep.subr.bf16.mxu0 0
        %3528 = vmatpush1.bf16.msra.mxu0 0
        %3529 = vmatprep.subr.bf16.mxu0 0
        %3530 = vmatpush1.bf16.msra.mxu0 0
        %3531 = vmatprep.subr.bf16.mxu0 0
        %3532 = vmatpush1.bf16.msra.mxu0 0
        %3533 = vmatprep.subr.bf16.mxu0 0
        %3534 = vmatpush1.bf16.msra.mxu0 0
        %3535 = vmatprep.subr.bf16.mxu0 0
        %3536 = vmatpush1.bf16.msra.mxu0 0
        %3537 = vmatprep.mubr.bf16.mxu0 0
        %3538 = vmatmul.mubr.bf16.gmra.mrb[0].mxu0 %v3450
        %v3539 = vpop.f32.mrb[0].mxu0
        %v3540 = vadd.f32 0.0, %v3539
        %v3541 = vpop.f32.mrb[0].mxu0
        %v3542 = vadd.f32 0.0, %v3541
        %v3543 = vpop.f32.mrb[0].mxu0
        %v3544 = vpop.f32.mrb[0].mxu0
        %3545 = vdwg.mxu0
        %3546 = vrot.lane.b32.xlu0 %v3433, 124
        %v3547 = vpop.permute.xlu0 %3546
        %3548 = vrot.lane.b32.xlu0 %v3434, 124
        %v3549 = vpop.permute.xlu0 %3548
        %3550 = vrot.lane.b32.xlu0 %v3435, 124
        %v3551 = vpop.permute.xlu0 %3550
        %3552 = vrot.lane.b32.xlu0 %v3436, 124
        %v3553 = vpop.permute.xlu0 %3552
        %vm3554 = vcmask 1014784
        %v3555 = vsel %vm3554, %v3547, %v3549
        %v3556 = vsel %vm3554, %v3549, %v3551
        %v3557 = vsel %vm3554, %v3551, %v3553
        %v3559 = vsel %vm2746, %v3424, 0
        %v3562 = vsel %vm1613, %v3555, 0
        %v3565 = vsel %vm1613, %v3556, 0
        %v3568 = vsel %vm1613, %v3557, 0
        %v3571 = vsel %vm1613, %v3553, 0
        %3573 = vmatprep.subr.bf16.mxu0 %v3565
        %3574 = vmatpush1.bf16.msra.mxu0 %v3562
        %3575 = vmatprep.subr.bf16.mxu0 0
        %3576 = vmatpush1.bf16.msra.mxu0 0
        %3577 = vmatprep.subr.bf16.mxu0 0
        %3578 = vmatpush1.bf16.msra.mxu0 0
        %3579 = vmatprep.subr.bf16.mxu0 0
        %3580 = vmatpush1.bf16.msra.mxu0 0
        %3581 = vmatprep.subr.bf16.mxu0 0
        %3582 = vmatpush1.bf16.msra.mxu0 0
        %3583 = vmatprep.subr.bf16.mxu0 0
        %3584 = vmatpush1.bf16.msra.mxu0 0
        %3585 = vmatprep.subr.bf16.mxu0 0
        %3586 = vmatpush1.bf16.msra.mxu0 0
        %3587 = vmatprep.subr.bf16.mxu0 0
        %3588 = vmatpush1.bf16.msra.mxu0 0
        %3589 = vmatprep.subr.bf16.mxu0 0
        %3590 = vmatpush1.bf16.msra.mxu0 0
        %3591 = vmatprep.subr.bf16.mxu0 0
        %3592 = vmatpush1.bf16.msra.mxu0 0
        %3593 = vmatprep.subr.bf16.mxu0 0
        %3594 = vmatpush1.bf16.msra.mxu0 0
        %3595 = vmatprep.subr.bf16.mxu0 0
        %3596 = vmatpush1.bf16.msra.mxu0 0
        %3597 = vmatprep.subr.bf16.mxu0 0
        %3598 = vmatpush1.bf16.msra.mxu0 0
        %3599 = vmatprep.subr.bf16.mxu0 0
        %3600 = vmatpush1.bf16.msra.mxu0 0
        %3601 = vmatprep.subr.bf16.mxu0 0
        %3602 = vmatpush1.bf16.msra.mxu0 0
        %3603 = vmatprep.subr.bf16.mxu0 0
        %3604 = vmatpush1.bf16.msra.mxu0 0
        %3605 = vmatprep.mubr.bf16.mxu0 0
        %3606 = vmatmul.mubr.bf16.gmra.mrb[0].mxu0 %v3559
        %v3607 = vpop.f32.mrb[0].mxu0
        %v3608 = vadd.f32 %v3499, %v3607
        %v3609 = vpop.f32.mrb[0].mxu0
        %v3610 = vadd.f32 %v3501, %v3609
        %v3611 = vpop.f32.mrb[0].mxu0
        %v3612 = vpop.f32.mrb[0].mxu0
        %3613 = vdwg.mxu0
        %3614 = vmatprep.subr.bf16.mxu0 %v3571
        %3615 = vmatpush1.bf16.msra.mxu0 %v3568
        %3616 = vmatprep.subr.bf16.mxu0 0
        %3617 = vmatpush1.bf16.msra.mxu0 0
        %3618 = vmatprep.subr.bf16.mxu0 0
        %3619 = vmatpush1.bf16.msra.mxu0 0
        %3620 = vmatprep.subr.bf16.mxu0 0
        %3621 = vmatpush1.bf16.msra.mxu0 0
        %3622 = vmatprep.subr.bf16.mxu0 0
        %3623 = vmatpush1.bf16.msra.mxu0 0
        %3624 = vmatprep.subr.bf16.mxu0 0
        %3625 = vmatpush1.bf16.msra.mxu0 0
        %3626 = vmatprep.subr.bf16.mxu0 0
        %3627 = vmatpush1.bf16.msra.mxu0 0
        %3628 = vmatprep.subr.bf16.mxu0 0
        %3629 = vmatpush1.bf16.msra.mxu0 0
        %3630 = vmatprep.subr.bf16.mxu0 0
        %3631 = vmatpush1.bf16.msra.mxu0 0
        %3632 = vmatprep.subr.bf16.mxu0 0
        %3633 = vmatpush1.bf16.msra.mxu0 0
        %3634 = vmatprep.subr.bf16.mxu0 0
        %3635 = vmatpush1.bf16.msra.mxu0 0
        %3636 = vmatprep.subr.bf16.mxu0 0
        %3637 = vmatpush1.bf16.msra.mxu0 0
        %3638 = vmatprep.subr.bf16.mxu0 0
        %3639 = vmatpush1.bf16.msra.mxu0 0
        %3640 = vmatprep.subr.bf16.mxu0 0
        %3641 = vmatpush1.bf16.msra.mxu0 0
        %3642 = vmatprep.subr.bf16.mxu0 0
        %3643 = vmatpush1.bf16.msra.mxu0 0
        %3644 = vmatprep.subr.bf16.mxu0 0
        %3645 = vmatpush1.bf16.msra.mxu0 0
        %3646 = vmatprep.mubr.bf16.mxu0 0
        %3647 = vmatmul.mubr.bf16.gmra.mrb[0].mxu0 %v3559
        %v3648 = vpop.f32.mrb[0].mxu0
        %v3649 = vadd.f32 %v3540, %v3648
        %v3650 = vpop.f32.mrb[0].mxu0
        %v3651 = vadd.f32 %v3542, %v3650
        %v3652 = vpop.f32.mrb[0].mxu0
        %v3653 = vpop.f32.mrb[0].mxu0
        %3654 = vdwg.mxu0
        %s3655 = scalar_lea.vmem %s4, 32
        %v3656 = vld [vmem:[%s3655] sm:$0xf]
        %3657 = vrot.lane.b32.xlu0 %v3433, 118
        %v3658 = vpop.permute.xlu0 %3657
        %3659 = vrot.lane.b32.xlu0 %v3434, 118
        %v3660 = vpop.permute.xlu0 %3659
        %3661 = vrot.lane.b32.xlu0 %v3435, 118
        %v3662 = vpop.permute.xlu0 %3661
        %3663 = vrot.lane.b32.xlu0 %v3436, 118
        %v3664 = vpop.permute.xlu0 %3663
        %vm3665 = vcmask 965632
        %v3666 = vsel %vm3665, %v3658, %v3660
        %v3667 = vsel %vm3665, %v3660, %v3662
        %v3668 = vsel %vm3665, %v3662, %v3664
        %v3670 = vsel %vm2746, %v3656, 0
        %v3673 = vsel %vm1613, %v3666, 0
        %v3676 = vsel %vm1613, %v3667, 0
        %v3679 = vsel %vm1613, %v3668, 0
        %v3682 = vsel %vm1613, %v3664, 0
        %3684 = vmatprep.subr.bf16.mxu0 %v3676
        %3685 = vmatpush1.bf16.msra.mxu0 %v3673
        %3686 = vmatprep.subr.bf16.mxu0 0
        %3687 = vmatpush1.bf16.msra.mxu0 0
        %3688 = vmatprep.subr.bf16.mxu0 0
        %3689 = vmatpush1.bf16.msra.mxu0 0
        %3690 = vmatprep.subr.bf16.mxu0 0
        %3691 = vmatpush1.bf16.msra.mxu0 0
        %3692 = vmatprep.subr.bf16.mxu0 0
        %3693 = vmatpush1.bf16.msra.mxu0 0
        %3694 = vmatprep.subr.bf16.mxu0 0
        %3695 = vmatpush1.bf16.msra.mxu0 0
        %3696 = vmatprep.subr.bf16.mxu0 0
        %3697 = vmatpush1.bf16.msra.mxu0 0
        %3698 = vmatprep.subr.bf16.mxu0 0
        %3699 = vmatpush1.bf16.msra.mxu0 0
        %3700 = vmatprep.subr.bf16.mxu0 0
        %3701 = vmatpush1.bf16.msra.mxu0 0
        %3702 = vmatprep.subr.bf16.mxu0 0
        %3703 = vmatpush1.bf16.msra.mxu0 0
        %3704 = vmatprep.subr.bf16.mxu0 0
        %3705 = vmatpush1.bf16.msra.mxu0 0
        %3706 = vmatprep.subr.bf16.mxu0 0
        %3707 = vmatpush1.bf16.msra.mxu0 0
        %3708 = vmatprep.subr.bf16.mxu0 0
        %3709 = vmatpush1.bf16.msra.mxu0 0
        %3710 = vmatprep.subr.bf16.mxu0 0
        %3711 = vmatpush1.bf16.msra.mxu0 0
        %3712 = vmatprep.subr.bf16.mxu0 0
        %3713 = vmatpush1.bf16.msra.mxu0 0
        %3714 = vmatprep.subr.bf16.mxu0 0
        %3715 = vmatpush1.bf16.msra.mxu0 0
        %3716 = vmatprep.mubr.bf16.mxu0 0
        %3717 = vmatmul.mubr.bf16.gmra.mrb[0].mxu0 %v3670
        %v3718 = vpop.f32.mrb[0].mxu0
        %v3719 = vadd.f32 0.0, %v3718
        %v3720 = vpop.f32.mrb[0].mxu0
        %v3721 = vadd.f32 0.0, %v3720
        %v3722 = vpop.f32.mrb[0].mxu0
        %v3723 = vpop.f32.mrb[0].mxu0
        %3724 = vdwg.mxu0
        %3725 = vmatprep.subr.bf16.mxu0 %v3682
        %3726 = vmatpush1.bf16.msra.mxu0 %v3679
        %3727 = vmatprep.subr.bf16.mxu0 0
        %3728 = vmatpush1.bf16.msra.mxu0 0
        %3729 = vmatprep.subr.bf16.mxu0 0
        %3730 = vmatpush1.bf16.msra.mxu0 0
        %3731 = vmatprep.subr.bf16.mxu0 0
        %3732 = vmatpush1.bf16.msra.mxu0 0
        %3733 = vmatprep.subr.bf16.mxu0 0
        %3734 = vmatpush1.bf16.msra.mxu0 0
        %3735 = vmatprep.subr.bf16.mxu0 0
        %3736 = vmatpush1.bf16.msra.mxu0 0
        %3737 = vmatprep.subr.bf16.mxu0 0
        %3738 = vmatpush1.bf16.msra.mxu0 0
        %3739 = vmatprep.subr.bf16.mxu0 0
        %3740 = vmatpush1.bf16.msra.mxu0 0
        %3741 = vmatprep.subr.bf16.mxu0 0
        %3742 = vmatpush1.bf16.msra.mxu0 0
        %3743 = vmatprep.subr.bf16.mxu0 0
        %3744 = vmatpush1.bf16.msra.mxu0 0
        %3745 = vmatprep.subr.bf16.mxu0 0
        %3746 = vmatpush1.bf16.msra.mxu0 0
        %3747 = vmatprep.subr.bf16.mxu0 0
        %3748 = vmatpush1.bf16.msra.mxu0 0
        %3749 = vmatprep.subr.bf16.mxu0 0
        %3750 = vmatpush1.bf16.msra.mxu0 0
        %3751 = vmatprep.subr.bf16.mxu0 0
        %3752 = vmatpush1.bf16.msra.mxu0 0
        %3753 = vmatprep.subr.bf16.mxu0 0
        %3754 = vmatpush1.bf16.msra.mxu0 0
        %3755 = vmatprep.subr.bf16.mxu0 0
        %3756 = vmatpush1.bf16.msra.mxu0 0
        %3757 = vmatprep.mubr.bf16.mxu0 0
        %3758 = vmatmul.mubr.bf16.gmra.mrb[0].mxu0 %v3670
        %v3759 = vpop.f32.mrb[0].mxu0
        %v3760 = vadd.f32 0.0, %v3759
        %v3761 = vpop.f32.mrb[0].mxu0
        %v3762 = vadd.f32 0.0, %v3761
        %v3763 = vpop.f32.mrb[0].mxu0
        %v3764 = vpop.f32.mrb[0].mxu0
        %3765 = vdwg.mxu0
        %v3766 = vadd.f32 %v3608, %v3719
        %v3767 = vadd.f32 %v3610, %v3721
        %v3768 = vadd.f32 %v3649, %v3760
        %v3769 = vadd.f32 %v3651, %v3762
        %v3770 = vadd.f32 %v3417, %v3766
        %v3771 = vadd.f32 %v3418, %v3767
        %v3772 = vadd.f32 %v3419, %v3768
        %v3773 = vadd.f32 %v3420, %v3769
        %3775 = vset.pattern.permute.xlu0 0
        %3776 = vperm.xlu0 %3775, %v2718
        %v3777 = vpop.permute.xlu0 %3776
        %v3779 = vadd.f32 %v3770, %v3777
        %v3780 = vadd.f32 %v3771, %v3777
        %v3781 = vadd.f32 %v3772, %v3777
        %v3782 = vadd.f32 %v3773, %v3777
        %v3783 = vmax.f32 %v3779, 0.0
        %v3784 = vmax.f32 %v3780, 0.0
        %v3785 = vmax.f32 %v3781, 0.0
        %v3786 = vmax.f32 %v3782, 0.0
        %v3787 = vmul.f32 %v3783, %v1508
        %v3788 = vmul.f32 %v3784, %v1512
        %v3789 = vmul.f32 %v3785, %v1516
        %v3790 = vmul.f32 %v3786, %v1520
        %v3791 = vpack.c.bf16 %v3787, %v3787
        %v3792 = vpack.c.bf16 %v3788, %v3788
        %v3793 = vpack.c.bf16 %v3789, %v3789
        %v3794 = vpack.c.bf16 %v3790, %v3790
        %v3799 = vunpack.c.l.b16 %v3791
        %v3800 = vunpack.c.l.b16 %v3792
        %v3801 = vunpack.c.l.b16 %v3793
        %v3802 = vunpack.c.l.b16 %v3794
        %v3803 = vpack.c.b16 %v3800, %v3799
        %v3804 = vpack.c.b16 %v3802, %v3801
        %v3805 = vrot.slane %v3803, 5
        %v3806 = vrot.slane %v3804, 5
        %3807 = vrot.lane.b32.xlu0 %v3805, 69
        %v3808 = vpop.permute.xlu0 %3807
        %3809 = vrot.lane.b32.xlu0 %v3806, 69
        %v3810 = vpop.permute.xlu0 %3809
        %v3811 = vrot.slane %v3808, 4
        %v3812 = vrot.slane %v3810, 4
        %v3813 = vsel %vm1551, %v3811, %v3808
        %v3814 = vsel %vm1553, %v3811, %v3812
        %v3815 = vsel %vm1551, %v3814, %v3810
        %vm3819 = vcmask 1044011
        %vm3820 = vsmask.f32 3328
        %vm3821 = vmand %vm3819, %vm3820
        %vm3822 = vcmask 1047559
        %vm3823 = vsmask.f32 7424
        %vm3824 = vmand %vm3822, %vm3823
        %vm3825 = vmor %vm3824, %vm3821
        %v3826 = vld [vmem:[#allocation2] sm:$0x88]
        %v3827 = vsel %vm3825, %v3813, %v3826
        %3828 = vst [vmem:[#allocation2] sm:$0x88] %v3827
        %vm3829 = vcmask 1043459
        %vm3830 = vmand %vm3829, %vm3820
        %vm3831 = vmor %vm3824, %vm3830
        %v3832 = vld [vmem:[#allocation2 + $0x8] sm:$0x88]
        %v3833 = vsel %vm3831, %v3815, %v3832
        %3834 = vst [vmem:[#allocation2 + $0x8] sm:$0x88] %v3833
        %vm3835 = vcmask 330755
        %vm3836 = vmand %vm3835, %vm3820
        %v3837 = vld [vmem:[#allocation2 + $0x10] sm:$0x8]
        %v3838 = vsel %vm3836, %v3812, %v3837
        %3839 = vst [vmem:[#allocation2 + $0x10] sm:$0x8] %v3838
        %s3840 = scalar_lea.vmem %s8, 24
        %v3841 = vld [vmem:[%s3840] sm:$0xff]
        %v3842 = vld [vmem:[#allocation2] sm:$0xff]
        %v3843 = vld [vmem:[#allocation2 + $0x8] sm:$0xff]
        %v3844 = vld [vmem:[#allocation2 + $0x10] sm:$0xf]
        %v3845 = vld [vmem:[%s5] sm:$0xf]
        %s3846 = scalar_lea.vmem %s5, 4
        %v3847 = vld [vmem:[%s3846] sm:$0xf]
        %v3851 = vunpack.c.l.b16 %v3842
        %v3852 = vunpack.c.h.b16 %v3842
        %v3853 = vunpack.c.l.b16 %v3843
        %v3854 = vunpack.c.h.b16 %v3843
        %v3855 = vunpack.c.l.b16 %v3844
        %v3856 = vpack.c.b16 %v3851, %v3851
        %v3857 = vpack.c.b16 %v3852, %v3852
        %v3858 = vpack.c.b16 %v3853, %v3853
        %v3859 = vpack.c.b16 %v3854, %v3854
        %v3860 = vpack.c.b16 %v3855, %v3855
        %3861 = vrot.lane.b32.xlu0 %v3856, 81
        %v3862 = vpop.permute.xlu0 %3861
        %3863 = vrot.lane.b32.xlu0 %v3857, 81
        %v3864 = vpop.permute.xlu0 %3863
        %3865 = vrot.lane.b32.xlu0 %v3858, 81
        %v3866 = vpop.permute.xlu0 %3865
        %3867 = vrot.lane.b32.xlu0 %v3859, 81
        %v3868 = vpop.permute.xlu0 %3867
        %3869 = vrot.lane.b32.xlu0 %v3860, 81
        %v3870 = vpop.permute.xlu0 %3869
        %v3871 = vsel %vm457, %v3862, %v3864
        %v3872 = vsel %vm457, %v3864, %v3866
        %v3873 = vsel %vm457, %v3866, %v3868
        %v3874 = vsel %vm457, %v3868, %v3870
        %vm3875 = vcmask 56320
        %v3877 = vsel %vm3875, %v3847, 0
        %vm3879 = vcmask 1043456
        %v3880 = vsel %vm1613, 4294967295, 65535
        %v3881 = vsel %vm3879, %v3880, 0
        %v3883 = vand.u32 %v3871, %v3881
        %v3886 = vand.u32 %v3872, %v3881
        %v3889 = vand.u32 %v3873, %v3881
        %v3892 = vand.u32 %v3874, %v3881
        %3894 = vmatprep.subr.bf16.mxu0 %v3886
        %3895 = vmatpush1.bf16.msra.mxu0 %v3883
        %3896 = vmatprep.subr.bf16.mxu0 0
        %3897 = vmatpush1.bf16.msra.mxu0 0
        %3898 = vmatprep.subr.bf16.mxu0 0
        %3899 = vmatpush1.bf16.msra.mxu0 0
        %3900 = vmatprep.subr.bf16.mxu0 0
        %3901 = vmatpush1.bf16.msra.mxu0 0
        %3902 = vmatprep.subr.bf16.mxu0 0
        %3903 = vmatpush1.bf16.msra.mxu0 0
        %3904 = vmatprep.subr.bf16.mxu0 0
        %3905 = vmatpush1.bf16.msra.mxu0 0
        %3906 = vmatprep.subr.bf16.mxu0 0
        %3907 = vmatpush1.bf16.msra.mxu0 0
        %3908 = vmatprep.subr.bf16.mxu0 0
        %3909 = vmatpush1.bf16.msra.mxu0 0
        %3910 = vmatprep.subr.bf16.mxu0 0
        %3911 = vmatpush1.bf16.msra.mxu0 0
        %3912 = vmatprep.subr.bf16.mxu0 0
        %3913 = vmatpush1.bf16.msra.mxu0 0
        %3914 = vmatprep.subr.bf16.mxu0 0
        %3915 = vmatpush1.bf16.msra.mxu0 0
        %3916 = vmatprep.subr.bf16.mxu0 0
        %3917 = vmatpush1.bf16.msra.mxu0 0
        %3918 = vmatprep.subr.bf16.mxu0 0
        %3919 = vmatpush1.bf16.msra.mxu0 0
        %3920 = vmatprep.subr.bf16.mxu0 0
        %3921 = vmatpush1.bf16.msra.mxu0 0
        %3922 = vmatprep.subr.bf16.mxu0 0
        %3923 = vmatpush1.bf16.msra.mxu0 0
        %3924 = vmatprep.subr.bf16.mxu0 0
        %3925 = vmatpush1.bf16.msra.mxu0 0
        %3926 = vmatprep.mubr.bf16.mxu0 0
        %3927 = vmatmul.mubr.bf16.gmra.mrb[0].mxu0 %v3877
        %v3928 = vpop.f32.mrb[0].mxu0
        %v3929 = vadd.f32 0.0, %v3928
        %v3930 = vpop.f32.mrb[0].mxu0
        %v3931 = vadd.f32 0.0, %v3930
        %v3932 = vpop.f32.mrb[0].mxu0
        %v3933 = vpop.f32.mrb[0].mxu0
        %3934 = vdwg.mxu0
        %3935 = vmatprep.subr.bf16.mxu0 %v3892
        %3936 = vmatpush1.bf16.msra.mxu0 %v3889
        %3937 = vmatprep.subr.bf16.mxu0 0
        %3938 = vmatpush1.bf16.msra.mxu0 0
        %3939 = vmatprep.subr.bf16.mxu0 0
        %3940 = vmatpush1.bf16.msra.mxu0 0
        %3941 = vmatprep.subr.bf16.mxu0 0
        %3942 = vmatpush1.bf16.msra.mxu0 0
        %3943 = vmatprep.subr.bf16.mxu0 0
        %3944 = vmatpush1.bf16.msra.mxu0 0
        %3945 = vmatprep.subr.bf16.mxu0 0
        %3946 = vmatpush1.bf16.msra.mxu0 0
        %3947 = vmatprep.subr.bf16.mxu0 0
        %3948 = vmatpush1.bf16.msra.mxu0 0
        %3949 = vmatprep.subr.bf16.mxu0 0
        %3950 = vmatpush1.bf16.msra.mxu0 0
        %3951 = vmatprep.subr.bf16.mxu0 0
        %3952 = vmatpush1.bf16.msra.mxu0 0
        %3953 = vmatprep.subr.bf16.mxu0 0
        %3954 = vmatpush1.bf16.msra.mxu0 0
        %3955 = vmatprep.subr.bf16.mxu0 0
        %3956 = vmatpush1.bf16.msra.mxu0 0
        %3957 = vmatprep.subr.bf16.mxu0 0
        %3958 = vmatpush1.bf16.msra.mxu0 0
        %3959 = vmatprep.subr.bf16.mxu0 0
        %3960 = vmatpush1.bf16.msra.mxu0 0
        %3961 = vmatprep.subr.bf16.mxu0 0
        %3962 = vmatpush1.bf16.msra.mxu0 0
        %3963 = vmatprep.subr.bf16.mxu0 0
        %3964 = vmatpush1.bf16.msra.mxu0 0
        %3965 = vmatprep.subr.bf16.mxu0 0
        %3966 = vmatpush1.bf16.msra.mxu0 0
        %3967 = vmatprep.mubr.bf16.mxu0 0
        %3968 = vmatmul.mubr.bf16.gmra.mrb[0].mxu0 %v3877
        %v3969 = vpop.f32.mrb[0].mxu0
        %v3970 = vadd.f32 0.0, %v3969
        %v3971 = vpop.f32.mrb[0].mxu0
        %v3972 = vadd.f32 0.0, %v3971
        %v3973 = vpop.f32.mrb[0].mxu0
        %v3974 = vpop.f32.mrb[0].mxu0
        %3975 = vdwg.mxu0
        %3976 = vrot.lane.b32.xlu0 %v3856, 82
        %v3977 = vpop.permute.xlu0 %3976
        %3978 = vrot.lane.b32.xlu0 %v3857, 82
        %v3979 = vpop.permute.xlu0 %3978
        %3980 = vrot.lane.b32.xlu0 %v3858, 82
        %v3981 = vpop.permute.xlu0 %3980
        %3982 = vrot.lane.b32.xlu0 %v3859, 82
        %v3983 = vpop.permute.xlu0 %3982
        %3984 = vrot.lane.b32.xlu0 %v3860, 82
        %v3985 = vpop.permute.xlu0 %3984
        %v3986 = vsel %vm571, %v3977, %v3979
        %v3987 = vsel %vm571, %v3979, %v3981
        %v3988 = vsel %vm571, %v3981, %v3983
        %v3989 = vsel %vm571, %v3983, %v3985
        %v3991 = vsel %vm3875, %v3845, 0
        %v3994 = vand.u32 %v3986, %v3881
        %v3997 = vand.u32 %v3987, %v3881
        %v4000 = vand.u32 %v3988, %v3881
        %v4003 = vand.u32 %v3989, %v3881
        %4005 = vmatprep.subr.bf16.mxu0 %v3997
        %4006 = vmatpush1.bf16.msra.mxu0 %v3994
        %4007 = vmatprep.subr.bf16.mxu0 0
        %4008 = vmatpush1.bf16.msra.mxu0 0
        %4009 = vmatprep.subr.bf16.mxu0 0
        %4010 = vmatpush1.bf16.msra.mxu0 0
        %4011 = vmatprep.subr.bf16.mxu0 0
        %4012 = vmatpush1.bf16.msra.mxu0 0
        %4013 = vmatprep.subr.bf16.mxu0 0
        %4014 = vmatpush1.bf16.msra.mxu0 0
        %4015 = vmatprep.subr.bf16.mxu0 0
        %4016 = vmatpush1.bf16.msra.mxu0 0
        %4017 = vmatprep.subr.bf16.mxu0 0
        %4018 = vmatpush1.bf16.msra.mxu0 0
        %4019 = vmatprep.subr.bf16.mxu0 0
        %4020 = vmatpush1.bf16.msra.mxu0 0
        %4021 = vmatprep.subr.bf16.mxu0 0
        %4022 = vmatpush1.bf16.msra.mxu0 0
        %4023 = vmatprep.subr.bf16.mxu0 0
        %4024 = vmatpush1.bf16.msra.mxu0 0
        %4025 = vmatprep.subr.bf16.mxu0 0
        %4026 = vmatpush1.bf16.msra.mxu0 0
        %4027 = vmatprep.subr.bf16.mxu0 0
        %4028 = vmatpush1.bf16.msra.mxu0 0
        %4029 = vmatprep.subr.bf16.mxu0 0
        %4030 = vmatpush1.bf16.msra.mxu0 0
        %4031 = vmatprep.subr.bf16.mxu0 0
        %4032 = vmatpush1.bf16.msra.mxu0 0
        %4033 = vmatprep.subr.bf16.mxu0 0
        %4034 = vmatpush1.bf16.msra.mxu0 0
        %4035 = vmatprep.subr.bf16.mxu0 0
        %4036 = vmatpush1.bf16.msra.mxu0 0
        %4037 = vmatprep.mubr.bf16.mxu0 0
        %4038 = vmatmul.mubr.bf16.gmra.mrb[0].mxu0 %v3991
        %v4039 = vpop.f32.mrb[0].mxu0
        %v4040 = vadd.f32 %v3929, %v4039
        %v4041 = vpop.f32.mrb[0].mxu0
        %v4042 = vadd.f32 %v3931, %v4041
        %v4043 = vpop.f32.mrb[0].mxu0
        %v4044 = vpop.f32.mrb[0].mxu0
        %4045 = vdwg.mxu0
        %4046 = vmatprep.subr.bf16.mxu0 %v4003
        %4047 = vmatpush1.bf16.msra.mxu0 %v4000
        %4048 = vmatprep.subr.bf16.mxu0 0
        %4049 = vmatpush1.bf16.msra.mxu0 0
        %4050 = vmatprep.subr.bf16.mxu0 0
        %4051 = vmatpush1.bf16.msra.mxu0 0
        %4052 = vmatprep.subr.bf16.mxu0 0
        %4053 = vmatpush1.bf16.msra.mxu0 0
        %4054 = vmatprep.subr.bf16.mxu0 0
        %4055 = vmatpush1.bf16.msra.mxu0 0
        %4056 = vmatprep.subr.bf16.mxu0 0
        %4057 = vmatpush1.bf16.msra.mxu0 0
        %4058 = vmatprep.subr.bf16.mxu0 0
        %4059 = vmatpush1.bf16.msra.mxu0 0
        %4060 = vmatprep.subr.bf16.mxu0 0
        %4061 = vmatpush1.bf16.msra.mxu0 0
        %4062 = vmatprep.subr.bf16.mxu0 0
        %4063 = vmatpush1.bf16.msra.mxu0 0
        %4064 = vmatprep.subr.bf16.mxu0 0
        %4065 = vmatpush1.bf16.msra.mxu0 0
        %4066 = vmatprep.subr.bf16.mxu0 0
        %4067 = vmatpush1.bf16.msra.mxu0 0
        %4068 = vmatprep.subr.bf16.mxu0 0
        %4069 = vmatpush1.bf16.msra.mxu0 0
        %4070 = vmatprep.subr.bf16.mxu0 0
        %4071 = vmatpush1.bf16.msra.mxu0 0
        %4072 = vmatprep.subr.bf16.mxu0 0
        %4073 = vmatpush1.bf16.msra.mxu0 0
        %4074 = vmatprep.subr.bf16.mxu0 0
        %4075 = vmatpush1.bf16.msra.mxu0 0
        %4076 = vmatprep.subr.bf16.mxu0 0
        %4077 = vmatpush1.bf16.msra.mxu0 0
        %4078 = vmatprep.mubr.bf16.mxu0 0
        %4079 = vmatmul.mubr.bf16.gmra.mrb[0].mxu0 %v3991
        %v4080 = vpop.f32.mrb[0].mxu0
        %v4081 = vadd.f32 %v3970, %v4080
        %v4082 = vpop.f32.mrb[0].mxu0
        %v4083 = vadd.f32 %v3972, %v4082
        %v4084 = vpop.f32.mrb[0].mxu0
        %v4085 = vpop.f32.mrb[0].mxu0
        %4086 = vdwg.mxu0
        %s4087 = scalar_lea.vmem %s5, 8
        %v4088 = vld [vmem:[%s4087] sm:$0xf]
        %4089 = vrot.lane.b32.xlu0 %v3856, 80
        %v4090 = vpop.permute.xlu0 %4089
        %4091 = vrot.lane.b32.xlu0 %v3857, 80
        %v4092 = vpop.permute.xlu0 %4091
        %4093 = vrot.lane.b32.xlu0 %v3858, 80
        %v4094 = vpop.permute.xlu0 %4093
        %4095 = vrot.lane.b32.xlu0 %v3859, 80
        %v4096 = vpop.permute.xlu0 %4095
        %4097 = vrot.lane.b32.xlu0 %v3860, 80
        %v4098 = vpop.permute.xlu0 %4097
        %v4099 = vsel %vm685, %v4090, %v4092
        %v4100 = vsel %vm685, %v4092, %v4094
        %v4101 = vsel %vm685, %v4094, %v4096
        %v4102 = vsel %vm685, %v4096, %v4098
        %v4104 = vsel %vm3875, %v4088, 0
        %v4107 = vand.u32 %v4099, %v3881
        %v4110 = vand.u32 %v4100, %v3881
        %v4113 = vand.u32 %v4101, %v3881
        %v4116 = vand.u32 %v4102, %v3881
        %4118 = vmatprep.subr.bf16.mxu0 %v4110
        %4119 = vmatpush1.bf16.msra.mxu0 %v4107
        %4120 = vmatprep.subr.bf16.mxu0 0
        %4121 = vmatpush1.bf16.msra.mxu0 0
        %4122 = vmatprep.subr.bf16.mxu0 0
        %4123 = vmatpush1.bf16.msra.mxu0 0
        %4124 = vmatprep.subr.bf16.mxu0 0
        %4125 = vmatpush1.bf16.msra.mxu0 0
        %4126 = vmatprep.subr.bf16.mxu0 0
        %4127 = vmatpush1.bf16.msra.mxu0 0
        %4128 = vmatprep.subr.bf16.mxu0 0
        %4129 = vmatpush1.bf16.msra.mxu0 0
        %4130 = vmatprep.subr.bf16.mxu0 0
        %4131 = vmatpush1.bf16.msra.mxu0 0
        %4132 = vmatprep.subr.bf16.mxu0 0
        %4133 = vmatpush1.bf16.msra.mxu0 0
        %4134 = vmatprep.subr.bf16.mxu0 0
        %4135 = vmatpush1.bf16.msra.mxu0 0
        %4136 = vmatprep.subr.bf16.mxu0 0
        %4137 = vmatpush1.bf16.msra.mxu0 0
        %4138 = vmatprep.subr.bf16.mxu0 0
        %4139 = vmatpush1.bf16.msra.mxu0 0
        %4140 = vmatprep.subr.bf16.mxu0 0
        %4141 = vmatpush1.bf16.msra.mxu0 0
        %4142 = vmatprep.subr.bf16.mxu0 0
        %4143 = vmatpush1.bf16.msra.mxu0 0
        %4144 = vmatprep.subr.bf16.mxu0 0
        %4145 = vmatpush1.bf16.msra.mxu0 0
        %4146 = vmatprep.subr.bf16.mxu0 0
        %4147 = vmatpush1.bf16.msra.mxu0 0
        %4148 = vmatprep.subr.bf16.mxu0 0
        %4149 = vmatpush1.bf16.msra.mxu0 0
        %4150 = vmatprep.mubr.bf16.mxu0 0
        %4151 = vmatmul.mubr.bf16.gmra.mrb[0].mxu0 %v4104
        %v4152 = vpop.f32.mrb[0].mxu0
        %v4153 = vadd.f32 0.0, %v4152
        %v4154 = vpop.f32.mrb[0].mxu0
        %v4155 = vadd.f32 0.0, %v4154
        %v4156 = vpop.f32.mrb[0].mxu0
        %v4157 = vpop.f32.mrb[0].mxu0
        %4158 = vdwg.mxu0
        %4159 = vmatprep.subr.bf16.mxu0 %v4116
        %4160 = vmatpush1.bf16.msra.mxu0 %v4113
        %4161 = vmatprep.subr.bf16.mxu0 0
        %4162 = vmatpush1.bf16.msra.mxu0 0
        %4163 = vmatprep.subr.bf16.mxu0 0
        %4164 = vmatpush1.bf16.msra.mxu0 0
        %4165 = vmatprep.subr.bf16.mxu0 0
        %4166 = vmatpush1.bf16.msra.mxu0 0
        %4167 = vmatprep.subr.bf16.mxu0 0
        %4168 = vmatpush1.bf16.msra.mxu0 0
        %4169 = vmatprep.subr.bf16.mxu0 0
        %4170 = vmatpush1.bf16.msra.mxu0 0
        %4171 = vmatprep.subr.bf16.mxu0 0
        %4172 = vmatpush1.bf16.msra.mxu0 0
        %4173 = vmatprep.subr.bf16.mxu0 0
        %4174 = vmatpush1.bf16.msra.mxu0 0
        %4175 = vmatprep.subr.bf16.mxu0 0
        %4176 = vmatpush1.bf16.msra.mxu0 0
        %4177 = vmatprep.subr.bf16.mxu0 0
        %4178 = vmatpush1.bf16.msra.mxu0 0
        %4179 = vmatprep.subr.bf16.mxu0 0
        %4180 = vmatpush1.bf16.msra.mxu0 0
        %4181 = vmatprep.subr.bf16.mxu0 0
        %4182 = vmatpush1.bf16.msra.mxu0 0
        %4183 = vmatprep.subr.bf16.mxu0 0
        %4184 = vmatpush1.bf16.msra.mxu0 0
        %4185 = vmatprep.subr.bf16.mxu0 0
        %4186 = vmatpush1.bf16.msra.mxu0 0
        %4187 = vmatprep.subr.bf16.mxu0 0
        %4188 = vmatpush1.bf16.msra.mxu0 0
        %4189 = vmatprep.subr.bf16.mxu0 0
        %4190 = vmatpush1.bf16.msra.mxu0 0
        %4191 = vmatprep.mubr.bf16.mxu0 0
        %4192 = vmatmul.mubr.bf16.gmra.mrb[0].mxu0 %v4104
        %v4193 = vpop.f32.mrb[0].mxu0
        %v4194 = vadd.f32 0.0, %v4193
        %v4195 = vpop.f32.mrb[0].mxu0
        %v4196 = vadd.f32 0.0, %v4195
        %v4197 = vpop.f32.mrb[0].mxu0
        %v4198 = vpop.f32.mrb[0].mxu0
        %4199 = vdwg.mxu0
        %v4200 = vadd.f32 %v4040, %v4153
        %v4201 = vadd.f32 %v4042, %v4155
        %v4202 = vadd.f32 %v4081, %v4194
        %v4203 = vadd.f32 %v4083, %v4196
        %s4204 = scalar_lea.vmem %s5, 12
        %v4205 = vld [vmem:[%s4204] sm:$0xf]
        %s4206 = scalar_lea.vmem %s5, 16
        %v4207 = vld [vmem:[%s4206] sm:$0xf]
        %4208 = vrot.lane.b32.xlu0 %v3856, 59
        %v4209 = vpop.permute.xlu0 %4208
        %4210 = vrot.lane.b32.xlu0 %v3857, 59
        %v4211 = vpop.permute.xlu0 %4210
        %4212 = vrot.lane.b32.xlu0 %v3858, 59
        %v4213 = vpop.permute.xlu0 %4212
        %4214 = vrot.lane.b32.xlu0 %v3859, 59
        %v4215 = vpop.permute.xlu0 %4214
        %4216 = vrot.lane.b32.xlu0 %v3860, 59
        %v4217 = vpop.permute.xlu0 %4216
        %v4218 = vsel %vm805, %v4209, %v4211
        %v4219 = vsel %vm805, %v4211, %v4213
        %v4220 = vsel %vm805, %v4213, %v4215
        %v4221 = vsel %vm805, %v4215, %v4217
        %v4223 = vsel %vm3875, %v4207, 0
        %v4226 = vand.u32 %v4218, %v3881
        %v4229 = vand.u32 %v4219, %v3881
        %v4232 = vand.u32 %v4220, %v3881
        %v4235 = vand.u32 %v4221, %v3881
        %4237 = vmatprep.subr.bf16.mxu0 %v4229
        %4238 = vmatpush1.bf16.msra.mxu0 %v4226
        %4239 = vmatprep.subr.bf16.mxu0 0
        %4240 = vmatpush1.bf16.msra.mxu0 0
        %4241 = vmatprep.subr.bf16.mxu0 0
        %4242 = vmatpush1.bf16.msra.mxu0 0
        %4243 = vmatprep.subr.bf16.mxu0 0
        %4244 = vmatpush1.bf16.msra.mxu0 0
        %4245 = vmatprep.subr.bf16.mxu0 0
        %4246 = vmatpush1.bf16.msra.mxu0 0
        %4247 = vmatprep.subr.bf16.mxu0 0
        %4248 = vmatpush1.bf16.msra.mxu0 0
        %4249 = vmatprep.subr.bf16.mxu0 0
        %4250 = vmatpush1.bf16.msra.mxu0 0
        %4251 = vmatprep.subr.bf16.mxu0 0
        %4252 = vmatpush1.bf16.msra.mxu0 0
        %4253 = vmatprep.subr.bf16.mxu0 0
        %4254 = vmatpush1.bf16.msra.mxu0 0
        %4255 = vmatprep.subr.bf16.mxu0 0
        %4256 = vmatpush1.bf16.msra.mxu0 0
        %4257 = vmatprep.subr.bf16.mxu0 0
        %4258 = vmatpush1.bf16.msra.mxu0 0
        %4259 = vmatprep.subr.bf16.mxu0 0
        %4260 = vmatpush1.bf16.msra.mxu0 0
        %4261 = vmatprep.subr.bf16.mxu0 0
        %4262 = vmatpush1.bf16.msra.mxu0 0
        %4263 = vmatprep.subr.bf16.mxu0 0
        %4264 = vmatpush1.bf16.msra.mxu0 0
        %4265 = vmatprep.subr.bf16.mxu0 0
        %4266 = vmatpush1.bf16.msra.mxu0 0
        %4267 = vmatprep.subr.bf16.mxu0 0
        %4268 = vmatpush1.bf16.msra.mxu0 0
        %4269 = vmatprep.mubr.bf16.mxu0 0
        %4270 = vmatmul.mubr.bf16.gmra.mrb[0].mxu0 %v4223
        %v4271 = vpop.f32.mrb[0].mxu0
        %v4272 = vadd.f32 0.0, %v4271
        %v4273 = vpop.f32.mrb[0].mxu0
        %v4274 = vadd.f32 0.0, %v4273
        %v4275 = vpop.f32.mrb[0].mxu0
        %v4276 = vpop.f32.mrb[0].mxu0
        %4277 = vdwg.mxu0
        %4278 = vmatprep.subr.bf16.mxu0 %v4235
        %4279 = vmatpush1.bf16.msra.mxu0 %v4232
        %4280 = vmatprep.subr.bf16.mxu0 0
        %4281 = vmatpush1.bf16.msra.mxu0 0
        %4282 = vmatprep.subr.bf16.mxu0 0
        %4283 = vmatpush1.bf16.msra.mxu0 0
        %4284 = vmatprep.subr.bf16.mxu0 0
        %4285 = vmatpush1.bf16.msra.mxu0 0
        %4286 = vmatprep.subr.bf16.mxu0 0
        %4287 = vmatpush1.bf16.msra.mxu0 0
        %4288 = vmatprep.subr.bf16.mxu0 0
        %4289 = vmatpush1.bf16.msra.mxu0 0
        %4290 = vmatprep.subr.bf16.mxu0 0
        %4291 = vmatpush1.bf16.msra.mxu0 0
        %4292 = vmatprep.subr.bf16.mxu0 0
        %4293 = vmatpush1.bf16.msra.mxu0 0
        %4294 = vmatprep.subr.bf16.mxu0 0
        %4295 = vmatpush1.bf16.msra.mxu0 0
        %4296 = vmatprep.subr.bf16.mxu0 0
        %4297 = vmatpush1.bf16.msra.mxu0 0
        %4298 = vmatprep.subr.bf16.mxu0 0
        %4299 = vmatpush1.bf16.msra.mxu0 0
        %4300 = vmatprep.subr.bf16.mxu0 0
        %4301 = vmatpush1.bf16.msra.mxu0 0
        %4302 = vmatprep.subr.bf16.mxu0 0
        %4303 = vmatpush1.bf16.msra.mxu0 0
        %4304 = vmatprep.subr.bf16.mxu0 0
        %4305 = vmatpush1.bf16.msra.mxu0 0
        %4306 = vmatprep.subr.bf16.mxu0 0
        %4307 = vmatpush1.bf16.msra.mxu0 0
        %4308 = vmatprep.subr.bf16.mxu0 0
        %4309 = vmatpush1.bf16.msra.mxu0 0
        %4310 = vmatprep.mubr.bf16.mxu0 0
        %4311 = vmatmul.mubr.bf16.gmra.mrb[0].mxu0 %v4223
        %v4312 = vpop.f32.mrb[0].mxu0
        %v4313 = vadd.f32 0.0, %v4312
        %v4314 = vpop.f32.mrb[0].mxu0
        %v4315 = vadd.f32 0.0, %v4314
        %v4316 = vpop.f32.mrb[0].mxu0
        %v4317 = vpop.f32.mrb[0].mxu0
        %4318 = vdwg.mxu0
        %4319 = vrot.lane.b32.xlu0 %v3856, 60
        %v4320 = vpop.permute.xlu0 %4319
        %4321 = vrot.lane.b32.xlu0 %v3857, 60
        %v4322 = vpop.permute.xlu0 %4321
        %4323 = vrot.lane.b32.xlu0 %v3858, 60
        %v4324 = vpop.permute.xlu0 %4323
        %4325 = vrot.lane.b32.xlu0 %v3859, 60
        %v4326 = vpop.permute.xlu0 %4325
        %4327 = vrot.lane.b32.xlu0 %v3860, 60
        %v4328 = vpop.permute.xlu0 %4327
        %v4329 = vsel %vm917, %v4320, %v4322
        %v4330 = vsel %vm917, %v4322, %v4324
        %v4331 = vsel %vm917, %v4324, %v4326
        %v4332 = vsel %vm917, %v4326, %v4328
        %v4334 = vsel %vm3875, %v4205, 0
        %v4337 = vand.u32 %v4329, %v3881
        %v4340 = vand.u32 %v4330, %v3881
        %v4343 = vand.u32 %v4331, %v3881
        %v4346 = vand.u32 %v4332, %v3881
        %4348 = vmatprep.subr.bf16.mxu0 %v4340
        %4349 = vmatpush1.bf16.msra.mxu0 %v4337
        %4350 = vmatprep.subr.bf16.mxu0 0
        %4351 = vmatpush1.bf16.msra.mxu0 0
        %4352 = vmatprep.subr.bf16.mxu0 0
        %4353 = vmatpush1.bf16.msra.mxu0 0
        %4354 = vmatprep.subr.bf16.mxu0 0
        %4355 = vmatpush1.bf16.msra.mxu0 0
        %4356 = vmatprep.subr.bf16.mxu0 0
        %4357 = vmatpush1.bf16.msra.mxu0 0
        %4358 = vmatprep.subr.bf16.mxu0 0
        %4359 = vmatpush1.bf16.msra.mxu0 0
        %4360 = vmatprep.subr.bf16.mxu0 0
        %4361 = vmatpush1.bf16.msra.mxu0 0
        %4362 = vmatprep.subr.bf16.mxu0 0
        %4363 = vmatpush1.bf16.msra.mxu0 0
        %4364 = vmatprep.subr.bf16.mxu0 0
        %4365 = vmatpush1.bf16.msra.mxu0 0
        %4366 = vmatprep.subr.bf16.mxu0 0
        %4367 = vmatpush1.bf16.msra.mxu0 0
        %4368 = vmatprep.subr.bf16.mxu0 0
        %4369 = vmatpush1.bf16.msra.mxu0 0
        %4370 = vmatprep.subr.bf16.mxu0 0
        %4371 = vmatpush1.bf16.msra.mxu0 0
        %4372 = vmatprep.subr.bf16.mxu0 0
        %4373 = vmatpush1.bf16.msra.mxu0 0
        %4374 = vmatprep.subr.bf16.mxu0 0
        %4375 = vmatpush1.bf16.msra.mxu0 0
        %4376 = vmatprep.subr.bf16.mxu0 0
        %4377 = vmatpush1.bf16.msra.mxu0 0
        %4378 = vmatprep.subr.bf16.mxu0 0
        %4379 = vmatpush1.bf16.msra.mxu0 0
        %4380 = vmatprep.mubr.bf16.mxu0 0
        %4381 = vmatmul.mubr.bf16.gmra.mrb[0].mxu0 %v4334
        %v4382 = vpop.f32.mrb[0].mxu0
        %v4383 = vadd.f32 %v4272, %v4382
        %v4384 = vpop.f32.mrb[0].mxu0
        %v4385 = vadd.f32 %v4274, %v4384
        %v4386 = vpop.f32.mrb[0].mxu0
        %v4387 = vpop.f32.mrb[0].mxu0
        %4388 = vdwg.mxu0
        %4389 = vmatprep.subr.bf16.mxu0 %v4346
        %4390 = vmatpush1.bf16.msra.mxu0 %v4343
        %4391 = vmatprep.subr.bf16.mxu0 0
        %4392 = vmatpush1.bf16.msra.mxu0 0
        %4393 = vmatprep.subr.bf16.mxu0 0
        %4394 = vmatpush1.bf16.msra.mxu0 0
        %4395 = vmatprep.subr.bf16.mxu0 0
        %4396 = vmatpush1.bf16.msra.mxu0 0
        %4397 = vmatprep.subr.bf16.mxu0 0
        %4398 = vmatpush1.bf16.msra.mxu0 0
        %4399 = vmatprep.subr.bf16.mxu0 0
        %4400 = vmatpush1.bf16.msra.mxu0 0
        %4401 = vmatprep.subr.bf16.mxu0 0
        %4402 = vmatpush1.bf16.msra.mxu0 0
        %4403 = vmatprep.subr.bf16.mxu0 0
        %4404 = vmatpush1.bf16.msra.mxu0 0
        %4405 = vmatprep.subr.bf16.mxu0 0
        %4406 = vmatpush1.bf16.msra.mxu0 0
        %4407 = vmatprep.subr.bf16.mxu0 0
        %4408 = vmatpush1.bf16.msra.mxu0 0
        %4409 = vmatprep.subr.bf16.mxu0 0
        %4410 = vmatpush1.bf16.msra.mxu0 0
        %4411 = vmatprep.subr.bf16.mxu0 0
        %4412 = vmatpush1.bf16.msra.mxu0 0
        %4413 = vmatprep.subr.bf16.mxu0 0
        %4414 = vmatpush1.bf16.msra.mxu0 0
        %4415 = vmatprep.subr.bf16.mxu0 0
        %4416 = vmatpush1.bf16.msra.mxu0 0
        %4417 = vmatprep.subr.bf16.mxu0 0
        %4418 = vmatpush1.bf16.msra.mxu0 0
        %4419 = vmatprep.subr.bf16.mxu0 0
        %4420 = vmatpush1.bf16.msra.mxu0 0
        %4421 = vmatprep.mubr.bf16.mxu0 0
        %4422 = vmatmul.mubr.bf16.gmra.mrb[0].mxu0 %v4334
        %v4423 = vpop.f32.mrb[0].mxu0
        %v4424 = vadd.f32 %v4313, %v4423
        %v4425 = vpop.f32.mrb[0].mxu0
        %v4426 = vadd.f32 %v4315, %v4425
        %v4427 = vpop.f32.mrb[0].mxu0
        %v4428 = vpop.f32.mrb[0].mxu0
        %4429 = vdwg.mxu0
        %s4430 = scalar_lea.vmem %s5, 20
        %v4431 = vld [vmem:[%s4430] sm:$0xf]
        %4432 = vrot.lane.b32.xlu0 %v3856, 58
        %v4433 = vpop.permute.xlu0 %4432
        %4434 = vrot.lane.b32.xlu0 %v3857, 58
        %v4435 = vpop.permute.xlu0 %4434
        %4436 = vrot.lane.b32.xlu0 %v3858, 58
        %v4437 = vpop.permute.xlu0 %4436
        %4438 = vrot.lane.b32.xlu0 %v3859, 58
        %v4439 = vpop.permute.xlu0 %4438
        %4440 = vrot.lane.b32.xlu0 %v3860, 58
        %v4441 = vpop.permute.xlu0 %4440
        %v4442 = vsel %vm1031, %v4433, %v4435
        %v4443 = vsel %vm1031, %v4435, %v4437
        %v4444 = vsel %vm1031, %v4437, %v4439
        %v4445 = vsel %vm1031, %v4439, %v4441
        %v4447 = vsel %vm3875, %v4431, 0
        %v4450 = vand.u32 %v4442, %v3881
        %v4453 = vand.u32 %v4443, %v3881
        %v4456 = vand.u32 %v4444, %v3881
        %v4459 = vand.u32 %v4445, %v3881
        %4461 = vmatprep.subr.bf16.mxu0 %v4453
        %4462 = vmatpush1.bf16.msra.mxu0 %v4450
        %4463 = vmatprep.subr.bf16.mxu0 0
        %4464 = vmatpush1.bf16.msra.mxu0 0
        %4465 = vmatprep.subr.bf16.mxu0 0
        %4466 = vmatpush1.bf16.msra.mxu0 0
        %4467 = vmatprep.subr.bf16.mxu0 0
        %4468 = vmatpush1.bf16.msra.mxu0 0
        %4469 = vmatprep.subr.bf16.mxu0 0
        %4470 = vmatpush1.bf16.msra.mxu0 0
        %4471 = vmatprep.subr.bf16.mxu0 0
        %4472 = vmatpush1.bf16.msra.mxu0 0
        %4473 = vmatprep.subr.bf16.mxu0 0
        %4474 = vmatpush1.bf16.msra.mxu0 0
        %4475 = vmatprep.subr.bf16.mxu0 0
        %4476 = vmatpush1.bf16.msra.mxu0 0
        %4477 = vmatprep.subr.bf16.mxu0 0
        %4478 = vmatpush1.bf16.msra.mxu0 0
        %4479 = vmatprep.subr.bf16.mxu0 0
        %4480 = vmatpush1.bf16.msra.mxu0 0
        %4481 = vmatprep.subr.bf16.mxu0 0
        %4482 = vmatpush1.bf16.msra.mxu0 0
        %4483 = vmatprep.subr.bf16.mxu0 0
        %4484 = vmatpush1.bf16.msra.mxu0 0
        %4485 = vmatprep.subr.bf16.mxu0 0
        %4486 = vmatpush1.bf16.msra.mxu0 0
        %4487 = vmatprep.subr.bf16.mxu0 0
        %4488 = vmatpush1.bf16.msra.mxu0 0
        %4489 = vmatprep.subr.bf16.mxu0 0
        %4490 = vmatpush1.bf16.msra.mxu0 0
        %4491 = vmatprep.subr.bf16.mxu0 0
        %4492 = vmatpush1.bf16.msra.mxu0 0
        %4493 = vmatprep.mubr.bf16.mxu0 0
        %4494 = vmatmul.mubr.bf16.gmra.mrb[0].mxu0 %v4447
        %v4495 = vpop.f32.mrb[0].mxu0
        %v4496 = vadd.f32 0.0, %v4495
        %v4497 = vpop.f32.mrb[0].mxu0
        %v4498 = vadd.f32 0.0, %v4497
        %v4499 = vpop.f32.mrb[0].mxu0
        %v4500 = vpop.f32.mrb[0].mxu0
        %4501 = vdwg.mxu0
        %4502 = vmatprep.subr.bf16.mxu0 %v4459
        %4503 = vmatpush1.bf16.msra.mxu0 %v4456
        %4504 = vmatprep.subr.bf16.mxu0 0
        %4505 = vmatpush1.bf16.msra.mxu0 0
        %4506 = vmatprep.subr.bf16.mxu0 0
        %4507 = vmatpush1.bf16.msra.mxu0 0
        %4508 = vmatprep.subr.bf16.mxu0 0
        %4509 = vmatpush1.bf16.msra.mxu0 0
        %4510 = vmatprep.subr.bf16.mxu0 0
        %4511 = vmatpush1.bf16.msra.mxu0 0
        %4512 = vmatprep.subr.bf16.mxu0 0
        %4513 = vmatpush1.bf16.msra.mxu0 0
        %4514 = vmatprep.subr.bf16.mxu0 0
        %4515 = vmatpush1.bf16.msra.mxu0 0
        %4516 = vmatprep.subr.bf16.mxu0 0
        %4517 = vmatpush1.bf16.msra.mxu0 0
        %4518 = vmatprep.subr.bf16.mxu0 0
        %4519 = vmatpush1.bf16.msra.mxu0 0
        %4520 = vmatprep.subr.bf16.mxu0 0
        %4521 = vmatpush1.bf16.msra.mxu0 0
        %4522 = vmatprep.subr.bf16.mxu0 0
        %4523 = vmatpush1.bf16.msra.mxu0 0
        %4524 = vmatprep.subr.bf16.mxu0 0
        %4525 = vmatpush1.bf16.msra.mxu0 0
        %4526 = vmatprep.subr.bf16.mxu0 0
        %4527 = vmatpush1.bf16.msra.mxu0 0
        %4528 = vmatprep.subr.bf16.mxu0 0
        %4529 = vmatpush1.bf16.msra.mxu0 0
        %4530 = vmatprep.subr.bf16.mxu0 0
        %4531 = vmatpush1.bf16.msra.mxu0 0
        %4532 = vmatprep.subr.bf16.mxu0 0
        %4533 = vmatpush1.bf16.msra.mxu0 0
        %4534 = vmatprep.mubr.bf16.mxu0 0
        %4535 = vmatmul.mubr.bf16.gmra.mrb[0].mxu0 %v4447
        %v4536 = vpop.f32.mrb[0].mxu0
        %v4537 = vadd.f32 0.0, %v4536
        %v4538 = vpop.f32.mrb[0].mxu0
        %v4539 = vadd.f32 0.0, %v4538
        %v4540 = vpop.f32.mrb[0].mxu0
        %v4541 = vpop.f32.mrb[0].mxu0
        %4542 = vdwg.mxu0
        %v4543 = vadd.f32 %v4383, %v4496
        %v4544 = vadd.f32 %v4385, %v4498
        %v4545 = vadd.f32 %v4424, %v4537
        %v4546 = vadd.f32 %v4426, %v4539
        %v4547 = vadd.f32 %v4200, %v4543
        %v4548 = vadd.f32 %v4201, %v4544
        %v4549 = vadd.f32 %v4202, %v4545
        %v4550 = vadd.f32 %v4203, %v4546
        %s4551 = scalar_lea.vmem %s5, 24
        %v4552 = vld [vmem:[%s4551] sm:$0xf]
        %s4553 = scalar_lea.vmem %s5, 28
        %v4554 = vld [vmem:[%s4553] sm:$0xf]
        %4555 = vrot.lane.b32.xlu0 %v3856, 37
        %v4556 = vpop.permute.xlu0 %4555
        %4557 = vrot.lane.b32.xlu0 %v3857, 37
        %v4558 = vpop.permute.xlu0 %4557
        %4559 = vrot.lane.b32.xlu0 %v3858, 37
        %v4560 = vpop.permute.xlu0 %4559
        %4561 = vrot.lane.b32.xlu0 %v3859, 37
        %v4562 = vpop.permute.xlu0 %4561
        %4563 = vrot.lane.b32.xlu0 %v3860, 37
        %v4564 = vpop.permute.xlu0 %4563
        %v4565 = vsel %vm1155, %v4556, %v4558
        %v4566 = vsel %vm1155, %v4558, %v4560
        %v4567 = vsel %vm1155, %v4560, %v4562
        %v4568 = vsel %vm1155, %v4562, %v4564
        %v4570 = vsel %vm3875, %v4554, 0
        %v4573 = vand.u32 %v4565, %v3881
        %v4576 = vand.u32 %v4566, %v3881
        %v4579 = vand.u32 %v4567, %v3881
        %v4582 = vand.u32 %v4568, %v3881
        %4584 = vmatprep.subr.bf16.mxu0 %v4576
        %4585 = vmatpush1.bf16.msra.mxu0 %v4573
        %4586 = vmatprep.subr.bf16.mxu0 0
        %4587 = vmatpush1.bf16.msra.mxu0 0
        %4588 = vmatprep.subr.bf16.mxu0 0
        %4589 = vmatpush1.bf16.msra.mxu0 0
        %4590 = vmatprep.subr.bf16.mxu0 0
        %4591 = vmatpush1.bf16.msra.mxu0 0
        %4592 = vmatprep.subr.bf16.mxu0 0
        %4593 = vmatpush1.bf16.msra.mxu0 0
        %4594 = vmatprep.subr.bf16.mxu0 0
        %4595 = vmatpush1.bf16.msra.mxu0 0
        %4596 = vmatprep.subr.bf16.mxu0 0
        %4597 = vmatpush1.bf16.msra.mxu0 0
        %4598 = vmatprep.subr.bf16.mxu0 0
        %4599 = vmatpush1.bf16.msra.mxu0 0
        %4600 = vmatprep.subr.bf16.mxu0 0
        %4601 = vmatpush1.bf16.msra.mxu0 0
        %4602 = vmatprep.subr.bf16.mxu0 0
        %4603 = vmatpush1.bf16.msra.mxu0 0
        %4604 = vmatprep.subr.bf16.mxu0 0
        %4605 = vmatpush1.bf16.msra.mxu0 0
        %4606 = vmatprep.subr.bf16.mxu0 0
        %4607 = vmatpush1.bf16.msra.mxu0 0
        %4608 = vmatprep.subr.bf16.mxu0 0
        %4609 = vmatpush1.bf16.msra.mxu0 0
        %4610 = vmatprep.subr.bf16.mxu0 0
        %4611 = vmatpush1.bf16.msra.mxu0 0
        %4612 = vmatprep.subr.bf16.mxu0 0
        %4613 = vmatpush1.bf16.msra.mxu0 0
        %4614 = vmatprep.subr.bf16.mxu0 0
        %4615 = vmatpush1.bf16.msra.mxu0 0
        %4616 = vmatprep.mubr.bf16.mxu0 0
        %4617 = vmatmul.mubr.bf16.gmra.mrb[0].mxu0 %v4570
        %v4618 = vpop.f32.mrb[0].mxu0
        %v4619 = vadd.f32 0.0, %v4618
        %v4620 = vpop.f32.mrb[0].mxu0
        %v4621 = vadd.f32 0.0, %v4620
        %v4622 = vpop.f32.mrb[0].mxu0
        %v4623 = vpop.f32.mrb[0].mxu0
        %4624 = vdwg.mxu0
        %4625 = vmatprep.subr.bf16.mxu0 %v4582
        %4626 = vmatpush1.bf16.msra.mxu0 %v4579
        %4627 = vmatprep.subr.bf16.mxu0 0
        %4628 = vmatpush1.bf16.msra.mxu0 0
        %4629 = vmatprep.subr.bf16.mxu0 0
        %4630 = vmatpush1.bf16.msra.mxu0 0
        %4631 = vmatprep.subr.bf16.mxu0 0
        %4632 = vmatpush1.bf16.msra.mxu0 0
        %4633 = vmatprep.subr.bf16.mxu0 0
        %4634 = vmatpush1.bf16.msra.mxu0 0
        %4635 = vmatprep.subr.bf16.mxu0 0
        %4636 = vmatpush1.bf16.msra.mxu0 0
        %4637 = vmatprep.subr.bf16.mxu0 0
        %4638 = vmatpush1.bf16.msra.mxu0 0
        %4639 = vmatprep.subr.bf16.mxu0 0
        %4640 = vmatpush1.bf16.msra.mxu0 0
        %4641 = vmatprep.subr.bf16.mxu0 0
        %4642 = vmatpush1.bf16.msra.mxu0 0
        %4643 = vmatprep.subr.bf16.mxu0 0
        %4644 = vmatpush1.bf16.msra.mxu0 0
        %4645 = vmatprep.subr.bf16.mxu0 0
        %4646 = vmatpush1.bf16.msra.mxu0 0
        %4647 = vmatprep.subr.bf16.mxu0 0
        %4648 = vmatpush1.bf16.msra.mxu0 0
        %4649 = vmatprep.subr.bf16.mxu0 0
        %4650 = vmatpush1.bf16.msra.mxu0 0
        %4651 = vmatprep.subr.bf16.mxu0 0
        %4652 = vmatpush1.bf16.msra.mxu0 0
        %4653 = vmatprep.subr.bf16.mxu0 0
        %4654 = vmatpush1.bf16.msra.mxu0 0
        %4655 = vmatprep.subr.bf16.mxu0 0
        %4656 = vmatpush1.bf16.msra.mxu0 0
        %4657 = vmatprep.mubr.bf16.mxu0 0
        %4658 = vmatmul.mubr.bf16.gmra.mrb[0].mxu0 %v4570
        %v4659 = vpop.f32.mrb[0].mxu0
        %v4660 = vadd.f32 0.0, %v4659
        %v4661 = vpop.f32.mrb[0].mxu0
        %v4662 = vadd.f32 0.0, %v4661
        %v4663 = vpop.f32.mrb[0].mxu0
        %v4664 = vpop.f32.mrb[0].mxu0
        %4665 = vdwg.mxu0
        %4666 = vrot.lane.b32.xlu0 %v3856, 38
        %v4667 = vpop.permute.xlu0 %4666
        %4668 = vrot.lane.b32.xlu0 %v3857, 38
        %v4669 = vpop.permute.xlu0 %4668
        %4670 = vrot.lane.b32.xlu0 %v3858, 38
        %v4671 = vpop.permute.xlu0 %4670
        %4672 = vrot.lane.b32.xlu0 %v3859, 38
        %v4673 = vpop.permute.xlu0 %4672
        %4674 = vrot.lane.b32.xlu0 %v3860, 38
        %v4675 = vpop.permute.xlu0 %4674
        %v4676 = vsel %vm1267, %v4667, %v4669
        %v4677 = vsel %vm1267, %v4669, %v4671
        %v4678 = vsel %vm1267, %v4671, %v4673
        %v4679 = vsel %vm1267, %v4673, %v4675
        %v4681 = vsel %vm3875, %v4552, 0
        %v4684 = vand.u32 %v4676, %v3881
        %v4687 = vand.u32 %v4677, %v3881
        %v4690 = vand.u32 %v4678, %v3881
        %v4693 = vand.u32 %v4679, %v3881
        %4695 = vmatprep.subr.bf16.mxu0 %v4687
        %4696 = vmatpush1.bf16.msra.mxu0 %v4684
        %4697 = vmatprep.subr.bf16.mxu0 0
        %4698 = vmatpush1.bf16.msra.mxu0 0
        %4699 = vmatprep.subr.bf16.mxu0 0
        %4700 = vmatpush1.bf16.msra.mxu0 0
        %4701 = vmatprep.subr.bf16.mxu0 0
        %4702 = vmatpush1.bf16.msra.mxu0 0
        %4703 = vmatprep.subr.bf16.mxu0 0
        %4704 = vmatpush1.bf16.msra.mxu0 0
        %4705 = vmatprep.subr.bf16.mxu0 0
        %4706 = vmatpush1.bf16.msra.mxu0 0
        %4707 = vmatprep.subr.bf16.mxu0 0
        %4708 = vmatpush1.bf16.msra.mxu0 0
        %4709 = vmatprep.subr.bf16.mxu0 0
        %4710 = vmatpush1.bf16.msra.mxu0 0
        %4711 = vmatprep.subr.bf16.mxu0 0
        %4712 = vmatpush1.bf16.msra.mxu0 0
        %4713 = vmatprep.subr.bf16.mxu0 0
        %4714 = vmatpush1.bf16.msra.mxu0 0
        %4715 = vmatprep.subr.bf16.mxu0 0
        %4716 = vmatpush1.bf16.msra.mxu0 0
        %4717 = vmatprep.subr.bf16.mxu0 0
        %4718 = vmatpush1.bf16.msra.mxu0 0
        %4719 = vmatprep.subr.bf16.mxu0 0
        %4720 = vmatpush1.bf16.msra.mxu0 0
        %4721 = vmatprep.subr.bf16.mxu0 0
        %4722 = vmatpush1.bf16.msra.mxu0 0
        %4723 = vmatprep.subr.bf16.mxu0 0
        %4724 = vmatpush1.bf16.msra.mxu0 0
        %4725 = vmatprep.subr.bf16.mxu0 0
        %4726 = vmatpush1.bf16.msra.mxu0 0
        %4727 = vmatprep.mubr.bf16.mxu0 0
        %4728 = vmatmul.mubr.bf16.gmra.mrb[0].mxu0 %v4681
        %v4729 = vpop.f32.mrb[0].mxu0
        %v4730 = vadd.f32 %v4619, %v4729
        %v4731 = vpop.f32.mrb[0].mxu0
        %v4732 = vadd.f32 %v4621, %v4731
        %v4733 = vpop.f32.mrb[0].mxu0
        %v4734 = vpop.f32.mrb[0].mxu0
        %4735 = vdwg.mxu0
        %4736 = vmatprep.subr.bf16.mxu0 %v4693
        %4737 = vmatpush1.bf16.msra.mxu0 %v4690
        %4738 = vmatprep.subr.bf16.mxu0 0
        %4739 = vmatpush1.bf16.msra.mxu0 0
        %4740 = vmatprep.subr.bf16.mxu0 0
        %4741 = vmatpush1.bf16.msra.mxu0 0
        %4742 = vmatprep.subr.bf16.mxu0 0
        %4743 = vmatpush1.bf16.msra.mxu0 0
        %4744 = vmatprep.subr.bf16.mxu0 0
        %4745 = vmatpush1.bf16.msra.mxu0 0
        %4746 = vmatprep.subr.bf16.mxu0 0
        %4747 = vmatpush1.bf16.msra.mxu0 0
        %4748 = vmatprep.subr.bf16.mxu0 0
        %4749 = vmatpush1.bf16.msra.mxu0 0
        %4750 = vmatprep.subr.bf16.mxu0 0
        %4751 = vmatpush1.bf16.msra.mxu0 0
        %4752 = vmatprep.subr.bf16.mxu0 0
        %4753 = vmatpush1.bf16.msra.mxu0 0
        %4754 = vmatprep.subr.bf16.mxu0 0
        %4755 = vmatpush1.bf16.msra.mxu0 0
        %4756 = vmatprep.subr.bf16.mxu0 0
        %4757 = vmatpush1.bf16.msra.mxu0 0
        %4758 = vmatprep.subr.bf16.mxu0 0
        %4759 = vmatpush1.bf16.msra.mxu0 0
        %4760 = vmatprep.subr.bf16.mxu0 0
        %4761 = vmatpush1.bf16.msra.mxu0 0
        %4762 = vmatprep.subr.bf16.mxu0 0
        %4763 = vmatpush1.bf16.msra.mxu0 0
        %4764 = vmatprep.subr.bf16.mxu0 0
        %4765 = vmatpush1.bf16.msra.mxu0 0
        %4766 = vmatprep.subr.bf16.mxu0 0
        %4767 = vmatpush1.bf16.msra.mxu0 0
        %4768 = vmatprep.mubr.bf16.mxu0 0
        %4769 = vmatmul.mubr.bf16.gmra.mrb[0].mxu0 %v4681
        %v4770 = vpop.f32.mrb[0].mxu0
        %v4771 = vadd.f32 %v4660, %v4770
        %v4772 = vpop.f32.mrb[0].mxu0
        %v4773 = vadd.f32 %v4662, %v4772
        %v4774 = vpop.f32.mrb[0].mxu0
        %v4775 = vpop.f32.mrb[0].mxu0
        %4776 = vdwg.mxu0
        %s4777 = scalar_lea.vmem %s5, 32
        %v4778 = vld [vmem:[%s4777] sm:$0xf]
        %4779 = vrot.lane.b32.xlu0 %v3856, 36
        %v4780 = vpop.permute.xlu0 %4779
        %4781 = vrot.lane.b32.xlu0 %v3857, 36
        %v4782 = vpop.permute.xlu0 %4781
        %4783 = vrot.lane.b32.xlu0 %v3858, 36
        %v4784 = vpop.permute.xlu0 %4783
        %4785 = vrot.lane.b32.xlu0 %v3859, 36
        %v4786 = vpop.permute.xlu0 %4785
        %4787 = vrot.lane.b32.xlu0 %v3860, 36
        %v4788 = vpop.permute.xlu0 %4787
        %v4789 = vsel %vm1381, %v4780, %v4782
        %v4790 = vsel %vm1381, %v4782, %v4784
        %v4791 = vsel %vm1381, %v4784, %v4786
        %v4792 = vsel %vm1381, %v4786, %v4788
        %v4794 = vsel %vm3875, %v4778, 0
        %v4797 = vand.u32 %v4789, %v3881
        %v4800 = vand.u32 %v4790, %v3881
        %v4803 = vand.u32 %v4791, %v3881
        %v4806 = vand.u32 %v4792, %v3881
        %4808 = vmatprep.subr.bf16.mxu0 %v4800
        %4809 = vmatpush1.bf16.msra.mxu0 %v4797
        %4810 = vmatprep.subr.bf16.mxu0 0
        %4811 = vmatpush1.bf16.msra.mxu0 0
        %4812 = vmatprep.subr.bf16.mxu0 0
        %4813 = vmatpush1.bf16.msra.mxu0 0
        %4814 = vmatprep.subr.bf16.mxu0 0
        %4815 = vmatpush1.bf16.msra.mxu0 0
        %4816 = vmatprep.subr.bf16.mxu0 0
        %4817 = vmatpush1.bf16.msra.mxu0 0
        %4818 = vmatprep.subr.bf16.mxu0 0
        %4819 = vmatpush1.bf16.msra.mxu0 0
        %4820 = vmatprep.subr.bf16.mxu0 0
        %4821 = vmatpush1.bf16.msra.mxu0 0
        %4822 = vmatprep.subr.bf16.mxu0 0
        %4823 = vmatpush1.bf16.msra.mxu0 0
        %4824 = vmatprep.subr.bf16.mxu0 0
        %4825 = vmatpush1.bf16.msra.mxu0 0
        %4826 = vmatprep.subr.bf16.mxu0 0
        %4827 = vmatpush1.bf16.msra.mxu0 0
        %4828 = vmatprep.subr.bf16.mxu0 0
        %4829 = vmatpush1.bf16.msra.mxu0 0
        %4830 = vmatprep.subr.bf16.mxu0 0
        %4831 = vmatpush1.bf16.msra.mxu0 0
        %4832 = vmatprep.subr.bf16.mxu0 0
        %4833 = vmatpush1.bf16.msra.mxu0 0
        %4834 = vmatprep.subr.bf16.mxu0 0
        %4835 = vmatpush1.bf16.msra.mxu0 0
        %4836 = vmatprep.subr.bf16.mxu0 0
        %4837 = vmatpush1.bf16.msra.mxu0 0
        %4838 = vmatprep.subr.bf16.mxu0 0
        %4839 = vmatpush1.bf16.msra.mxu0 0
        %4840 = vmatprep.mubr.bf16.mxu0 0
        %4841 = vmatmul.mubr.bf16.gmra.mrb[0].mxu0 %v4794
        %v4842 = vpop.f32.mrb[0].mxu0
        %v4843 = vadd.f32 0.0, %v4842
        %v4844 = vpop.f32.mrb[0].mxu0
        %v4845 = vadd.f32 0.0, %v4844
        %v4846 = vpop.f32.mrb[0].mxu0
        %v4847 = vpop.f32.mrb[0].mxu0
        %4848 = vdwg.mxu0
        %4849 = vmatprep.subr.bf16.mxu0 %v4806
        %4850 = vmatpush1.bf16.msra.mxu0 %v4803
        %4851 = vmatprep.subr.bf16.mxu0 0
        %4852 = vmatpush1.bf16.msra.mxu0 0
        %4853 = vmatprep.subr.bf16.mxu0 0
        %4854 = vmatpush1.bf16.msra.mxu0 0
        %4855 = vmatprep.subr.bf16.mxu0 0
        %4856 = vmatpush1.bf16.msra.mxu0 0
        %4857 = vmatprep.subr.bf16.mxu0 0
        %4858 = vmatpush1.bf16.msra.mxu0 0
        %4859 = vmatprep.subr.bf16.mxu0 0
        %4860 = vmatpush1.bf16.msra.mxu0 0
        %4861 = vmatprep.subr.bf16.mxu0 0
        %4862 = vmatpush1.bf16.msra.mxu0 0
        %4863 = vmatprep.subr.bf16.mxu0 0
        %4864 = vmatpush1.bf16.msra.mxu0 0
        %4865 = vmatprep.subr.bf16.mxu0 0
        %4866 = vmatpush1.bf16.msra.mxu0 0
        %4867 = vmatprep.subr.bf16.mxu0 0
        %4868 = vmatpush1.bf16.msra.mxu0 0
        %4869 = vmatprep.subr.bf16.mxu0 0
        %4870 = vmatpush1.bf16.msra.mxu0 0
        %4871 = vmatprep.subr.bf16.mxu0 0
        %4872 = vmatpush1.bf16.msra.mxu0 0
        %4873 = vmatprep.subr.bf16.mxu0 0
        %4874 = vmatpush1.bf16.msra.mxu0 0
        %4875 = vmatprep.subr.bf16.mxu0 0
        %4876 = vmatpush1.bf16.msra.mxu0 0
        %4877 = vmatprep.subr.bf16.mxu0 0
        %4878 = vmatpush1.bf16.msra.mxu0 0
        %4879 = vmatprep.subr.bf16.mxu0 0
        %4880 = vmatpush1.bf16.msra.mxu0 0
        %4881 = vmatprep.mubr.bf16.mxu0 0
        %4882 = vmatmul.mubr.bf16.gmra.mrb[0].mxu0 %v4794
        %v4883 = vpop.f32.mrb[0].mxu0
        %v4884 = vadd.f32 0.0, %v4883
        %v4885 = vpop.f32.mrb[0].mxu0
        %v4886 = vadd.f32 0.0, %v4885
        %v4887 = vpop.f32.mrb[0].mxu0
        %v4888 = vpop.f32.mrb[0].mxu0
        %4889 = vdwg.mxu0
        %v4890 = vadd.f32 %v4730, %v4843
        %v4891 = vadd.f32 %v4732, %v4845
        %v4892 = vadd.f32 %v4771, %v4884
        %v4893 = vadd.f32 %v4773, %v4886
        %v4894 = vadd.f32 %v4547, %v4890
        %v4895 = vadd.f32 %v4548, %v4891
        %v4896 = vadd.f32 %v4549, %v4892
        %v4897 = vadd.f32 %v4550, %v4893
        %4899 = vset.pattern.permute.xlu0 0
        %4900 = vperm.xlu0 %4899, %v3841
        %v4901 = vpop.permute.xlu0 %4900
        %v4903 = vadd.f32 %v4894, %v4901
        %v4904 = vadd.f32 %v4895, %v4901
        %v4905 = vadd.f32 %v4896, %v4901
        %v4906 = vadd.f32 %v4897, %v4901
        %v4907 = vmax.f32 %v4903, 0.0
        %v4908 = vmax.f32 %v4904, 0.0
        %v4909 = vmax.f32 %v4905, 0.0
        %v4910 = vmax.f32 %v4906, 0.0
        %v4911 = vmul.f32 %v4907, %v1508
        %v4912 = vmul.f32 %v4908, %v1512
        %v4913 = vmul.f32 %v4909, %v1516
        %v4914 = vmul.f32 %v4910, %v1520
        %v4915 = vpack.c.bf16 %v4911, %v4911
        %v4916 = vpack.c.bf16 %v4912, %v4912
        %v4917 = vpack.c.bf16 %v4913, %v4913
        %v4918 = vpack.c.bf16 %v4914, %v4914
        %v4923 = vunpack.c.l.b16 %v4915
        %v4924 = vunpack.c.l.b16 %v4916
        %v4925 = vunpack.c.l.b16 %v4917
        %v4926 = vunpack.c.l.b16 %v4918
        %v4927 = vpack.c.b16 %v4924, %v4923
        %v4928 = vpack.c.b16 %v4926, %v4925
        %v4930 = vshll.u32 %v4927, 16
        %v4932 = vrot.slane %v4930, 5
        %v4934 = vshll.u32 %v4928, 16
        %v4936 = vrot.slane %v4934, 5
        %4937 = vrot.lane.b32.xlu0 %v4932, 69
        %v4938 = vpop.permute.xlu0 %4937
        %4939 = vrot.lane.b32.xlu0 %v4936, 69
        %v4940 = vpop.permute.xlu0 %4939
        %v4941 = vrot.slane %v4938, 4
        %v4942 = vrot.slane %v4940, 4
        %v4943 = vsel %vm1551, %v4941, %v4938
        %v4944 = vsel %vm1553, %v4941, %v4942
        %v4945 = vsel %vm1551, %v4944, %v4940
        %vm4949 = vsmask.f32 7950
        %vm4950 = vmand %vm3819, %vm4949
        %vm4951 = vsmask.f32 7966
        %vm4952 = vmand %vm3822, %vm4951
        %vm4953 = vmor %vm4952, %vm4950
        %v4954 = vld [vmem:[#allocation2] sm:$0x88]
        %v4955 = vsel %vm4953, %v4943, %v4954
        %4956 = vst [vmem:[#allocation2] sm:$0x88] %v4955
        %vm4957 = vmand %vm3829, %vm4949
        %vm4958 = vmor %vm4952, %vm4957
        %v4959 = vld [vmem:[#allocation2 + $0x8] sm:$0x88]
        %v4960 = vsel %vm4958, %v4945, %v4959
        %4961 = vst [vmem:[#allocation2 + $0x8] sm:$0x88] %v4960
        %vm4962 = vmand %vm3835, %vm4949
        %v4963 = vld [vmem:[#allocation2 + $0x10] sm:$0x8]
        %v4964 = vsel %vm4962, %v4942, %v4963
        %4965 = vst [vmem:[#allocation2 + $0x10] sm:$0x8] %v4964
        %s4966 = scalar_lea.vmem %s8, 32
        %v4967 = vld [vmem:[%s4966] sm:$0xff]
        %v4968 = vld [vmem:[#allocation2] sm:$0xff]
        %v4969 = vld [vmem:[#allocation2 + $0x8] sm:$0xff]
        %v4970 = vld [vmem:[%s6] sm:$0xf]
        %s4971 = scalar_lea.vmem %s6, 4
        %v4972 = vld [vmem:[%s4971] sm:$0xf]
        %v4975 = vunpack.c.l.b16 %v4968
        %v4976 = vunpack.c.h.b16 %v4968
        %v4977 = vunpack.c.l.b16 %v4969
        %v4978 = vunpack.c.h.b16 %v4969
        %v4979 = vpack.c.b16 %v4975, %v4975
        %v4980 = vpack.c.b16 %v4976, %v4976
        %v4981 = vpack.c.b16 %v4977, %v4977
        %v4982 = vpack.c.b16 %v4978, %v4978
        %4983 = vrot.lane.b32.xlu0 %v4979, 103
        %v4984 = vpop.permute.xlu0 %4983
        %4985 = vrot.lane.b32.xlu0 %v4980, 103
        %v4986 = vpop.permute.xlu0 %4985
        %4987 = vrot.lane.b32.xlu0 %v4981, 103
        %v4988 = vpop.permute.xlu0 %4987
        %4989 = vrot.lane.b32.xlu0 %v4982, 103
        %v4990 = vpop.permute.xlu0 %4989
        %v4991 = vsel %vm1605, %v4984, %v4986
        %v4992 = vsel %vm1605, %v4986, %v4988
        %v4993 = vsel %vm1605, %v4988, %v4990
        %vm4994 = vcmask 64512
        %v4996 = vsel %vm4994, %v4972, 0
        %v4999 = vsel %vm3879, %v4991, 0
        %v5002 = vsel %vm3879, %v4992, 0
        %v5005 = vsel %vm3879, %v4993, 0
        %v5008 = vsel %vm3879, %v4990, 0
        %5010 = vmatprep.subr.bf16.mxu0 %v5002
        %5011 = vmatpush1.bf16.msra.mxu0 %v4999
        %5012 = vmatprep.subr.bf16.mxu0 0
        %5013 = vmatpush1.bf16.msra.mxu0 0
        %5014 = vmatprep.subr.bf16.mxu0 0
        %5015 = vmatpush1.bf16.msra.mxu0 0
        %5016 = vmatprep.subr.bf16.mxu0 0
        %5017 = vmatpush1.bf16.msra.mxu0 0
        %5018 = vmatprep.subr.bf16.mxu0 0
        %5019 = vmatpush1.bf16.msra.mxu0 0
        %5020 = vmatprep.subr.bf16.mxu0 0
        %5021 = vmatpush1.bf16.msra.mxu0 0
        %5022 = vmatprep.subr.bf16.mxu0 0
        %5023 = vmatpush1.bf16.msra.mxu0 0
        %5024 = vmatprep.subr.bf16.mxu0 0
        %5025 = vmatpush1.bf16.msra.mxu0 0
        %5026 = vmatprep.subr.bf16.mxu0 0
        %5027 = vmatpush1.bf16.msra.mxu0 0
        %5028 = vmatprep.subr.bf16.mxu0 0
        %5029 = vmatpush1.bf16.msra.mxu0 0
        %5030 = vmatprep.subr.bf16.mxu0 0
        %5031 = vmatpush1.bf16.msra.mxu0 0
        %5032 = vmatprep.subr.bf16.mxu0 0
        %5033 = vmatpush1.bf16.msra.mxu0 0
        %5034 = vmatprep.subr.bf16.mxu0 0
        %5035 = vmatpush1.bf16.msra.mxu0 0
        %5036 = vmatprep.subr.bf16.mxu0 0
        %5037 = vmatpush1.bf16.msra.mxu0 0
        %5038 = vmatprep.subr.bf16.mxu0 0
        %5039 = vmatpush1.bf16.msra.mxu0 0
        %5040 = vmatprep.subr.bf16.mxu0 0
        %5041 = vmatpush1.bf16.msra.mxu0 0
        %5042 = vmatprep.mubr.bf16.mxu0 0
        %5043 = vmatmul.mubr.bf16.gmra.mrb[0].mxu0 %v4996
        %v5044 = vpop.f32.mrb[0].mxu0
        %v5045 = vadd.f32 0.0, %v5044
        %v5046 = vpop.f32.mrb[0].mxu0
        %v5047 = vadd.f32 0.0, %v5046
        %v5048 = vpop.f32.mrb[0].mxu0
        %v5049 = vpop.f32.mrb[0].mxu0
        %5050 = vdwg.mxu0
        %5051 = vmatprep.subr.bf16.mxu0 %v5008
        %5052 = vmatpush1.bf16.msra.mxu0 %v5005
        %5053 = vmatprep.subr.bf16.mxu0 0
        %5054 = vmatpush1.bf16.msra.mxu0 0
        %5055 = vmatprep.subr.bf16.mxu0 0
        %5056 = vmatpush1.bf16.msra.mxu0 0
        %5057 = vmatprep.subr.bf16.mxu0 0
        %5058 = vmatpush1.bf16.msra.mxu0 0
        %5059 = vmatprep.subr.bf16.mxu0 0
        %5060 = vmatpush1.bf16.msra.mxu0 0
        %5061 = vmatprep.subr.bf16.mxu0 0
        %5062 = vmatpush1.bf16.msra.mxu0 0
        %5063 = vmatprep.subr.bf16.mxu0 0
        %5064 = vmatpush1.bf16.msra.mxu0 0
        %5065 = vmatprep.subr.bf16.mxu0 0
        %5066 = vmatpush1.bf16.msra.mxu0 0
        %5067 = vmatprep.subr.bf16.mxu0 0
        %5068 = vmatpush1.bf16.msra.mxu0 0
        %5069 = vmatprep.subr.bf16.mxu0 0
        %5070 = vmatpush1.bf16.msra.mxu0 0
        %5071 = vmatprep.subr.bf16.mxu0 0
        %5072 = vmatpush1.bf16.msra.mxu0 0
        %5073 = vmatprep.subr.bf16.mxu0 0
        %5074 = vmatpush1.bf16.msra.mxu0 0
        %5075 = vmatprep.subr.bf16.mxu0 0
        %5076 = vmatpush1.bf16.msra.mxu0 0
        %5077 = vmatprep.subr.bf16.mxu0 0
        %5078 = vmatpush1.bf16.msra.mxu0 0
        %5079 = vmatprep.subr.bf16.mxu0 0
        %5080 = vmatpush1.bf16.msra.mxu0 0
        %5081 = vmatprep.subr.bf16.mxu0 0
        %5082 = vmatpush1.bf16.msra.mxu0 0
        %5083 = vmatprep.mubr.bf16.mxu0 0
        %5084 = vmatmul.mubr.bf16.gmra.mrb[0].mxu0 %v4996
        %v5085 = vpop.f32.mrb[0].mxu0
        %v5086 = vadd.f32 0.0, %v5085
        %v5087 = vpop.f32.mrb[0].mxu0
        %v5088 = vadd.f32 0.0, %v5087
        %v5089 = vpop.f32.mrb[0].mxu0
        %v5090 = vpop.f32.mrb[0].mxu0
        %5091 = vdwg.mxu0
        %5092 = vrot.lane.b32.xlu0 %v4979, 105
        %v5093 = vpop.permute.xlu0 %5092
        %5094 = vrot.lane.b32.xlu0 %v4980, 105
        %v5095 = vpop.permute.xlu0 %5094
        %5096 = vrot.lane.b32.xlu0 %v4981, 105
        %v5097 = vpop.permute.xlu0 %5096
        %5098 = vrot.lane.b32.xlu0 %v4982, 105
        %v5099 = vpop.permute.xlu0 %5098
        %v5100 = vsel %vm1718, %v5093, %v5095
        %v5101 = vsel %vm1718, %v5095, %v5097
        %v5102 = vsel %vm1718, %v5097, %v5099
        %v5104 = vsel %vm4994, %v4970, 0
        %v5107 = vsel %vm3879, %v5100, 0
        %v5110 = vsel %vm3879, %v5101, 0
        %v5113 = vsel %vm3879, %v5102, 0
        %v5116 = vsel %vm3879, %v5099, 0
        %5118 = vmatprep.subr.bf16.mxu0 %v5110
        %5119 = vmatpush1.bf16.msra.mxu0 %v5107
        %5120 = vmatprep.subr.bf16.mxu0 0
        %5121 = vmatpush1.bf16.msra.mxu0 0
        %5122 = vmatprep.subr.bf16.mxu0 0
        %5123 = vmatpush1.bf16.msra.mxu0 0
        %5124 = vmatprep.subr.bf16.mxu0 0
        %5125 = vmatpush1.bf16.msra.mxu0 0
        %5126 = vmatprep.subr.bf16.mxu0 0
        %5127 = vmatpush1.bf16.msra.mxu0 0
        %5128 = vmatprep.subr.bf16.mxu0 0
        %5129 = vmatpush1.bf16.msra.mxu0 0
        %5130 = vmatprep.subr.bf16.mxu0 0
        %5131 = vmatpush1.bf16.msra.mxu0 0
        %5132 = vmatprep.subr.bf16.mxu0 0
        %5133 = vmatpush1.bf16.msra.mxu0 0
        %5134 = vmatprep.subr.bf16.mxu0 0
        %5135 = vmatpush1.bf16.msra.mxu0 0
        %5136 = vmatprep.subr.bf16.mxu0 0
        %5137 = vmatpush1.bf16.msra.mxu0 0
        %5138 = vmatprep.subr.bf16.mxu0 0
        %5139 = vmatpush1.bf16.msra.mxu0 0
        %5140 = vmatprep.subr.bf16.mxu0 0
        %5141 = vmatpush1.bf16.msra.mxu0 0
        %5142 = vmatprep.subr.bf16.mxu0 0
        %5143 = vmatpush1.bf16.msra.mxu0 0
        %5144 = vmatprep.subr.bf16.mxu0 0
        %5145 = vmatpush1.bf16.msra.mxu0 0
        %5146 = vmatprep.subr.bf16.mxu0 0
        %5147 = vmatpush1.bf16.msra.mxu0 0
        %5148 = vmatprep.subr.bf16.mxu0 0
        %5149 = vmatpush1.bf16.msra.mxu0 0
        %5150 = vmatprep.mubr.bf16.mxu0 0
        %5151 = vmatmul.mubr.bf16.gmra.mrb[0].mxu0 %v5104
        %v5152 = vpop.f32.mrb[0].mxu0
        %v5153 = vadd.f32 %v5045, %v5152
        %v5154 = vpop.f32.mrb[0].mxu0
        %v5155 = vadd.f32 %v5047, %v5154
        %v5156 = vpop.f32.mrb[0].mxu0
        %v5157 = vpop.f32.mrb[0].mxu0
        %5158 = vdwg.mxu0
        %5159 = vmatprep.subr.bf16.mxu0 %v5116
        %5160 = vmatpush1.bf16.msra.mxu0 %v5113
        %5161 = vmatprep.subr.bf16.mxu0 0
        %5162 = vmatpush1.bf16.msra.mxu0 0
        %5163 = vmatprep.subr.bf16.mxu0 0
        %5164 = vmatpush1.bf16.msra.mxu0 0
        %5165 = vmatprep.subr.bf16.mxu0 0
        %5166 = vmatpush1.bf16.msra.mxu0 0
        %5167 = vmatprep.subr.bf16.mxu0 0
        %5168 = vmatpush1.bf16.msra.mxu0 0
        %5169 = vmatprep.subr.bf16.mxu0 0
        %5170 = vmatpush1.bf16.msra.mxu0 0
        %5171 = vmatprep.subr.bf16.mxu0 0
        %5172 = vmatpush1.bf16.msra.mxu0 0
        %5173 = vmatprep.subr.bf16.mxu0 0
        %5174 = vmatpush1.bf16.msra.mxu0 0
        %5175 = vmatprep.subr.bf16.mxu0 0
        %5176 = vmatpush1.bf16.msra.mxu0 0
        %5177 = vmatprep.subr.bf16.mxu0 0
        %5178 = vmatpush1.bf16.msra.mxu0 0
        %5179 = vmatprep.subr.bf16.mxu0 0
        %5180 = vmatpush1.bf16.msra.mxu0 0
        %5181 = vmatprep.subr.bf16.mxu0 0
        %5182 = vmatpush1.bf16.msra.mxu0 0
        %5183 = vmatprep.subr.bf16.mxu0 0
        %5184 = vmatpush1.bf16.msra.mxu0 0
        %5185 = vmatprep.subr.bf16.mxu0 0
        %5186 = vmatpush1.bf16.msra.mxu0 0
        %5187 = vmatprep.subr.bf16.mxu0 0
        %5188 = vmatpush1.bf16.msra.mxu0 0
        %5189 = vmatprep.subr.bf16.mxu0 0
        %5190 = vmatpush1.bf16.msra.mxu0 0
        %5191 = vmatprep.mubr.bf16.mxu0 0
        %5192 = vmatmul.mubr.bf16.gmra.mrb[0].mxu0 %v5104
        %v5193 = vpop.f32.mrb[0].mxu0
        %v5194 = vadd.f32 %v5086, %v5193
        %v5195 = vpop.f32.mrb[0].mxu0
        %v5196 = vadd.f32 %v5088, %v5195
        %v5197 = vpop.f32.mrb[0].mxu0
        %v5198 = vpop.f32.mrb[0].mxu0
        %5199 = vdwg.mxu0
        %s5200 = scalar_lea.vmem %s6, 8
        %v5201 = vld [vmem:[%s5200] sm:$0xf]
        %5202 = vrot.lane.b32.xlu0 %v4979, 101
        %v5203 = vpop.permute.xlu0 %5202
        %5204 = vrot.lane.b32.xlu0 %v4980, 101
        %v5205 = vpop.permute.xlu0 %5204
        %5206 = vrot.lane.b32.xlu0 %v4981, 101
        %v5207 = vpop.permute.xlu0 %5206
        %5208 = vrot.lane.b32.xlu0 %v4982, 101
        %v5209 = vpop.permute.xlu0 %5208
        %v5210 = vsel %vm1829, %v5203, %v5205
        %v5211 = vsel %vm1829, %v5205, %v5207
        %v5212 = vsel %vm1829, %v5207, %v5209
        %v5214 = vsel %vm4994, %v5201, 0
        %v5217 = vsel %vm3879, %v5210, 0
        %v5220 = vsel %vm3879, %v5211, 0
        %v5223 = vsel %vm3879, %v5212, 0
        %v5226 = vsel %vm3879, %v5209, 0
        %5228 = vmatprep.subr.bf16.mxu0 %v5220
        %5229 = vmatpush1.bf16.msra.mxu0 %v5217
        %5230 = vmatprep.subr.bf16.mxu0 0
        %5231 = vmatpush1.bf16.msra.mxu0 0
        %5232 = vmatprep.subr.bf16.mxu0 0
        %5233 = vmatpush1.bf16.msra.mxu0 0
        %5234 = vmatprep.subr.bf16.mxu0 0
        %5235 = vmatpush1.bf16.msra.mxu0 0
        %5236 = vmatprep.subr.bf16.mxu0 0
        %5237 = vmatpush1.bf16.msra.mxu0 0
        %5238 = vmatprep.subr.bf16.mxu0 0
        %5239 = vmatpush1.bf16.msra.mxu0 0
        %5240 = vmatprep.subr.bf16.mxu0 0
        %5241 = vmatpush1.bf16.msra.mxu0 0
        %5242 = vmatprep.subr.bf16.mxu0 0
        %5243 = vmatpush1.bf16.msra.mxu0 0
        %5244 = vmatprep.subr.bf16.mxu0 0
        %5245 = vmatpush1.bf16.msra.mxu0 0
        %5246 = vmatprep.subr.bf16.mxu0 0
        %5247 = vmatpush1.bf16.msra.mxu0 0
        %5248 = vmatprep.subr.bf16.mxu0 0
        %5249 = vmatpush1.bf16.msra.mxu0 0
        %5250 = vmatprep.subr.bf16.mxu0 0
        %5251 = vmatpush1.bf16.msra.mxu0 0
        %5252 = vmatprep.subr.bf16.mxu0 0
        %5253 = vmatpush1.bf16.msra.mxu0 0
        %5254 = vmatprep.subr.bf16.mxu0 0
        %5255 = vmatpush1.bf16.msra.mxu0 0
        %5256 = vmatprep.subr.bf16.mxu0 0
        %5257 = vmatpush1.bf16.msra.mxu0 0
        %5258 = vmatprep.subr.bf16.mxu0 0
        %5259 = vmatpush1.bf16.msra.mxu0 0
        %5260 = vmatprep.mubr.bf16.mxu0 0
        %5261 = vmatmul.mubr.bf16.gmra.mrb[0].mxu0 %v5214
        %v5262 = vpop.f32.mrb[0].mxu0
        %v5263 = vadd.f32 0.0, %v5262
        %v5264 = vpop.f32.mrb[0].mxu0
        %v5265 = vadd.f32 0.0, %v5264
        %v5266 = vpop.f32.mrb[0].mxu0
        %v5267 = vpop.f32.mrb[0].mxu0
        %5268 = vdwg.mxu0
        %5269 = vmatprep.subr.bf16.mxu0 %v5226
        %5270 = vmatpush1.bf16.msra.mxu0 %v5223
        %5271 = vmatprep.subr.bf16.mxu0 0
        %5272 = vmatpush1.bf16.msra.mxu0 0
        %5273 = vmatprep.subr.bf16.mxu0 0
        %5274 = vmatpush1.bf16.msra.mxu0 0
        %5275 = vmatprep.subr.bf16.mxu0 0
        %5276 = vmatpush1.bf16.msra.mxu0 0
        %5277 = vmatprep.subr.bf16.mxu0 0
        %5278 = vmatpush1.bf16.msra.mxu0 0
        %5279 = vmatprep.subr.bf16.mxu0 0
        %5280 = vmatpush1.bf16.msra.mxu0 0
        %5281 = vmatprep.subr.bf16.mxu0 0
        %5282 = vmatpush1.bf16.msra.mxu0 0
        %5283 = vmatprep.subr.bf16.mxu0 0
        %5284 = vmatpush1.bf16.msra.mxu0 0
        %5285 = vmatprep.subr.bf16.mxu0 0
        %5286 = vmatpush1.bf16.msra.mxu0 0
        %5287 = vmatprep.subr.bf16.mxu0 0
        %5288 = vmatpush1.bf16.msra.mxu0 0
        %5289 = vmatprep.subr.bf16.mxu0 0
        %5290 = vmatpush1.bf16.msra.mxu0 0
        %5291 = vmatprep.subr.bf16.mxu0 0
        %5292 = vmatpush1.bf16.msra.mxu0 0
        %5293 = vmatprep.subr.bf16.mxu0 0
        %5294 = vmatpush1.bf16.msra.mxu0 0
        %5295 = vmatprep.subr.bf16.mxu0 0
        %5296 = vmatpush1.bf16.msra.mxu0 0
        %5297 = vmatprep.subr.bf16.mxu0 0
        %5298 = vmatpush1.bf16.msra.mxu0 0
        %5299 = vmatprep.subr.bf16.mxu0 0
        %5300 = vmatpush1.bf16.msra.mxu0 0
        %5301 = vmatprep.mubr.bf16.mxu0 0
        %5302 = vmatmul.mubr.bf16.gmra.mrb[0].mxu0 %v5214
        %v5303 = vpop.f32.mrb[0].mxu0
        %v5304 = vadd.f32 0.0, %v5303
        %v5305 = vpop.f32.mrb[0].mxu0
        %v5306 = vadd.f32 0.0, %v5305
        %v5307 = vpop.f32.mrb[0].mxu0
        %v5308 = vpop.f32.mrb[0].mxu0
        %5309 = vdwg.mxu0
        %v5310 = vadd.f32 %v5153, %v5263
        %v5311 = vadd.f32 %v5155, %v5265
        %v5312 = vadd.f32 %v5194, %v5304
        %v5313 = vadd.f32 %v5196, %v5306
        %v5314 = vld [vmem:[#allocation2] sm:$0xff]
        %v5315 = vld [vmem:[#allocation2 + $0x8] sm:$0xff]
        %v5316 = vld [vmem:[#allocation2 + $0x10] sm:$0xf]
        %s5317 = scalar_lea.vmem %s6, 12
        %v5318 = vld [vmem:[%s5317] sm:$0xf]
        %s5319 = scalar_lea.vmem %s6, 16
        %v5320 = vld [vmem:[%s5319] sm:$0xf]
        %v5324 = vunpack.c.l.b16 %v5314
        %v5325 = vunpack.c.h.b16 %v5314
        %v5326 = vunpack.c.l.b16 %v5315
        %v5327 = vunpack.c.h.b16 %v5315
        %v5328 = vunpack.c.l.b16 %v5316
        %v5329 = vpack.c.b16 %v5324, %v5324
        %v5330 = vpack.c.b16 %v5325, %v5325
        %v5331 = vpack.c.b16 %v5326, %v5326
        %v5332 = vpack.c.b16 %v5327, %v5327
        %v5333 = vpack.c.b16 %v5328, %v5328
        %5334 = vrot.lane.b32.xlu0 %v5329, 59
        %v5335 = vpop.permute.xlu0 %5334
        %5336 = vrot.lane.b32.xlu0 %v5330, 59
        %v5337 = vpop.permute.xlu0 %5336
        %5338 = vrot.lane.b32.xlu0 %v5331, 59
        %v5339 = vpop.permute.xlu0 %5338
        %5340 = vrot.lane.b32.xlu0 %v5332, 59
        %v5341 = vpop.permute.xlu0 %5340
        %5342 = vrot.lane.b32.xlu0 %v5333, 59
        %v5343 = vpop.permute.xlu0 %5342
        %v5344 = vsel %vm805, %v5335, %v5337
        %v5345 = vsel %vm805, %v5337, %v5339
        %v5346 = vsel %vm805, %v5339, %v5341
        %v5347 = vsel %vm805, %v5341, %v5343
        %v5349 = vsel %vm4994, %v5320, 0
        %v5352 = vsel %vm3879, %v5344, 0
        %v5355 = vsel %vm3879, %v5345, 0
        %v5358 = vsel %vm3879, %v5346, 0
        %v5361 = vsel %vm3879, %v5347, 0
        %5363 = vmatprep.subr.bf16.mxu0 %v5355
        %5364 = vmatpush1.bf16.msra.mxu0 %v5352
        %5365 = vmatprep.subr.bf16.mxu0 0
        %5366 = vmatpush1.bf16.msra.mxu0 0
        %5367 = vmatprep.subr.bf16.mxu0 0
        %5368 = vmatpush1.bf16.msra.mxu0 0
        %5369 = vmatprep.subr.bf16.mxu0 0
        %5370 = vmatpush1.bf16.msra.mxu0 0
        %5371 = vmatprep.subr.bf16.mxu0 0
        %5372 = vmatpush1.bf16.msra.mxu0 0
        %5373 = vmatprep.subr.bf16.mxu0 0
        %5374 = vmatpush1.bf16.msra.mxu0 0
        %5375 = vmatprep.subr.bf16.mxu0 0
        %5376 = vmatpush1.bf16.msra.mxu0 0
        %5377 = vmatprep.subr.bf16.mxu0 0
        %5378 = vmatpush1.bf16.msra.mxu0 0
        %5379 = vmatprep.subr.bf16.mxu0 0
        %5380 = vmatpush1.bf16.msra.mxu0 0
        %5381 = vmatprep.subr.bf16.mxu0 0
        %5382 = vmatpush1.bf16.msra.mxu0 0
        %5383 = vmatprep.subr.bf16.mxu0 0
        %5384 = vmatpush1.bf16.msra.mxu0 0
        %5385 = vmatprep.subr.bf16.mxu0 0
        %5386 = vmatpush1.bf16.msra.mxu0 0
        %5387 = vmatprep.subr.bf16.mxu0 0
        %5388 = vmatpush1.bf16.msra.mxu0 0
        %5389 = vmatprep.subr.bf16.mxu0 0
        %5390 = vmatpush1.bf16.msra.mxu0 0
        %5391 = vmatprep.subr.bf16.mxu0 0
        %5392 = vmatpush1.bf16.msra.mxu0 0
        %5393 = vmatprep.subr.bf16.mxu0 0
        %5394 = vmatpush1.bf16.msra.mxu0 0
        %5395 = vmatprep.mubr.bf16.mxu0 0
        %5396 = vmatmul.mubr.bf16.gmra.mrb[0].mxu0 %v5349
        %v5397 = vpop.f32.mrb[0].mxu0
        %v5398 = vadd.f32 0.0, %v5397
        %v5399 = vpop.f32.mrb[0].mxu0
        %v5400 = vadd.f32 0.0, %v5399
        %v5401 = vpop.f32.mrb[0].mxu0
        %v5402 = vpop.f32.mrb[0].mxu0
        %5403 = vdwg.mxu0
        %5404 = vmatprep.subr.bf16.mxu0 %v5361
        %5405 = vmatpush1.bf16.msra.mxu0 %v5358
        %5406 = vmatprep.subr.bf16.mxu0 0
        %5407 = vmatpush1.bf16.msra.mxu0 0
        %5408 = vmatprep.subr.bf16.mxu0 0
        %5409 = vmatpush1.bf16.msra.mxu0 0
        %5410 = vmatprep.subr.bf16.mxu0 0
        %5411 = vmatpush1.bf16.msra.mxu0 0
        %5412 = vmatprep.subr.bf16.mxu0 0
        %5413 = vmatpush1.bf16.msra.mxu0 0
        %5414 = vmatprep.subr.bf16.mxu0 0
        %5415 = vmatpush1.bf16.msra.mxu0 0
        %5416 = vmatprep.subr.bf16.mxu0 0
        %5417 = vmatpush1.bf16.msra.mxu0 0
        %5418 = vmatprep.subr.bf16.mxu0 0
        %5419 = vmatpush1.bf16.msra.mxu0 0
        %5420 = vmatprep.subr.bf16.mxu0 0
        %5421 = vmatpush1.bf16.msra.mxu0 0
        %5422 = vmatprep.subr.bf16.mxu0 0
        %5423 = vmatpush1.bf16.msra.mxu0 0
        %5424 = vmatprep.subr.bf16.mxu0 0
        %5425 = vmatpush1.bf16.msra.mxu0 0
        %5426 = vmatprep.subr.bf16.mxu0 0
        %5427 = vmatpush1.bf16.msra.mxu0 0
        %5428 = vmatprep.subr.bf16.mxu0 0
        %5429 = vmatpush1.bf16.msra.mxu0 0
        %5430 = vmatprep.subr.bf16.mxu0 0
        %5431 = vmatpush1.bf16.msra.mxu0 0
        %5432 = vmatprep.subr.bf16.mxu0 0
        %5433 = vmatpush1.bf16.msra.mxu0 0
        %5434 = vmatprep.subr.bf16.mxu0 0
        %5435 = vmatpush1.bf16.msra.mxu0 0
        %5436 = vmatprep.mubr.bf16.mxu0 0
        %5437 = vmatmul.mubr.bf16.gmra.mrb[0].mxu0 %v5349
        %v5438 = vpop.f32.mrb[0].mxu0
        %v5439 = vadd.f32 0.0, %v5438
        %v5440 = vpop.f32.mrb[0].mxu0
        %v5441 = vadd.f32 0.0, %v5440
        %v5442 = vpop.f32.mrb[0].mxu0
        %v5443 = vpop.f32.mrb[0].mxu0
        %5444 = vdwg.mxu0
        %5445 = vrot.lane.b32.xlu0 %v5329, 61
        %v5446 = vpop.permute.xlu0 %5445
        %5447 = vrot.lane.b32.xlu0 %v5330, 61
        %v5448 = vpop.permute.xlu0 %5447
        %5449 = vrot.lane.b32.xlu0 %v5331, 61
        %v5450 = vpop.permute.xlu0 %5449
        %5451 = vrot.lane.b32.xlu0 %v5332, 61
        %v5452 = vpop.permute.xlu0 %5451
        %5453 = vrot.lane.b32.xlu0 %v5333, 61
        %v5454 = vpop.permute.xlu0 %5453
        %v5455 = vsel %vm2075, %v5446, %v5448
        %v5456 = vsel %vm2075, %v5448, %v5450
        %v5457 = vsel %vm2075, %v5450, %v5452
        %v5458 = vsel %vm2075, %v5452, %v5454
        %v5460 = vsel %vm4994, %v5318, 0
        %v5463 = vsel %vm3879, %v5455, 0
        %v5466 = vsel %vm3879, %v5456, 0
        %v5469 = vsel %vm3879, %v5457, 0
        %v5472 = vsel %vm3879, %v5458, 0
        %5474 = vmatprep.subr.bf16.mxu0 %v5466
        %5475 = vmatpush1.bf16.msra.mxu0 %v5463
        %5476 = vmatprep.subr.bf16.mxu0 0
        %5477 = vmatpush1.bf16.msra.mxu0 0
        %5478 = vmatprep.subr.bf16.mxu0 0
        %5479 = vmatpush1.bf16.msra.mxu0 0
        %5480 = vmatprep.subr.bf16.mxu0 0
        %5481 = vmatpush1.bf16.msra.mxu0 0
        %5482 = vmatprep.subr.bf16.mxu0 0
        %5483 = vmatpush1.bf16.msra.mxu0 0
        %5484 = vmatprep.subr.bf16.mxu0 0
        %5485 = vmatpush1.bf16.msra.mxu0 0
        %5486 = vmatprep.subr.bf16.mxu0 0
        %5487 = vmatpush1.bf16.msra.mxu0 0
        %5488 = vmatprep.subr.bf16.mxu0 0
        %5489 = vmatpush1.bf16.msra.mxu0 0
        %5490 = vmatprep.subr.bf16.mxu0 0
        %5491 = vmatpush1.bf16.msra.mxu0 0
        %5492 = vmatprep.subr.bf16.mxu0 0
        %5493 = vmatpush1.bf16.msra.mxu0 0
        %5494 = vmatprep.subr.bf16.mxu0 0
        %5495 = vmatpush1.bf16.msra.mxu0 0
        %5496 = vmatprep.subr.bf16.mxu0 0
        %5497 = vmatpush1.bf16.msra.mxu0 0
        %5498 = vmatprep.subr.bf16.mxu0 0
        %5499 = vmatpush1.bf16.msra.mxu0 0
        %5500 = vmatprep.subr.bf16.mxu0 0
        %5501 = vmatpush1.bf16.msra.mxu0 0
        %5502 = vmatprep.subr.bf16.mxu0 0
        %5503 = vmatpush1.bf16.msra.mxu0 0
        %5504 = vmatprep.subr.bf16.mxu0 0
        %5505 = vmatpush1.bf16.msra.mxu0 0
        %5506 = vmatprep.mubr.bf16.mxu0 0
        %5507 = vmatmul.mubr.bf16.gmra.mrb[0].mxu0 %v5460
        %v5508 = vpop.f32.mrb[0].mxu0
        %v5509 = vadd.f32 %v5398, %v5508
        %v5510 = vpop.f32.mrb[0].mxu0
        %v5511 = vadd.f32 %v5400, %v5510
        %v5512 = vpop.f32.mrb[0].mxu0
        %v5513 = vpop.f32.mrb[0].mxu0
        %5514 = vdwg.mxu0
        %5515 = vmatprep.subr.bf16.mxu0 %v5472
        %5516 = vmatpush1.bf16.msra.mxu0 %v5469
        %5517 = vmatprep.subr.bf16.mxu0 0
        %5518 = vmatpush1.bf16.msra.mxu0 0
        %5519 = vmatprep.subr.bf16.mxu0 0
        %5520 = vmatpush1.bf16.msra.mxu0 0
        %5521 = vmatprep.subr.bf16.mxu0 0
        %5522 = vmatpush1.bf16.msra.mxu0 0
        %5523 = vmatprep.subr.bf16.mxu0 0
        %5524 = vmatpush1.bf16.msra.mxu0 0
        %5525 = vmatprep.subr.bf16.mxu0 0
        %5526 = vmatpush1.bf16.msra.mxu0 0
        %5527 = vmatprep.subr.bf16.mxu0 0
        %5528 = vmatpush1.bf16.msra.mxu0 0
        %5529 = vmatprep.subr.bf16.mxu0 0
        %5530 = vmatpush1.bf16.msra.mxu0 0
        %5531 = vmatprep.subr.bf16.mxu0 0
        %5532 = vmatpush1.bf16.msra.mxu0 0
        %5533 = vmatprep.subr.bf16.mxu0 0
        %5534 = vmatpush1.bf16.msra.mxu0 0
        %5535 = vmatprep.subr.bf16.mxu0 0
        %5536 = vmatpush1.bf16.msra.mxu0 0
        %5537 = vmatprep.subr.bf16.mxu0 0
        %5538 = vmatpush1.bf16.msra.mxu0 0
        %5539 = vmatprep.subr.bf16.mxu0 0
        %5540 = vmatpush1.bf16.msra.mxu0 0
        %5541 = vmatprep.subr.bf16.mxu0 0
        %5542 = vmatpush1.bf16.msra.mxu0 0
        %5543 = vmatprep.subr.bf16.mxu0 0
        %5544 = vmatpush1.bf16.msra.mxu0 0
        %5545 = vmatprep.subr.bf16.mxu0 0
        %5546 = vmatpush1.bf16.msra.mxu0 0
        %5547 = vmatprep.mubr.bf16.mxu0 0
        %5548 = vmatmul.mubr.bf16.gmra.mrb[0].mxu0 %v5460
        %v5549 = vpop.f32.mrb[0].mxu0
        %v5550 = vadd.f32 %v5439, %v5549
        %v5551 = vpop.f32.mrb[0].mxu0
        %v5552 = vadd.f32 %v5441, %v5551
        %v5553 = vpop.f32.mrb[0].mxu0
        %v5554 = vpop.f32.mrb[0].mxu0
        %5555 = vdwg.mxu0
        %s5556 = scalar_lea.vmem %s6, 20
        %v5557 = vld [vmem:[%s5556] sm:$0xf]
        %5558 = vrot.lane.b32.xlu0 %v5329, 57
        %v5559 = vpop.permute.xlu0 %5558
        %5560 = vrot.lane.b32.xlu0 %v5330, 57
        %v5561 = vpop.permute.xlu0 %5560
        %5562 = vrot.lane.b32.xlu0 %v5331, 57
        %v5563 = vpop.permute.xlu0 %5562
        %5564 = vrot.lane.b32.xlu0 %v5332, 57
        %v5565 = vpop.permute.xlu0 %5564
        %5566 = vrot.lane.b32.xlu0 %v5333, 57
        %v5567 = vpop.permute.xlu0 %5566
        %v5568 = vsel %vm2189, %v5559, %v5561
        %v5569 = vsel %vm2189, %v5561, %v5563
        %v5570 = vsel %vm2189, %v5563, %v5565
        %v5571 = vsel %vm2189, %v5565, %v5567
        %v5573 = vsel %vm4994, %v5557, 0
        %v5576 = vsel %vm3879, %v5568, 0
        %v5579 = vsel %vm3879, %v5569, 0
        %v5582 = vsel %vm3879, %v5570, 0
        %v5585 = vsel %vm3879, %v5571, 0
        %5587 = vmatprep.subr.bf16.mxu0 %v5579
        %5588 = vmatpush1.bf16.msra.mxu0 %v5576
        %5589 = vmatprep.subr.bf16.mxu0 0
        %5590 = vmatpush1.bf16.msra.mxu0 0
        %5591 = vmatprep.subr.bf16.mxu0 0
        %5592 = vmatpush1.bf16.msra.mxu0 0
        %5593 = vmatprep.subr.bf16.mxu0 0
        %5594 = vmatpush1.bf16.msra.mxu0 0
        %5595 = vmatprep.subr.bf16.mxu0 0
        %5596 = vmatpush1.bf16.msra.mxu0 0
        %5597 = vmatprep.subr.bf16.mxu0 0
        %5598 = vmatpush1.bf16.msra.mxu0 0
        %5599 = vmatprep.subr.bf16.mxu0 0
        %5600 = vmatpush1.bf16.msra.mxu0 0
        %5601 = vmatprep.subr.bf16.mxu0 0
        %5602 = vmatpush1.bf16.msra.mxu0 0
        %5603 = vmatprep.subr.bf16.mxu0 0
        %5604 = vmatpush1.bf16.msra.mxu0 0
        %5605 = vmatprep.subr.bf16.mxu0 0
        %5606 = vmatpush1.bf16.msra.mxu0 0
        %5607 = vmatprep.subr.bf16.mxu0 0
        %5608 = vmatpush1.bf16.msra.mxu0 0
        %5609 = vmatprep.subr.bf16.mxu0 0
        %5610 = vmatpush1.bf16.msra.mxu0 0
        %5611 = vmatprep.subr.bf16.mxu0 0
        %5612 = vmatpush1.bf16.msra.mxu0 0
        %5613 = vmatprep.subr.bf16.mxu0 0
        %5614 = vmatpush1.bf16.msra.mxu0 0
        %5615 = vmatprep.subr.bf16.mxu0 0
        %5616 = vmatpush1.bf16.msra.mxu0 0
        %5617 = vmatprep.subr.bf16.mxu0 0
        %5618 = vmatpush1.bf16.msra.mxu0 0
        %5619 = vmatprep.mubr.bf16.mxu0 0
        %5620 = vmatmul.mubr.bf16.gmra.mrb[0].mxu0 %v5573
        %v5621 = vpop.f32.mrb[0].mxu0
        %v5622 = vadd.f32 0.0, %v5621
        %v5623 = vpop.f32.mrb[0].mxu0
        %v5624 = vadd.f32 0.0, %v5623
        %v5625 = vpop.f32.mrb[0].mxu0
        %v5626 = vpop.f32.mrb[0].mxu0
        %5627 = vdwg.mxu0
        %5628 = vmatprep.subr.bf16.mxu0 %v5585
        %5629 = vmatpush1.bf16.msra.mxu0 %v5582
        %5630 = vmatprep.subr.bf16.mxu0 0
        %5631 = vmatpush1.bf16.msra.mxu0 0
        %5632 = vmatprep.subr.bf16.mxu0 0
        %5633 = vmatpush1.bf16.msra.mxu0 0
        %5634 = vmatprep.subr.bf16.mxu0 0
        %5635 = vmatpush1.bf16.msra.mxu0 0
        %5636 = vmatprep.subr.bf16.mxu0 0
        %5637 = vmatpush1.bf16.msra.mxu0 0
        %5638 = vmatprep.subr.bf16.mxu0 0
        %5639 = vmatpush1.bf16.msra.mxu0 0
        %5640 = vmatprep.subr.bf16.mxu0 0
        %5641 = vmatpush1.bf16.msra.mxu0 0
        %5642 = vmatprep.subr.bf16.mxu0 0
        %5643 = vmatpush1.bf16.msra.mxu0 0
        %5644 = vmatprep.subr.bf16.mxu0 0
        %5645 = vmatpush1.bf16.msra.mxu0 0
        %5646 = vmatprep.subr.bf16.mxu0 0
        %5647 = vmatpush1.bf16.msra.mxu0 0
        %5648 = vmatprep.subr.bf16.mxu0 0
        %5649 = vmatpush1.bf16.msra.mxu0 0
        %5650 = vmatprep.subr.bf16.mxu0 0
        %5651 = vmatpush1.bf16.msra.mxu0 0
        %5652 = vmatprep.subr.bf16.mxu0 0
        %5653 = vmatpush1.bf16.msra.mxu0 0
        %5654 = vmatprep.subr.bf16.mxu0 0
        %5655 = vmatpush1.bf16.msra.mxu0 0
        %5656 = vmatprep.subr.bf16.mxu0 0
        %5657 = vmatpush1.bf16.msra.mxu0 0
        %5658 = vmatprep.subr.bf16.mxu0 0
        %5659 = vmatpush1.bf16.msra.mxu0 0
        %5660 = vmatprep.mubr.bf16.mxu0 0
        %5661 = vmatmul.mubr.bf16.gmra.mrb[0].mxu0 %v5573
        %v5662 = vpop.f32.mrb[0].mxu0
        %v5663 = vadd.f32 0.0, %v5662
        %v5664 = vpop.f32.mrb[0].mxu0
        %v5665 = vadd.f32 0.0, %v5664
        %v5666 = vpop.f32.mrb[0].mxu0
        %v5667 = vpop.f32.mrb[0].mxu0
        %5668 = vdwg.mxu0
        %v5669 = vadd.f32 %v5509, %v5622
        %v5670 = vadd.f32 %v5511, %v5624
        %v5671 = vadd.f32 %v5550, %v5663
        %v5672 = vadd.f32 %v5552, %v5665
        %v5673 = vadd.f32 %v5310, %v5669
        %v5674 = vadd.f32 %v5311, %v5670
        %v5675 = vadd.f32 %v5312, %v5671
        %v5676 = vadd.f32 %v5313, %v5672
        %s5677 = scalar_lea.vmem %s6, 24
        %v5678 = vld [vmem:[%s5677] sm:$0xf]
        %s5679 = scalar_lea.vmem %s6, 28
        %v5680 = vld [vmem:[%s5679] sm:$0xf]
        %5681 = vrot.lane.b32.xlu0 %v5329, 15
        %v5682 = vpop.permute.xlu0 %5681
        %5683 = vrot.lane.b32.xlu0 %v5330, 15
        %v5684 = vpop.permute.xlu0 %5683
        %5685 = vrot.lane.b32.xlu0 %v5331, 15
        %v5686 = vpop.permute.xlu0 %5685
        %5687 = vrot.lane.b32.xlu0 %v5332, 15
        %v5688 = vpop.permute.xlu0 %5687
        %5689 = vrot.lane.b32.xlu0 %v5333, 15
        %v5690 = vpop.permute.xlu0 %5689
        %v5691 = vsel %vm2313, %v5682, %v5684
        %v5692 = vsel %vm2313, %v5684, %v5686
        %v5693 = vsel %vm2313, %v5686, %v5688
        %v5694 = vsel %vm2313, %v5688, %v5690
        %v5696 = vsel %vm4994, %v5680, 0
        %v5699 = vsel %vm3879, %v5691, 0
        %v5702 = vsel %vm3879, %v5692, 0
        %v5705 = vsel %vm3879, %v5693, 0
        %v5708 = vsel %vm3879, %v5694, 0
        %5710 = vmatprep.subr.bf16.mxu0 %v5702
        %5711 = vmatpush1.bf16.msra.mxu0 %v5699
        %5712 = vmatprep.subr.bf16.mxu0 0
        %5713 = vmatpush1.bf16.msra.mxu0 0
        %5714 = vmatprep.subr.bf16.mxu0 0
        %5715 = vmatpush1.bf16.msra.mxu0 0
        %5716 = vmatprep.subr.bf16.mxu0 0
        %5717 = vmatpush1.bf16.msra.mxu0 0
        %5718 = vmatprep.subr.bf16.mxu0 0
        %5719 = vmatpush1.bf16.msra.mxu0 0
        %5720 = vmatprep.subr.bf16.mxu0 0
        %5721 = vmatpush1.bf16.msra.mxu0 0
        %5722 = vmatprep.subr.bf16.mxu0 0
        %5723 = vmatpush1.bf16.msra.mxu0 0
        %5724 = vmatprep.subr.bf16.mxu0 0
        %5725 = vmatpush1.bf16.msra.mxu0 0
        %5726 = vmatprep.subr.bf16.mxu0 0
        %5727 = vmatpush1.bf16.msra.mxu0 0
        %5728 = vmatprep.subr.bf16.mxu0 0
        %5729 = vmatpush1.bf16.msra.mxu0 0
        %5730 = vmatprep.subr.bf16.mxu0 0
        %5731 = vmatpush1.bf16.msra.mxu0 0
        %5732 = vmatprep.subr.bf16.mxu0 0
        %5733 = vmatpush1.bf16.msra.mxu0 0
        %5734 = vmatprep.subr.bf16.mxu0 0
        %5735 = vmatpush1.bf16.msra.mxu0 0
        %5736 = vmatprep.subr.bf16.mxu0 0
        %5737 = vmatpush1.bf16.msra.mxu0 0
        %5738 = vmatprep.subr.bf16.mxu0 0
        %5739 = vmatpush1.bf16.msra.mxu0 0
        %5740 = vmatprep.subr.bf16.mxu0 0
        %5741 = vmatpush1.bf16.msra.mxu0 0
        %5742 = vmatprep.mubr.bf16.mxu0 0
        %5743 = vmatmul.mubr.bf16.gmra.mrb[0].mxu0 %v5696
        %v5744 = vpop.f32.mrb[0].mxu0
        %v5745 = vadd.f32 0.0, %v5744
        %v5746 = vpop.f32.mrb[0].mxu0
        %v5747 = vadd.f32 0.0, %v5746
        %v5748 = vpop.f32.mrb[0].mxu0
        %v5749 = vpop.f32.mrb[0].mxu0
        %5750 = vdwg.mxu0
        %5751 = vmatprep.subr.bf16.mxu0 %v5708
        %5752 = vmatpush1.bf16.msra.mxu0 %v5705
        %5753 = vmatprep.subr.bf16.mxu0 0
        %5754 = vmatpush1.bf16.msra.mxu0 0
        %5755 = vmatprep.subr.bf16.mxu0 0
        %5756 = vmatpush1.bf16.msra.mxu0 0
        %5757 = vmatprep.subr.bf16.mxu0 0
        %5758 = vmatpush1.bf16.msra.mxu0 0
        %5759 = vmatprep.subr.bf16.mxu0 0
        %5760 = vmatpush1.bf16.msra.mxu0 0
        %5761 = vmatprep.subr.bf16.mxu0 0
        %5762 = vmatpush1.bf16.msra.mxu0 0
        %5763 = vmatprep.subr.bf16.mxu0 0
        %5764 = vmatpush1.bf16.msra.mxu0 0
        %5765 = vmatprep.subr.bf16.mxu0 0
        %5766 = vmatpush1.bf16.msra.mxu0 0
        %5767 = vmatprep.subr.bf16.mxu0 0
        %5768 = vmatpush1.bf16.msra.mxu0 0
        %5769 = vmatprep.subr.bf16.mxu0 0
        %5770 = vmatpush1.bf16.msra.mxu0 0
        %5771 = vmatprep.subr.bf16.mxu0 0
        %5772 = vmatpush1.bf16.msra.mxu0 0
        %5773 = vmatprep.subr.bf16.mxu0 0
        %5774 = vmatpush1.bf16.msra.mxu0 0
        %5775 = vmatprep.subr.bf16.mxu0 0
        %5776 = vmatpush1.bf16.msra.mxu0 0
        %5777 = vmatprep.subr.bf16.mxu0 0
        %5778 = vmatpush1.bf16.msra.mxu0 0
        %5779 = vmatprep.subr.bf16.mxu0 0
        %5780 = vmatpush1.bf16.msra.mxu0 0
        %5781 = vmatprep.subr.bf16.mxu0 0
        %5782 = vmatpush1.bf16.msra.mxu0 0
        %5783 = vmatprep.mubr.bf16.mxu0 0
        %5784 = vmatmul.mubr.bf16.gmra.mrb[0].mxu0 %v5696
        %v5785 = vpop.f32.mrb[0].mxu0
        %v5786 = vadd.f32 0.0, %v5785
        %v5787 = vpop.f32.mrb[0].mxu0
        %v5788 = vadd.f32 0.0, %v5787
        %v5789 = vpop.f32.mrb[0].mxu0
        %v5790 = vpop.f32.mrb[0].mxu0
        %5791 = vdwg.mxu0
        %5792 = vrot.lane.b32.xlu0 %v5329, 17
        %v5793 = vpop.permute.xlu0 %5792
        %5794 = vrot.lane.b32.xlu0 %v5330, 17
        %v5795 = vpop.permute.xlu0 %5794
        %5796 = vrot.lane.b32.xlu0 %v5331, 17
        %v5797 = vpop.permute.xlu0 %5796
        %5798 = vrot.lane.b32.xlu0 %v5332, 17
        %v5799 = vpop.permute.xlu0 %5798
        %5800 = vrot.lane.b32.xlu0 %v5333, 17
        %v5801 = vpop.permute.xlu0 %5800
        %v5802 = vsel %vm2425, %v5793, %v5795
        %v5803 = vsel %vm2425, %v5795, %v5797
        %v5804 = vsel %vm2425, %v5797, %v5799
        %v5805 = vsel %vm2425, %v5799, %v5801
        %v5807 = vsel %vm4994, %v5678, 0
        %v5810 = vsel %vm3879, %v5802, 0
        %v5813 = vsel %vm3879, %v5803, 0
        %v5816 = vsel %vm3879, %v5804, 0
        %v5819 = vsel %vm3879, %v5805, 0
        %5821 = vmatprep.subr.bf16.mxu0 %v5813
        %5822 = vmatpush1.bf16.msra.mxu0 %v5810
        %5823 = vmatprep.subr.bf16.mxu0 0
        %5824 = vmatpush1.bf16.msra.mxu0 0
        %5825 = vmatprep.subr.bf16.mxu0 0
        %5826 = vmatpush1.bf16.msra.mxu0 0
        %5827 = vmatprep.subr.bf16.mxu0 0
        %5828 = vmatpush1.bf16.msra.mxu0 0
        %5829 = vmatprep.subr.bf16.mxu0 0
        %5830 = vmatpush1.bf16.msra.mxu0 0
        %5831 = vmatprep.subr.bf16.mxu0 0
        %5832 = vmatpush1.bf16.msra.mxu0 0
        %5833 = vmatprep.subr.bf16.mxu0 0
        %5834 = vmatpush1.bf16.msra.mxu0 0
        %5835 = vmatprep.subr.bf16.mxu0 0
        %5836 = vmatpush1.bf16.msra.mxu0 0
        %5837 = vmatprep.subr.bf16.mxu0 0
        %5838 = vmatpush1.bf16.msra.mxu0 0
        %5839 = vmatprep.subr.bf16.mxu0 0
        %5840 = vmatpush1.bf16.msra.mxu0 0
        %5841 = vmatprep.subr.bf16.mxu0 0
        %5842 = vmatpush1.bf16.msra.mxu0 0
        %5843 = vmatprep.subr.bf16.mxu0 0
        %5844 = vmatpush1.bf16.msra.mxu0 0
        %5845 = vmatprep.subr.bf16.mxu0 0
        %5846 = vmatpush1.bf16.msra.mxu0 0
        %5847 = vmatprep.subr.bf16.mxu0 0
        %5848 = vmatpush1.bf16.msra.mxu0 0
        %5849 = vmatprep.subr.bf16.mxu0 0
        %5850 = vmatpush1.bf16.msra.mxu0 0
        %5851 = vmatprep.subr.bf16.mxu0 0
        %5852 = vmatpush1.bf16.msra.mxu0 0
        %5853 = vmatprep.mubr.bf16.mxu0 0
        %5854 = vmatmul.mubr.bf16.gmra.mrb[0].mxu0 %v5807
        %v5855 = vpop.f32.mrb[0].mxu0
        %v5856 = vadd.f32 %v5745, %v5855
        %v5857 = vpop.f32.mrb[0].mxu0
        %v5858 = vadd.f32 %v5747, %v5857
        %v5859 = vpop.f32.mrb[0].mxu0
        %v5860 = vpop.f32.mrb[0].mxu0
        %5861 = vdwg.mxu0
        %5862 = vmatprep.subr.bf16.mxu0 %v5819
        %5863 = vmatpush1.bf16.msra.mxu0 %v5816
        %5864 = vmatprep.subr.bf16.mxu0 0
        %5865 = vmatpush1.bf16.msra.mxu0 0
        %5866 = vmatprep.subr.bf16.mxu0 0
        %5867 = vmatpush1.bf16.msra.mxu0 0
        %5868 = vmatprep.subr.bf16.mxu0 0
        %5869 = vmatpush1.bf16.msra.mxu0 0
        %5870 = vmatprep.subr.bf16.mxu0 0
        %5871 = vmatpush1.bf16.msra.mxu0 0
        %5872 = vmatprep.subr.bf16.mxu0 0
        %5873 = vmatpush1.bf16.msra.mxu0 0
        %5874 = vmatprep.subr.bf16.mxu0 0
        %5875 = vmatpush1.bf16.msra.mxu0 0
        %5876 = vmatprep.subr.bf16.mxu0 0
        %5877 = vmatpush1.bf16.msra.mxu0 0
        %5878 = vmatprep.subr.bf16.mxu0 0
        %5879 = vmatpush1.bf16.msra.mxu0 0
        %5880 = vmatprep.subr.bf16.mxu0 0
        %5881 = vmatpush1.bf16.msra.mxu0 0
        %5882 = vmatprep.subr.bf16.mxu0 0
        %5883 = vmatpush1.bf16.msra.mxu0 0
        %5884 = vmatprep.subr.bf16.mxu0 0
        %5885 = vmatpush1.bf16.msra.mxu0 0
        %5886 = vmatprep.subr.bf16.mxu0 0
        %5887 = vmatpush1.bf16.msra.mxu0 0
        %5888 = vmatprep.subr.bf16.mxu0 0
        %5889 = vmatpush1.bf16.msra.mxu0 0
        %5890 = vmatprep.subr.bf16.mxu0 0
        %5891 = vmatpush1.bf16.msra.mxu0 0
        %5892 = vmatprep.subr.bf16.mxu0 0
        %5893 = vmatpush1.bf16.msra.mxu0 0
        %5894 = vmatprep.mubr.bf16.mxu0 0
        %5895 = vmatmul.mubr.bf16.gmra.mrb[0].mxu0 %v5807
        %v5896 = vpop.f32.mrb[0].mxu0
        %v5897 = vadd.f32 %v5786, %v5896
        %v5898 = vpop.f32.mrb[0].mxu0
        %v5899 = vadd.f32 %v5788, %v5898
        %v5900 = vpop.f32.mrb[0].mxu0
        %v5901 = vpop.f32.mrb[0].mxu0
        %5902 = vdwg.mxu0
        %s5903 = scalar_lea.vmem %s6, 32
        %v5904 = vld [vmem:[%s5903] sm:$0xf]
        %5905 = vrot.lane.b32.xlu0 %v5329, 13
        %v5906 = vpop.permute.xlu0 %5905
        %5907 = vrot.lane.b32.xlu0 %v5330, 13
        %v5908 = vpop.permute.xlu0 %5907
        %5909 = vrot.lane.b32.xlu0 %v5331, 13
        %v5910 = vpop.permute.xlu0 %5909
        %5911 = vrot.lane.b32.xlu0 %v5332, 13
        %v5912 = vpop.permute.xlu0 %5911
        %5913 = vrot.lane.b32.xlu0 %v5333, 13
        %v5914 = vpop.permute.xlu0 %5913
        %v5915 = vsel %vm2539, %v5906, %v5908
        %v5916 = vsel %vm2539, %v5908, %v5910
        %v5917 = vsel %vm2539, %v5910, %v5912
        %v5918 = vsel %vm2539, %v5912, %v5914
        %v5920 = vsel %vm4994, %v5904, 0
        %v5923 = vsel %vm3879, %v5915, 0
        %v5926 = vsel %vm3879, %v5916, 0
        %v5929 = vsel %vm3879, %v5917, 0
        %v5932 = vsel %vm3879, %v5918, 0
        %5934 = vmatprep.subr.bf16.mxu0 %v5926
        %5935 = vmatpush1.bf16.msra.mxu0 %v5923
        %5936 = vmatprep.subr.bf16.mxu0 0
        %5937 = vmatpush1.bf16.msra.mxu0 0
        %5938 = vmatprep.subr.bf16.mxu0 0
        %5939 = vmatpush1.bf16.msra.mxu0 0
        %5940 = vmatprep.subr.bf16.mxu0 0
        %5941 = vmatpush1.bf16.msra.mxu0 0
        %5942 = vmatprep.subr.bf16.mxu0 0
        %5943 = vmatpush1.bf16.msra.mxu0 0
        %5944 = vmatprep.subr.bf16.mxu0 0
        %5945 = vmatpush1.bf16.msra.mxu0 0
        %5946 = vmatprep.subr.bf16.mxu0 0
        %5947 = vmatpush1.bf16.msra.mxu0 0
        %5948 = vmatprep.subr.bf16.mxu0 0
        %5949 = vmatpush1.bf16.msra.mxu0 0
        %5950 = vmatprep.subr.bf16.mxu0 0
        %5951 = vmatpush1.bf16.msra.mxu0 0
        %5952 = vmatprep.subr.bf16.mxu0 0
        %5953 = vmatpush1.bf16.msra.mxu0 0
        %5954 = vmatprep.subr.bf16.mxu0 0
        %5955 = vmatpush1.bf16.msra.mxu0 0
        %5956 = vmatprep.subr.bf16.mxu0 0
        %5957 = vmatpush1.bf16.msra.mxu0 0
        %5958 = vmatprep.subr.bf16.mxu0 0
        %5959 = vmatpush1.bf16.msra.mxu0 0
        %5960 = vmatprep.subr.bf16.mxu0 0
        %5961 = vmatpush1.bf16.msra.mxu0 0
        %5962 = vmatprep.subr.bf16.mxu0 0
        %5963 = vmatpush1.bf16.msra.mxu0 0
        %5964 = vmatprep.subr.bf16.mxu0 0
        %5965 = vmatpush1.bf16.msra.mxu0 0
        %5966 = vmatprep.mubr.bf16.mxu0 0
        %5967 = vmatmul.mubr.bf16.gmra.mrb[0].mxu0 %v5920
        %v5968 = vpop.f32.mrb[0].mxu0
        %v5969 = vadd.f32 0.0, %v5968
        %v5970 = vpop.f32.mrb[0].mxu0
        %v5971 = vadd.f32 0.0, %v5970
        %v5972 = vpop.f32.mrb[0].mxu0
        %v5973 = vpop.f32.mrb[0].mxu0
        %5974 = vdwg.mxu0
        %5975 = vmatprep.subr.bf16.mxu0 %v5932
        %5976 = vmatpush1.bf16.msra.mxu0 %v5929
        %5977 = vmatprep.subr.bf16.mxu0 0
        %5978 = vmatpush1.bf16.msra.mxu0 0
        %5979 = vmatprep.subr.bf16.mxu0 0
        %5980 = vmatpush1.bf16.msra.mxu0 0
        %5981 = vmatprep.subr.bf16.mxu0 0
        %5982 = vmatpush1.bf16.msra.mxu0 0
        %5983 = vmatprep.subr.bf16.mxu0 0
        %5984 = vmatpush1.bf16.msra.mxu0 0
        %5985 = vmatprep.subr.bf16.mxu0 0
        %5986 = vmatpush1.bf16.msra.mxu0 0
        %5987 = vmatprep.subr.bf16.mxu0 0
        %5988 = vmatpush1.bf16.msra.mxu0 0
        %5989 = vmatprep.subr.bf16.mxu0 0
        %5990 = vmatpush1.bf16.msra.mxu0 0
        %5991 = vmatprep.subr.bf16.mxu0 0
        %5992 = vmatpush1.bf16.msra.mxu0 0
        %5993 = vmatprep.subr.bf16.mxu0 0
        %5994 = vmatpush1.bf16.msra.mxu0 0
        %5995 = vmatprep.subr.bf16.mxu0 0
        %5996 = vmatpush1.bf16.msra.mxu0 0
        %5997 = vmatprep.subr.bf16.mxu0 0
        %5998 = vmatpush1.bf16.msra.mxu0 0
        %5999 = vmatprep.subr.bf16.mxu0 0
        %6000 = vmatpush1.bf16.msra.mxu0 0
        %6001 = vmatprep.subr.bf16.mxu0 0
        %6002 = vmatpush1.bf16.msra.mxu0 0
        %6003 = vmatprep.subr.bf16.mxu0 0
        %6004 = vmatpush1.bf16.msra.mxu0 0
        %6005 = vmatprep.subr.bf16.mxu0 0
        %6006 = vmatpush1.bf16.msra.mxu0 0
        %6007 = vmatprep.mubr.bf16.mxu0 0
        %6008 = vmatmul.mubr.bf16.gmra.mrb[0].mxu0 %v5920
        %v6009 = vpop.f32.mrb[0].mxu0
        %v6010 = vadd.f32 0.0, %v6009
        %v6011 = vpop.f32.mrb[0].mxu0
        %v6012 = vadd.f32 0.0, %v6011
        %v6013 = vpop.f32.mrb[0].mxu0
        %v6014 = vpop.f32.mrb[0].mxu0
        %6015 = vdwg.mxu0
        %v6016 = vadd.f32 %v5856, %v5969
        %v6017 = vadd.f32 %v5858, %v5971
        %v6018 = vadd.f32 %v5897, %v6010
        %v6019 = vadd.f32 %v5899, %v6012
        %v6020 = vadd.f32 %v5673, %v6016
        %v6021 = vadd.f32 %v5674, %v6017
        %v6022 = vadd.f32 %v5675, %v6018
        %v6023 = vadd.f32 %v5676, %v6019
        %6025 = vset.pattern.permute.xlu0 0
        %6026 = vperm.xlu0 %6025, %v4967
        %v6027 = vpop.permute.xlu0 %6026
        %v6029 = vadd.f32 %v6020, %v6027
        %v6030 = vadd.f32 %v6021, %v6027
        %v6031 = vadd.f32 %v6022, %v6027
        %v6032 = vadd.f32 %v6023, %v6027
        %v6033 = vmax.f32 %v6029, 0.0
        %v6034 = vmax.f32 %v6030, 0.0
        %v6035 = vmax.f32 %v6031, 0.0
        %v6036 = vmax.f32 %v6032, 0.0
        %v6037 = vmul.f32 %v6033, %v1508
        %v6038 = vmul.f32 %v6034, %v1512
        %v6039 = vmul.f32 %v6035, %v1516
        %v6040 = vmul.f32 %v6036, %v1520
        %v6041 = vpack.c.bf16 %v6037, %v6037
        %v6042 = vpack.c.bf16 %v6038, %v6038
        %v6043 = vpack.c.bf16 %v6039, %v6039
        %v6044 = vpack.c.bf16 %v6040, %v6040
        %v6049 = vunpack.c.l.b16 %v6041
        %v6050 = vunpack.c.l.b16 %v6042
        %v6051 = vunpack.c.l.b16 %v6043
        %v6052 = vunpack.c.l.b16 %v6044
        %v6053 = vpack.c.b16 %v6050, %v6049
        %v6054 = vpack.c.b16 %v6052, %v6051
        %6055 = vrot.lane.b32.xlu0 %v6053, 69
        %v6056 = vpop.permute.xlu0 %6055
        %6057 = vrot.lane.b32.xlu0 %v6054, 69
        %v6058 = vpop.permute.xlu0 %6057
        %v6059 = vrot.slane %v6056, 4
        %v6060 = vrot.slane %v6058, 4
        %v6061 = vsel %vm1551, %v6059, %v6056
        %v6062 = vsel %vm1553, %v6059, %v6060
        %v6063 = vsel %vm1551, %v6062, %v6058
        %vm6067 = vcmask 1040936
        %vm6068 = vsmask.f32 256
        %vm6069 = vmand %vm6067, %vm6068
        %vm6070 = vcmask 1044484
        %vm6071 = vsmask.f32 4352
        %vm6072 = vmand %vm6070, %vm6071
        %vm6073 = vmor %vm6072, %vm6069
        %v6074 = vld [vmem:[#allocation2 + $0x14] sm:$0x11]
        %v6075 = vsel %vm6073, %v6061, %v6074
        %6076 = vst [vmem:[#allocation2 + $0x14] sm:$0x11] %v6075
        %vm6077 = vcmask 1040384
        %vm6078 = vmand %vm6077, %vm6068
        %vm6079 = vmor %vm6072, %vm6078
        %v6080 = vld [vmem:[#allocation2 + $0x1c] sm:$0x11]
        %v6081 = vsel %vm6079, %v6063, %v6080
        %6082 = vst [vmem:[#allocation2 + $0x1c] sm:$0x11] %v6081
        %vm6083 = vcmask 327680
        %vm6084 = vmand %vm6083, %vm6068
        %v6085 = vld [vmem:[#allocation2 + $0x24] sm:$0x1]
        %v6086 = vsel %vm6084, %v6060, %v6085
        %6087 = vst [vmem:[#allocation2 + $0x24] sm:$0x1] %v6086
        %s6088 = scalar_lea.vmem %s8, 40
        %v6089 = vld [vmem:[%s6088] sm:$0xff]
        %v6090 = vld [vmem:[#allocation2] sm:$0xff]
        %v6091 = vld [vmem:[#allocation2 + $0x8] sm:$0xff]
        %v6092 = vld [vmem:[#allocation2 + $0x14] sm:$0x11]
        %v6093 = vld [vmem:[#allocation2 + $0x1c] sm:$0x11]
        %v6094 = vld [vmem:[%s7] sm:$0xf]
        %s6095 = scalar_lea.vmem %s7, 4
        %v6096 = vld [vmem:[%s6095] sm:$0xf]
        %v6101 = vunpack.c.l.b16 %v6090
        %v6102 = vunpack.c.h.b16 %v6090
        %v6103 = vunpack.c.l.b16 %v6091
        %v6104 = vunpack.c.h.b16 %v6091
        %v6105 = vunpack.c.l.b16 %v6092
        %v6106 = vunpack.c.h.b16 %v6092
        %v6107 = vunpack.c.l.b16 %v6093
        %v6108 = vunpack.c.h.b16 %v6093
        %v6109 = vpack.c.b16 %v6105, %v6101
        %v6110 = vpack.c.b16 %v6106, %v6102
        %v6111 = vpack.c.b16 %v6107, %v6103
        %v6112 = vpack.c.b16 %v6108, %v6104
        %6113 = vrot.lane.b32.xlu0 %v6109, 125
        %v6114 = vpop.permute.xlu0 %6113
        %6115 = vrot.lane.b32.xlu0 %v6110, 125
        %v6116 = vpop.permute.xlu0 %6115
        %6117 = vrot.lane.b32.xlu0 %v6111, 125
        %v6118 = vpop.permute.xlu0 %6117
        %6119 = vrot.lane.b32.xlu0 %v6112, 125
        %v6120 = vpop.permute.xlu0 %6119
        %v6121 = vsel %vm2742, %v6114, %v6116
        %v6122 = vsel %vm2742, %v6116, %v6118
        %v6123 = vsel %vm2742, %v6118, %v6120
        %vm6124 = vcmask 72704
        %v6126 = vsel %vm6124, %v6096, 0
        %vm6128 = vcmask 1044480
        %v6129 = vsel %vm3879, 4294967295, 65535
        %v6130 = vsel %vm6128, %v6129, 0
        %v6132 = vand.u32 %v6121, %v6130
        %v6135 = vand.u32 %v6122, %v6130
        %v6138 = vand.u32 %v6123, %v6130
        %v6141 = vand.u32 %v6120, %v6130
        %6143 = vmatprep.subr.bf16.mxu0 %v6135
        %6144 = vmatpush1.bf16.msra.mxu0 %v6132
        %6145 = vmatprep.subr.bf16.mxu0 0
        %6146 = vmatpush1.bf16.msra.mxu0 0
        %6147 = vmatprep.subr.bf16.mxu0 0
        %6148 = vmatpush1.bf16.msra.mxu0 0
        %6149 = vmatprep.subr.bf16.mxu0 0
        %6150 = vmatpush1.bf16.msra.mxu0 0
        %6151 = vmatprep.subr.bf16.mxu0 0
        %6152 = vmatpush1.bf16.msra.mxu0 0
        %6153 = vmatprep.subr.bf16.mxu0 0
        %6154 = vmatpush1.bf16.msra.mxu0 0
        %6155 = vmatprep.subr.bf16.mxu0 0
        %6156 = vmatpush1.bf16.msra.mxu0 0
        %6157 = vmatprep.subr.bf16.mxu0 0
        %6158 = vmatpush1.bf16.msra.mxu0 0
        %6159 = vmatprep.subr.bf16.mxu0 0
        %6160 = vmatpush1.bf16.msra.mxu0 0
        %6161 = vmatprep.subr.bf16.mxu0 0
        %6162 = vmatpush1.bf16.msra.mxu0 0
        %6163 = vmatprep.subr.bf16.mxu0 0
        %6164 = vmatpush1.bf16.msra.mxu0 0
        %6165 = vmatprep.subr.bf16.mxu0 0
        %6166 = vmatpush1.bf16.msra.mxu0 0
        %6167 = vmatprep.subr.bf16.mxu0 0
        %6168 = vmatpush1.bf16.msra.mxu0 0
        %6169 = vmatprep.subr.bf16.mxu0 0
        %6170 = vmatpush1.bf16.msra.mxu0 0
        %6171 = vmatprep.subr.bf16.mxu0 0
        %6172 = vmatpush1.bf16.msra.mxu0 0
        %6173 = vmatprep.subr.bf16.mxu0 0
        %6174 = vmatpush1.bf16.msra.mxu0 0
        %6175 = vmatprep.mubr.bf16.mxu0 0
        %6176 = vmatmul.mubr.bf16.gmra.mrb[0].mxu0 %v6126
        %v6177 = vpop.f32.mrb[0].mxu0
        %v6178 = vadd.f32 0.0, %v6177
        %v6179 = vpop.f32.mrb[0].mxu0
        %v6180 = vadd.f32 0.0, %v6179
        %v6181 = vpop.f32.mrb[0].mxu0
        %v6182 = vpop.f32.mrb[0].mxu0
        %6183 = vdwg.mxu0
        %6184 = vmatprep.subr.bf16.mxu0 %v6141
        %6185 = vmatpush1.bf16.msra.mxu0 %v6138
        %6186 = vmatprep.subr.bf16.mxu0 0
        %6187 = vmatpush1.bf16.msra.mxu0 0
        %6188 = vmatprep.subr.bf16.mxu0 0
        %6189 = vmatpush1.bf16.msra.mxu0 0
        %6190 = vmatprep.subr.bf16.mxu0 0
        %6191 = vmatpush1.bf16.msra.mxu0 0
        %6192 = vmatprep.subr.bf16.mxu0 0
        %6193 = vmatpush1.bf16.msra.mxu0 0
        %6194 = vmatprep.subr.bf16.mxu0 0
        %6195 = vmatpush1.bf16.msra.mxu0 0
        %6196 = vmatprep.subr.bf16.mxu0 0
        %6197 = vmatpush1.bf16.msra.mxu0 0
        %6198 = vmatprep.subr.bf16.mxu0 0
        %6199 = vmatpush1.bf16.msra.mxu0 0
        %6200 = vmatprep.subr.bf16.mxu0 0
        %6201 = vmatpush1.bf16.msra.mxu0 0
        %6202 = vmatprep.subr.bf16.mxu0 0
        %6203 = vmatpush1.bf16.msra.mxu0 0
        %6204 = vmatprep.subr.bf16.mxu0 0
        %6205 = vmatpush1.bf16.msra.mxu0 0
        %6206 = vmatprep.subr.bf16.mxu0 0
        %6207 = vmatpush1.bf16.msra.mxu0 0
        %6208 = vmatprep.subr.bf16.mxu0 0
        %6209 = vmatpush1.bf16.msra.mxu0 0
        %6210 = vmatprep.subr.bf16.mxu0 0
        %6211 = vmatpush1.bf16.msra.mxu0 0
        %6212 = vmatprep.subr.bf16.mxu0 0
        %6213 = vmatpush1.bf16.msra.mxu0 0
        %6214 = vmatprep.subr.bf16.mxu0 0
        %6215 = vmatpush1.bf16.msra.mxu0 0
        %6216 = vmatprep.mubr.bf16.mxu0 0
        %6217 = vmatmul.mubr.bf16.gmra.mrb[0].mxu0 %v6126
        %v6218 = vpop.f32.mrb[0].mxu0
        %v6219 = vadd.f32 0.0, %v6218
        %v6220 = vpop.f32.mrb[0].mxu0
        %v6221 = vadd.f32 0.0, %v6220
        %v6222 = vpop.f32.mrb[0].mxu0
        %v6223 = vpop.f32.mrb[0].mxu0
        %6224 = vdwg.mxu0
        %v6226 = vsel %vm6124, %v6094, 0
        %v6229 = vand.u32 %v6109, %v6130
        %v6232 = vand.u32 %v6110, %v6130
        %v6235 = vand.u32 %v6111, %v6130
        %v6238 = vand.u32 %v6112, %v6130
        %6240 = vmatprep.subr.bf16.mxu0 %v6232
        %6241 = vmatpush1.bf16.msra.mxu0 %v6229
        %6242 = vmatprep.subr.bf16.mxu0 0
        %6243 = vmatpush1.bf16.msra.mxu0 0
        %6244 = vmatprep.subr.bf16.mxu0 0
        %6245 = vmatpush1.bf16.msra.mxu0 0
        %6246 = vmatprep.subr.bf16.mxu0 0
        %6247 = vmatpush1.bf16.msra.mxu0 0
        %6248 = vmatprep.subr.bf16.mxu0 0
        %6249 = vmatpush1.bf16.msra.mxu0 0
        %6250 = vmatprep.subr.bf16.mxu0 0
        %6251 = vmatpush1.bf16.msra.mxu0 0
        %6252 = vmatprep.subr.bf16.mxu0 0
        %6253 = vmatpush1.bf16.msra.mxu0 0
        %6254 = vmatprep.subr.bf16.mxu0 0
        %6255 = vmatpush1.bf16.msra.mxu0 0
        %6256 = vmatprep.subr.bf16.mxu0 0
        %6257 = vmatpush1.bf16.msra.mxu0 0
        %6258 = vmatprep.subr.bf16.mxu0 0
        %6259 = vmatpush1.bf16.msra.mxu0 0
        %6260 = vmatprep.subr.bf16.mxu0 0
        %6261 = vmatpush1.bf16.msra.mxu0 0
        %6262 = vmatprep.subr.bf16.mxu0 0
        %6263 = vmatpush1.bf16.msra.mxu0 0
        %6264 = vmatprep.subr.bf16.mxu0 0
        %6265 = vmatpush1.bf16.msra.mxu0 0
        %6266 = vmatprep.subr.bf16.mxu0 0
        %6267 = vmatpush1.bf16.msra.mxu0 0
        %6268 = vmatprep.subr.bf16.mxu0 0
        %6269 = vmatpush1.bf16.msra.mxu0 0
        %6270 = vmatprep.subr.bf16.mxu0 0
        %6271 = vmatpush1.bf16.msra.mxu0 0
        %6272 = vmatprep.mubr.bf16.mxu0 0
        %6273 = vmatmul.mubr.bf16.gmra.mrb[0].mxu0 %v6226
        %v6274 = vpop.f32.mrb[0].mxu0
        %v6275 = vadd.f32 %v6178, %v6274
        %v6276 = vpop.f32.mrb[0].mxu0
        %v6277 = vadd.f32 %v6180, %v6276
        %v6278 = vpop.f32.mrb[0].mxu0
        %v6279 = vpop.f32.mrb[0].mxu0
        %6280 = vdwg.mxu0
        %6281 = vmatprep.subr.bf16.mxu0 %v6238
        %6282 = vmatpush1.bf16.msra.mxu0 %v6235
        %6283 = vmatprep.subr.bf16.mxu0 0
        %6284 = vmatpush1.bf16.msra.mxu0 0
        %6285 = vmatprep.subr.bf16.mxu0 0
        %6286 = vmatpush1.bf16.msra.mxu0 0
        %6287 = vmatprep.subr.bf16.mxu0 0
        %6288 = vmatpush1.bf16.msra.mxu0 0
        %6289 = vmatprep.subr.bf16.mxu0 0
        %6290 = vmatpush1.bf16.msra.mxu0 0
        %6291 = vmatprep.subr.bf16.mxu0 0
        %6292 = vmatpush1.bf16.msra.mxu0 0
        %6293 = vmatprep.subr.bf16.mxu0 0
        %6294 = vmatpush1.bf16.msra.mxu0 0
        %6295 = vmatprep.subr.bf16.mxu0 0
        %6296 = vmatpush1.bf16.msra.mxu0 0
        %6297 = vmatprep.subr.bf16.mxu0 0
        %6298 = vmatpush1.bf16.msra.mxu0 0
        %6299 = vmatprep.subr.bf16.mxu0 0
        %6300 = vmatpush1.bf16.msra.mxu0 0
        %6301 = vmatprep.subr.bf16.mxu0 0
        %6302 = vmatpush1.bf16.msra.mxu0 0
        %6303 = vmatprep.subr.bf16.mxu0 0
        %6304 = vmatpush1.bf16.msra.mxu0 0
        %6305 = vmatprep.subr.bf16.mxu0 0
        %6306 = vmatpush1.bf16.msra.mxu0 0
        %6307 = vmatprep.subr.bf16.mxu0 0
        %6308 = vmatpush1.bf16.msra.mxu0 0
        %6309 = vmatprep.subr.bf16.mxu0 0
        %6310 = vmatpush1.bf16.msra.mxu0 0
        %6311 = vmatprep.subr.bf16.mxu0 0
        %6312 = vmatpush1.bf16.msra.mxu0 0
        %6313 = vmatprep.mubr.bf16.mxu0 0
        %6314 = vmatmul.mubr.bf16.gmra.mrb[0].mxu0 %v6226
        %v6315 = vpop.f32.mrb[0].mxu0
        %v6316 = vadd.f32 %v6219, %v6315
        %v6317 = vpop.f32.mrb[0].mxu0
        %v6318 = vadd.f32 %v6221, %v6317
        %v6319 = vpop.f32.mrb[0].mxu0
        %v6320 = vpop.f32.mrb[0].mxu0
        %6321 = vdwg.mxu0
        %s6322 = scalar_lea.vmem %s7, 8
        %v6323 = vld [vmem:[%s6322] sm:$0xf]
        %6324 = vrot.lane.b32.xlu0 %v6109, 122
        %v6325 = vpop.permute.xlu0 %6324
        %6326 = vrot.lane.b32.xlu0 %v6110, 122
        %v6327 = vpop.permute.xlu0 %6326
        %6328 = vrot.lane.b32.xlu0 %v6111, 122
        %v6329 = vpop.permute.xlu0 %6328
        %6330 = vrot.lane.b32.xlu0 %v6112, 122
        %v6331 = vpop.permute.xlu0 %6330
        %v6332 = vsel %vm2951, %v6325, %v6327
        %v6333 = vsel %vm2951, %v6327, %v6329
        %v6334 = vsel %vm2951, %v6329, %v6331
        %v6336 = vsel %vm6124, %v6323, 0
        %v6339 = vand.u32 %v6332, %v6130
        %v6342 = vand.u32 %v6333, %v6130
        %v6345 = vand.u32 %v6334, %v6130
        %v6348 = vand.u32 %v6331, %v6130
        %6350 = vmatprep.subr.bf16.mxu0 %v6342
        %6351 = vmatpush1.bf16.msra.mxu0 %v6339
        %6352 = vmatprep.subr.bf16.mxu0 0
        %6353 = vmatpush1.bf16.msra.mxu0 0
        %6354 = vmatprep.subr.bf16.mxu0 0
        %6355 = vmatpush1.bf16.msra.mxu0 0
        %6356 = vmatprep.subr.bf16.mxu0 0
        %6357 = vmatpush1.bf16.msra.mxu0 0
        %6358 = vmatprep.subr.bf16.mxu0 0
        %6359 = vmatpush1.bf16.msra.mxu0 0
        %6360 = vmatprep.subr.bf16.mxu0 0
        %6361 = vmatpush1.bf16.msra.mxu0 0
        %6362 = vmatprep.subr.bf16.mxu0 0
        %6363 = vmatpush1.bf16.msra.mxu0 0
        %6364 = vmatprep.subr.bf16.mxu0 0
        %6365 = vmatpush1.bf16.msra.mxu0 0
        %6366 = vmatprep.subr.bf16.mxu0 0
        %6367 = vmatpush1.bf16.msra.mxu0 0
        %6368 = vmatprep.subr.bf16.mxu0 0
        %6369 = vmatpush1.bf16.msra.mxu0 0
        %6370 = vmatprep.subr.bf16.mxu0 0
        %6371 = vmatpush1.bf16.msra.mxu0 0
        %6372 = vmatprep.subr.bf16.mxu0 0
        %6373 = vmatpush1.bf16.msra.mxu0 0
        %6374 = vmatprep.subr.bf16.mxu0 0
        %6375 = vmatpush1.bf16.msra.mxu0 0
        %6376 = vmatprep.subr.bf16.mxu0 0
        %6377 = vmatpush1.bf16.msra.mxu0 0
        %6378 = vmatprep.subr.bf16.mxu0 0
        %6379 = vmatpush1.bf16.msra.mxu0 0
        %6380 = vmatprep.subr.bf16.mxu0 0
        %6381 = vmatpush1.bf16.msra.mxu0 0
        %6382 = vmatprep.mubr.bf16.mxu0 0
        %6383 = vmatmul.mubr.bf16.gmra.mrb[0].mxu0 %v6336
        %v6384 = vpop.f32.mrb[0].mxu0
        %v6385 = vadd.f32 0.0, %v6384
        %v6386 = vpop.f32.mrb[0].mxu0
        %v6387 = vadd.f32 0.0, %v6386
        %v6388 = vpop.f32.mrb[0].mxu0
        %v6389 = vpop.f32.mrb[0].mxu0
        %6390 = vdwg.mxu0
        %6391 = vmatprep.subr.bf16.mxu0 %v6348
        %6392 = vmatpush1.bf16.msra.mxu0 %v6345
        %6393 = vmatprep.subr.bf16.mxu0 0
        %6394 = vmatpush1.bf16.msra.mxu0 0
        %6395 = vmatprep.subr.bf16.mxu0 0
        %6396 = vmatpush1.bf16.msra.mxu0 0
        %6397 = vmatprep.subr.bf16.mxu0 0
        %6398 = vmatpush1.bf16.msra.mxu0 0
        %6399 = vmatprep.subr.bf16.mxu0 0
        %6400 = vmatpush1.bf16.msra.mxu0 0
        %6401 = vmatprep.subr.bf16.mxu0 0
        %6402 = vmatpush1.bf16.msra.mxu0 0
        %6403 = vmatprep.subr.bf16.mxu0 0
        %6404 = vmatpush1.bf16.msra.mxu0 0
        %6405 = vmatprep.subr.bf16.mxu0 0
        %6406 = vmatpush1.bf16.msra.mxu0 0
        %6407 = vmatprep.subr.bf16.mxu0 0
        %6408 = vmatpush1.bf16.msra.mxu0 0
        %6409 = vmatprep.subr.bf16.mxu0 0
        %6410 = vmatpush1.bf16.msra.mxu0 0
        %6411 = vmatprep.subr.bf16.mxu0 0
        %6412 = vmatpush1.bf16.msra.mxu0 0
        %6413 = vmatprep.subr.bf16.mxu0 0
        %6414 = vmatpush1.bf16.msra.mxu0 0
        %6415 = vmatprep.subr.bf16.mxu0 0
        %6416 = vmatpush1.bf16.msra.mxu0 0
        %6417 = vmatprep.subr.bf16.mxu0 0
        %6418 = vmatpush1.bf16.msra.mxu0 0
        %6419 = vmatprep.subr.bf16.mxu0 0
        %6420 = vmatpush1.bf16.msra.mxu0 0
        %6421 = vmatprep.subr.bf16.mxu0 0
        %6422 = vmatpush1.bf16.msra.mxu0 0
        %6423 = vmatprep.mubr.bf16.mxu0 0
        %6424 = vmatmul.mubr.bf16.gmra.mrb[0].mxu0 %v6336
        %v6425 = vpop.f32.mrb[0].mxu0
        %v6426 = vadd.f32 0.0, %v6425
        %v6427 = vpop.f32.mrb[0].mxu0
        %v6428 = vadd.f32 0.0, %v6427
        %v6429 = vpop.f32.mrb[0].mxu0
        %v6430 = vpop.f32.mrb[0].mxu0
        %6431 = vdwg.mxu0
        %v6432 = vadd.f32 %v6275, %v6385
        %v6433 = vadd.f32 %v6277, %v6387
        %v6434 = vadd.f32 %v6316, %v6426
        %v6435 = vadd.f32 %v6318, %v6428
        %v6436 = vld [vmem:[#allocation2] sm:$0xff]
        %v6437 = vld [vmem:[#allocation2 + $0x8] sm:$0xff]
        %v6438 = vld [vmem:[#allocation2 + $0x10] sm:$0xf]
        %v6439 = vld [vmem:[#allocation2 + $0x14] sm:$0x11]
        %v6440 = vld [vmem:[#allocation2 + $0x1c] sm:$0x11]
        %v6441 = vld [vmem:[#allocation2 + $0x24] sm:$0x1]
        %s6442 = scalar_lea.vmem %s7, 12
        %v6443 = vld [vmem:[%s6442] sm:$0xf]
        %s6444 = scalar_lea.vmem %s7, 16
        %v6445 = vld [vmem:[%s6444] sm:$0xf]
        %v6452 = vunpack.c.l.b16 %v6436
        %v6453 = vunpack.c.h.b16 %v6436
        %v6454 = vunpack.c.l.b16 %v6437
        %v6455 = vunpack.c.h.b16 %v6437
        %v6456 = vunpack.c.l.b16 %v6438
        %v6457 = vunpack.c.l.b16 %v6439
        %v6458 = vunpack.c.h.b16 %v6439
        %v6459 = vunpack.c.l.b16 %v6440
        %v6460 = vunpack.c.h.b16 %v6440
        %v6461 = vunpack.c.l.b16 %v6441
        %v6462 = vpack.c.b16 %v6457, %v6452
        %v6463 = vpack.c.b16 %v6458, %v6453
        %v6464 = vpack.c.b16 %v6459, %v6454
        %v6465 = vpack.c.b16 %v6460, %v6455
        %v6466 = vpack.c.b16 %v6461, %v6456
        %6467 = vrot.lane.b32.xlu0 %v6462, 59
        %v6468 = vpop.permute.xlu0 %6467
        %6469 = vrot.lane.b32.xlu0 %v6463, 59
        %v6470 = vpop.permute.xlu0 %6469
        %6471 = vrot.lane.b32.xlu0 %v6464, 59
        %v6472 = vpop.permute.xlu0 %6471
        %6473 = vrot.lane.b32.xlu0 %v6465, 59
        %v6474 = vpop.permute.xlu0 %6473
        %6475 = vrot.lane.b32.xlu0 %v6466, 59
        %v6476 = vpop.permute.xlu0 %6475
        %v6477 = vsel %vm805, %v6468, %v6470
        %v6478 = vsel %vm805, %v6470, %v6472
        %v6479 = vsel %vm805, %v6472, %v6474
        %v6480 = vsel %vm805, %v6474, %v6476
        %v6482 = vsel %vm6124, %v6445, 0
        %v6485 = vand.u32 %v6477, %v6130
        %v6488 = vand.u32 %v6478, %v6130
        %v6491 = vand.u32 %v6479, %v6130
        %v6494 = vand.u32 %v6480, %v6130
        %6496 = vmatprep.subr.bf16.mxu0 %v6488
        %6497 = vmatpush1.bf16.msra.mxu0 %v6485
        %6498 = vmatprep.subr.bf16.mxu0 0
        %6499 = vmatpush1.bf16.msra.mxu0 0
        %6500 = vmatprep.subr.bf16.mxu0 0
        %6501 = vmatpush1.bf16.msra.mxu0 0
        %6502 = vmatprep.subr.bf16.mxu0 0
        %6503 = vmatpush1.bf16.msra.mxu0 0
        %6504 = vmatprep.subr.bf16.mxu0 0
        %6505 = vmatpush1.bf16.msra.mxu0 0
        %6506 = vmatprep.subr.bf16.mxu0 0
        %6507 = vmatpush1.bf16.msra.mxu0 0
        %6508 = vmatprep.subr.bf16.mxu0 0
        %6509 = vmatpush1.bf16.msra.mxu0 0
        %6510 = vmatprep.subr.bf16.mxu0 0
        %6511 = vmatpush1.bf16.msra.mxu0 0
        %6512 = vmatprep.subr.bf16.mxu0 0
        %6513 = vmatpush1.bf16.msra.mxu0 0
        %6514 = vmatprep.subr.bf16.mxu0 0
        %6515 = vmatpush1.bf16.msra.mxu0 0
        %6516 = vmatprep.subr.bf16.mxu0 0
        %6517 = vmatpush1.bf16.msra.mxu0 0
        %6518 = vmatprep.subr.bf16.mxu0 0
        %6519 = vmatpush1.bf16.msra.mxu0 0
        %6520 = vmatprep.subr.bf16.mxu0 0
        %6521 = vmatpush1.bf16.msra.mxu0 0
        %6522 = vmatprep.subr.bf16.mxu0 0
        %6523 = vmatpush1.bf16.msra.mxu0 0
        %6524 = vmatprep.subr.bf16.mxu0 0
        %6525 = vmatpush1.bf16.msra.mxu0 0
        %6526 = vmatprep.subr.bf16.mxu0 0
        %6527 = vmatpush1.bf16.msra.mxu0 0
        %6528 = vmatprep.mubr.bf16.mxu0 0
        %6529 = vmatmul.mubr.bf16.gmra.mrb[0].mxu0 %v6482
        %v6530 = vpop.f32.mrb[0].mxu0
        %v6531 = vadd.f32 0.0, %v6530
        %v6532 = vpop.f32.mrb[0].mxu0
        %v6533 = vadd.f32 0.0, %v6532
        %v6534 = vpop.f32.mrb[0].mxu0
        %v6535 = vpop.f32.mrb[0].mxu0
        %6536 = vdwg.mxu0
        %6537 = vmatprep.subr.bf16.mxu0 %v6494
        %6538 = vmatpush1.bf16.msra.mxu0 %v6491
        %6539 = vmatprep.subr.bf16.mxu0 0
        %6540 = vmatpush1.bf16.msra.mxu0 0
        %6541 = vmatprep.subr.bf16.mxu0 0
        %6542 = vmatpush1.bf16.msra.mxu0 0
        %6543 = vmatprep.subr.bf16.mxu0 0
        %6544 = vmatpush1.bf16.msra.mxu0 0
        %6545 = vmatprep.subr.bf16.mxu0 0
        %6546 = vmatpush1.bf16.msra.mxu0 0
        %6547 = vmatprep.subr.bf16.mxu0 0
        %6548 = vmatpush1.bf16.msra.mxu0 0
        %6549 = vmatprep.subr.bf16.mxu0 0
        %6550 = vmatpush1.bf16.msra.mxu0 0
        %6551 = vmatprep.subr.bf16.mxu0 0
        %6552 = vmatpush1.bf16.msra.mxu0 0
        %6553 = vmatprep.subr.bf16.mxu0 0
        %6554 = vmatpush1.bf16.msra.mxu0 0
        %6555 = vmatprep.subr.bf16.mxu0 0
        %6556 = vmatpush1.bf16.msra.mxu0 0
        %6557 = vmatprep.subr.bf16.mxu0 0
        %6558 = vmatpush1.bf16.msra.mxu0 0
        %6559 = vmatprep.subr.bf16.mxu0 0
        %6560 = vmatpush1.bf16.msra.mxu0 0
        %6561 = vmatprep.subr.bf16.mxu0 0
        %6562 = vmatpush1.bf16.msra.mxu0 0
        %6563 = vmatprep.subr.bf16.mxu0 0
        %6564 = vmatpush1.bf16.msra.mxu0 0
        %6565 = vmatprep.subr.bf16.mxu0 0
        %6566 = vmatpush1.bf16.msra.mxu0 0
        %6567 = vmatprep.subr.bf16.mxu0 0
        %6568 = vmatpush1.bf16.msra.mxu0 0
        %6569 = vmatprep.mubr.bf16.mxu0 0
        %6570 = vmatmul.mubr.bf16.gmra.mrb[0].mxu0 %v6482
        %v6571 = vpop.f32.mrb[0].mxu0
        %v6572 = vadd.f32 0.0, %v6571
        %v6573 = vpop.f32.mrb[0].mxu0
        %v6574 = vadd.f32 0.0, %v6573
        %v6575 = vpop.f32.mrb[0].mxu0
        %v6576 = vpop.f32.mrb[0].mxu0
        %6577 = vdwg.mxu0
        %6578 = vrot.lane.b32.xlu0 %v6462, 62
        %v6579 = vpop.permute.xlu0 %6578
        %6580 = vrot.lane.b32.xlu0 %v6463, 62
        %v6581 = vpop.permute.xlu0 %6580
        %6582 = vrot.lane.b32.xlu0 %v6464, 62
        %v6583 = vpop.permute.xlu0 %6582
        %6584 = vrot.lane.b32.xlu0 %v6465, 62
        %v6585 = vpop.permute.xlu0 %6584
        %6586 = vrot.lane.b32.xlu0 %v6466, 62
        %v6587 = vpop.permute.xlu0 %6586
        %v6588 = vsel %vm3197, %v6579, %v6581
        %v6589 = vsel %vm3197, %v6581, %v6583
        %v6590 = vsel %vm3197, %v6583, %v6585
        %v6591 = vsel %vm3197, %v6585, %v6587
        %v6593 = vsel %vm6124, %v6443, 0
        %v6596 = vand.u32 %v6588, %v6130
        %v6599 = vand.u32 %v6589, %v6130
        %v6602 = vand.u32 %v6590, %v6130
        %v6605 = vand.u32 %v6591, %v6130
        %6607 = vmatprep.subr.bf16.mxu0 %v6599
        %6608 = vmatpush1.bf16.msra.mxu0 %v6596
        %6609 = vmatprep.subr.bf16.mxu0 0
        %6610 = vmatpush1.bf16.msra.mxu0 0
        %6611 = vmatprep.subr.bf16.mxu0 0
        %6612 = vmatpush1.bf16.msra.mxu0 0
        %6613 = vmatprep.subr.bf16.mxu0 0
        %6614 = vmatpush1.bf16.msra.mxu0 0
        %6615 = vmatprep.subr.bf16.mxu0 0
        %6616 = vmatpush1.bf16.msra.mxu0 0
        %6617 = vmatprep.subr.bf16.mxu0 0
        %6618 = vmatpush1.bf16.msra.mxu0 0
        %6619 = vmatprep.subr.bf16.mxu0 0
        %6620 = vmatpush1.bf16.msra.mxu0 0
        %6621 = vmatprep.subr.bf16.mxu0 0
        %6622 = vmatpush1.bf16.msra.mxu0 0
        %6623 = vmatprep.subr.bf16.mxu0 0
        %6624 = vmatpush1.bf16.msra.mxu0 0
        %6625 = vmatprep.subr.bf16.mxu0 0
        %6626 = vmatpush1.bf16.msra.mxu0 0
        %6627 = vmatprep.subr.bf16.mxu0 0
        %6628 = vmatpush1.bf16.msra.mxu0 0
        %6629 = vmatprep.subr.bf16.mxu0 0
        %6630 = vmatpush1.bf16.msra.mxu0 0
        %6631 = vmatprep.subr.bf16.mxu0 0
        %6632 = vmatpush1.bf16.msra.mxu0 0
        %6633 = vmatprep.subr.bf16.mxu0 0
        %6634 = vmatpush1.bf16.msra.mxu0 0
        %6635 = vmatprep.subr.bf16.mxu0 0
        %6636 = vmatpush1.bf16.msra.mxu0 0
        %6637 = vmatprep.subr.bf16.mxu0 0
        %6638 = vmatpush1.bf16.msra.mxu0 0
        %6639 = vmatprep.mubr.bf16.mxu0 0
        %6640 = vmatmul.mubr.bf16.gmra.mrb[0].mxu0 %v6593
        %v6641 = vpop.f32.mrb[0].mxu0
        %v6642 = vadd.f32 %v6531, %v6641
        %v6643 = vpop.f32.mrb[0].mxu0
        %v6644 = vadd.f32 %v6533, %v6643
        %v6645 = vpop.f32.mrb[0].mxu0
        %v6646 = vpop.f32.mrb[0].mxu0
        %6647 = vdwg.mxu0
        %6648 = vmatprep.subr.bf16.mxu0 %v6605
        %6649 = vmatpush1.bf16.msra.mxu0 %v6602
        %6650 = vmatprep.subr.bf16.mxu0 0
        %6651 = vmatpush1.bf16.msra.mxu0 0
        %6652 = vmatprep.subr.bf16.mxu0 0
        %6653 = vmatpush1.bf16.msra.mxu0 0
        %6654 = vmatprep.subr.bf16.mxu0 0
        %6655 = vmatpush1.bf16.msra.mxu0 0
        %6656 = vmatprep.subr.bf16.mxu0 0
        %6657 = vmatpush1.bf16.msra.mxu0 0
        %6658 = vmatprep.subr.bf16.mxu0 0
        %6659 = vmatpush1.bf16.msra.mxu0 0
        %6660 = vmatprep.subr.bf16.mxu0 0
        %6661 = vmatpush1.bf16.msra.mxu0 0
        %6662 = vmatprep.subr.bf16.mxu0 0
        %6663 = vmatpush1.bf16.msra.mxu0 0
        %6664 = vmatprep.subr.bf16.mxu0 0
        %6665 = vmatpush1.bf16.msra.mxu0 0
        %6666 = vmatprep.subr.bf16.mxu0 0
        %6667 = vmatpush1.bf16.msra.mxu0 0
        %6668 = vmatprep.subr.bf16.mxu0 0
        %6669 = vmatpush1.bf16.msra.mxu0 0
        %6670 = vmatprep.subr.bf16.mxu0 0
        %6671 = vmatpush1.bf16.msra.mxu0 0
        %6672 = vmatprep.subr.bf16.mxu0 0
        %6673 = vmatpush1.bf16.msra.mxu0 0
        %6674 = vmatprep.subr.bf16.mxu0 0
        %6675 = vmatpush1.bf16.msra.mxu0 0
        %6676 = vmatprep.subr.bf16.mxu0 0
        %6677 = vmatpush1.bf16.msra.mxu0 0
        %6678 = vmatprep.subr.bf16.mxu0 0
        %6679 = vmatpush1.bf16.msra.mxu0 0
        %6680 = vmatprep.mubr.bf16.mxu0 0
        %6681 = vmatmul.mubr.bf16.gmra.mrb[0].mxu0 %v6593
        %v6682 = vpop.f32.mrb[0].mxu0
        %v6683 = vadd.f32 %v6572, %v6682
        %v6684 = vpop.f32.mrb[0].mxu0
        %v6685 = vadd.f32 %v6574, %v6684
        %v6686 = vpop.f32.mrb[0].mxu0
        %v6687 = vpop.f32.mrb[0].mxu0
        %6688 = vdwg.mxu0
        %s6689 = scalar_lea.vmem %s7, 20
        %v6690 = vld [vmem:[%s6689] sm:$0xf]
        %6691 = vrot.lane.b32.xlu0 %v6462, 56
        %v6692 = vpop.permute.xlu0 %6691
        %6693 = vrot.lane.b32.xlu0 %v6463, 56
        %v6694 = vpop.permute.xlu0 %6693
        %6695 = vrot.lane.b32.xlu0 %v6464, 56
        %v6696 = vpop.permute.xlu0 %6695
        %6697 = vrot.lane.b32.xlu0 %v6465, 56
        %v6698 = vpop.permute.xlu0 %6697
        %6699 = vrot.lane.b32.xlu0 %v6466, 56
        %v6700 = vpop.permute.xlu0 %6699
        %v6701 = vsel %vm3311, %v6692, %v6694
        %v6702 = vsel %vm3311, %v6694, %v6696
        %v6703 = vsel %vm3311, %v6696, %v6698
        %v6704 = vsel %vm3311, %v6698, %v6700
        %v6706 = vsel %vm6124, %v6690, 0
        %v6709 = vand.u32 %v6701, %v6130
        %v6712 = vand.u32 %v6702, %v6130
        %v6715 = vand.u32 %v6703, %v6130
        %v6718 = vand.u32 %v6704, %v6130
        %6720 = vmatprep.subr.bf16.mxu0 %v6712
        %6721 = vmatpush1.bf16.msra.mxu0 %v6709
        %6722 = vmatprep.subr.bf16.mxu0 0
        %6723 = vmatpush1.bf16.msra.mxu0 0
        %6724 = vmatprep.subr.bf16.mxu0 0
        %6725 = vmatpush1.bf16.msra.mxu0 0
        %6726 = vmatprep.subr.bf16.mxu0 0
        %6727 = vmatpush1.bf16.msra.mxu0 0
        %6728 = vmatprep.subr.bf16.mxu0 0
        %6729 = vmatpush1.bf16.msra.mxu0 0
        %6730 = vmatprep.subr.bf16.mxu0 0
        %6731 = vmatpush1.bf16.msra.mxu0 0
        %6732 = vmatprep.subr.bf16.mxu0 0
        %6733 = vmatpush1.bf16.msra.mxu0 0
        %6734 = vmatprep.subr.bf16.mxu0 0
        %6735 = vmatpush1.bf16.msra.mxu0 0
        %6736 = vmatprep.subr.bf16.mxu0 0
        %6737 = vmatpush1.bf16.msra.mxu0 0
        %6738 = vmatprep.subr.bf16.mxu0 0
        %6739 = vmatpush1.bf16.msra.mxu0 0
        %6740 = vmatprep.subr.bf16.mxu0 0
        %6741 = vmatpush1.bf16.msra.mxu0 0
        %6742 = vmatprep.subr.bf16.mxu0 0
        %6743 = vmatpush1.bf16.msra.mxu0 0
        %6744 = vmatprep.subr.bf16.mxu0 0
        %6745 = vmatpush1.bf16.msra.mxu0 0
        %6746 = vmatprep.subr.bf16.mxu0 0
        %6747 = vmatpush1.bf16.msra.mxu0 0
        %6748 = vmatprep.subr.bf16.mxu0 0
        %6749 = vmatpush1.bf16.msra.mxu0 0
        %6750 = vmatprep.subr.bf16.mxu0 0
        %6751 = vmatpush1.bf16.msra.mxu0 0
        %6752 = vmatprep.mubr.bf16.mxu0 0
        %6753 = vmatmul.mubr.bf16.gmra.mrb[0].mxu0 %v6706
        %v6754 = vpop.f32.mrb[0].mxu0
        %v6755 = vadd.f32 0.0, %v6754
        %v6756 = vpop.f32.mrb[0].mxu0
        %v6757 = vadd.f32 0.0, %v6756
        %v6758 = vpop.f32.mrb[0].mxu0
        %v6759 = vpop.f32.mrb[0].mxu0
        %6760 = vdwg.mxu0
        %6761 = vmatprep.subr.bf16.mxu0 %v6718
        %6762 = vmatpush1.bf16.msra.mxu0 %v6715
        %6763 = vmatprep.subr.bf16.mxu0 0
        %6764 = vmatpush1.bf16.msra.mxu0 0
        %6765 = vmatprep.subr.bf16.mxu0 0
        %6766 = vmatpush1.bf16.msra.mxu0 0
        %6767 = vmatprep.subr.bf16.mxu0 0
        %6768 = vmatpush1.bf16.msra.mxu0 0
        %6769 = vmatprep.subr.bf16.mxu0 0
        %6770 = vmatpush1.bf16.msra.mxu0 0
        %6771 = vmatprep.subr.bf16.mxu0 0
        %6772 = vmatpush1.bf16.msra.mxu0 0
        %6773 = vmatprep.subr.bf16.mxu0 0
        %6774 = vmatpush1.bf16.msra.mxu0 0
        %6775 = vmatprep.subr.bf16.mxu0 0
        %6776 = vmatpush1.bf16.msra.mxu0 0
        %6777 = vmatprep.subr.bf16.mxu0 0
        %6778 = vmatpush1.bf16.msra.mxu0 0
        %6779 = vmatprep.subr.bf16.mxu0 0
        %6780 = vmatpush1.bf16.msra.mxu0 0
        %6781 = vmatprep.subr.bf16.mxu0 0
        %6782 = vmatpush1.bf16.msra.mxu0 0
        %6783 = vmatprep.subr.bf16.mxu0 0
        %6784 = vmatpush1.bf16.msra.mxu0 0
        %6785 = vmatprep.subr.bf16.mxu0 0
        %6786 = vmatpush1.bf16.msra.mxu0 0
        %6787 = vmatprep.subr.bf16.mxu0 0
        %6788 = vmatpush1.bf16.msra.mxu0 0
        %6789 = vmatprep.subr.bf16.mxu0 0
        %6790 = vmatpush1.bf16.msra.mxu0 0
        %6791 = vmatprep.subr.bf16.mxu0 0
        %6792 = vmatpush1.bf16.msra.mxu0 0
        %6793 = vmatprep.mubr.bf16.mxu0 0
        %6794 = vmatmul.mubr.bf16.gmra.mrb[0].mxu0 %v6706
        %v6795 = vpop.f32.mrb[0].mxu0
        %v6796 = vadd.f32 0.0, %v6795
        %v6797 = vpop.f32.mrb[0].mxu0
        %v6798 = vadd.f32 0.0, %v6797
        %v6799 = vpop.f32.mrb[0].mxu0
        %v6800 = vpop.f32.mrb[0].mxu0
        %6801 = vdwg.mxu0
        %v6802 = vadd.f32 %v6642, %v6755
        %v6803 = vadd.f32 %v6644, %v6757
        %v6804 = vadd.f32 %v6683, %v6796
        %v6805 = vadd.f32 %v6685, %v6798
        %v6806 = vadd.f32 %v6432, %v6802
        %v6807 = vadd.f32 %v6433, %v6803
        %v6808 = vadd.f32 %v6434, %v6804
        %v6809 = vadd.f32 %v6435, %v6805
        %v6810 = vld [vmem:[#allocation2 + $0x4] sm:$0xff]
        %v6811 = vld [vmem:[#allocation2 + $0xc] sm:$0xff]
        %v6812 = vld [vmem:[#allocation2 + $0x18] sm:$0x11]
        %v6813 = vld [vmem:[#allocation2 + $0x20] sm:$0x11]
        %s6814 = scalar_lea.vmem %s7, 24
        %v6815 = vld [vmem:[%s6814] sm:$0xf]
        %s6816 = scalar_lea.vmem %s7, 28
        %v6817 = vld [vmem:[%s6816] sm:$0xf]
        %v6822 = vunpack.c.l.b16 %v6810
        %v6823 = vunpack.c.h.b16 %v6810
        %v6824 = vunpack.c.l.b16 %v6811
        %v6825 = vunpack.c.h.b16 %v6811
        %v6826 = vunpack.c.l.b16 %v6812
        %v6827 = vunpack.c.h.b16 %v6812
        %v6828 = vunpack.c.l.b16 %v6813
        %v6829 = vunpack.c.h.b16 %v6813
        %v6830 = vpack.c.b16 %v6826, %v6822
        %v6831 = vpack.c.b16 %v6827, %v6823
        %v6832 = vpack.c.b16 %v6828, %v6824
        %v6833 = vpack.c.b16 %v6829, %v6825
        %6834 = vrot.lane.b32.xlu0 %v6830, 121
        %v6835 = vpop.permute.xlu0 %6834
        %6836 = vrot.lane.b32.xlu0 %v6831, 121
        %v6837 = vpop.permute.xlu0 %6836
        %6838 = vrot.lane.b32.xlu0 %v6832, 121
        %v6839 = vpop.permute.xlu0 %6838
        %6840 = vrot.lane.b32.xlu0 %v6833, 121
        %v6841 = vpop.permute.xlu0 %6840
        %v6842 = vsel %vm3445, %v6835, %v6837
        %v6843 = vsel %vm3445, %v6837, %v6839
        %v6844 = vsel %vm3445, %v6839, %v6841
        %v6846 = vsel %vm6124, %v6817, 0
        %v6849 = vand.u32 %v6842, %v6130
        %v6852 = vand.u32 %v6843, %v6130
        %v6855 = vand.u32 %v6844, %v6130
        %v6858 = vand.u32 %v6841, %v6130
        %6860 = vmatprep.subr.bf16.mxu0 %v6852
        %6861 = vmatpush1.bf16.msra.mxu0 %v6849
        %6862 = vmatprep.subr.bf16.mxu0 0
        %6863 = vmatpush1.bf16.msra.mxu0 0
        %6864 = vmatprep.subr.bf16.mxu0 0
        %6865 = vmatpush1.bf16.msra.mxu0 0
        %6866 = vmatprep.subr.bf16.mxu0 0
        %6867 = vmatpush1.bf16.msra.mxu0 0
        %6868 = vmatprep.subr.bf16.mxu0 0
        %6869 = vmatpush1.bf16.msra.mxu0 0
        %6870 = vmatprep.subr.bf16.mxu0 0
        %6871 = vmatpush1.bf16.msra.mxu0 0
        %6872 = vmatprep.subr.bf16.mxu0 0
        %6873 = vmatpush1.bf16.msra.mxu0 0
        %6874 = vmatprep.subr.bf16.mxu0 0
        %6875 = vmatpush1.bf16.msra.mxu0 0
        %6876 = vmatprep.subr.bf16.mxu0 0
        %6877 = vmatpush1.bf16.msra.mxu0 0
        %6878 = vmatprep.subr.bf16.mxu0 0
        %6879 = vmatpush1.bf16.msra.mxu0 0
        %6880 = vmatprep.subr.bf16.mxu0 0
        %6881 = vmatpush1.bf16.msra.mxu0 0
        %6882 = vmatprep.subr.bf16.mxu0 0
        %6883 = vmatpush1.bf16.msra.mxu0 0
        %6884 = vmatprep.subr.bf16.mxu0 0
        %6885 = vmatpush1.bf16.msra.mxu0 0
        %6886 = vmatprep.subr.bf16.mxu0 0
        %6887 = vmatpush1.bf16.msra.mxu0 0
        %6888 = vmatprep.subr.bf16.mxu0 0
        %6889 = vmatpush1.bf16.msra.mxu0 0
        %6890 = vmatprep.subr.bf16.mxu0 0
        %6891 = vmatpush1.bf16.msra.mxu0 0
        %6892 = vmatprep.mubr.bf16.mxu0 0
        %6893 = vmatmul.mubr.bf16.gmra.mrb[0].mxu0 %v6846
        %v6894 = vpop.f32.mrb[0].mxu0
        %v6895 = vadd.f32 0.0, %v6894
        %v6896 = vpop.f32.mrb[0].mxu0
        %v6897 = vadd.f32 0.0, %v6896
        %v6898 = vpop.f32.mrb[0].mxu0
        %v6899 = vpop.f32.mrb[0].mxu0
        %6900 = vdwg.mxu0
        %6901 = vmatprep.subr.bf16.mxu0 %v6858
        %6902 = vmatpush1.bf16.msra.mxu0 %v6855
        %6903 = vmatprep.subr.bf16.mxu0 0
        %6904 = vmatpush1.bf16.msra.mxu0 0
        %6905 = vmatprep.subr.bf16.mxu0 0
        %6906 = vmatpush1.bf16.msra.mxu0 0
        %6907 = vmatprep.subr.bf16.mxu0 0
        %6908 = vmatpush1.bf16.msra.mxu0 0
        %6909 = vmatprep.subr.bf16.mxu0 0
        %6910 = vmatpush1.bf16.msra.mxu0 0
        %6911 = vmatprep.subr.bf16.mxu0 0
        %6912 = vmatpush1.bf16.msra.mxu0 0
        %6913 = vmatprep.subr.bf16.mxu0 0
        %6914 = vmatpush1.bf16.msra.mxu0 0
        %6915 = vmatprep.subr.bf16.mxu0 0
        %6916 = vmatpush1.bf16.msra.mxu0 0
        %6917 = vmatprep.subr.bf16.mxu0 0
        %6918 = vmatpush1.bf16.msra.mxu0 0
        %6919 = vmatprep.subr.bf16.mxu0 0
        %6920 = vmatpush1.bf16.msra.mxu0 0
        %6921 = vmatprep.subr.bf16.mxu0 0
        %6922 = vmatpush1.bf16.msra.mxu0 0
        %6923 = vmatprep.subr.bf16.mxu0 0
        %6924 = vmatpush1.bf16.msra.mxu0 0
        %6925 = vmatprep.subr.bf16.mxu0 0
        %6926 = vmatpush1.bf16.msra.mxu0 0
        %6927 = vmatprep.subr.bf16.mxu0 0
        %6928 = vmatpush1.bf16.msra.mxu0 0
        %6929 = vmatprep.subr.bf16.mxu0 0
        %6930 = vmatpush1.bf16.msra.mxu0 0
        %6931 = vmatprep.subr.bf16.mxu0 0
        %6932 = vmatpush1.bf16.msra.mxu0 0
        %6933 = vmatprep.mubr.bf16.mxu0 0
        %6934 = vmatmul.mubr.bf16.gmra.mrb[0].mxu0 %v6846
        %v6935 = vpop.f32.mrb[0].mxu0
        %v6936 = vadd.f32 0.0, %v6935
        %v6937 = vpop.f32.mrb[0].mxu0
        %v6938 = vadd.f32 0.0, %v6937
        %v6939 = vpop.f32.mrb[0].mxu0
        %v6940 = vpop.f32.mrb[0].mxu0
        %6941 = vdwg.mxu0
        %6942 = vrot.lane.b32.xlu0 %v6830, 124
        %v6943 = vpop.permute.xlu0 %6942
        %6944 = vrot.lane.b32.xlu0 %v6831, 124
        %v6945 = vpop.permute.xlu0 %6944
        %6946 = vrot.lane.b32.xlu0 %v6832, 124
        %v6947 = vpop.permute.xlu0 %6946
        %6948 = vrot.lane.b32.xlu0 %v6833, 124
        %v6949 = vpop.permute.xlu0 %6948
        %v6950 = vsel %vm3554, %v6943, %v6945
        %v6951 = vsel %vm3554, %v6945, %v6947
        %v6952 = vsel %vm3554, %v6947, %v6949
        %v6954 = vsel %vm6124, %v6815, 0
        %v6957 = vand.u32 %v6950, %v6130
        %v6960 = vand.u32 %v6951, %v6130
        %v6963 = vand.u32 %v6952, %v6130
        %v6966 = vand.u32 %v6949, %v6130
        %6968 = vmatprep.subr.bf16.mxu0 %v6960
        %6969 = vmatpush1.bf16.msra.mxu0 %v6957
        %6970 = vmatprep.subr.bf16.mxu0 0
        %6971 = vmatpush1.bf16.msra.mxu0 0
        %6972 = vmatprep.subr.bf16.mxu0 0
        %6973 = vmatpush1.bf16.msra.mxu0 0
        %6974 = vmatprep.subr.bf16.mxu0 0
        %6975 = vmatpush1.bf16.msra.mxu0 0
        %6976 = vmatprep.subr.bf16.mxu0 0
        %6977 = vmatpush1.bf16.msra.mxu0 0
        %6978 = vmatprep.subr.bf16.mxu0 0
        %6979 = vmatpush1.bf16.msra.mxu0 0
        %6980 = vmatprep.subr.bf16.mxu0 0
        %6981 = vmatpush1.bf16.msra.mxu0 0
        %6982 = vmatprep.subr.bf16.mxu0 0
        %6983 = vmatpush1.bf16.msra.mxu0 0
        %6984 = vmatprep.subr.bf16.mxu0 0
        %6985 = vmatpush1.bf16.msra.mxu0 0
        %6986 = vmatprep.subr.bf16.mxu0 0
        %6987 = vmatpush1.bf16.msra.mxu0 0
        %6988 = vmatprep.subr.bf16.mxu0 0
        %6989 = vmatpush1.bf16.msra.mxu0 0
        %6990 = vmatprep.subr.bf16.mxu0 0
        %6991 = vmatpush1.bf16.msra.mxu0 0
        %6992 = vmatprep.subr.bf16.mxu0 0
        %6993 = vmatpush1.bf16.msra.mxu0 0
        %6994 = vmatprep.subr.bf16.mxu0 0
        %6995 = vmatpush1.bf16.msra.mxu0 0
        %6996 = vmatprep.subr.bf16.mxu0 0
        %6997 = vmatpush1.bf16.msra.mxu0 0
        %6998 = vmatprep.subr.bf16.mxu0 0
        %6999 = vmatpush1.bf16.msra.mxu0 0
        %7000 = vmatprep.mubr.bf16.mxu0 0
        %7001 = vmatmul.mubr.bf16.gmra.mrb[0].mxu0 %v6954
        %v7002 = vpop.f32.mrb[0].mxu0
        %v7003 = vadd.f32 %v6895, %v7002
        %v7004 = vpop.f32.mrb[0].mxu0
        %v7005 = vadd.f32 %v6897, %v7004
        %v7006 = vpop.f32.mrb[0].mxu0
        %v7007 = vpop.f32.mrb[0].mxu0
        %7008 = vdwg.mxu0
        %7009 = vmatprep.subr.bf16.mxu0 %v6966
        %7010 = vmatpush1.bf16.msra.mxu0 %v6963
        %7011 = vmatprep.subr.bf16.mxu0 0
        %7012 = vmatpush1.bf16.msra.mxu0 0
        %7013 = vmatprep.subr.bf16.mxu0 0
        %7014 = vmatpush1.bf16.msra.mxu0 0
        %7015 = vmatprep.subr.bf16.mxu0 0
        %7016 = vmatpush1.bf16.msra.mxu0 0
        %7017 = vmatprep.subr.bf16.mxu0 0
        %7018 = vmatpush1.bf16.msra.mxu0 0
        %7019 = vmatprep.subr.bf16.mxu0 0
        %7020 = vmatpush1.bf16.msra.mxu0 0
        %7021 = vmatprep.subr.bf16.mxu0 0
        %7022 = vmatpush1.bf16.msra.mxu0 0
        %7023 = vmatprep.subr.bf16.mxu0 0
        %7024 = vmatpush1.bf16.msra.mxu0 0
        %7025 = vmatprep.subr.bf16.mxu0 0
        %7026 = vmatpush1.bf16.msra.mxu0 0
        %7027 = vmatprep.subr.bf16.mxu0 0
        %7028 = vmatpush1.bf16.msra.mxu0 0
        %7029 = vmatprep.subr.bf16.mxu0 0
        %7030 = vmatpush1.bf16.msra.mxu0 0
        %7031 = vmatprep.subr.bf16.mxu0 0
        %7032 = vmatpush1.bf16.msra.mxu0 0
        %7033 = vmatprep.subr.bf16.mxu0 0
        %7034 = vmatpush1.bf16.msra.mxu0 0
        %7035 = vmatprep.subr.bf16.mxu0 0
        %7036 = vmatpush1.bf16.msra.mxu0 0
        %7037 = vmatprep.subr.bf16.mxu0 0
        %7038 = vmatpush1.bf16.msra.mxu0 0
        %7039 = vmatprep.subr.bf16.mxu0 0
        %7040 = vmatpush1.bf16.msra.mxu0 0
        %7041 = vmatprep.mubr.bf16.mxu0 0
        %7042 = vmatmul.mubr.bf16.gmra.mrb[0].mxu0 %v6954
        %v7043 = vpop.f32.mrb[0].mxu0
        %v7044 = vadd.f32 %v6936, %v7043
        %v7045 = vpop.f32.mrb[0].mxu0
        %v7046 = vadd.f32 %v6938, %v7045
        %v7047 = vpop.f32.mrb[0].mxu0
        %v7048 = vpop.f32.mrb[0].mxu0
        %7049 = vdwg.mxu0
        %s7050 = scalar_lea.vmem %s7, 32
        %v7051 = vld [vmem:[%s7050] sm:$0xf]
        %7052 = vrot.lane.b32.xlu0 %v6830, 118
        %v7053 = vpop.permute.xlu0 %7052
        %7054 = vrot.lane.b32.xlu0 %v6831, 118
        %v7055 = vpop.permute.xlu0 %7054
        %7056 = vrot.lane.b32.xlu0 %v6832, 118
        %v7057 = vpop.permute.xlu0 %7056
        %7058 = vrot.lane.b32.xlu0 %v6833, 118
        %v7059 = vpop.permute.xlu0 %7058
        %v7060 = vsel %vm3665, %v7053, %v7055
        %v7061 = vsel %vm3665, %v7055, %v7057
        %v7062 = vsel %vm3665, %v7057, %v7059
        %v7064 = vsel %vm6124, %v7051, 0
        %v7067 = vand.u32 %v7060, %v6130
        %v7070 = vand.u32 %v7061, %v6130
        %v7073 = vand.u32 %v7062, %v6130
        %v7076 = vand.u32 %v7059, %v6130
        %7078 = vmatprep.subr.bf16.mxu0 %v7070
        %7079 = vmatpush1.bf16.msra.mxu0 %v7067
        %7080 = vmatprep.subr.bf16.mxu0 0
        %7081 = vmatpush1.bf16.msra.mxu0 0
        %7082 = vmatprep.subr.bf16.mxu0 0
        %7083 = vmatpush1.bf16.msra.mxu0 0
        %7084 = vmatprep.subr.bf16.mxu0 0
        %7085 = vmatpush1.bf16.msra.mxu0 0
        %7086 = vmatprep.subr.bf16.mxu0 0
        %7087 = vmatpush1.bf16.msra.mxu0 0
        %7088 = vmatprep.subr.bf16.mxu0 0
        %7089 = vmatpush1.bf16.msra.mxu0 0
        %7090 = vmatprep.subr.bf16.mxu0 0
        %7091 = vmatpush1.bf16.msra.mxu0 0
        %7092 = vmatprep.subr.bf16.mxu0 0
        %7093 = vmatpush1.bf16.msra.mxu0 0
        %7094 = vmatprep.subr.bf16.mxu0 0
        %7095 = vmatpush1.bf16.msra.mxu0 0
        %7096 = vmatprep.subr.bf16.mxu0 0
        %7097 = vmatpush1.bf16.msra.mxu0 0
        %7098 = vmatprep.subr.bf16.mxu0 0
        %7099 = vmatpush1.bf16.msra.mxu0 0
        %7100 = vmatprep.subr.bf16.mxu0 0
        %7101 = vmatpush1.bf16.msra.mxu0 0
        %7102 = vmatprep.subr.bf16.mxu0 0
        %7103 = vmatpush1.bf16.msra.mxu0 0
        %7104 = vmatprep.subr.bf16.mxu0 0
        %7105 = vmatpush1.bf16.msra.mxu0 0
        %7106 = vmatprep.subr.bf16.mxu0 0
        %7107 = vmatpush1.bf16.msra.mxu0 0
        %7108 = vmatprep.subr.bf16.mxu0 0
        %7109 = vmatpush1.bf16.msra.mxu0 0
        %7110 = vmatprep.mubr.bf16.mxu0 0
        %7111 = vmatmul.mubr.bf16.gmra.mrb[0].mxu0 %v7064
        %v7112 = vpop.f32.mrb[0].mxu0
        %v7113 = vadd.f32 0.0, %v7112
        %v7114 = vpop.f32.mrb[0].mxu0
        %v7115 = vadd.f32 0.0, %v7114
        %v7116 = vpop.f32.mrb[0].mxu0
        %v7117 = vpop.f32.mrb[0].mxu0
        %7118 = vdwg.mxu0
        %7119 = vmatprep.subr.bf16.mxu0 %v7076
        %7120 = vmatpush1.bf16.msra.mxu0 %v7073
        %7121 = vmatprep.subr.bf16.mxu0 0
        %7122 = vmatpush1.bf16.msra.mxu0 0
        %7123 = vmatprep.subr.bf16.mxu0 0
        %7124 = vmatpush1.bf16.msra.mxu0 0
        %7125 = vmatprep.subr.bf16.mxu0 0
        %7126 = vmatpush1.bf16.msra.mxu0 0
        %7127 = vmatprep.subr.bf16.mxu0 0
        %7128 = vmatpush1.bf16.msra.mxu0 0
        %7129 = vmatprep.subr.bf16.mxu0 0
        %7130 = vmatpush1.bf16.msra.mxu0 0
        %7131 = vmatprep.subr.bf16.mxu0 0
        %7132 = vmatpush1.bf16.msra.mxu0 0
        %7133 = vmatprep.subr.bf16.mxu0 0
        %7134 = vmatpush1.bf16.msra.mxu0 0
        %7135 = vmatprep.subr.bf16.mxu0 0
        %7136 = vmatpush1.bf16.msra.mxu0 0
        %7137 = vmatprep.subr.bf16.mxu0 0
        %7138 = vmatpush1.bf16.msra.mxu0 0
        %7139 = vmatprep.subr.bf16.mxu0 0
        %7140 = vmatpush1.bf16.msra.mxu0 0
        %7141 = vmatprep.subr.bf16.mxu0 0
        %7142 = vmatpush1.bf16.msra.mxu0 0
        %7143 = vmatprep.subr.bf16.mxu0 0
        %7144 = vmatpush1.bf16.msra.mxu0 0
        %7145 = vmatprep.subr.bf16.mxu0 0
        %7146 = vmatpush1.bf16.msra.mxu0 0
        %7147 = vmatprep.subr.bf16.mxu0 0
        %7148 = vmatpush1.bf16.msra.mxu0 0
        %7149 = vmatprep.subr.bf16.mxu0 0
        %7150 = vmatpush1.bf16.msra.mxu0 0
        %7151 = vmatprep.mubr.bf16.mxu0 0
        %7152 = vmatmul.mubr.bf16.gmra.mrb[0].mxu0 %v7064
        %v7153 = vpop.f32.mrb[0].mxu0
        %v7154 = vadd.f32 0.0, %v7153
        %v7155 = vpop.f32.mrb[0].mxu0
        %v7156 = vadd.f32 0.0, %v7155
        %v7157 = vpop.f32.mrb[0].mxu0
        %v7158 = vpop.f32.mrb[0].mxu0
        %7159 = vdwg.mxu0
        %v7160 = vadd.f32 %v7003, %v7113
        %v7161 = vadd.f32 %v7005, %v7115
        %v7162 = vadd.f32 %v7044, %v7154
        %v7163 = vadd.f32 %v7046, %v7156
        %v7164 = vadd.f32 %v6806, %v7160
        %v7165 = vadd.f32 %v6807, %v7161
        %v7166 = vadd.f32 %v6808, %v7162
        %v7167 = vadd.f32 %v6809, %v7163
        %7169 = vset.pattern.permute.xlu0 0
        %7170 = vperm.xlu0 %7169, %v6089
        %v7171 = vpop.permute.xlu0 %7170
        %v7173 = vadd.f32 %v7164, %v7171
        %v7174 = vadd.f32 %v7165, %v7171
        %v7175 = vadd.f32 %v7166, %v7171
        %v7176 = vadd.f32 %v7167, %v7171
        %v7177 = vmax.f32 %v7173, 0.0
        %v7178 = vmax.f32 %v7174, 0.0
        %v7179 = vmax.f32 %v7175, 0.0
        %v7180 = vmax.f32 %v7176, 0.0
        %v7181 = vmul.f32 %v7177, %v1508
        %v7182 = vmul.f32 %v7178, %v1512
        %v7183 = vmul.f32 %v7179, %v1516
        %v7184 = vmul.f32 %v7180, %v1520
        %v7185 = vpack.c.bf16 %v7181, %v7181
        %v7186 = vpack.c.bf16 %v7182, %v7182
        %v7187 = vpack.c.bf16 %v7183, %v7183
        %v7188 = vpack.c.bf16 %v7184, %v7184
        %v7193 = vunpack.c.l.b16 %v7185
        %v7194 = vunpack.c.l.b16 %v7186
        %v7195 = vunpack.c.l.b16 %v7187
        %v7196 = vunpack.c.l.b16 %v7188
        %v7197 = vpack.c.b16 %v7194, %v7193
        %v7198 = vpack.c.b16 %v7196, %v7195
        %v7200 = vshll.u32 %v7197, 16
        %v7203 = vshll.u32 %v7198, 16
        %7205 = vrot.lane.b32.xlu0 %v7200, 69
        %v7206 = vpop.permute.xlu0 %7205
        %7207 = vrot.lane.b32.xlu0 %v7203, 69
        %v7208 = vpop.permute.xlu0 %7207
        %v7209 = vrot.slane %v7206, 4
        %v7210 = vrot.slane %v7208, 4
        %v7211 = vsel %vm1551, %v7209, %v7206
        %v7212 = vsel %vm1553, %v7209, %v7210
        %v7213 = vsel %vm1551, %v7212, %v7208
        %vm7217 = vsmask.f32 7938
        %vm7218 = vmand %vm6067, %vm7217
        %vm7219 = vsmask.f32 7954
        %vm7220 = vmand %vm6070, %vm7219
        %vm7221 = vmor %vm7220, %vm7218
        %v7222 = vsel %vm7221, %v7211, %v6439
        %7223 = vst [vmem:[#allocation2 + $0x14] sm:$0x11] %v7222
        %vm7224 = vmand %vm6077, %vm7217
        %vm7225 = vmor %vm7220, %vm7224
        %v7226 = vld [vmem:[#allocation2 + $0x1c] sm:$0x11]
        %v7227 = vsel %vm7225, %v7213, %v7226
        %7228 = vst [vmem:[#allocation2 + $0x1c] sm:$0x11] %v7227
        %vm7229 = vmand %vm6083, %vm7217
        %v7230 = vld [vmem:[#allocation2 + $0x24] sm:$0x1]
        %v7231 = vsel %vm7229, %v7210, %v7230
        %7232 = vst [vmem:[#allocation2 + $0x24] sm:$0x1] %v7231
        %v7233 = vld [vmem:[#allocation2] sm:$0x33]
        %v7234 = vld [vmem:[#allocation2 + $0x8] sm:$0x33]
        %v7235 = vld [vmem:[#allocation2 + $0x10] sm:$0x3]
        %v7236 = vunpack.c.l.bf16 %v7233
        %v7237 = vunpack.c.h.bf16 %v7233
        %v7238 = vunpack.c.l.bf16 %v7234
        %v7239 = vunpack.c.h.bf16 %v7234
        %v7240 = vunpack.c.l.bf16 %v7235
        %vm7241 = vcmp.gt.f32.partialorder %v426, 0.5
        %v7242 = vsel %vm7241, 1, 0
        %v7243 = vlaneseq
        %v7244 = vshrl.u32 %v7243, 7
        %v7245 = vsub.s32 0, %v7244
        %v7246 = vrot.slane %v7242, %v7245
        %v7247 = vlaneseq
        %v7248 = vshrl.u32 %v7247, 7
        %v7249 = vsub.s32 1, %v7248
        %v7250 = vrot.slane %v7242, %v7249
        %v7251 = vlaneseq
        %v7252 = vshrl.u32 %v7251, 7
        %v7253 = vsub.s32 2, %v7252
        %v7254 = vrot.slane %v7242, %v7253
        %v7255 = vlaneseq
        %v7256 = vshrl.u32 %v7255, 7
        %v7257 = vsub.s32 3, %v7256
        %v7258 = vrot.slane %v7242, %v7257
        %vm7259 = vcmp.eq.s32.totalorder %v7246, 1
        %vm7260 = vcmp.eq.s32.totalorder %v7250, 1
        %vm7261 = vcmp.eq.s32.totalorder %v7254, 1
        %vm7262 = vcmp.eq.s32.totalorder %v7258, 1
        %7268 = vrot.lane.b32.xlu0 %v7236, 59
        %v7269 = vpop.permute.xlu0 %7268
        %7270 = vrot.lane.b32.xlu0 %v7237, 59
        %v7271 = vpop.permute.xlu0 %7270
        %7272 = vrot.lane.b32.xlu0 %v7238, 59
        %v7273 = vpop.permute.xlu0 %7272
        %7274 = vrot.lane.b32.xlu0 %v7239, 59
        %v7275 = vpop.permute.xlu0 %7274
        %7276 = vrot.lane.b32.xlu0 %v7240, 59
        %v7277 = vpop.permute.xlu0 %7276
        %vm7278 = vcmask 482304
        %v7279 = vsel %vm7278, %v7269, %v7271
        %v7280 = vsel %vm7278, %v7271, %v7273
        %v7281 = vsel %vm7278, %v7273, %v7275
        %v7282 = vsel %vm7278, %v7275, %v7277
        %v7287 = vsel %vm7259, %v7279, -3.4028235e+38
        %v7288 = vsel %vm7260, %v7280, -3.4028235e+38
        %v7289 = vsel %vm7261, %v7281, -3.4028235e+38
        %v7290 = vsel %vm7262, %v7282, -3.4028235e+38
        %v7291 = vsel %vm3879, %v7287, -inf
        %v7292 = vsel %vm3879, %v7288, -inf
        %v7293 = vsel %vm3879, %v7289, -inf
        %vm7294 = vcmask 814080
        %v7295 = vsel %vm7294, %v7290, -inf
        %v7296 = vmax.f32 %v7291, %v7292
        %v7297 = vmax.f32 %v7293, %v7295
        %v7298 = vmax.f32 %v7296, %v7297
        %7299 = vmax.xlane.f32.xlu0 %v7298
        %v7300 = vpop.xlane.xlu0 %7299
        %v7301 = vld [vmem:[#allocation2] sm:$0xcc]
        %v7302 = vld [vmem:[#allocation2 + $0x8] sm:$0xcc]
        %v7303 = vld [vmem:[#allocation2 + $0x10] sm:$0xc]
        %v7304 = vld [vmem:[#allocation2 + $0x14] sm:$0x11]
        %v7305 = vld [vmem:[#allocation2 + $0x1c] sm:$0x11]
        %v7306 = vld [vmem:[#allocation2 + $0x24] sm:$0x1]
        %v7307 = vunpack.c.l.bf16 %v7301
        %v7308 = vunpack.c.h.bf16 %v7301
        %v7309 = vunpack.c.l.bf16 %v7302
        %v7310 = vunpack.c.h.bf16 %v7302
        %v7311 = vunpack.c.l.bf16 %v7303
        %v7312 = vunpack.c.l.bf16 %v7304
        %v7313 = vunpack.c.h.bf16 %v7304
        %v7314 = vunpack.c.l.bf16 %v7305
        %v7315 = vunpack.c.h.bf16 %v7305
        %v7316 = vunpack.c.l.bf16 %v7306
        %vm7317 = vcmask 1048108
        %v7318 = vsel %vm7317, %v7307, -inf
        %vm7319 = vcmask 1047556
        %v7320 = vsel %vm7319, %v7308, -inf
        %v7321 = vsel %vm7319, %v7309, -inf
        %v7322 = vmax.f32 %v7318, %v7321
        %v7323 = vsel %vm7319, %v7310, -inf
        %v7324 = vmax.f32 %v7320, %v7323
        %vm7325 = vcmask 334852
        %v7326 = vsel %vm7325, %v7311, -inf
        %v7327 = vmax.f32 %v7322, %v7326
        %v7328 = vmax.f32 %v7327, %v7324
        %7329 = vmax.xlane.f32.xlu0 %v7328
        %v7330 = vpop.xlane.xlu0 %7329
        %vm7331 = vcmask 1041960
        %v7332 = vsel %vm7331, %v7312, -inf
        %v7333 = vsel %vm466, %v7313, -inf
        %v7334 = vsel %vm466, %v7314, -inf
        %v7335 = vmax.f32 %v7332, %v7334
        %v7336 = vsel %vm466, %v7315, -inf
        %v7337 = vmax.f32 %v7333, %v7336
        %vm7338 = vcmask 328704
        %v7339 = vsel %vm7338, %v7316, -inf
        %v7340 = vmax.f32 %v7335, %v7339
        %v7341 = vmax.f32 %v7340, %v7337
        %7342 = vmax.xlane.f32.xlu0 %v7341
        %v7343 = vpop.xlane.xlu0 %7342
        %v7344 = vld [vmem:[%s9] sm:$0xf]
        %v7345 = vmul.f32 %v7344, %v7300
        %v7346 = vsel %vm3879, %v7345, 0.0
        %v7347 = vrot.slane %v7346, 4
        %v7348 = vadd.f32 %v7346, %v7347
        %v7349 = vrot.slane %v7348, 2
        %v7350 = vadd.f32 %v7348, %v7349
        %v7351 = vrot.slane %v7350, 1
        %v7352 = vadd.f32 %v7350, %v7351
        %v7353 = vld [vmem:[%s9 + $0x4] sm:$0x3f]
        %v7356 = vrot.slane %v7330, 4
        %v7357 = vrot.slane %v7343, 4
        %v7358 = vsel %vm3879, %v7356, %v7357
        %v7360 = vmul.f32 %v7353, %v7358
        %vm7361 = vcmask 1045504
        %v7362 = vsel %vm7361, %v7360, 0.0
        %v7363 = vrot.slane %v7362, 4
        %v7364 = vadd.f32 %v7362, %v7363
        %v7365 = vrot.slane %v7364, 2
        %v7366 = vadd.f32 %v7364, %v7365
        %v7367 = vrot.slane %v7366, 1
        %v7368 = vadd.f32 %v7366, %v7367
        %v7369 = vadd.f32 %v7352, %v7368
        %v7370 = vld [vmem:[%s10] sm:$0x1]
        %v7371 = vadd.f32 %v7369, %v7370
        %7372 = vst [vmem:[%s378] sm:$0x1] %v7371
        %s7373 = sand.u32 %s269, 1
        %s7374 = scalar_lea.sflag [#allocation4], %s7373
        %s7375 = sand.u32 %s269, 1
        %s7376 = scalar_lea.vmem [#allocation3], %s7375
        // Predicated region
        $region65: #{tpu_custom_call.1} parent=63 // pred_check
          %p7377 = pneg %p279
        $region66: #{tpu_custom_call.1} parent=63 // pred_check_branch
          %7379 = sbr.rel (%p7377) target = $region68
        $region67: #{tpu_custom_call.1} parent=63 // pred_region
          %s7381 = ssub.s32 16, 16
          %7382 = vsyncadd %s7374, %s7381
          %s7383 = smul.addr %s25, 16
          %s7384 = scalar_lea.hbm %s11, %s7383
          %s7386 = sshll.u32 %s7376, 4
          %s7387 = int_to_ptr.vmem [resolvable:$true] %s7386
          %7389 = dma.vmem_to_hbm [thread:$0]  %s7387, 16, %s7384, %s7374
        $region68: #{tpu_custom_call.1} parent=63 // pred_fallthru
          _
      $region64: #{tpu_custom_call.1} parent=5 // pred_fallthru
        _
      %p7390 = scmp.le.s32.totalorder 2, %s20
      // Predicated region
      $region69: #{tpu_custom_call.1} parent=5 // pred_check
        %p7391 = pneg %p7390
      $region70: #{tpu_custom_call.1} parent=5 // pred_check_branch
        %7393 = sbr.rel (%p7391) target = $region72
      $region71: #{tpu_custom_call.1} parent=5 // pred_region
        %s7394 = ssub.s32 %s20, 2
        // Predicated region
        $region73: #{tpu_custom_call.1} parent=71 // pred_check
          %p7395 = pneg %p285
        $region74: #{tpu_custom_call.1} parent=71 // pred_check_branch
          %7397 = sbr.rel (%p7395) target = $region76
        $region75: #{tpu_custom_call.1} parent=71 // pred_region
          %s7398 = sand.u32 %s270, 1
          %s7399 = scalar_lea.sflag [#allocation4], %s7398
          %s7400 = sand.u32 %s270, 1
          %s7401 = scalar_lea.vmem [#allocation3], %s7400
          %7402 = dma.done %s7399, 16
        $region76: #{tpu_custom_call.1} parent=71 // pred_fallthru
          _
      $region72: #{tpu_custom_call.1} parent=5 // pred_fallthru
        _
    $region6: #{tpu_custom_call.1} parent=1 // loop_footer
      %s24 = sadd.s32 1, %s20
    $region7: #{tpu_custom_call.1} parent=1 // loop_footer_branch
      %19 = sbr.rel target = $region3
    $region8: #{tpu_custom_call.1} parent=1 // loop_exit
      _
    %7403 = vsyncpa [#allocation4], 1
    %s7404 = scalar_lea.sflag [#allocation4], 1
    %7405 = vsyncpa %s7404, 1

</llo_original>
